<compile_context>
chip_gen: v7x
topology: tpu7x:2x2x1
jax: 0.10.0
libtpu: 0.0.40
codegen_flags: <defaults>
</compile_context>

<pallas_src>
import math
import functools

import jax
import jax.numpy as jnp
from jax import lax
from jax.experimental import pallas as pl
from jax.experimental.pallas import tpu as pltpu


# ----------------------------------------------------------------------------
# helpers
# ----------------------------------------------------------------------------
def _rup(n, m):
    return ((n + m - 1) // m) * m


def _vmem_cap_bytes():
    try:
        return int(pltpu.get_tpu_info().vmem_capacity_bytes)
    except Exception:
        return 64 << 20


_VMEM_CAP = _vmem_cap_bytes()


def _vmem_limit(est_bytes):
    cap = max((_VMEM_CAP * 3) // 4, 16 << 20)
    return int(min(max(2 * est_bytes + (8 << 20), 24 << 20), cap))


def _row_tile(n, cap):
    """Largest multiple-of-8 divisor of n that is <= cap, else n (full dim)."""
    if n <= cap:
        return n
    for c in range(cap, 7, -1):
        if n % c == 0 and c % 8 == 0:
            return c
    return n


# ----------------------------------------------------------------------------
# Kernel 1: LayerNorm + in_proj (rows = B*L folded, bf16 matmuls, two outputs)
# ----------------------------------------------------------------------------
def _ln_inproj_kernel(x_ref, lnw_ref, lnb_ref, wx_ref, wz_ref, ox_ref, oz_ref):
    x = x_ref[...]                                       # (RT, C) f32
    mu = jnp.mean(x, axis=-1, keepdims=True)
    xc = x - mu
    var = jnp.mean(xc * xc, axis=-1, keepdims=True)
    xn = xc * lax.rsqrt(var + 1e-5)
    y = (xn * lnw_ref[...] + lnb_ref[...]).astype(jnp.bfloat16)
    ox_ref[...] = jnp.dot(y, wx_ref[...],
                          preferred_element_type=jnp.float32).astype(ox_ref.dtype)
    oz_ref[...] = jnp.dot(y, wz_ref[...],
                          preferred_element_type=jnp.float32).astype(oz_ref.dtype)


def ln_inproj(x2d, lnw, lnb, win_x, win_z):
    BL, C = x2d.shape
    Di = win_x.shape[1]
    RT = _row_tile(BL, 512)
    cpad, dpad = _rup(C, 128), _rup(Di, 128)
    est = 2 * RT * cpad * 4 + 4 * RT * dpad * 2 + 2 * cpad * dpad * 2 + (1 << 20)
    return pl.pallas_call(
        _ln_inproj_kernel,
        out_shape=(jax.ShapeDtypeStruct((BL, Di), jnp.bfloat16),
                   jax.ShapeDtypeStruct((BL, Di), jnp.bfloat16)),
        grid=(BL // RT,),
        in_specs=[
            pl.BlockSpec((RT, C), lambda i: (i, 0)),
            pl.BlockSpec((1, C), lambda i: (0, 0)),
            pl.BlockSpec((1, C), lambda i: (0, 0)),
            pl.BlockSpec((C, Di), lambda i: (0, 0)),
            pl.BlockSpec((C, Di), lambda i: (0, 0)),
        ],
        out_specs=(pl.BlockSpec((RT, Di), lambda i: (i, 0)),
                   pl.BlockSpec((RT, Di), lambda i: (i, 0))),
        compiler_params=pltpu.CompilerParams(
            dimension_semantics=("parallel",),
            vmem_limit_bytes=_vmem_limit(est)),
    )(x2d, lnw, lnb, win_x, win_z)


# ----------------------------------------------------------------------------
# Kernel 2: per-direction Mamba inner (causal conv + selective scan + gating),
#           chunked over L with h / conv-halo carried in VMEM scratch.
# ----------------------------------------------------------------------------
def _mamba_dir_kernel(x_ref, z_ref, convw_ref, convb_ref, wx_ref, dtw_ref,
                      dtb_ref, At_ref, D_ref, y_ref,
                      dA_scr, dBu_scr, h_scr, prev_scr, *, R, N, K, seg):
    c = pl.program_id(2)

    @pl.when(c == 0)
    def _init():
        h_scr[...] = jnp.zeros_like(h_scr)
        prev_scr[...] = jnp.zeros_like(prev_scr)

    u = x_ref[0, 0].astype(jnp.float32)                  # (TC, Di) raw conv input
    z = z_ref[0, 0].astype(jnp.float32)                  # (TC, Di) gate
    TC, Di = u.shape
    convw = convw_ref[0]                                 # (K, Di)
    prev = prev_scr[...]                                 # previous chunk (raw), zeros at c==0

    # --- causal depthwise conv1d (kernel K, padding K-1) via roll shifts + halo
    row = lax.broadcasted_iota(jnp.int32, (TC, Di), 0)
    acc = u * convw[K - 1:K, :]
    for k in range(K - 1):
        sh = K - 1 - k                                   # shift 1..K-1
        cur_r = pltpu.roll(u, shift=sh, axis=0)          # u[t - sh]  (wrapped)
        prv_r = pltpu.roll(prev, shift=sh, axis=0)       # prev[TC - sh + t] at t < sh
        shifted = jnp.where(row >= sh, cur_r, prv_r)
        acc = acc + shifted * convw[k:k + 1, :]
    prev_scr[...] = u                                    # conv halo for next chunk
    xconv = acc + convb_ref[0]
    xconv = xconv * jax.nn.sigmoid(xconv)                # SiLU

    # --- fused x_proj: one bf16 matmul, segments lane-aligned at multiples of `seg`
    xdbl = jnp.dot(xconv.astype(jnp.bfloat16), wx_ref[0],
                   preferred_element_type=jnp.float32)   # (TC, 2*seg + N)
    dt_pre = xdbl[:, :R]
    xB = xdbl[:, seg:seg + N]
    xC = xdbl[:, 2 * seg:2 * seg + N]

    # --- dt_proj (MXU dot) + softplus
    delta = jnp.dot(dt_pre, dtw_ref[0], preferred_element_type=jnp.float32)
    delta = jax.nn.softplus(delta + dtb_ref[0])          # (TC, Di)

    # --- selective scan in (t, N, Di) layout: d_inner on the 128-lane axis
    At = At_ref[0]                                       # (N, Di) = (-exp(A_log)).T
    dA_scr[...] = jnp.exp(delta[:, None, :] * At[None, :, :])        # (TC, N, Di)
    dBu_scr[...] = (delta * xconv)[:, None, :] * xB[:, :, None]      # (TC, N, Di)

    unroll = 8 if TC % 8 == 0 else 1

    def body(i, h):
        base = i * unroll
        for j in range(unroll):
            t = base + j
            h = dA_scr[t] * h + dBu_scr[t]
            dBu_scr[t] = h                               # store h in-place (reuse dBu)
        return h

    h_scr[...] = lax.fori_loop(0, TC // unroll, body, h_scr[...])

    ycore = jnp.sum(dBu_scr[...] * xC[:, :, None], axis=1)           # (TC, Di)
    y = ycore + xconv * D_ref[0]
    y = y * (z * jax.nn.sigmoid(z))                      # gate with SiLU(z)
    y_ref[0, 0] = y.astype(y_ref.dtype)


def mamba_inner_all(x_all, z_all, *, conv_w, conv_b, wx_packed, dtw_t, dtb, At, D,
                    R, N, seg):
    nd, B, L, Di = x_all.shape
    K = conv_w.shape[1]
    chunk_cap = 512 if _VMEM_CAP >= (96 << 20) else 256  # v5e/v6e bigger chunks than v7x
    chunk = _row_tile(L, chunk_cap)
    assert chunk >= K, "sequence chunk must cover the conv kernel"
    nc = L // chunk

    kern = functools.partial(_mamba_dir_kernel, R=R, N=N, K=K, seg=seg)

    def wspec(shape):
        return pl.BlockSpec((1,) + shape,
                            lambda d, b, c: (d,) + (0,) * len(shape))

    npad, dpad = _rup(N, 8), _rup(Di, 128)
    est = ((2 * chunk * npad + npad + chunk) * dpad * 4            # scratch
           + 3 * 2 * chunk * dpad * 2                              # x/z/y blocks (bf16)
           + (K + 3 + npad) * dpad * 4                             # small f32 params
           + dpad * _rup(2 * seg + N, 128) * 2 + _rup(R, 8) * dpad * 4)

    return pl.pallas_call(
        kern,
        out_shape=jax.ShapeDtypeStruct((nd, B, L, Di), jnp.bfloat16),
        grid=(nd, B, nc),
        in_specs=[
            pl.BlockSpec((1, 1, chunk, Di), lambda d, b, c: (d, b, c, 0)),
            pl.BlockSpec((1, 1, chunk, Di), lambda d, b, c: (d, b, c, 0)),
            wspec((K, Di)),                  # conv1d depthwise weight
            wspec((1, Di)),                  # conv1d bias
            wspec((Di, 2 * seg + N)),        # fused x_proj weight (bf16, padded segments)
            wspec((R, Di)),                  # dt_proj weight (transposed)
            wspec((1, Di)),                  # dt_proj bias
            wspec((N, Di)),                  # A^T = (-exp(A_log))^T
            wspec((1, Di)),                  # D
        ],
        out_specs=pl.BlockSpec((1, 1, chunk, Di), lambda d, b, c: (d, b, c, 0)),
        scratch_shapes=[
            pltpu.VMEM((chunk, N, Di), jnp.float32),     # dA
            pltpu.VMEM((chunk, N, Di), jnp.float32),     # dBu -> h (in place)
            pltpu.VMEM((N, Di), jnp.float32),            # carried scan state h
            pltpu.VMEM((chunk, Di), jnp.float32),        # previous chunk (conv halo)
        ],
        compiler_params=pltpu.CompilerParams(
            dimension_semantics=("parallel", "parallel", "arbitrary"),
            vmem_limit_bytes=_vmem_limit(est)),
    )(x_all, z_all, conv_w, conv_b, wx_packed, dtw_t, dtb, At, D)


# ----------------------------------------------------------------------------
# Kernel 3: sum of 3 directions + out_proj (rows = B*L folded, bf16 matmul)
# ----------------------------------------------------------------------------
def _outproj_kernel(y_ref, w_ref, o_ref):
    ys = (y_ref[0].astype(jnp.float32) + y_ref[1].astype(jnp.float32)
          + y_ref[2].astype(jnp.float32))
    o_ref[...] = jnp.dot(ys.astype(jnp.bfloat16), w_ref[...],
                         preferred_element_type=jnp.float32)


def out_proj(y_stack2d, wout_t):
    nd, BL, Di = y_stack2d.shape
    C = wout_t.shape[1]
    RT = _row_tile(BL, 512)
    cpad, dpad = _rup(C, 128), _rup(Di, 128)
    est = 2 * 3 * RT * dpad * 2 + 2 * RT * cpad * 4 + dpad * cpad * 2 + (1 << 20)
    return pl.pallas_call(
        _outproj_kernel,
        out_shape=jax.ShapeDtypeStruct((BL, C), jnp.float32),
        grid=(BL // RT,),
        in_specs=[
            pl.BlockSpec((nd, RT, Di), lambda i: (0, i, 0)),
            pl.BlockSpec((Di, C), lambda i: (0, 0)),
        ],
        out_specs=pl.BlockSpec((RT, C), lambda i: (i, 0)),
        compiler_params=pltpu.CompilerParams(
            dimension_semantics=("parallel",),
            vmem_limit_bytes=_vmem_limit(est)),
    )(y_stack2d, wout_t)


# ----------------------------------------------------------------------------
# Plain-JAX glue: pooling, permutations, trilinear upsample, residual
# ----------------------------------------------------------------------------
def _upsample_linear_axis(x, axis, scale):
    # Matches nn.Upsample(mode='*linear', align_corners=False) per-axis.
    n_in = x.shape[axis]
    n_out = n_in * scale
    out_idx = jnp.arange(n_out, dtype=jnp.float32)
    src = (out_idx + 0.5) / scale - 0.5
    src = jnp.clip(src, 0.0, float(n_in - 1))
    lo = jnp.floor(src).astype(jnp.int32)
    hi = jnp.minimum(lo + 1, n_in - 1)
    w = src - lo.astype(jnp.float32)
    x_lo = jnp.take(x, lo, axis=axis)
    x_hi = jnp.take(x, hi, axis=axis)
    shp = [1] * x.ndim
    shp[axis] = n_out
    w = w.reshape(shp)
    return x_lo * (1.0 - w) + x_hi * w


def upsample_trilinear(x, p):
    for ax in (2, 3, 4):
        x = _upsample_linear_axis(x, ax, p)
    return x


def tri_window_mamba_forward(x, params, *, p, num_slices):
    B, C, Z, H, W = x.shape
    x = x.astype(jnp.float32)
    pooled = (Z % p == 0) and (H % p == 0) and (W % p == 0)
    if pooled:
        x_div = x.reshape(B, C, Z // p, p, H // p, p, W // p, p).mean(axis=(3, 5, 7))
    else:
        x_div = x
    NZ, NH, NW = x_div.shape[2:]
    L = NZ * NH * NW
    x_flat = jnp.swapaxes(x_div.reshape(B, C, L), 1, 2)          # (B, L, C)

    Di = params["wout_t"].shape[0]
    R = params["w_dt_t"].shape[2]
    N = params["w_B_t"].shape[2]

    # ---- packed / transposed / bf16 parameter views
    win = params["win_t"].astype(jnp.bfloat16)                   # (C, 2*Di)
    win_x, win_z = win[:, :Di], win[:, Di:]
    seg = max(128, _rup(R, 128), _rup(N, 128))                   # lane-aligned segments
    wx_packed = jnp.zeros((3, Di, 2 * seg + N), jnp.float32)
    wx_packed = wx_packed.at[:, :, :R].set(params["w_dt_t"])
    wx_packed = wx_packed.at[:, :, seg:seg + N].set(params["w_B_t"])
    wx_packed = wx_packed.at[:, :, 2 * seg:2 * seg + N].set(params["w_C_t"])
    wx_packed = wx_packed.astype(jnp.bfloat16)
    At = jnp.swapaxes(params["A"], 1, 2)                         # (3, N, Di)
    wout = params["wout_t"].astype(jnp.bfloat16)

    # ---- kernel 1: LayerNorm + in_proj
    x2d, z2d = ln_inproj(x_flat.reshape(B * L, C),
                         params["ln_w"], params["ln_b"], win_x, win_z)
    x_part = x2d.reshape(B, L, Di)
    z_part = z2d.reshape(B, L, Di)

    # ---- scan-direction permutations (forward / backward / inter-slice), bf16
    ns = num_slices
    M = L // ns

    def slc_perm(a):      # chunk into `ns` slices, interleave
        return a.reshape(B, ns, M, Di).swapaxes(1, 2).reshape(B, L, Di)

    def slc_unperm(a):    # inverse of slc_perm
        return a.reshape(B, M, ns, Di).swapaxes(1, 2).reshape(B, L, Di)

    x_all = jnp.stack([x_part, x_part[:, ::-1], slc_perm(x_part)], axis=0)
    z_all = jnp.stack([z_part, z_part[:, ::-1], slc_perm(z_part)], axis=0)

    # ---- kernel 2: tri-directional causal conv + selective scan + gating
    y_all = mamba_inner_all(
        x_all, z_all,
        conv_w=params["conv_w"], conv_b=params["conv_b"], wx_packed=wx_packed,
        dtw_t=params["dtw_t"], dtb=params["dtb"], At=At, D=params["D"],
        R=R, N=N, seg=seg)                                       # (3, B, L, Di) bf16

    y_stack = jnp.stack([y_all[0], y_all[1][:, ::-1], slc_unperm(y_all[2])], axis=0)

    # ---- kernel 3: combine directions + out_proj
    out2d = out_proj(y_stack.reshape(3, B * L, Di), wout)        # (B*L, C) f32
    x_out = jnp.swapaxes(out2d.reshape(B, L, C), 1, 2).reshape(B, C, NZ, NH, NW)
    if pooled:
        x_out = upsample_trilinear(x_out, p)
    # TODO(synk): AvgPool3d / trilinear upsample / scan-order permutations stay XLA glue.
    return x_out + x


# ----------------------------------------------------------------------------
# Deterministic parameter init (shapes follow Mamba(d_model, d_state, d_conv, expand))
# ----------------------------------------------------------------------------
def init_params(key, dim, d_state, d_conv, expand):
    d_inner = expand * dim
    dt_rank = math.ceil(dim / 16)
    ks = jax.random.split(key, 10)

    def rnd(i, shape, s=0.1):
        return (s * jax.random.normal(ks[i], shape)).astype(jnp.float32)

    params = {
        "ln_w": jnp.ones((1, dim), jnp.float32),
        "ln_b": jnp.zeros((1, dim), jnp.float32),
        "win_t": rnd(0, (dim, 2 * d_inner)),                 # in_proj.weight^T
        # per-direction (forward / backward / slice) parameters, stacked on dim 0
        "conv_w": rnd(1, (3, d_conv, d_inner)),              # conv1d.weight[:,0,:].T
        "conv_b": rnd(2, (3, 1, d_inner)),
        "w_dt_t": rnd(3, (3, d_inner, dt_rank)),             # x_proj dt rows ^T
        "w_B_t": rnd(4, (3, d_inner, d_state)),              # x_proj B rows ^T
        "w_C_t": rnd(5, (3, d_inner, d_state)),              # x_proj C rows ^T
        "dtw_t": rnd(6, (3, dt_rank, d_inner)),              # dt_proj.weight^T
        "dtb": rnd(7, (3, 1, d_inner)) + 0.01,               # dt_proj.bias
        "wout_t": rnd(8, (d_inner, dim)),                    # out_proj.weight^T
        "D": jnp.ones((3, 1, d_inner), jnp.float32),
    }
    # A = -exp(A_log), A_log initialized as log(1..d_state) per channel (Mamba default)
    A_row = jnp.arange(1, d_state + 1, dtype=jnp.float32)
    A = -jnp.tile(A_row[None, :], (d_inner, 1))
    params["A"] = jnp.stack([A, A, A], axis=0)
    return params


if __name__ == "__main__":
    dim, p_factor, d_state, d_conv, expand = 16, 2, 16, 4, 2
    B, Z, H, W = 2, 8, 8, 8
    num_slices = Z // p_factor            # 4 slices in the pooled volume (16 tokens each)

    key = jax.random.PRNGKey(0)
    kx, kp = jax.random.split(key)
    x = jax.random.normal(kx, (B, dim, Z, H, W), jnp.float32)
    params = init_params(kp, dim, d_state, d_conv, expand)

    fwd = jax.jit(functools.partial(tri_window_mamba_forward,
                                    p=p_factor, num_slices=num_slices))
    out = fwd(x, params)
    jax.block_until_ready(out)
    assert out.shape == x.shape and out.dtype == jnp.float32
    assert bool(jnp.all(jnp.isfinite(out)))
    print("KERNEL_OK")
</pallas_src>

<mosaic_0001>
module attributes {stable_mosaic.version = 11 : i64} {
  func.func @_ln_inproj_kernel(%arg0: i32, %arg1: memref<128x16xf32, #tpu.memory_space<vmem>>, %arg2: memref<1x16xf32, #tpu.memory_space<vmem>>, %arg3: memref<1x16xf32, #tpu.memory_space<vmem>>, %arg4: memref<16x32xbf16, #tpu.memory_space<vmem>>, %arg5: memref<16x32xbf16, #tpu.memory_space<vmem>>, %arg6: memref<128x32xbf16, #tpu.memory_space<vmem>>, %arg7: memref<128x32xbf16, #tpu.memory_space<vmem>>) attributes {dimension_semantics = [#tpu.dimension_semantics<parallel>], iteration_bounds = array<i64: 1>, scalar_prefetch = 0 : i64, scratch_operands = 0 : i64, tpu.core_type = #tpu.core_type<tc>, window_params = [{transform_indices = @transform_0, window_bounds = array<i64: 128, 16>}, {pipeline_mode = #tpu.pipeline_mode<synchronous>, transform_indices = @transform_1, window_bounds = array<i64: 1, 16>}, {pipeline_mode = #tpu.pipeline_mode<synchronous>, transform_indices = @transform_2, window_bounds = array<i64: 1, 16>}, {pipeline_mode = #tpu.pipeline_mode<synchronous>, transform_indices = @transform_3, window_bounds = array<i64: 16, 32>}, {pipeline_mode = #tpu.pipeline_mode<synchronous>, transform_indices = @transform_4, window_bounds = array<i64: 16, 32>}, {transform_indices = @transform_5, window_bounds = array<i64: 128, 32>}, {transform_indices = @transform_6, window_bounds = array<i64: 128, 32>}]} {
    %c0 = arith.constant 0 : index
    %c0_0 = arith.constant 0 : index
    %0 = vector.load %arg1[%c0, %c0_0] : memref<128x16xf32, #tpu.memory_space<vmem>>, vector<128x16xf32>
    %cst = arith.constant dense<0.000000e+00> : vector<128xf32>
    %1 = vector.multi_reduction <add>, %0, %cst [1] : vector<128x16xf32> to vector<128xf32>
    %2 = vector.shape_cast %1 : vector<128xf32> to vector<128x1xf32>
    %cst_1 = arith.constant 1.600000e+01 : f32
    %3 = vector.broadcast %cst_1 : f32 to vector<128x1xf32>
    %4 = arith.divf %2, %3 : vector<128x1xf32>
    %5 = vector.broadcast %4 : vector<128x1xf32> to vector<128x16xf32>
    %6 = arith.subf %0, %5 : vector<128x16xf32>
    %7 = arith.mulf %6, %6 : vector<128x16xf32>
    %cst_2 = arith.constant dense<0.000000e+00> : vector<128xf32>
    %8 = vector.multi_reduction <add>, %7, %cst_2 [1] : vector<128x16xf32> to vector<128xf32>
    %9 = vector.shape_cast %8 : vector<128xf32> to vector<128x1xf32>
    %cst_3 = arith.constant 1.600000e+01 : f32
    %10 = vector.broadcast %cst_3 : f32 to vector<128x1xf32>
    %11 = arith.divf %9, %10 : vector<128x1xf32>
    %cst_4 = arith.constant 9.99999974E-6 : f32
    %12 = vector.broadcast %cst_4 : f32 to vector<128x1xf32>
    %13 = arith.addf %11, %12 : vector<128x1xf32>
    %14 = math.rsqrt %13 : vector<128x1xf32>
    %15 = vector.broadcast %14 : vector<128x1xf32> to vector<128x16xf32>
    %16 = arith.mulf %6, %15 : vector<128x16xf32>
    %c0_5 = arith.constant 0 : index
    %c0_6 = arith.constant 0 : index
    %17 = vector.load %arg2[%c0_5, %c0_6] : memref<1x16xf32, #tpu.memory_space<vmem>>, vector<1x16xf32>
    %18 = vector.broadcast %17 : vector<1x16xf32> to vector<128x16xf32>
    %19 = arith.mulf %16, %18 : vector<128x16xf32>
    %c0_7 = arith.constant 0 : index
    %c0_8 = arith.constant 0 : index
    %20 = vector.load %arg3[%c0_7, %c0_8] : memref<1x16xf32, #tpu.memory_space<vmem>>, vector<1x16xf32>
    %21 = vector.broadcast %20 : vector<1x16xf32> to vector<128x16xf32>
    %22 = arith.addf %19, %21 : vector<128x16xf32>
    %23 = arith.truncf %22 : vector<128x16xf32> to vector<128x16xbf16>
    %c0_9 = arith.constant 0 : index
    %c0_10 = arith.constant 0 : index
    %24 = vector.load %arg4[%c0_9, %c0_10] : memref<16x32xbf16, #tpu.memory_space<vmem>>, vector<16x32xbf16>
    %cst_11 = arith.constant dense<0.000000e+00> : vector<128x32xf32>
    %25 = tpu.matmul %23, %24, %cst_11 {dimension_numbers = #tpu.dot_dimension_numbers<[1], [0], [0], [1], [0, 0, 1, 1], [], []>} : vector<128x16xbf16>, vector<16x32xbf16>, vector<128x32xf32> -> vector<128x32xf32>
    %26 = arith.truncf %25 : vector<128x32xf32> to vector<128x32xbf16>
    %c0_12 = arith.constant 0 : index
    %c0_13 = arith.constant 0 : index
    %27 = vector.load %arg6[%c0_12, %c0_13] : memref<128x32xbf16, #tpu.memory_space<vmem>>, vector<128x32xbf16>
    tpu.vector_store %arg6[%c0_12, %c0_13], %26 {strides = array<i32>} : memref<128x32xbf16, #tpu.memory_space<vmem>>, vector<128x32xbf16>,
    %c0_14 = arith.constant 0 : index
    %c0_15 = arith.constant 0 : index
    %28 = vector.load %arg5[%c0_14, %c0_15] : memref<16x32xbf16, #tpu.memory_space<vmem>>, vector<16x32xbf16>
    %cst_16 = arith.constant dense<0.000000e+00> : vector<128x32xf32>
    %29 = tpu.matmul %23, %28, %cst_16 {dimension_numbers = #tpu.dot_dimension_numbers<[1], [0], [0], [1], [0, 0, 1, 1], [], []>} : vector<128x16xbf16>, vector<16x32xbf16>, vector<128x32xf32> -> vector<128x32xf32>
    %30 = arith.truncf %29 : vector<128x32xf32> to vector<128x32xbf16>
    %c0_17 = arith.constant 0 : index
    %c0_18 = arith.constant 0 : index
    %31 = vector.load %arg7[%c0_17, %c0_18] : memref<128x32xbf16, #tpu.memory_space<vmem>>, vector<128x32xbf16>
    tpu.vector_store %arg7[%c0_17, %c0_18], %30 {strides = array<i32>} : memref<128x32xbf16, #tpu.memory_space<vmem>>, vector<128x32xbf16>,
    return
  }
  func.func @transform_0(%arg0: i32) -> (i32, i32) {
    %c0_i32 = arith.constant 0 : i32
    %c0_i32_0 = arith.constant 0 : i32
    return %arg0, %c0_i32 : i32, i32
  }
  func.func @transform_1(%arg0: i32) -> (i32, i32) {
    %c0_i32 = arith.constant 0 : i32
    %c0_i32_0 = arith.constant 0 : i32
    %c0_i32_1 = arith.constant 0 : i32
    return %c0_i32, %c0_i32_0 : i32, i32
  }
  func.func @transform_2(%arg0: i32) -> (i32, i32) {
    %c0_i32 = arith.constant 0 : i32
    %c0_i32_0 = arith.constant 0 : i32
    %c0_i32_1 = arith.constant 0 : i32
    return %c0_i32, %c0_i32_0 : i32, i32
  }
  func.func @transform_3(%arg0: i32) -> (i32, i32) {
    %c0_i32 = arith.constant 0 : i32
    %c0_i32_0 = arith.constant 0 : i32
    %c0_i32_1 = arith.constant 0 : i32
    return %c0_i32, %c0_i32_0 : i32, i32
  }
  func.func @transform_4(%arg0: i32) -> (i32, i32) {
    %c0_i32 = arith.constant 0 : i32
    %c0_i32_0 = arith.constant 0 : i32
    %c0_i32_1 = arith.constant 0 : i32
    return %c0_i32, %c0_i32_0 : i32, i32
  }
  func.func @transform_5(%arg0: i32) -> (i32, i32) {
    %c0_i32 = arith.constant 0 : i32
    %c0_i32_0 = arith.constant 0 : i32
    return %arg0, %c0_i32 : i32, i32
  }
  func.func @transform_6(%arg0: i32) -> (i32, i32) {
    %c0_i32 = arith.constant 0 : i32
    %c0_i32_0 = arith.constant 0 : i32
    return %arg0, %c0_i32 : i32, i32
  }
}

module attributes {stable_mosaic.version = 11 : i64} {
  func.func @_mamba_dir_kernel(%arg0: i32, %arg1: i32, %arg2: i32, %arg3: memref<1x1x64x32xbf16, #tpu.memory_space<vmem>>, %arg4: memref<1x1x64x32xbf16, #tpu.memory_space<vmem>>, %arg5: memref<1x4x32xf32, #tpu.memory_space<vmem>>, %arg6: memref<1x1x32xf32, #tpu.memory_space<vmem>>, %arg7: memref<1x32x272xbf16, #tpu.memory_space<vmem>>, %arg8: memref<1x1x32xf32, #tpu.memory_space<vmem>>, %arg9: memref<1x1x32xf32, #tpu.memory_space<vmem>>, %arg10: memref<1x16x32xf32, #tpu.memory_space<vmem>>, %arg11: memref<1x1x32xf32, #tpu.memory_space<vmem>>, %arg12: memref<1x1x64x32xbf16, #tpu.memory_space<vmem>>, %arg13: memref<64x16x32xf32, #tpu.memory_space<vmem>>, %arg14: memref<64x16x32xf32, #tpu.memory_space<vmem>>, %arg15: memref<16x32xf32, #tpu.memory_space<vmem>>, %arg16: memref<64x32xf32, #tpu.memory_space<vmem>>) attributes {dimension_semantics = [#tpu.dimension_semantics<parallel>, #tpu.dimension_semantics<parallel>, #tpu.dimension_semantics<arbitrary>], iteration_bounds = array<i64: 3, 2, 1>, scalar_prefetch = 0 : i64, scratch_operands = 4 : i64, tpu.core_type = #tpu.core_type<tc>, window_params = [{transform_indices = @transform_0, window_bounds = array<i64: 1, 1, 64, 32>}, {transform_indices = @transform_1, window_bounds = array<i64: 1, 1, 64, 32>}, {transform_indices = @transform_2, window_bounds = array<i64: 1, 4, 32>}, {transform_indices = @transform_3, window_bounds = array<i64: 1, 1, 32>}, {transform_indices = @transform_4, window_bounds = array<i64: 1, 32, 272>}, {transform_indices = @transform_5, window_bounds = array<i64: 1, 1, 32>}, {transform_indices = @transform_6, window_bounds = array<i64: 1, 1, 32>}, {transform_indices = @transform_7, window_bounds = array<i64: 1, 16, 32>}, {transform_indices = @transform_8, window_bounds = array<i64: 1, 1, 32>}, {transform_indices = @transform_9, window_bounds = array<i64: 1, 1, 64, 32>}]} {
    %c0_i32 = arith.constant 0 : i32
    %0 = arith.cmpi eq, %arg2, %c0_i32 : i32
    %1 = arith.extui %0 : i1 to i32
    %c0_i32_0 = arith.constant 0 : i32
    %2 = arith.cmpi ne, %1, %c0_i32_0 : i32
    scf.if %2 {
      %cst_65 = arith.constant 0.000000e+00 : f32
      %123 = vector.broadcast %cst_65 : f32 to vector<16x32xf32>
      %c0_66 = arith.constant 0 : index
      %c0_67 = arith.constant 0 : index
      %124 = vector.load %arg15[%c0_66, %c0_67] : memref<16x32xf32, #tpu.memory_space<vmem>>, vector<16x32xf32>
      tpu.vector_store %arg15[%c0_66, %c0_67], %123 {strides = array<i32>} : memref<16x32xf32, #tpu.memory_space<vmem>>, vector<16x32xf32>,
      %cst_68 = arith.constant 0.000000e+00 : f32
      %125 = vector.broadcast %cst_68 : f32 to vector<64x32xf32>
      %c0_69 = arith.constant 0 : index
      %c0_70 = arith.constant 0 : index
      %126 = vector.load %arg16[%c0_69, %c0_70] : memref<64x32xf32, #tpu.memory_space<vmem>>, vector<64x32xf32>
      tpu.vector_store %arg16[%c0_69, %c0_70], %125 {strides = array<i32>} : memref<64x32xf32, #tpu.memory_space<vmem>>, vector<64x32xf32>,
    } else {
    }
    %c0 = arith.constant 0 : index
    %c0_1 = arith.constant 0 : index
    %c0_2 = arith.constant 0 : index
    %c0_3 = arith.constant 0 : index
    %3 = vector.load %arg3[%c0, %c0_1, %c0_2, %c0_3] : memref<1x1x64x32xbf16, #tpu.memory_space<vmem>>, vector<1x1x64x32xbf16>
    %4 = vector.shape_cast %3 : vector<1x1x64x32xbf16> to vector<64x32xbf16>
    %5 = arith.extf %4 : vector<64x32xbf16> to vector<64x32xf32>
    %c0_4 = arith.constant 0 : index
    %c0_5 = arith.constant 0 : index
    %c0_6 = arith.constant 0 : index
    %c0_7 = arith.constant 0 : index
    %6 = vector.load %arg4[%c0_4, %c0_5, %c0_6, %c0_7] : memref<1x1x64x32xbf16, #tpu.memory_space<vmem>>, vector<1x1x64x32xbf16>
    %7 = vector.shape_cast %6 : vector<1x1x64x32xbf16> to vector<64x32xbf16>
    %8 = arith.extf %7 : vector<64x32xbf16> to vector<64x32xf32>
    %c0_8 = arith.constant 0 : index
    %c0_9 = arith.constant 0 : index
    %c0_10 = arith.constant 0 : index
    %9 = vector.load %arg5[%c0_8, %c0_9, %c0_10] : memref<1x4x32xf32, #tpu.memory_space<vmem>>, vector<1x4x32xf32>
    %10 = vector.shape_cast %9 : vector<1x4x32xf32> to vector<4x32xf32>
    %c0_11 = arith.constant 0 : index
    %c0_12 = arith.constant 0 : index
    %11 = vector.load %arg16[%c0_11, %c0_12] : memref<64x32xf32, #tpu.memory_space<vmem>>, vector<64x32xf32>
    %12 = tpu.iota {dimensions = array<i32: 0>} : vector<64x32xi32>
    %13 = vector.extract_strided_slice %10 {offsets = [3, 0], sizes = [1, 32], strides = [1, 1]} : vector<4x32xf32> to vector<1x32xf32>
    %14 = vector.broadcast %13 : vector<1x32xf32> to vector<64x32xf32>
    %15 = arith.mulf %5, %14 : vector<64x32xf32>
    %c3_i32 = arith.constant 3 : i32
    %16 = tpu.dynamic_rotate %5 by %c3_i32 dim 0 : vector<64x32xf32>, i32 -> vector<64x32xf32>
    %c3_i32_13 = arith.constant 3 : i32
    %17 = tpu.dynamic_rotate %11 by %c3_i32_13 dim 0 : vector<64x32xf32>, i32 -> vector<64x32xf32>
    %c3_i32_14 = arith.constant 3 : i32
    %18 = vector.broadcast %c3_i32_14 : i32 to vector<64x32xi32>
    %19 = arith.cmpi sge, %12, %18 : vector<64x32xi32>
    %20 = arith.select %19, %16, %17 : vector<64x32xi1>, vector<64x32xf32>
    %21 = vector.extract_strided_slice %10 {offsets = [0, 0], sizes = [1, 32], strides = [1, 1]} : vector<4x32xf32> to vector<1x32xf32>
    %22 = vector.broadcast %21 : vector<1x32xf32> to vector<64x32xf32>
    %23 = arith.mulf %20, %22 : vector<64x32xf32>
    %24 = arith.addf %15, %23 : vector<64x32xf32>
    %c2_i32 = arith.constant 2 : i32
    %25 = tpu.dynamic_rotate %5 by %c2_i32 dim 0 : vector<64x32xf32>, i32 -> vector<64x32xf32>
    %c2_i32_15 = arith.constant 2 : i32
    %26 = tpu.dynamic_rotate %11 by %c2_i32_15 dim 0 : vector<64x32xf32>, i32 -> vector<64x32xf32>
    %c2_i32_16 = arith.constant 2 : i32
    %27 = vector.broadcast %c2_i32_16 : i32 to vector<64x32xi32>
    %28 = arith.cmpi sge, %12, %27 : vector<64x32xi32>
    %29 = arith.select %28, %25, %26 : vector<64x32xi1>, vector<64x32xf32>
    %30 = vector.extract_strided_slice %10 {offsets = [1, 0], sizes = [1, 32], strides = [1, 1]} : vector<4x32xf32> to vector<1x32xf32>
    %31 = vector.broadcast %30 : vector<1x32xf32> to vector<64x32xf32>
    %32 = arith.mulf %29, %31 : vector<64x32xf32>
    %33 = arith.addf %24, %32 : vector<64x32xf32>
    %c1_i32 = arith.constant 1 : i32
    %34 = tpu.dynamic_rotate %5 by %c1_i32 dim 0 : vector<64x32xf32>, i32 -> vector<64x32xf32>
    %c1_i32_17 = arith.constant 1 : i32
    %35 = tpu.dynamic_rotate %11 by %c1_i32_17 dim 0 : vector<64x32xf32>, i32 -> vector<64x32xf32>
    %c1_i32_18 = arith.constant 1 : i32
    %36 = vector.broadcast %c1_i32_18 : i32 to vector<64x32xi32>
    %37 = arith.cmpi sge, %12, %36 : vector<64x32xi32>
    %38 = arith.select %37, %34, %35 : vector<64x32xi1>, vector<64x32xf32>
    %39 = vector.extract_strided_slice %10 {offsets = [2, 0], sizes = [1, 32], strides = [1, 1]} : vector<4x32xf32> to vector<1x32xf32>
    %40 = vector.broadcast %39 : vector<1x32xf32> to vector<64x32xf32>
    %41 = arith.mulf %38, %40 : vector<64x32xf32>
    %42 = arith.addf %33, %41 : vector<64x32xf32>
    %c0_19 = arith.constant 0 : index
    %c0_20 = arith.constant 0 : index
    %43 = vector.load %arg16[%c0_19, %c0_20] : memref<64x32xf32, #tpu.memory_space<vmem>>, vector<64x32xf32>
    tpu.vector_store %arg16[%c0_19, %c0_20], %5 {strides = array<i32>} : memref<64x32xf32, #tpu.memory_space<vmem>>, vector<64x32xf32>,
    %c0_21 = arith.constant 0 : index
    %c0_22 = arith.constant 0 : index
    %c0_23 = arith.constant 0 : index
    %44 = vector.load %arg6[%c0_21, %c0_22, %c0_23] : memref<1x1x32xf32, #tpu.memory_space<vmem>>, vector<1x1x32xf32>
    %45 = vector.shape_cast %44 : vector<1x1x32xf32> to vector<1x32xf32>
    %46 = vector.broadcast %45 : vector<1x32xf32> to vector<64x32xf32>
    %47 = arith.addf %42, %46 : vector<64x32xf32>
    %48 = arith.negf %47 : vector<64x32xf32>
    %49 = math.exp %48 : vector<64x32xf32>
    %cst = arith.constant 1.000000e+00 : f32
    %50 = vector.broadcast %cst : f32 to vector<64x32xf32>
    %51 = arith.addf %50, %49 : vector<64x32xf32>
    %52 = arith.divf %50, %51 : vector<64x32xf32>
    %53 = arith.mulf %47, %52 : vector<64x32xf32>
    %54 = arith.truncf %53 : vector<64x32xf32> to vector<64x32xbf16>
    %c0_24 = arith.constant 0 : index
    %c0_25 = arith.constant 0 : index
    %c0_26 = arith.constant 0 : index
    %55 = vector.load %arg7[%c0_24, %c0_25, %c0_26] : memref<1x32x272xbf16, #tpu.memory_space<vmem>>, vector<1x32x272xbf16>
    %56 = vector.shape_cast %55 : vector<1x32x272xbf16> to vector<32x272xbf16>
    %cst_27 = arith.constant dense<0.000000e+00> : vector<64x272xf32>
    %57 = tpu.matmul %54, %56, %cst_27 {dimension_numbers = #tpu.dot_dimension_numbers<[1], [0], [0], [1], [0, 0, 1, 1], [], []>} : vector<64x32xbf16>, vector<32x272xbf16>, vector<64x272xf32> -> vector<64x272xf32>
    %58 = vector.extract_strided_slice %57 {offsets = [0, 0], sizes = [64, 1], strides = [1, 1]} : vector<64x272xf32> to vector<64x1xf32>
    %59 = vector.extract_strided_slice %57 {offsets = [0, 128], sizes = [64, 16], strides = [1, 1]} : vector<64x272xf32> to vector<64x16xf32>
    %60 = vector.extract_strided_slice %57 {offsets = [0, 256], sizes = [64, 16], strides = [1, 1]} : vector<64x272xf32> to vector<64x16xf32>
    %c0_28 = arith.constant 0 : index
    %c0_29 = arith.constant 0 : index
    %c0_30 = arith.constant 0 : index
    %61 = vector.load %arg8[%c0_28, %c0_29, %c0_30] : memref<1x1x32xf32, #tpu.memory_space<vmem>>, vector<1x1x32xf32>
    %62 = vector.shape_cast %61 : vector<1x1x32xf32> to vector<1x32xf32>
    %cst_31 = arith.constant dense<0.000000e+00> : vector<64x32xf32>
    %63 = tpu.matmul %58, %62, %cst_31 {dimension_numbers = #tpu.dot_dimension_numbers<[1], [0], [0], [1], [0, 0, 1, 1], [], []>} : vector<64x1xf32>, vector<1x32xf32>, vector<64x32xf32> -> vector<64x32xf32>
    %c0_32 = arith.constant 0 : index
    %c0_33 = arith.constant 0 : index
    %c0_34 = arith.constant 0 : index
    %64 = vector.load %arg9[%c0_32, %c0_33, %c0_34] : memref<1x1x32xf32, #tpu.memory_space<vmem>>, vector<1x1x32xf32>
    %65 = vector.shape_cast %64 : vector<1x1x32xf32> to vector<1x32xf32>
    %66 = vector.broadcast %65 : vector<1x32xf32> to vector<64x32xf32>
    %67 = arith.addf %63, %66 : vector<64x32xf32>
    %cst_35 = arith.constant 0.000000e+00 : f32
    %68 = vector.broadcast %cst_35 : f32 to vector<64x32xf32>
    %69 = arith.maximumf %67, %68 : vector<64x32xf32>
    %70 = vector.broadcast %cst_35 : f32 to vector<64x32xf32>
    %71 = arith.subf %67, %70 : vector<64x32xf32>
    %72 = arith.cmpf one, %71, %71 : vector<64x32xf32>
    %73 = vector.broadcast %cst_35 : f32 to vector<64x32xf32>
    %74 = arith.addf %67, %73 : vector<64x32xf32>
    %75 = math.absf %71 : vector<64x32xf32>
    %cst_36 = arith.constant 0.000000e+00 : f32
    %76 = vector.broadcast %cst_36 : f32 to vector<64x32xf32>
    %77 = arith.subf %76, %75 : vector<64x32xf32>
    %78 = math.exp %77 : vector<64x32xf32>
    %79 = math.log1p %78 : vector<64x32xf32>
    %80 = arith.addf %69, %79 : vector<64x32xf32>
    %81 = arith.select %72, %74, %80 : vector<64x32xi1>, vector<64x32xf32>
    %c0_37 = arith.constant 0 : index
    %c0_38 = arith.constant 0 : index
    %c0_39 = arith.constant 0 : index
    %82 = vector.load %arg10[%c0_37, %c0_38, %c0_39] : memref<1x16x32xf32, #tpu.memory_space<vmem>>, vector<1x16x32xf32>
    %83 = vector.shape_cast %82 : vector<1x16x32xf32> to vector<16x32xf32>
    %84 = vector.shape_cast %81 : vector<64x32xf32> to vector<64x1x32xf32>
    %85 = vector.shape_cast %83 : vector<16x32xf32> to vector<1x16x32xf32>
    %86 = vector.broadcast %84 : vector<64x1x32xf32> to vector<64x16x32xf32>
    %87 = vector.broadcast %85 : vector<1x16x32xf32> to vector<64x16x32xf32>
    %88 = arith.mulf %86, %87 : vector<64x16x32xf32>
    %89 = math.exp %88 : vector<64x16x32xf32>
    %c0_40 = arith.constant 0 : index
    %c0_41 = arith.constant 0 : index
    %c0_42 = arith.constant 0 : index
    %90 = vector.load %arg13[%c0_40, %c0_41, %c0_42] : memref<64x16x32xf32, #tpu.memory_space<vmem>>, vector<64x16x32xf32>
    tpu.vector_store %arg13[%c0_40, %c0_41, %c0_42], %89 {strides = array<i32>} : memref<64x16x32xf32, #tpu.memory_space<vmem>>, vector<64x16x32xf32>,
    %91 = arith.mulf %81, %53 : vector<64x32xf32>
    %92 = vector.shape_cast %91 : vector<64x32xf32> to vector<64x1x32xf32>
    %93 = vector.shape_cast %59 : vector<64x16xf32> to vector<64x16x1xf32>
    %94 = vector.broadcast %92 : vector<64x1x32xf32> to vector<64x16x32xf32>
    %95 = vector.broadcast %93 : vector<64x16x1xf32> to vector<64x16x32xf32>
    %96 = arith.mulf %94, %95 : vector<64x16x32xf32>
    %c0_43 = arith.constant 0 : index
    %c0_44 = arith.constant 0 : index
    %c0_45 = arith.constant 0 : index
    %97 = vector.load %arg14[%c0_43, %c0_44, %c0_45] : memref<64x16x32xf32, #tpu.memory_space<vmem>>, vector<64x16x32xf32>
    tpu.vector_store %arg14[%c0_43, %c0_44, %c0_45], %96 {strides = array<i32>} : memref<64x16x32xf32, #tpu.memory_space<vmem>>, vector<64x16x32xf32>,
    %c0_46 = arith.constant 0 : index
    %c0_47 = arith.constant 0 : index
    %98 = vector.load %arg15[%c0_46, %c0_47] : memref<16x32xf32, #tpu.memory_space<vmem>>, vector<16x32xf32>
    %c0_i32_48 = arith.constant 0 : i32
    %c8_i32 = arith.constant 8 : i32
    %99 = arith.addi %c0_i32_48, %c8_i32 : i32
    %c1_i32_49 = arith.constant 1 : i32
    %100 = scf.for %arg17 = %c0_i32_48 to %99 step %c1_i32_49 iter_args(%arg18 = %98) -> (vector<16x32xf32>)  : i32 {
      %c8_i32_65 = arith.constant 8 : i32
      %123 = arith.muli %arg17, %c8_i32_65 : i32
      %c0_i32_66 = arith.constant 0 : i32
      %124 = arith.addi %123, %c0_i32_66 : i32
      %125 = arith.index_cast %124 : i32 to index
      %c0_67 = arith.constant 0 : index
      %c0_68 = arith.constant 0 : index
      %126 = vector.load %arg13[%125, %c0_67, %c0_68] : memref<64x16x32xf32, #tpu.memory_space<vmem>>, vector<1x16x32xf32>
      %127 = vector.shape_cast %126 : vector<1x16x32xf32> to vector<16x32xf32>
      %128 = arith.mulf %127, %arg18 : vector<16x32xf32>
      %129 = arith.index_cast %124 : i32 to index
      %c0_69 = arith.constant 0 : index
      %c0_70 = arith.constant 0 : index
      %130 = vector.load %arg14[%129, %c0_69, %c0_70] : memref<64x16x32xf32, #tpu.memory_space<vmem>>, vector<1x16x32xf32>
      %131 = vector.shape_cast %130 : vector<1x16x32xf32> to vector<16x32xf32>
      %132 = arith.addf %128, %131 : vector<16x32xf32>
      %133 = arith.index_cast %124 : i32 to index
      %c0_71 = arith.constant 0 : index
      %c0_72 = arith.constant 0 : index
      %134 = vector.load %arg14[%133, %c0_71, %c0_72] : memref<64x16x32xf32, #tpu.memory_space<vmem>>, vector<1x16x32xf32>
      %135 = vector.shape_cast %134 : vector<1x16x32xf32> to vector<16x32xf32>
      %136 = vector.shape_cast %132 : vector<16x32xf32> to vector<1x16x32xf32>
      tpu.vector_store %arg14[%133, %c0_71, %c0_72], %136 {strides = array<i32>} : memref<64x16x32xf32, #tpu.memory_space<vmem>>, vector<1x16x32xf32>,
      %c1_i32_73 = arith.constant 1 : i32
      %137 = arith.addi %123, %c1_i32_73 : i32
      %138 = arith.index_cast %137 : i32 to index
      %c0_74 = arith.constant 0 : index
      %c0_75 = arith.constant 0 : index
      %139 = vector.load %arg13[%138, %c0_74, %c0_75] : memref<64x16x32xf32, #tpu.memory_space<vmem>>, vector<1x16x32xf32>
      %140 = vector.shape_cast %139 : vector<1x16x32xf32> to vector<16x32xf32>
      %141 = arith.mulf %140, %132 : vector<16x32xf32>
      %142 = arith.index_cast %137 : i32 to index
      %c0_76 = arith.constant 0 : index
      %c0_77 = arith.constant 0 : index
      %143 = vector.load %arg14[%142, %c0_76, %c0_77] : memref<64x16x32xf32, #tpu.memory_space<vmem>>, vector<1x16x32xf32>
      %144 = vector.shape_cast %143 : vector<1x16x32xf32> to vector<16x32xf32>
      %145 = arith.addf %141, %144 : vector<16x32xf32>
      %146 = arith.index_cast %137 : i32 to index
      %c0_78 = arith.constant 0 : index
      %c0_79 = arith.constant 0 : index
      %147 = vector.load %arg14[%146, %c0_78, %c0_79] : memref<64x16x32xf32, #tpu.memory_space<vmem>>, vector<1x16x32xf32>
      %148 = vector.shape_cast %147 : vector<1x16x32xf32> to vector<16x32xf32>
      %149 = vector.shape_cast %145 : vector<16x32xf32> to vector<1x16x32xf32>
      tpu.vector_store %arg14[%146, %c0_78, %c0_79], %149 {strides = array<i32>} : memref<64x16x32xf32, #tpu.memory_space<vmem>>, vector<1x16x32xf32>,
      %c2_i32_80 = arith.constant 2 : i32
      %150 = arith.addi %123, %c2_i32_80 : i32
      %151 = arith.index_cast %150 : i32 to index
      %c0_81 = arith.constant 0 : index
      %c0_82 = arith.constant 0 : index
      %152 = vector.load %arg13[%151, %c0_81, %c0_82] : memref<64x16x32xf32, #tpu.memory_space<vmem>>, vector<1x16x32xf32>
      %153 = vector.shape_cast %152 : vector<1x16x32xf32> to vector<16x32xf32>
      %154 = arith.mulf %153, %145 : vector<16x32xf32>
      %155 = arith.index_cast %150 : i32 to index
      %c0_83 = arith.constant 0 : index
      %c0_84 = arith.constant 0 : index
      %156 = vector.load %arg14[%155, %c0_83, %c0_84] : memref<64x16x32xf32, #tpu.memory_space<vmem>>, vector<1x16x32xf32>
      %157 = vector.shape_cast %156 : vector<1x16x32xf32> to vector<16x32xf32>
      %158 = arith.addf %154, %157 : vector<16x32xf32>
      %159 = arith.index_cast %150 : i32 to index
      %c0_85 = arith.constant 0 : index
      %c0_86 = arith.constant 0 : index
      %160 = vector.load %arg14[%159, %c0_85, %c0_86] : memref<64x16x32xf32, #tpu.memory_space<vmem>>, vector<1x16x32xf32>
      %161 = vector.shape_cast %160 : vector<1x16x32xf32> to vector<16x32xf32>
      %162 = vector.shape_cast %158 : vector<16x32xf32> to vector<1x16x32xf32>
      tpu.vector_store %arg14[%159, %c0_85, %c0_86], %162 {strides = array<i32>} : memref<64x16x32xf32, #tpu.memory_space<vmem>>, vector<1x16x32xf32>,
      %c3_i32_87 = arith.constant 3 : i32
      %163 = arith.addi %123, %c3_i32_87 : i32
      %164 = arith.index_cast %163 : i32 to index
      %c0_88 = arith.constant 0 : index
      %c0_89 = arith.constant 0 : index
      %165 = vector.load %arg13[%164, %c0_88, %c0_89] : memref<64x16x32xf32, #tpu.memory_space<vmem>>, vector<1x16x32xf32>
      %166 = vector.shape_cast %165 : vector<1x16x32xf32> to vector<16x32xf32>
      %167 = arith.mulf %166, %158 : vector<16x32xf32>
      %168 = arith.index_cast %163 : i32 to index
      %c0_90 = arith.constant 0 : index
      %c0_91 = arith.constant 0 : index
      %169 = vector.load %arg14[%168, %c0_90, %c0_91] : memref<64x16x32xf32, #tpu.memory_space<vmem>>, vector<1x16x32xf32>
      %170 = vector.shape_cast %169 : vector<1x16x32xf32> to vector<16x32xf32>
      %171 = arith.addf %167, %170 : vector<16x32xf32>
      %172 = arith.index_cast %163 : i32 to index
      %c0_92 = arith.constant 0 : index
      %c0_93 = arith.constant 0 : index
      %173 = vector.load %arg14[%172, %c0_92, %c0_93] : memref<64x16x32xf32, #tpu.memory_space<vmem>>, vector<1x16x32xf32>
      %174 = vector.shape_cast %173 : vector<1x16x32xf32> to vector<16x32xf32>
      %175 = vector.shape_cast %171 : vector<16x32xf32> to vector<1x16x32xf32>
      tpu.vector_store %arg14[%172, %c0_92, %c0_93], %175 {strides = array<i32>} : memref<64x16x32xf32, #tpu.memory_space<vmem>>, vector<1x16x32xf32>,
      %c4_i32 = arith.constant 4 : i32
      %176 = arith.addi %123, %c4_i32 : i32
      %177 = arith.index_cast %176 : i32 to index
      %c0_94 = arith.constant 0 : index
      %c0_95 = arith.constant 0 : index
      %178 = vector.load %arg13[%177, %c0_94, %c0_95] : memref<64x16x32xf32, #tpu.memory_space<vmem>>, vector<1x16x32xf32>
      %179 = vector.shape_cast %178 : vector<1x16x32xf32> to vector<16x32xf32>
      %180 = arith.mulf %179, %171 : vector<16x32xf32>
      %181 = arith.index_cast %176 : i32 to index
      %c0_96 = arith.constant 0 : index
      %c0_97 = arith.constant 0 : index
      %182 = vector.load %arg14[%181, %c0_96, %c0_97] : memref<64x16x32xf32, #tpu.memory_space<vmem>>, vector<1x16x32xf32>
      %183 = vector.shape_cast %182 : vector<1x16x32xf32> to vector<16x32xf32>
      %184 = arith.addf %180, %183 : vector<16x32xf32>
      %185 = arith.index_cast %176 : i32 to index
      %c0_98 = arith.constant 0 : index
      %c0_99 = arith.constant 0 : index
      %186 = vector.load %arg14[%185, %c0_98, %c0_99] : memref<64x16x32xf32, #tpu.memory_space<vmem>>, vector<1x16x32xf32>
      %187 = vector.shape_cast %186 : vector<1x16x32xf32> to vector<16x32xf32>
      %188 = vector.shape_cast %184 : vector<16x32xf32> to vector<1x16x32xf32>
      tpu.vector_store %arg14[%185, %c0_98, %c0_99], %188 {strides = array<i32>} : memref<64x16x32xf32, #tpu.memory_space<vmem>>, vector<1x16x32xf32>,
      %c5_i32 = arith.constant 5 : i32
      %189 = arith.addi %123, %c5_i32 : i32
      %190 = arith.index_cast %189 : i32 to index
      %c0_100 = arith.constant 0 : index
      %c0_101 = arith.constant 0 : index
      %191 = vector.load %arg13[%190, %c0_100, %c0_101] : memref<64x16x32xf32, #tpu.memory_space<vmem>>, vector<1x16x32xf32>
      %192 = vector.shape_cast %191 : vector<1x16x32xf32> to vector<16x32xf32>
      %193 = arith.mulf %192, %184 : vector<16x32xf32>
      %194 = arith.index_cast %189 : i32 to index
      %c0_102 = arith.constant 0 : index
      %c0_103 = arith.constant 0 : index
      %195 = vector.load %arg14[%194, %c0_102, %c0_103] : memref<64x16x32xf32, #tpu.memory_space<vmem>>, vector<1x16x32xf32>
      %196 = vector.shape_cast %195 : vector<1x16x32xf32> to vector<16x32xf32>
      %197 = arith.addf %193, %196 : vector<16x32xf32>
      %198 = arith.index_cast %189 : i32 to index
      %c0_104 = arith.constant 0 : index
      %c0_105 = arith.constant 0 : index
      %199 = vector.load %arg14[%198, %c0_104, %c0_105] : memref<64x16x32xf32, #tpu.memory_space<vmem>>, vector<1x16x32xf32>
      %200 = vector.shape_cast %199 : vector<1x16x32xf32> to vector<16x32xf32>
      %201 = vector.shape_cast %197 : vector<16x32xf32> to vector<1x16x32xf32>
      tpu.vector_store %arg14[%198, %c0_104, %c0_105], %201 {strides = array<i32>} : memref<64x16x32xf32, #tpu.memory_space<vmem>>, vector<1x16x32xf32>,
      %c6_i32 = arith.constant 6 : i32
      %202 = arith.addi %123, %c6_i32 : i32
      %203 = arith.index_cast %202 : i32 to index
      %c0_106 = arith.constant 0 : index
      %c0_107 = arith.constant 0 : index
      %204 = vector.load %arg13[%203, %c0_106, %c0_107] : memref<64x16x32xf32, #tpu.memory_space<vmem>>, vector<1x16x32xf32>
      %205 = vector.shape_cast %204 : vector<1x16x32xf32> to vector<16x32xf32>
      %206 = arith.mulf %205, %197 : vector<16x32xf32>
      %207 = arith.index_cast %202 : i32 to index
      %c0_108 = arith.constant 0 : index
      %c0_109 = arith.constant 0 : index
      %208 = vector.load %arg14[%207, %c0_108, %c0_109] : memref<64x16x32xf32, #tpu.memory_space<vmem>>, vector<1x16x32xf32>
      %209 = vector.shape_cast %208 : vector<1x16x32xf32> to vector<16x32xf32>
      %210 = arith.addf %206, %209 : vector<16x32xf32>
      %211 = arith.index_cast %202 : i32 to index
      %c0_110 = arith.constant 0 : index
      %c0_111 = arith.constant 0 : index
      %212 = vector.load %arg14[%211, %c0_110, %c0_111] : memref<64x16x32xf32, #tpu.memory_space<vmem>>, vector<1x16x32xf32>
      %213 = vector.shape_cast %212 : vector<1x16x32xf32> to vector<16x32xf32>
      %214 = vector.shape_cast %210 : vector<16x32xf32> to vector<1x16x32xf32>
      tpu.vector_store %arg14[%211, %c0_110, %c0_111], %214 {strides = array<i32>} : memref<64x16x32xf32, #tpu.memory_space<vmem>>, vector<1x16x32xf32>,
      %c7_i32 = arith.constant 7 : i32
      %215 = arith.addi %123, %c7_i32 : i32
      %216 = arith.index_cast %215 : i32 to index
      %c0_112 = arith.constant 0 : index
      %c0_113 = arith.constant 0 : index
      %217 = vector.load %arg13[%216, %c0_112, %c0_113] : memref<64x16x32xf32, #tpu.memory_space<vmem>>, vector<1x16x32xf32>
      %218 = vector.shape_cast %217 : vector<1x16x32xf32> to vector<16x32xf32>
      %219 = arith.mulf %218, %210 : vector<16x32xf32>
      %220 = arith.index_cast %215 : i32 to index
      %c0_114 = arith.constant 0 : index
      %c0_115 = arith.constant 0 : index
      %221 = vector.load %arg14[%220, %c0_114, %c0_115] : memref<64x16x32xf32, #tpu.memory_space<vmem>>, vector<1x16x32xf32>
      %222 = vector.shape_cast %221 : vector<1x16x32xf32> to vector<16x32xf32>
      %223 = arith.addf %219, %222 : vector<16x32xf32>
      %224 = arith.index_cast %215 : i32 to index
      %c0_116 = arith.constant 0 : index
      %c0_117 = arith.constant 0 : index
      %225 = vector.load %arg14[%224, %c0_116, %c0_117] : memref<64x16x32xf32, #tpu.memory_space<vmem>>, vector<1x16x32xf32>
      %226 = vector.shape_cast %225 : vector<1x16x32xf32> to vector<16x32xf32>
      %227 = vector.shape_cast %223 : vector<16x32xf32> to vector<1x16x32xf32>
      tpu.vector_store %arg14[%224, %c0_116, %c0_117], %227 {strides = array<i32>} : memref<64x16x32xf32, #tpu.memory_space<vmem>>, vector<1x16x32xf32>,
      scf.yield %223 : vector<16x32xf32>
    }
    %c8_i32_50 = arith.constant 8 : i32
    %c0_51 = arith.constant 0 : index
    %c0_52 = arith.constant 0 : index
    %101 = vector.load %arg15[%c0_51, %c0_52] : memref<16x32xf32, #tpu.memory_space<vmem>>, vector<16x32xf32>
    tpu.vector_store %arg15[%c0_51, %c0_52], %100 {strides = array<i32>} : memref<16x32xf32, #tpu.memory_space<vmem>>, vector<16x32xf32>,
    %c0_53 = arith.constant 0 : index
    %c0_54 = arith.constant 0 : index
    %c0_55 = arith.constant 0 : index
    %102 = vector.load %arg14[%c0_53, %c0_54, %c0_55] : memref<64x16x32xf32, #tpu.memory_space<vmem>>, vector<64x16x32xf32>
    %103 = vector.shape_cast %60 : vector<64x16xf32> to vector<64x16x1xf32>
    %104 = vector.broadcast %103 : vector<64x16x1xf32> to vector<64x16x32xf32>
    %105 = arith.mulf %102, %104 : vector<64x16x32xf32>
    %cst_56 = arith.constant dense<0.000000e+00> : vector<64x32xf32>
    %106 = vector.multi_reduction <add>, %105, %cst_56 [1] : vector<64x16x32xf32> to vector<64x32xf32>
    %c0_57 = arith.constant 0 : index
    %c0_58 = arith.constant 0 : index
    %c0_59 = arith.constant 0 : index
    %107 = vector.load %arg11[%c0_57, %c0_58, %c0_59] : memref<1x1x32xf32, #tpu.memory_space<vmem>>, vector<1x1x32xf32>
    %108 = vector.shape_cast %107 : vector<1x1x32xf32> to vector<1x32xf32>
    %109 = vector.broadcast %108 : vector<1x32xf32> to vector<64x32xf32>
    %110 = arith.mulf %53, %109 : vector<64x32xf32>
    %111 = arith.addf %106, %110 : vector<64x32xf32>
    %112 = arith.negf %8 : vector<64x32xf32>
    %113 = math.exp %112 : vector<64x32xf32>
    %cst_60 = arith.constant 1.000000e+00 : f32
    %114 = vector.broadcast %cst_60 : f32 to vector<64x32xf32>
    %115 = arith.addf %114, %113 : vector<64x32xf32>
    %116 = arith.divf %114, %115 : vector<64x32xf32>
    %117 = arith.mulf %8, %116 : vector<64x32xf32>
    %118 = arith.mulf %111, %117 : vector<64x32xf32>
    %119 = arith.truncf %118 : vector<64x32xf32> to vector<64x32xbf16>
    %c0_61 = arith.constant 0 : index
    %c0_62 = arith.constant 0 : index
    %c0_63 = arith.constant 0 : index
    %c0_64 = arith.constant 0 : index
    %120 = vector.load %arg12[%c0_61, %c0_62, %c0_63, %c0_64] : memref<1x1x64x32xbf16, #tpu.memory_space<vmem>>, vector<1x1x64x32xbf16>
    %121 = vector.shape_cast %120 : vector<1x1x64x32xbf16> to vector<64x32xbf16>
    %122 = vector.shape_cast %119 : vector<64x32xbf16> to vector<1x1x64x32xbf16>
    tpu.vector_store %arg12[%c0_61, %c0_62, %c0_63, %c0_64], %122 {strides = array<i32>} : memref<1x1x64x32xbf16, #tpu.memory_space<vmem>>, vector<1x1x64x32xbf16>,
    return
  }
  func.func @transform_0(%arg0: i32, %arg1: i32, %arg2: i32) -> (i32, i32, i32, i32) {
    %c0_i32 = arith.constant 0 : i32
    %c0_i32_0 = arith.constant 0 : i32
    return %arg0, %arg1, %arg2, %c0_i32 : i32, i32, i32, i32
  }
  func.func @transform_1(%arg0: i32, %arg1: i32, %arg2: i32) -> (i32, i32, i32, i32) {
    %c0_i32 = arith.constant 0 : i32
    %c0_i32_0 = arith.constant 0 : i32
    return %arg0, %arg1, %arg2, %c0_i32 : i32, i32, i32, i32
  }
  func.func @transform_2(%arg0: i32, %arg1: i32, %arg2: i32) -> (i32, i32, i32) {
    %c0_i32 = arith.constant 0 : i32
    %c0_i32_0 = arith.constant 0 : i32
    %c0_i32_1 = arith.constant 0 : i32
    return %arg0, %c0_i32, %c0_i32_0 : i32, i32, i32
  }
  func.func @transform_3(%arg0: i32, %arg1: i32, %arg2: i32) -> (i32, i32, i32) {
    %c0_i32 = arith.constant 0 : i32
    %c0_i32_0 = arith.constant 0 : i32
    %c0_i32_1 = arith.constant 0 : i32
    return %arg0, %c0_i32, %c0_i32_0 : i32, i32, i32
  }
  func.func @transform_4(%arg0: i32, %arg1: i32, %arg2: i32) -> (i32, i32, i32) {
    %c0_i32 = arith.constant 0 : i32
    %c0_i32_0 = arith.constant 0 : i32
    %c0_i32_1 = arith.constant 0 : i32
    return %arg0, %c0_i32, %c0_i32_0 : i32, i32, i32
  }
  func.func @transform_5(%arg0: i32, %arg1: i32, %arg2: i32) -> (i32, i32, i32) {
    %c0_i32 = arith.constant 0 : i32
    %c0_i32_0 = arith.constant 0 : i32
    %c0_i32_1 = arith.constant 0 : i32
    return %arg0, %c0_i32, %c0_i32_0 : i32, i32, i32
  }
  func.func @transform_6(%arg0: i32, %arg1: i32, %arg2: i32) -> (i32, i32, i32) {
    %c0_i32 = arith.constant 0 : i32
    %c0_i32_0 = arith.constant 0 : i32
    %c0_i32_1 = arith.constant 0 : i32
    return %arg0, %c0_i32, %c0_i32_0 : i32, i32, i32
  }
  func.func @transform_7(%arg0: i32, %arg1: i32, %arg2: i32) -> (i32, i32, i32) {
    %c0_i32 = arith.constant 0 : i32
    %c0_i32_0 = arith.constant 0 : i32
    %c0_i32_1 = arith.constant 0 : i32
    return %arg0, %c0_i32, %c0_i32_0 : i32, i32, i32
  }
  func.func @transform_8(%arg0: i32, %arg1: i32, %arg2: i32) -> (i32, i32, i32) {
    %c0_i32 = arith.constant 0 : i32
    %c0_i32_0 = arith.constant 0 : i32
    %c0_i32_1 = arith.constant 0 : i32
    return %arg0, %c0_i32, %c0_i32_0 : i32, i32, i32
  }
  func.func @transform_9(%arg0: i32, %arg1: i32, %arg2: i32) -> (i32, i32, i32, i32) {
    %c0_i32 = arith.constant 0 : i32
    %c0_i32_0 = arith.constant 0 : i32
    return %arg0, %arg1, %arg2, %c0_i32 : i32, i32, i32, i32
  }
}

module attributes {stable_mosaic.version = 11 : i64} {
  func.func @_outproj_kernel(%arg0: i32, %arg1: memref<3x128x32xbf16, #tpu.memory_space<vmem>>, %arg2: memref<32x16xbf16, #tpu.memory_space<vmem>>, %arg3: memref<128x16xf32, #tpu.memory_space<vmem>>) attributes {dimension_semantics = [#tpu.dimension_semantics<parallel>], iteration_bounds = array<i64: 1>, scalar_prefetch = 0 : i64, scratch_operands = 0 : i64, tpu.core_type = #tpu.core_type<tc>, window_params = [{transform_indices = @transform_0, window_bounds = array<i64: 3, 128, 32>}, {pipeline_mode = #tpu.pipeline_mode<synchronous>, transform_indices = @transform_1, window_bounds = array<i64: 32, 16>}, {transform_indices = @transform_2, window_bounds = array<i64: 128, 16>}]} {
    %c0 = arith.constant 0 : index
    %c0_0 = arith.constant 0 : index
    %c0_1 = arith.constant 0 : index
    %0 = vector.load %arg1[%c0, %c0_0, %c0_1] : memref<3x128x32xbf16, #tpu.memory_space<vmem>>, vector<1x128x32xbf16>
    %1 = vector.shape_cast %0 : vector<1x128x32xbf16> to vector<128x32xbf16>
    %2 = arith.extf %1 : vector<128x32xbf16> to vector<128x32xf32>
    %c1 = arith.constant 1 : index
    %c0_2 = arith.constant 0 : index
    %c0_3 = arith.constant 0 : index
    %3 = vector.load %arg1[%c1, %c0_2, %c0_3] : memref<3x128x32xbf16, #tpu.memory_space<vmem>>, vector<1x128x32xbf16>
    %4 = vector.shape_cast %3 : vector<1x128x32xbf16> to vector<128x32xbf16>
    %5 = arith.extf %4 : vector<128x32xbf16> to vector<128x32xf32>
    %6 = arith.addf %2, %5 : vector<128x32xf32>
    %c2 = arith.constant 2 : index
    %c0_4 = arith.constant 0 : index
    %c0_5 = arith.constant 0 : index
    %7 = vector.load %arg1[%c2, %c0_4, %c0_5] : memref<3x128x32xbf16, #tpu.memory_space<vmem>>, vector<1x128x32xbf16>
    %8 = vector.shape_cast %7 : vector<1x128x32xbf16> to vector<128x32xbf16>
    %9 = arith.extf %8 : vector<128x32xbf16> to vector<128x32xf32>
    %10 = arith.addf %6, %9 : vector<128x32xf32>
    %11 = arith.truncf %10 : vector<128x32xf32> to vector<128x32xbf16>
    %c0_6 = arith.constant 0 : index
    %c0_7 = arith.constant 0 : index
    %12 = vector.load %arg2[%c0_6, %c0_7] : memref<32x16xbf16, #tpu.memory_space<vmem>>, vector<32x16xbf16>
    %cst = arith.constant dense<0.000000e+00> : vector<128x16xf32>
    %13 = tpu.matmul %11, %12, %cst {dimension_numbers = #tpu.dot_dimension_numbers<[1], [0], [0], [1], [0, 0, 1, 1], [], []>} : vector<128x32xbf16>, vector<32x16xbf16>, vector<128x16xf32> -> vector<128x16xf32>
    %c0_8 = arith.constant 0 : index
    %c0_9 = arith.constant 0 : index
    %14 = vector.load %arg3[%c0_8, %c0_9] : memref<128x16xf32, #tpu.memory_space<vmem>>, vector<128x16xf32>
    tpu.vector_store %arg3[%c0_8, %c0_9], %13 {strides = array<i32>} : memref<128x16xf32, #tpu.memory_space<vmem>>, vector<128x16xf32>,
    return
  }
  func.func @transform_0(%arg0: i32) -> (i32, i32, i32) {
    %c0_i32 = arith.constant 0 : i32
    %c0_i32_0 = arith.constant 0 : i32
    %c0_i32_1 = arith.constant 0 : i32
    return %c0_i32, %arg0, %c0_i32_0 : i32, i32, i32
  }
  func.func @transform_1(%arg0: i32) -> (i32, i32) {
    %c0_i32 = arith.constant 0 : i32
    %c0_i32_0 = arith.constant 0 : i32
    %c0_i32_1 = arith.constant 0 : i32
    return %c0_i32, %c0_i32_0 : i32, i32
  }
  func.func @transform_2(%arg0: i32) -> (i32, i32) {
    %c0_i32 = arith.constant 0 : i32
    %c0_i32_0 = arith.constant 0 : i32
    return %arg0, %c0_i32 : i32, i32
  }
}

</mosaic_0001>

<llo_original>
// kernel: tri_window_mamba_forward.3
$region0: #{tri_window_mamba_forward.3}
  #allocation0 [shape = 'u32[]', space=smem, size = 0x4, offset = 0x4, fixed_abs, tag = 'smem constant byte address 0x4 - core index']
  #allocation1 [shape = 'u32[144,128]{1,0:T(1,128)}', space=vmem, size = 0x12000, scoped, tag = 'internal scratch']
  %s0 = inlined_call_operand.vmem [shape: f32[128,16], index: 0, kind: input, shape index: {}]
  %s1 = inlined_call_operand.vmem [shape: f32[1,16], index: 1, kind: input, shape index: {}]
  %s2 = inlined_call_operand.vmem [shape: f32[1,16], index: 2, kind: input, shape index: {}]
  %s3 = inlined_call_operand.vmem [shape: bf16[16,32], index: 3, kind: input, shape index: {}]
  %s4 = inlined_call_operand.vmem [shape: bf16[16,32], index: 4, kind: input, shape index: {}]
  %s5 = inlined_call_operand.vmem [shape: bf16[128,32], index: 5, kind: output, shape index: {0}]
  %s6 = inlined_call_operand.vmem [shape: bf16[128,32], index: 6, kind: output, shape index: {1}]
  %7 = xla_tuple %s5, %s6
  %s8 = sld [smem:[#allocation0]]
  $region38: #{tri_window_mamba_forward.3} parent=0
    _
  %s10 = ssub.s32 1, %s8
  %s11 = scalar_select 0, %s10, %s8
  // Predicated region
  $region2: #{tri_window_mamba_forward.3} parent=0 // pred_check
    _
  $region3: #{tri_window_mamba_forward.3} parent=0 // pred_check_branch
    %13 = sbr.rel (0) target = $region5
  $region4: #{tri_window_mamba_forward.3} parent=0 // pred_region
    _
  $region5: #{tri_window_mamba_forward.3} parent=0 // pred_fallthru
    _
  // Predicated region
  $region6: #{tri_window_mamba_forward.3} parent=0 // pred_check
    _
  $region7: #{tri_window_mamba_forward.3} parent=0 // pred_check_branch
    %15 = sbr.rel (0) target = $region9
  $region8: #{tri_window_mamba_forward.3} parent=0 // pred_region
    _
  $region9: #{tri_window_mamba_forward.3} parent=0 // pred_fallthru
    _
  // Predicated region
  $region10: #{tri_window_mamba_forward.3} parent=0 // pred_check
    _
  $region11: #{tri_window_mamba_forward.3} parent=0 // pred_check_branch
    %17 = sbr.rel (0) target = $region13
  $region12: #{tri_window_mamba_forward.3} parent=0 // pred_region
    _
  $region13: #{tri_window_mamba_forward.3} parent=0 // pred_fallthru
    _
  // Predicated region
  $region14: #{tri_window_mamba_forward.3} parent=0 // pred_check
    _
  $region15: #{tri_window_mamba_forward.3} parent=0 // pred_check_branch
    %19 = sbr.rel (0) target = $region17
  $region16: #{tri_window_mamba_forward.3} parent=0 // pred_region
    _
  $region17: #{tri_window_mamba_forward.3} parent=0 // pred_fallthru
    _
  // Predicated region
  $region18: #{tri_window_mamba_forward.3} parent=0 // pred_check
    _
  $region19: #{tri_window_mamba_forward.3} parent=0 // pred_check_branch
    %21 = sbr.rel (0) target = $region21
  $region20: #{tri_window_mamba_forward.3} parent=0 // pred_region
    _
  $region21: #{tri_window_mamba_forward.3} parent=0 // pred_fallthru
    _
  %v23 = vld [vmem:[%s0] sm:$0xff]
  %v24 = vld [vmem:[%s0 + $0x8] sm:$0xff]
  %v25 = vld [vmem:[%s0 + $0x10] sm:$0xff]
  %v26 = vld [vmem:[%s0 + $0x18] sm:$0xff]
  %v27 = vld [vmem:[%s0 + $0x20] sm:$0xff]
  %v28 = vld [vmem:[%s0 + $0x28] sm:$0xff]
  %v29 = vld [vmem:[%s0 + $0x30] sm:$0xff]
  %v30 = vld [vmem:[%s0 + $0x38] sm:$0xff]
  %v31 = vld [vmem:[%s0 + $0x40] sm:$0xff]
  %v32 = vld [vmem:[%s0 + $0x48] sm:$0xff]
  %v33 = vld [vmem:[%s0 + $0x50] sm:$0xff]
  %v34 = vld [vmem:[%s0 + $0x58] sm:$0xff]
  %v35 = vld [vmem:[%s0 + $0x60] sm:$0xff]
  %v36 = vld [vmem:[%s0 + $0x68] sm:$0xff]
  %v37 = vld [vmem:[%s0 + $0x70] sm:$0xff]
  %v38 = vld [vmem:[%s0 + $0x78] sm:$0xff]
  %vm39 = vcmask 130048
  %v40 = vsel %vm39, %v23, 0.0
  %41 = vadd.xlane.f32.xlu0 %v40
  %v42 = vpop.xlane.xlu0 %41
  %v43 = vsel %vm39, %v24, 0.0
  %44 = vadd.xlane.f32.xlu0 %v43
  %v45 = vpop.xlane.xlu0 %44
  %v46 = vsel %vm39, %v25, 0.0
  %47 = vadd.xlane.f32.xlu0 %v46
  %v48 = vpop.xlane.xlu0 %47
  %v49 = vsel %vm39, %v26, 0.0
  %50 = vadd.xlane.f32.xlu0 %v49
  %v51 = vpop.xlane.xlu0 %50
  %v52 = vsel %vm39, %v27, 0.0
  %53 = vadd.xlane.f32.xlu0 %v52
  %v54 = vpop.xlane.xlu0 %53
  %v55 = vsel %vm39, %v28, 0.0
  %56 = vadd.xlane.f32.xlu0 %v55
  %v57 = vpop.xlane.xlu0 %56
  %v58 = vsel %vm39, %v29, 0.0
  %59 = vadd.xlane.f32.xlu0 %v58
  %v60 = vpop.xlane.xlu0 %59
  %v61 = vsel %vm39, %v30, 0.0
  %62 = vadd.xlane.f32.xlu0 %v61
  %v63 = vpop.xlane.xlu0 %62
  %v64 = vsel %vm39, %v31, 0.0
  %65 = vadd.xlane.f32.xlu0 %v64
  %v66 = vpop.xlane.xlu0 %65
  %v67 = vsel %vm39, %v32, 0.0
  %68 = vadd.xlane.f32.xlu0 %v67
  %v69 = vpop.xlane.xlu0 %68
  %v70 = vsel %vm39, %v33, 0.0
  %71 = vadd.xlane.f32.xlu0 %v70
  %v72 = vpop.xlane.xlu0 %71
  %v73 = vsel %vm39, %v34, 0.0
  %74 = vadd.xlane.f32.xlu0 %v73
  %v75 = vpop.xlane.xlu0 %74
  %v76 = vsel %vm39, %v35, 0.0
  %77 = vadd.xlane.f32.xlu0 %v76
  %v78 = vpop.xlane.xlu0 %77
  %v79 = vsel %vm39, %v36, 0.0
  %80 = vadd.xlane.f32.xlu0 %v79
  %v81 = vpop.xlane.xlu0 %80
  %v82 = vsel %vm39, %v37, 0.0
  %83 = vadd.xlane.f32.xlu0 %v82
  %v84 = vpop.xlane.xlu0 %83
  %v85 = vsel %vm39, %v38, 0.0
  %86 = vadd.xlane.f32.xlu0 %v85
  %v87 = vpop.xlane.xlu0 %86
  %v88 = vrcp.pop 16.0
  %v89 = vmul.f32 %v42, %v88
  %v90 = vmul.f32 %v45, %v88
  %v91 = vmul.f32 %v48, %v88
  %v92 = vmul.f32 %v51, %v88
  %v93 = vmul.f32 %v54, %v88
  %v94 = vmul.f32 %v57, %v88
  %v95 = vmul.f32 %v60, %v88
  %v96 = vmul.f32 %v63, %v88
  %v97 = vmul.f32 %v66, %v88
  %v98 = vmul.f32 %v69, %v88
  %v99 = vmul.f32 %v72, %v88
  %v100 = vmul.f32 %v75, %v88
  %v101 = vmul.f32 %v78, %v88
  %v102 = vmul.f32 %v81, %v88
  %v103 = vmul.f32 %v84, %v88
  %v104 = vmul.f32 %v87, %v88
  %v105 = vsub.f32 %v23, %v89
  %v106 = vsub.f32 %v24, %v90
  %v107 = vsub.f32 %v25, %v91
  %v108 = vsub.f32 %v26, %v92
  %v109 = vsub.f32 %v27, %v93
  %v110 = vsub.f32 %v28, %v94
  %v111 = vsub.f32 %v29, %v95
  %v112 = vsub.f32 %v30, %v96
  %v113 = vsub.f32 %v31, %v97
  %v114 = vsub.f32 %v32, %v98
  %v115 = vsub.f32 %v33, %v99
  %v116 = vsub.f32 %v34, %v100
  %v117 = vsub.f32 %v35, %v101
  %v118 = vsub.f32 %v36, %v102
  %v119 = vsub.f32 %v37, %v103
  %v120 = vsub.f32 %v38, %v104
  %v121 = vmul.f32 %v105, %v105
  %v122 = vmul.f32 %v106, %v106
  %v123 = vmul.f32 %v107, %v107
  %v124 = vmul.f32 %v108, %v108
  %v125 = vmul.f32 %v109, %v109
  %v126 = vmul.f32 %v110, %v110
  %v127 = vmul.f32 %v111, %v111
  %v128 = vmul.f32 %v112, %v112
  %v129 = vmul.f32 %v113, %v113
  %v130 = vmul.f32 %v114, %v114
  %v131 = vmul.f32 %v115, %v115
  %v132 = vmul.f32 %v116, %v116
  %v133 = vmul.f32 %v117, %v117
  %v134 = vmul.f32 %v118, %v118
  %v135 = vmul.f32 %v119, %v119
  %v136 = vmul.f32 %v120, %v120
  %v137 = vsel %vm39, %v121, 0.0
  %138 = vadd.xlane.f32.xlu0 %v137
  %v139 = vpop.xlane.xlu0 %138
  %v140 = vsel %vm39, %v122, 0.0
  %141 = vadd.xlane.f32.xlu0 %v140
  %v142 = vpop.xlane.xlu0 %141
  %v143 = vsel %vm39, %v123, 0.0
  %144 = vadd.xlane.f32.xlu0 %v143
  %v145 = vpop.xlane.xlu0 %144
  %v146 = vsel %vm39, %v124, 0.0
  %147 = vadd.xlane.f32.xlu0 %v146
  %v148 = vpop.xlane.xlu0 %147
  %v149 = vsel %vm39, %v125, 0.0
  %150 = vadd.xlane.f32.xlu0 %v149
  %v151 = vpop.xlane.xlu0 %150
  %v152 = vsel %vm39, %v126, 0.0
  %153 = vadd.xlane.f32.xlu0 %v152
  %v154 = vpop.xlane.xlu0 %153
  %v155 = vsel %vm39, %v127, 0.0
  %156 = vadd.xlane.f32.xlu0 %v155
  %v157 = vpop.xlane.xlu0 %156
  %v158 = vsel %vm39, %v128, 0.0
  %159 = vadd.xlane.f32.xlu0 %v158
  %v160 = vpop.xlane.xlu0 %159
  %v161 = vsel %vm39, %v129, 0.0
  %162 = vadd.xlane.f32.xlu0 %v161
  %v163 = vpop.xlane.xlu0 %162
  %v164 = vsel %vm39, %v130, 0.0
  %165 = vadd.xlane.f32.xlu0 %v164
  %v166 = vpop.xlane.xlu0 %165
  %v167 = vsel %vm39, %v131, 0.0
  %168 = vadd.xlane.f32.xlu0 %v167
  %v169 = vpop.xlane.xlu0 %168
  %v170 = vsel %vm39, %v132, 0.0
  %171 = vadd.xlane.f32.xlu0 %v170
  %v172 = vpop.xlane.xlu0 %171
  %v173 = vsel %vm39, %v133, 0.0
  %174 = vadd.xlane.f32.xlu0 %v173
  %v175 = vpop.xlane.xlu0 %174
  %v176 = vsel %vm39, %v134, 0.0
  %177 = vadd.xlane.f32.xlu0 %v176
  %v178 = vpop.xlane.xlu0 %177
  %v179 = vsel %vm39, %v135, 0.0
  %180 = vadd.xlane.f32.xlu0 %v179
  %v181 = vpop.xlane.xlu0 %180
  %v182 = vsel %vm39, %v136, 0.0
  %183 = vadd.xlane.f32.xlu0 %v182
  %v184 = vpop.xlane.xlu0 %183
  %v185 = vmul.f32 %v139, %v88
  %v186 = vmul.f32 %v142, %v88
  %v187 = vmul.f32 %v145, %v88
  %v188 = vmul.f32 %v148, %v88
  %v189 = vmul.f32 %v151, %v88
  %v190 = vmul.f32 %v154, %v88
  %v191 = vmul.f32 %v157, %v88
  %v192 = vmul.f32 %v160, %v88
  %v193 = vmul.f32 %v163, %v88
  %v194 = vmul.f32 %v166, %v88
  %v195 = vmul.f32 %v169, %v88
  %v196 = vmul.f32 %v172, %v88
  %v197 = vmul.f32 %v175, %v88
  %v198 = vmul.f32 %v178, %v88
  %v199 = vmul.f32 %v181, %v88
  %v200 = vmul.f32 %v184, %v88
  %v201 = vadd.f32 %v185, 1e-05
  %v202 = vadd.f32 %v186, 1e-05
  %v203 = vadd.f32 %v187, 1e-05
  %v204 = vadd.f32 %v188, 1e-05
  %v205 = vadd.f32 %v189, 1e-05
  %v206 = vadd.f32 %v190, 1e-05
  %v207 = vadd.f32 %v191, 1e-05
  %v208 = vadd.f32 %v192, 1e-05
  %v209 = vadd.f32 %v193, 1e-05
  %v210 = vadd.f32 %v194, 1e-05
  %v211 = vadd.f32 %v195, 1e-05
  %v212 = vadd.f32 %v196, 1e-05
  %v213 = vadd.f32 %v197, 1e-05
  %v214 = vadd.f32 %v198, 1e-05
  %v215 = vadd.f32 %v199, 1e-05
  %v216 = vadd.f32 %v200, 1e-05
  %v217 = vrsqrt.pop %v201
  %v218 = vrsqrt.pop %v202
  %v219 = vrsqrt.pop %v203
  %v220 = vrsqrt.pop %v204
  %v221 = vrsqrt.pop %v205
  %v222 = vrsqrt.pop %v206
  %v223 = vrsqrt.pop %v207
  %v224 = vrsqrt.pop %v208
  %v225 = vrsqrt.pop %v209
  %v226 = vrsqrt.pop %v210
  %v227 = vrsqrt.pop %v211
  %v228 = vrsqrt.pop %v212
  %v229 = vrsqrt.pop %v213
  %v230 = vrsqrt.pop %v214
  %v231 = vrsqrt.pop %v215
  %v232 = vrsqrt.pop %v216
  %v233 = vmul.f32 %v105, %v217
  %v234 = vmul.f32 %v106, %v218
  %v235 = vmul.f32 %v107, %v219
  %v236 = vmul.f32 %v108, %v220
  %v237 = vmul.f32 %v109, %v221
  %v238 = vmul.f32 %v110, %v222
  %v239 = vmul.f32 %v111, %v223
  %v240 = vmul.f32 %v112, %v224
  %v241 = vmul.f32 %v113, %v225
  %v242 = vmul.f32 %v114, %v226
  %v243 = vmul.f32 %v115, %v227
  %v244 = vmul.f32 %v116, %v228
  %v245 = vmul.f32 %v117, %v229
  %v246 = vmul.f32 %v118, %v230
  %v247 = vmul.f32 %v119, %v231
  %v248 = vmul.f32 %v120, %v232
  %v249 = vld [vmem:[%s1] sm:$0x1]
  %v251 = vlaneseq
  %v252 = vshrl.u32 %v251, 7
  %v253 = vsub.s32 0, %v252
  %v254 = vrot.slane %v249, %v253
  %v256 = vmul.f32 %v233, %v254
  %v257 = vmul.f32 %v234, %v254
  %v258 = vmul.f32 %v235, %v254
  %v259 = vmul.f32 %v236, %v254
  %v260 = vmul.f32 %v237, %v254
  %v261 = vmul.f32 %v238, %v254
  %v262 = vmul.f32 %v239, %v254
  %v263 = vmul.f32 %v240, %v254
  %v264 = vmul.f32 %v241, %v254
  %v265 = vmul.f32 %v242, %v254
  %v266 = vmul.f32 %v243, %v254
  %v267 = vmul.f32 %v244, %v254
  %v268 = vmul.f32 %v245, %v254
  %v269 = vmul.f32 %v246, %v254
  %v270 = vmul.f32 %v247, %v254
  %v271 = vmul.f32 %v248, %v254
  %v272 = vld [vmem:[%s2] sm:$0x1]
  %v274 = vlaneseq
  %v275 = vshrl.u32 %v274, 7
  %v276 = vsub.s32 0, %v275
  %v277 = vrot.slane %v272, %v276
  %v279 = vadd.f32 %v256, %v277
  %v280 = vadd.f32 %v257, %v277
  %v281 = vadd.f32 %v258, %v277
  %v282 = vadd.f32 %v259, %v277
  %v283 = vadd.f32 %v260, %v277
  %v284 = vadd.f32 %v261, %v277
  %v285 = vadd.f32 %v262, %v277
  %v286 = vadd.f32 %v263, %v277
  %v287 = vadd.f32 %v264, %v277
  %v288 = vadd.f32 %v265, %v277
  %v289 = vadd.f32 %v266, %v277
  %v290 = vadd.f32 %v267, %v277
  %v291 = vadd.f32 %v268, %v277
  %v292 = vadd.f32 %v269, %v277
  %v293 = vadd.f32 %v270, %v277
  %v294 = vadd.f32 %v271, %v277
  %v295 = vpack.c.bf16 %v280, %v279
  %v296 = vpack.c.bf16 %v282, %v281
  %v297 = vpack.c.bf16 %v284, %v283
  %v298 = vpack.c.bf16 %v286, %v285
  %v299 = vpack.c.bf16 %v288, %v287
  %v300 = vpack.c.bf16 %v290, %v289
  %v301 = vpack.c.bf16 %v292, %v291
  %v302 = vpack.c.bf16 %v294, %v293
  %v303 = vld [vmem:[%s3] sm:$0xf]
  %v304 = vld [vmem:[%s3 + $0x4] sm:$0xf]
  %v307 = vunpack.c.l.b16 %v303
  %v308 = vunpack.c.l.b16 %v304
  %v309 = vpack.c.b16 %v308, %v307
  %v312 = vsel %vm39, %v295, 0
  %v315 = vsel %vm39, %v296, 0
  %v318 = vsel %vm39, %v297, 0
  %v321 = vsel %vm39, %v298, 0
  %v324 = vsel %vm39, %v299, 0
  %v327 = vsel %vm39, %v300, 0
  %v330 = vsel %vm39, %v301, 0
  %v333 = vsel %vm39, %v302, 0
  %335 = vmatprep.subr.bf16.mxu0 0
  %336 = vmatpush1.bf16.msra.mxu0 %v309
  %337 = vmatprep.subr.bf16.mxu0 0
  %338 = vmatpush1.bf16.msra.mxu0 0
  %339 = vmatprep.subr.bf16.mxu0 0
  %340 = vmatpush1.bf16.msra.mxu0 0
  %341 = vmatprep.subr.bf16.mxu0 0
  %342 = vmatpush1.bf16.msra.mxu0 0
  %343 = vmatprep.subr.bf16.mxu0 0
  %344 = vmatpush1.bf16.msra.mxu0 0
  %345 = vmatprep.subr.bf16.mxu0 0
  %346 = vmatpush1.bf16.msra.mxu0 0
  %347 = vmatprep.subr.bf16.mxu0 0
  %348 = vmatpush1.bf16.msra.mxu0 0
  %349 = vmatprep.subr.bf16.mxu0 0
  %350 = vmatpush1.bf16.msra.mxu0 0
  %351 = vmatprep.subr.bf16.mxu0 0
  %352 = vmatpush1.bf16.msra.mxu0 0
  %353 = vmatprep.subr.bf16.mxu0 0
  %354 = vmatpush1.bf16.msra.mxu0 0
  %355 = vmatprep.subr.bf16.mxu0 0
  %356 = vmatpush1.bf16.msra.mxu0 0
  %357 = vmatprep.subr.bf16.mxu0 0
  %358 = vmatpush1.bf16.msra.mxu0 0
  %359 = vmatprep.subr.bf16.mxu0 0
  %360 = vmatpush1.bf16.msra.mxu0 0
  %361 = vmatprep.subr.bf16.mxu0 0
  %362 = vmatpush1.bf16.msra.mxu0 0
  %363 = vmatprep.subr.bf16.mxu0 0
  %364 = vmatpush1.bf16.msra.mxu0 0
  %365 = vmatprep.subr.bf16.mxu0 0
  %366 = vmatpush1.bf16.msra.mxu0 0
  %367 = vmatprep.mubr.bf16.mxu0 0
  %368 = vmatmul.mubr.bf16.gmra.mrb[0].mxu0 %v312
  %v369 = vpop.f32.mrb[0].mxu0
  %v370 = vadd.f32 0.0, %v369
  %v371 = vpop.f32.mrb[0].mxu0
  %v372 = vpop.f32.mrb[0].mxu0
  %v373 = vadd.f32 0.0, %v372
  %v374 = vpop.f32.mrb[0].mxu0
  %375 = vmatprep.mubr.bf16.mxu0 0
  %376 = vmatmul.mubr.bf16.gmra.mrb[0].mxu0 %v315
  %v377 = vpop.f32.mrb[0].mxu0
  %v378 = vadd.f32 0.0, %v377
  %v379 = vpop.f32.mrb[0].mxu0
  %v380 = vpop.f32.mrb[0].mxu0
  %v381 = vadd.f32 0.0, %v380
  %v382 = vpop.f32.mrb[0].mxu0
  %383 = vmatprep.mubr.bf16.mxu0 0
  %384 = vmatmul.mubr.bf16.gmra.mrb[0].mxu0 %v318
  %v385 = vpop.f32.mrb[0].mxu0
  %v386 = vadd.f32 0.0, %v385
  %v387 = vpop.f32.mrb[0].mxu0
  %v388 = vpop.f32.mrb[0].mxu0
  %v389 = vadd.f32 0.0, %v388
  %v390 = vpop.f32.mrb[0].mxu0
  %391 = vmatprep.mubr.bf16.mxu0 0
  %392 = vmatmul.mubr.bf16.gmra.mrb[0].mxu0 %v321
  %v393 = vpop.f32.mrb[0].mxu0
  %v394 = vadd.f32 0.0, %v393
  %v395 = vpop.f32.mrb[0].mxu0
  %v396 = vpop.f32.mrb[0].mxu0
  %v397 = vadd.f32 0.0, %v396
  %v398 = vpop.f32.mrb[0].mxu0
  %399 = vmatprep.mubr.bf16.mxu0 0
  %400 = vmatmul.mubr.bf16.gmra.mrb[0].mxu0 %v324
  %v401 = vpop.f32.mrb[0].mxu0
  %v402 = vadd.f32 0.0, %v401
  %v403 = vpop.f32.mrb[0].mxu0
  %v404 = vpop.f32.mrb[0].mxu0
  %v405 = vadd.f32 0.0, %v404
  %v406 = vpop.f32.mrb[0].mxu0
  %407 = vmatprep.mubr.bf16.mxu0 0
  %408 = vmatmul.mubr.bf16.gmra.mrb[0].mxu0 %v327
  %v409 = vpop.f32.mrb[0].mxu0
  %v410 = vadd.f32 0.0, %v409
  %v411 = vpop.f32.mrb[0].mxu0
  %v412 = vpop.f32.mrb[0].mxu0
  %v413 = vadd.f32 0.0, %v412
  %v414 = vpop.f32.mrb[0].mxu0
  %415 = vmatprep.mubr.bf16.mxu0 0
  %416 = vmatmul.mubr.bf16.gmra.mrb[0].mxu0 %v330
  %v417 = vpop.f32.mrb[0].mxu0
  %v418 = vadd.f32 0.0, %v417
  %v419 = vpop.f32.mrb[0].mxu0
  %v420 = vpop.f32.mrb[0].mxu0
  %v421 = vadd.f32 0.0, %v420
  %v422 = vpop.f32.mrb[0].mxu0
  %423 = vmatprep.mubr.bf16.mxu0 0
  %424 = vmatmul.mubr.bf16.gmra.mrb[0].mxu0 %v333
  %v425 = vpop.f32.mrb[0].mxu0
  %v426 = vadd.f32 0.0, %v425
  %v427 = vpop.f32.mrb[0].mxu0
  %v428 = vpop.f32.mrb[0].mxu0
  %v429 = vadd.f32 0.0, %v428
  %v430 = vpop.f32.mrb[0].mxu0
  %431 = vdwg.mxu0
  %v432 = vpack.c.bf16 %v373, %v370
  %v433 = vpack.c.bf16 %v381, %v378
  %v434 = vpack.c.bf16 %v389, %v386
  %v435 = vpack.c.bf16 %v397, %v394
  %v436 = vpack.c.bf16 %v405, %v402
  %v437 = vpack.c.bf16 %v413, %v410
  %v438 = vpack.c.bf16 %v421, %v418
  %v439 = vpack.c.bf16 %v429, %v426
  %v448 = vunpack.c.l.b16 %v432
  %v449 = vunpack.c.h.b16 %v432
  %v450 = vunpack.c.l.b16 %v433
  %v451 = vunpack.c.h.b16 %v433
  %v452 = vunpack.c.l.b16 %v434
  %v453 = vunpack.c.h.b16 %v434
  %v454 = vunpack.c.l.b16 %v435
  %v455 = vunpack.c.h.b16 %v435
  %v456 = vunpack.c.l.b16 %v436
  %v457 = vunpack.c.h.b16 %v436
  %v458 = vunpack.c.l.b16 %v437
  %v459 = vunpack.c.h.b16 %v437
  %v460 = vunpack.c.l.b16 %v438
  %v461 = vunpack.c.h.b16 %v438
  %v462 = vunpack.c.l.b16 %v439
  %v463 = vunpack.c.h.b16 %v439
  %v464 = vpack.c.b16 %v448, %v448
  %v465 = vpack.c.b16 %v449, %v449
  %v466 = vpack.c.b16 %v450, %v450
  %v467 = vpack.c.b16 %v451, %v451
  %v468 = vpack.c.b16 %v452, %v452
  %v469 = vpack.c.b16 %v453, %v453
  %v470 = vpack.c.b16 %v454, %v454
  %v471 = vpack.c.b16 %v455, %v455
  %v472 = vpack.c.b16 %v456, %v456
  %v473 = vpack.c.b16 %v457, %v457
  %v474 = vpack.c.b16 %v458, %v458
  %v475 = vpack.c.b16 %v459, %v459
  %v476 = vpack.c.b16 %v460, %v460
  %v477 = vpack.c.b16 %v461, %v461
  %v478 = vpack.c.b16 %v462, %v462
  %v479 = vpack.c.b16 %v463, %v463
  %vm496 = vcmask 257024
  %497 = vst.msk [vmem:[%s5] sm:$0xf] %vm496, %v464
  %498 = vst.msk [vmem:[%s5 + $0x4] sm:$0xf] %vm496, %v465
  %499 = vst.msk [vmem:[%s5 + $0x8] sm:$0xf] %vm496, %v466
  %500 = vst.msk [vmem:[%s5 + $0xc] sm:$0xf] %vm496, %v467
  %501 = vst.msk [vmem:[%s5 + $0x10] sm:$0xf] %vm496, %v468
  %502 = vst.msk [vmem:[%s5 + $0x14] sm:$0xf] %vm496, %v469
  %503 = vst.msk [vmem:[%s5 + $0x18] sm:$0xf] %vm496, %v470
  %504 = vst.msk [vmem:[%s5 + $0x1c] sm:$0xf] %vm496, %v471
  %505 = vst.msk [vmem:[%s5 + $0x20] sm:$0xf] %vm496, %v472
  %506 = vst.msk [vmem:[%s5 + $0x24] sm:$0xf] %vm496, %v473
  %507 = vst.msk [vmem:[%s5 + $0x28] sm:$0xf] %vm496, %v474
  %508 = vst.msk [vmem:[%s5 + $0x2c] sm:$0xf] %vm496, %v475
  %509 = vst.msk [vmem:[%s5 + $0x30] sm:$0xf] %vm496, %v476
  %510 = vst.msk [vmem:[%s5 + $0x34] sm:$0xf] %vm496, %v477
  %511 = vst.msk [vmem:[%s5 + $0x38] sm:$0xf] %vm496, %v478
  %512 = vst.msk [vmem:[%s5 + $0x3c] sm:$0xf] %vm496, %v479
  %v513 = vld [vmem:[%s4] sm:$0xf]
  %v514 = vld [vmem:[%s4 + $0x4] sm:$0xf]
  %v517 = vunpack.c.l.b16 %v513
  %v518 = vunpack.c.l.b16 %v514
  %v519 = vpack.c.b16 %v518, %v517
  %521 = vmatprep.subr.bf16.mxu0 0
  %522 = vmatpush1.bf16.msra.mxu0 %v519
  %523 = vmatprep.subr.bf16.mxu0 0
  %524 = vmatpush1.bf16.msra.mxu0 0
  %525 = vmatprep.subr.bf16.mxu0 0
  %526 = vmatpush1.bf16.msra.mxu0 0
  %527 = vmatprep.subr.bf16.mxu0 0
  %528 = vmatpush1.bf16.msra.mxu0 0
  %529 = vmatprep.subr.bf16.mxu0 0
  %530 = vmatpush1.bf16.msra.mxu0 0
  %531 = vmatprep.subr.bf16.mxu0 0
  %532 = vmatpush1.bf16.msra.mxu0 0
  %533 = vmatprep.subr.bf16.mxu0 0
  %534 = vmatpush1.bf16.msra.mxu0 0
  %535 = vmatprep.subr.bf16.mxu0 0
  %536 = vmatpush1.bf16.msra.mxu0 0
  %537 = vmatprep.subr.bf16.mxu0 0
  %538 = vmatpush1.bf16.msra.mxu0 0
  %539 = vmatprep.subr.bf16.mxu0 0
  %540 = vmatpush1.bf16.msra.mxu0 0
  %541 = vmatprep.subr.bf16.mxu0 0
  %542 = vmatpush1.bf16.msra.mxu0 0
  %543 = vmatprep.subr.bf16.mxu0 0
  %544 = vmatpush1.bf16.msra.mxu0 0
  %545 = vmatprep.subr.bf16.mxu0 0
  %546 = vmatpush1.bf16.msra.mxu0 0
  %547 = vmatprep.subr.bf16.mxu0 0
  %548 = vmatpush1.bf16.msra.mxu0 0
  %549 = vmatprep.subr.bf16.mxu0 0
  %550 = vmatpush1.bf16.msra.mxu0 0
  %551 = vmatprep.subr.bf16.mxu0 0
  %552 = vmatpush1.bf16.msra.mxu0 0
  %553 = vmatprep.mubr.bf16.mxu0 0
  %554 = vmatmul.mubr.bf16.gmra.mrb[0].mxu0 %v312
  %v555 = vpop.f32.mrb[0].mxu0
  %v556 = vadd.f32 0.0, %v555
  %v557 = vpop.f32.mrb[0].mxu0
  %v558 = vpop.f32.mrb[0].mxu0
  %v559 = vadd.f32 0.0, %v558
  %v560 = vpop.f32.mrb[0].mxu0
  %561 = vmatprep.mubr.bf16.mxu0 0
  %562 = vmatmul.mubr.bf16.gmra.mrb[0].mxu0 %v315
  %v563 = vpop.f32.mrb[0].mxu0
  %v564 = vadd.f32 0.0, %v563
  %v565 = vpop.f32.mrb[0].mxu0
  %v566 = vpop.f32.mrb[0].mxu0
  %v567 = vadd.f32 0.0, %v566
  %v568 = vpop.f32.mrb[0].mxu0
  %569 = vmatprep.mubr.bf16.mxu0 0
  %570 = vmatmul.mubr.bf16.gmra.mrb[0].mxu0 %v318
  %v571 = vpop.f32.mrb[0].mxu0
  %v572 = vadd.f32 0.0, %v571
  %v573 = vpop.f32.mrb[0].mxu0
  %v574 = vpop.f32.mrb[0].mxu0
  %v575 = vadd.f32 0.0, %v574
  %v576 = vpop.f32.mrb[0].mxu0
  %577 = vmatprep.mubr.bf16.mxu0 0
  %578 = vmatmul.mubr.bf16.gmra.mrb[0].mxu0 %v321
  %v579 = vpop.f32.mrb[0].mxu0
  %v580 = vadd.f32 0.0, %v579
  %v581 = vpop.f32.mrb[0].mxu0
  %v582 = vpop.f32.mrb[0].mxu0
  %v583 = vadd.f32 0.0, %v582
  %v584 = vpop.f32.mrb[0].mxu0
  %585 = vmatprep.mubr.bf16.mxu0 0
  %586 = vmatmul.mubr.bf16.gmra.mrb[0].mxu0 %v324
  %v587 = vpop.f32.mrb[0].mxu0
  %v588 = vadd.f32 0.0, %v587
  %v589 = vpop.f32.mrb[0].mxu0
  %v590 = vpop.f32.mrb[0].mxu0
  %v591 = vadd.f32 0.0, %v590
  %v592 = vpop.f32.mrb[0].mxu0
  %593 = vmatprep.mubr.bf16.mxu0 0
  %594 = vmatmul.mubr.bf16.gmra.mrb[0].mxu0 %v327
  %v595 = vpop.f32.mrb[0].mxu0
  %v596 = vadd.f32 0.0, %v595
  %v597 = vpop.f32.mrb[0].mxu0
  %v598 = vpop.f32.mrb[0].mxu0
  %v599 = vadd.f32 0.0, %v598
  %v600 = vpop.f32.mrb[0].mxu0
  %601 = vmatprep.mubr.bf16.mxu0 0
  %602 = vmatmul.mubr.bf16.gmra.mrb[0].mxu0 %v330
  %v603 = vpop.f32.mrb[0].mxu0
  %v604 = vadd.f32 0.0, %v603
  %v605 = vpop.f32.mrb[0].mxu0
  %v606 = vpop.f32.mrb[0].mxu0
  %v607 = vadd.f32 0.0, %v606
  %v608 = vpop.f32.mrb[0].mxu0
  %609 = vmatprep.mubr.bf16.mxu0 0
  %610 = vmatmul.mubr.bf16.gmra.mrb[0].mxu0 %v333
  %v611 = vpop.f32.mrb[0].mxu0
  %v612 = vadd.f32 0.0, %v611
  %v613 = vpop.f32.mrb[0].mxu0
  %v614 = vpop.f32.mrb[0].mxu0
  %v615 = vadd.f32 0.0, %v614
  %v616 = vpop.f32.mrb[0].mxu0
  %617 = vdwg.mxu0
  %v618 = vpack.c.bf16 %v559, %v556
  %v619 = vpack.c.bf16 %v567, %v564
  %v620 = vpack.c.bf16 %v575, %v572
  %v621 = vpack.c.bf16 %v583, %v580
  %v622 = vpack.c.bf16 %v591, %v588
  %v623 = vpack.c.bf16 %v599, %v596
  %v624 = vpack.c.bf16 %v607, %v604
  %v625 = vpack.c.bf16 %v615, %v612
  %v634 = vunpack.c.l.b16 %v618
  %v635 = vunpack.c.h.b16 %v618
  %v636 = vunpack.c.l.b16 %v619
  %v637 = vunpack.c.h.b16 %v619
  %v638 = vunpack.c.l.b16 %v620
  %v639 = vunpack.c.h.b16 %v620
  %v640 = vunpack.c.l.b16 %v621
  %v641 = vunpack.c.h.b16 %v621
  %v642 = vunpack.c.l.b16 %v622
  %v643 = vunpack.c.h.b16 %v622
  %v644 = vunpack.c.l.b16 %v623
  %v645 = vunpack.c.h.b16 %v623
  %v646 = vunpack.c.l.b16 %v624
  %v647 = vunpack.c.h.b16 %v624
  %v648 = vunpack.c.l.b16 %v625
  %v649 = vunpack.c.h.b16 %v625
  %v650 = vpack.c.b16 %v634, %v634
  %v651 = vpack.c.b16 %v635, %v635
  %v652 = vpack.c.b16 %v636, %v636
  %v653 = vpack.c.b16 %v637, %v637
  %v654 = vpack.c.b16 %v638, %v638
  %v655 = vpack.c.b16 %v639, %v639
  %v656 = vpack.c.b16 %v640, %v640
  %v657 = vpack.c.b16 %v641, %v641
  %v658 = vpack.c.b16 %v642, %v642
  %v659 = vpack.c.b16 %v643, %v643
  %v660 = vpack.c.b16 %v644, %v644
  %v661 = vpack.c.b16 %v645, %v645
  %v662 = vpack.c.b16 %v646, %v646
  %v663 = vpack.c.b16 %v647, %v647
  %v664 = vpack.c.b16 %v648, %v648
  %v665 = vpack.c.b16 %v649, %v649
  %682 = vst.msk [vmem:[%s6] sm:$0xf] %vm496, %v650
  %683 = vst.msk [vmem:[%s6 + $0x4] sm:$0xf] %vm496, %v651
  %684 = vst.msk [vmem:[%s6 + $0x8] sm:$0xf] %vm496, %v652
  %685 = vst.msk [vmem:[%s6 + $0xc] sm:$0xf] %vm496, %v653
  %686 = vst.msk [vmem:[%s6 + $0x10] sm:$0xf] %vm496, %v654
  %687 = vst.msk [vmem:[%s6 + $0x14] sm:$0xf] %vm496, %v655
  %688 = vst.msk [vmem:[%s6 + $0x18] sm:$0xf] %vm496, %v656
  %689 = vst.msk [vmem:[%s6 + $0x1c] sm:$0xf] %vm496, %v657
  %690 = vst.msk [vmem:[%s6 + $0x20] sm:$0xf] %vm496, %v658
  %691 = vst.msk [vmem:[%s6 + $0x24] sm:$0xf] %vm496, %v659
  %692 = vst.msk [vmem:[%s6 + $0x28] sm:$0xf] %vm496, %v660
  %693 = vst.msk [vmem:[%s6 + $0x2c] sm:$0xf] %vm496, %v661
  %694 = vst.msk [vmem:[%s6 + $0x30] sm:$0xf] %vm496, %v662
  %695 = vst.msk [vmem:[%s6 + $0x34] sm:$0xf] %vm496, %v663
  %696 = vst.msk [vmem:[%s6 + $0x38] sm:$0xf] %vm496, %v664
  %697 = vst.msk [vmem:[%s6 + $0x3c] sm:$0xf] %vm496, %v665
  // Predicated region
  $region22: #{tri_window_mamba_forward.3} parent=0 // pred_check
    _
  $region23: #{tri_window_mamba_forward.3} parent=0 // pred_check_branch
    %699 = sbr.rel (0) target = $region25
  $region24: #{tri_window_mamba_forward.3} parent=0 // pred_region
    _
  $region25: #{tri_window_mamba_forward.3} parent=0 // pred_fallthru
    _
  // Predicated region
  $region26: #{tri_window_mamba_forward.3} parent=0 // pred_check
    _
  $region27: #{tri_window_mamba_forward.3} parent=0 // pred_check_branch
    %701 = sbr.rel (0) target = $region29
  $region28: #{tri_window_mamba_forward.3} parent=0 // pred_region
    _
  $region29: #{tri_window_mamba_forward.3} parent=0 // pred_fallthru
    _
  // Predicated region
  $region30: #{tri_window_mamba_forward.3} parent=0 // pred_check
    _
  $region31: #{tri_window_mamba_forward.3} parent=0 // pred_check_branch
    %703 = sbr.rel (0) target = $region33
  $region32: #{tri_window_mamba_forward.3} parent=0 // pred_region
    _
  $region33: #{tri_window_mamba_forward.3} parent=0 // pred_fallthru
    _
  // Predicated region
  $region34: #{tri_window_mamba_forward.3} parent=0 // pred_check
    _
  $region35: #{tri_window_mamba_forward.3} parent=0 // pred_check_branch
    %705 = sbr.rel (0) target = $region37
  $region36: #{tri_window_mamba_forward.3} parent=0 // pred_region
    _
  $region37: #{tri_window_mamba_forward.3} parent=0 // pred_fallthru
    _

// kernel: tri_window_mamba_forward.5
$region0: #{tri_window_mamba_forward.5}
  #allocation0 [shape = 'u32[]', space=smem, size = 0x4, offset = 0x4, fixed_abs, tag = 'smem constant byte address 0x4 - core index']
  #allocation1 [shape = 'u32[144,128]{1,0:T(1,128)}', space=vmem, size = 0x12000, scoped, tag = 'internal scratch']
  %s0 = inlined_call_operand.vmem [shape: bf16[3,128,32], index: 0, kind: input, shape index: {}]
  %s1 = inlined_call_operand.vmem [shape: bf16[32,16], index: 1, kind: input, shape index: {}]
  %s2 = inlined_call_operand.vmem [shape: f32[128,16], index: 2, kind: output, shape index: {}]
  %s3 = sld [smem:[#allocation0]]
  $region18: #{tri_window_mamba_forward.5} parent=0
    _
  %s5 = ssub.s32 1, %s3
  %s6 = scalar_select 0, %s5, %s3
  // Predicated region
  $region2: #{tri_window_mamba_forward.5} parent=0 // pred_check
    _
  $region3: #{tri_window_mamba_forward.5} parent=0 // pred_check_branch
    %8 = sbr.rel (0) target = $region5
  $region4: #{tri_window_mamba_forward.5} parent=0 // pred_region
    _
  $region5: #{tri_window_mamba_forward.5} parent=0 // pred_fallthru
    _
  // Predicated region
  $region6: #{tri_window_mamba_forward.5} parent=0 // pred_check
    _
  $region7: #{tri_window_mamba_forward.5} parent=0 // pred_check_branch
    %10 = sbr.rel (0) target = $region9
  $region8: #{tri_window_mamba_forward.5} parent=0 // pred_region
    _
  $region9: #{tri_window_mamba_forward.5} parent=0 // pred_fallthru
    _
  %v12 = vld [vmem:[%s0] sm:$0xf]
  %v13 = vld [vmem:[%s0 + $0x4] sm:$0xf]
  %v14 = vld [vmem:[%s0 + $0x8] sm:$0xf]
  %v15 = vld [vmem:[%s0 + $0xc] sm:$0xf]
  %v16 = vld [vmem:[%s0 + $0x10] sm:$0xf]
  %v17 = vld [vmem:[%s0 + $0x14] sm:$0xf]
  %v18 = vld [vmem:[%s0 + $0x18] sm:$0xf]
  %v19 = vld [vmem:[%s0 + $0x1c] sm:$0xf]
  %v20 = vld [vmem:[%s0 + $0x20] sm:$0xf]
  %v21 = vld [vmem:[%s0 + $0x24] sm:$0xf]
  %v22 = vld [vmem:[%s0 + $0x28] sm:$0xf]
  %v23 = vld [vmem:[%s0 + $0x2c] sm:$0xf]
  %v24 = vld [vmem:[%s0 + $0x30] sm:$0xf]
  %v25 = vld [vmem:[%s0 + $0x34] sm:$0xf]
  %v26 = vld [vmem:[%s0 + $0x38] sm:$0xf]
  %v27 = vld [vmem:[%s0 + $0x3c] sm:$0xf]
  %v28 = vunpack.c.l.bf16 %v12
  %v29 = vunpack.c.l.bf16 %v13
  %v30 = vunpack.c.l.bf16 %v14
  %v31 = vunpack.c.l.bf16 %v15
  %v32 = vunpack.c.l.bf16 %v16
  %v33 = vunpack.c.l.bf16 %v17
  %v34 = vunpack.c.l.bf16 %v18
  %v35 = vunpack.c.l.bf16 %v19
  %v36 = vunpack.c.l.bf16 %v20
  %v37 = vunpack.c.l.bf16 %v21
  %v38 = vunpack.c.l.bf16 %v22
  %v39 = vunpack.c.l.bf16 %v23
  %v40 = vunpack.c.l.bf16 %v24
  %v41 = vunpack.c.l.bf16 %v25
  %v42 = vunpack.c.l.bf16 %v26
  %v43 = vunpack.c.l.bf16 %v27
  %s44 = scalar_lea.vmem %s0, 64
  %v45 = vld [vmem:[%s44] sm:$0xf]
  %v46 = vld [vmem:[%s44 + $0x4] sm:$0xf]
  %v47 = vld [vmem:[%s44 + $0x8] sm:$0xf]
  %v48 = vld [vmem:[%s44 + $0xc] sm:$0xf]
  %v49 = vld [vmem:[%s44 + $0x10] sm:$0xf]
  %v50 = vld [vmem:[%s44 + $0x14] sm:$0xf]
  %v51 = vld [vmem:[%s44 + $0x18] sm:$0xf]
  %v52 = vld [vmem:[%s44 + $0x1c] sm:$0xf]
  %v53 = vld [vmem:[%s44 + $0x20] sm:$0xf]
  %v54 = vld [vmem:[%s44 + $0x24] sm:$0xf]
  %v55 = vld [vmem:[%s44 + $0x28] sm:$0xf]
  %v56 = vld [vmem:[%s44 + $0x2c] sm:$0xf]
  %v57 = vld [vmem:[%s44 + $0x30] sm:$0xf]
  %v58 = vld [vmem:[%s44 + $0x34] sm:$0xf]
  %v59 = vld [vmem:[%s44 + $0x38] sm:$0xf]
  %v60 = vld [vmem:[%s44 + $0x3c] sm:$0xf]
  %v61 = vunpack.c.l.bf16 %v45
  %v62 = vunpack.c.l.bf16 %v46
  %v63 = vunpack.c.l.bf16 %v47
  %v64 = vunpack.c.l.bf16 %v48
  %v65 = vunpack.c.l.bf16 %v49
  %v66 = vunpack.c.l.bf16 %v50
  %v67 = vunpack.c.l.bf16 %v51
  %v68 = vunpack.c.l.bf16 %v52
  %v69 = vunpack.c.l.bf16 %v53
  %v70 = vunpack.c.l.bf16 %v54
  %v71 = vunpack.c.l.bf16 %v55
  %v72 = vunpack.c.l.bf16 %v56
  %v73 = vunpack.c.l.bf16 %v57
  %v74 = vunpack.c.l.bf16 %v58
  %v75 = vunpack.c.l.bf16 %v59
  %v76 = vunpack.c.l.bf16 %v60
  %v77 = vadd.f32 %v28, %v61
  %v78 = vadd.f32 %v29, %v62
  %v79 = vadd.f32 %v30, %v63
  %v80 = vadd.f32 %v31, %v64
  %v81 = vadd.f32 %v32, %v65
  %v82 = vadd.f32 %v33, %v66
  %v83 = vadd.f32 %v34, %v67
  %v84 = vadd.f32 %v35, %v68
  %v85 = vadd.f32 %v36, %v69
  %v86 = vadd.f32 %v37, %v70
  %v87 = vadd.f32 %v38, %v71
  %v88 = vadd.f32 %v39, %v72
  %v89 = vadd.f32 %v40, %v73
  %v90 = vadd.f32 %v41, %v74
  %v91 = vadd.f32 %v42, %v75
  %v92 = vadd.f32 %v43, %v76
  %s93 = scalar_lea.vmem %s0, 128
  %v94 = vld [vmem:[%s93] sm:$0xf]
  %v95 = vld [vmem:[%s93 + $0x4] sm:$0xf]
  %v96 = vld [vmem:[%s93 + $0x8] sm:$0xf]
  %v97 = vld [vmem:[%s93 + $0xc] sm:$0xf]
  %v98 = vld [vmem:[%s93 + $0x10] sm:$0xf]
  %v99 = vld [vmem:[%s93 + $0x14] sm:$0xf]
  %v100 = vld [vmem:[%s93 + $0x18] sm:$0xf]
  %v101 = vld [vmem:[%s93 + $0x1c] sm:$0xf]
  %v102 = vld [vmem:[%s93 + $0x20] sm:$0xf]
  %v103 = vld [vmem:[%s93 + $0x24] sm:$0xf]
  %v104 = vld [vmem:[%s93 + $0x28] sm:$0xf]
  %v105 = vld [vmem:[%s93 + $0x2c] sm:$0xf]
  %v106 = vld [vmem:[%s93 + $0x30] sm:$0xf]
  %v107 = vld [vmem:[%s93 + $0x34] sm:$0xf]
  %v108 = vld [vmem:[%s93 + $0x38] sm:$0xf]
  %v109 = vld [vmem:[%s93 + $0x3c] sm:$0xf]
  %v110 = vunpack.c.l.bf16 %v94
  %v111 = vunpack.c.l.bf16 %v95
  %v112 = vunpack.c.l.bf16 %v96
  %v113 = vunpack.c.l.bf16 %v97
  %v114 = vunpack.c.l.bf16 %v98
  %v115 = vunpack.c.l.bf16 %v99
  %v116 = vunpack.c.l.bf16 %v100
  %v117 = vunpack.c.l.bf16 %v101
  %v118 = vunpack.c.l.bf16 %v102
  %v119 = vunpack.c.l.bf16 %v103
  %v120 = vunpack.c.l.bf16 %v104
  %v121 = vunpack.c.l.bf16 %v105
  %v122 = vunpack.c.l.bf16 %v106
  %v123 = vunpack.c.l.bf16 %v107
  %v124 = vunpack.c.l.bf16 %v108
  %v125 = vunpack.c.l.bf16 %v109
  %v126 = vadd.f32 %v77, %v110
  %v127 = vadd.f32 %v78, %v111
  %v128 = vadd.f32 %v79, %v112
  %v129 = vadd.f32 %v80, %v113
  %v130 = vadd.f32 %v81, %v114
  %v131 = vadd.f32 %v82, %v115
  %v132 = vadd.f32 %v83, %v116
  %v133 = vadd.f32 %v84, %v117
  %v134 = vadd.f32 %v85, %v118
  %v135 = vadd.f32 %v86, %v119
  %v136 = vadd.f32 %v87, %v120
  %v137 = vadd.f32 %v88, %v121
  %v138 = vadd.f32 %v89, %v122
  %v139 = vadd.f32 %v90, %v123
  %v140 = vadd.f32 %v91, %v124
  %v141 = vadd.f32 %v92, %v125
  %v142 = vpack.c.bf16 %v127, %v126
  %v143 = vpack.c.bf16 %v129, %v128
  %v144 = vpack.c.bf16 %v131, %v130
  %v145 = vpack.c.bf16 %v133, %v132
  %v146 = vpack.c.bf16 %v135, %v134
  %v147 = vpack.c.bf16 %v137, %v136
  %v148 = vpack.c.bf16 %v139, %v138
  %v149 = vpack.c.bf16 %v141, %v140
  %v150 = vld [vmem:[%s1] sm:$0xf]
  %v151 = vld [vmem:[%s1 + $0x4] sm:$0xf]
  %v152 = vld [vmem:[%s1 + $0x8] sm:$0xf]
  %v153 = vld [vmem:[%s1 + $0xc] sm:$0xf]
  %v158 = vunpack.c.l.b16 %v150
  %v159 = vunpack.c.l.b16 %v151
  %v160 = vunpack.c.l.b16 %v152
  %v161 = vunpack.c.l.b16 %v153
  %v162 = vpack.c.b16 %v159, %v158
  %v163 = vpack.c.b16 %v161, %v160
  %vm166 = vcmask 261120
  %v168 = vsel %vm166, %v142, 0
  %v171 = vsel %vm166, %v143, 0
  %v174 = vsel %vm166, %v144, 0
  %v177 = vsel %vm166, %v145, 0
  %v180 = vsel %vm166, %v146, 0
  %v183 = vsel %vm166, %v147, 0
  %v186 = vsel %vm166, %v148, 0
  %v189 = vsel %vm166, %v149, 0
  %191 = vmatprep.subr.bf16.mxu0 0
  %192 = vmatpush1.bf16.msra.mxu0 %v162
  %193 = vmatprep.subr.bf16.mxu0 0
  %194 = vmatpush1.bf16.msra.mxu0 %v163
  %195 = vmatprep.subr.bf16.mxu0 0
  %196 = vmatpush1.bf16.msra.mxu0 0
  %197 = vmatprep.subr.bf16.mxu0 0
  %198 = vmatpush1.bf16.msra.mxu0 0
  %199 = vmatprep.subr.bf16.mxu0 0
  %200 = vmatpush1.bf16.msra.mxu0 0
  %201 = vmatprep.subr.bf16.mxu0 0
  %202 = vmatpush1.bf16.msra.mxu0 0
  %203 = vmatprep.subr.bf16.mxu0 0
  %204 = vmatpush1.bf16.msra.mxu0 0
  %205 = vmatprep.subr.bf16.mxu0 0
  %206 = vmatpush1.bf16.msra.mxu0 0
  %207 = vmatprep.subr.bf16.mxu0 0
  %208 = vmatpush1.bf16.msra.mxu0 0
  %209 = vmatprep.subr.bf16.mxu0 0
  %210 = vmatpush1.bf16.msra.mxu0 0
  %211 = vmatprep.subr.bf16.mxu0 0
  %212 = vmatpush1.bf16.msra.mxu0 0
  %213 = vmatprep.subr.bf16.mxu0 0
  %214 = vmatpush1.bf16.msra.mxu0 0
  %215 = vmatprep.subr.bf16.mxu0 0
  %216 = vmatpush1.bf16.msra.mxu0 0
  %217 = vmatprep.subr.bf16.mxu0 0
  %218 = vmatpush1.bf16.msra.mxu0 0
  %219 = vmatprep.subr.bf16.mxu0 0
  %220 = vmatpush1.bf16.msra.mxu0 0
  %221 = vmatprep.subr.bf16.mxu0 0
  %222 = vmatpush1.bf16.msra.mxu0 0
  %223 = vmatprep.mubr.bf16.mxu0 0
  %224 = vmatmul.mubr.bf16.gmra.mrb[0].mxu0 %v168
  %v225 = vpop.f32.mrb[0].mxu0
  %v226 = vadd.f32 0.0, %v225
  %v227 = vpop.f32.mrb[0].mxu0
  %v228 = vpop.f32.mrb[0].mxu0
  %v229 = vadd.f32 0.0, %v228
  %v230 = vpop.f32.mrb[0].mxu0
  %231 = vmatprep.mubr.bf16.mxu0 0
  %232 = vmatmul.mubr.bf16.gmra.mrb[0].mxu0 %v171
  %v233 = vpop.f32.mrb[0].mxu0
  %v234 = vadd.f32 0.0, %v233
  %v235 = vpop.f32.mrb[0].mxu0
  %v236 = vpop.f32.mrb[0].mxu0
  %v237 = vadd.f32 0.0, %v236
  %v238 = vpop.f32.mrb[0].mxu0
  %239 = vmatprep.mubr.bf16.mxu0 0
  %240 = vmatmul.mubr.bf16.gmra.mrb[0].mxu0 %v174
  %v241 = vpop.f32.mrb[0].mxu0
  %v242 = vadd.f32 0.0, %v241
  %v243 = vpop.f32.mrb[0].mxu0
  %v244 = vpop.f32.mrb[0].mxu0
  %v245 = vadd.f32 0.0, %v244
  %v246 = vpop.f32.mrb[0].mxu0
  %247 = vmatprep.mubr.bf16.mxu0 0
  %248 = vmatmul.mubr.bf16.gmra.mrb[0].mxu0 %v177
  %v249 = vpop.f32.mrb[0].mxu0
  %v250 = vadd.f32 0.0, %v249
  %v251 = vpop.f32.mrb[0].mxu0
  %v252 = vpop.f32.mrb[0].mxu0
  %v253 = vadd.f32 0.0, %v252
  %v254 = vpop.f32.mrb[0].mxu0
  %255 = vmatprep.mubr.bf16.mxu0 0
  %256 = vmatmul.mubr.bf16.gmra.mrb[0].mxu0 %v180
  %v257 = vpop.f32.mrb[0].mxu0
  %v258 = vadd.f32 0.0, %v257
  %v259 = vpop.f32.mrb[0].mxu0
  %v260 = vpop.f32.mrb[0].mxu0
  %v261 = vadd.f32 0.0, %v260
  %v262 = vpop.f32.mrb[0].mxu0
  %263 = vmatprep.mubr.bf16.mxu0 0
  %264 = vmatmul.mubr.bf16.gmra.mrb[0].mxu0 %v183
  %v265 = vpop.f32.mrb[0].mxu0
  %v266 = vadd.f32 0.0, %v265
  %v267 = vpop.f32.mrb[0].mxu0
  %v268 = vpop.f32.mrb[0].mxu0
  %v269 = vadd.f32 0.0, %v268
  %v270 = vpop.f32.mrb[0].mxu0
  %271 = vmatprep.mubr.bf16.mxu0 0
  %272 = vmatmul.mubr.bf16.gmra.mrb[0].mxu0 %v186
  %v273 = vpop.f32.mrb[0].mxu0
  %v274 = vadd.f32 0.0, %v273
  %v275 = vpop.f32.mrb[0].mxu0
  %v276 = vpop.f32.mrb[0].mxu0
  %v277 = vadd.f32 0.0, %v276
  %v278 = vpop.f32.mrb[0].mxu0
  %279 = vmatprep.mubr.bf16.mxu0 0
  %280 = vmatmul.mubr.bf16.gmra.mrb[0].mxu0 %v189
  %v281 = vpop.f32.mrb[0].mxu0
  %v282 = vadd.f32 0.0, %v281
  %v283 = vpop.f32.mrb[0].mxu0
  %v284 = vpop.f32.mrb[0].mxu0
  %v285 = vadd.f32 0.0, %v284
  %v286 = vpop.f32.mrb[0].mxu0
  %287 = vdwg.mxu0
  %vm288 = vcmask 130048
  %289 = vst.msk [vmem:[%s2] sm:$0xff] %vm288, %v226
  %290 = vst.msk [vmem:[%s2 + $0x8] sm:$0xff] %vm288, %v229
  %291 = vst.msk [vmem:[%s2 + $0x10] sm:$0xff] %vm288, %v234
  %292 = vst.msk [vmem:[%s2 + $0x18] sm:$0xff] %vm288, %v237
  %293 = vst.msk [vmem:[%s2 + $0x20] sm:$0xff] %vm288, %v242
  %294 = vst.msk [vmem:[%s2 + $0x28] sm:$0xff] %vm288, %v245
  %295 = vst.msk [vmem:[%s2 + $0x30] sm:$0xff] %vm288, %v250
  %296 = vst.msk [vmem:[%s2 + $0x38] sm:$0xff] %vm288, %v253
  %297 = vst.msk [vmem:[%s2 + $0x40] sm:$0xff] %vm288, %v258
  %298 = vst.msk [vmem:[%s2 + $0x48] sm:$0xff] %vm288, %v261
  %299 = vst.msk [vmem:[%s2 + $0x50] sm:$0xff] %vm288, %v266
  %300 = vst.msk [vmem:[%s2 + $0x58] sm:$0xff] %vm288, %v269
  %301 = vst.msk [vmem:[%s2 + $0x60] sm:$0xff] %vm288, %v274
  %302 = vst.msk [vmem:[%s2 + $0x68] sm:$0xff] %vm288, %v277
  %303 = vst.msk [vmem:[%s2 + $0x70] sm:$0xff] %vm288, %v282
  %304 = vst.msk [vmem:[%s2 + $0x78] sm:$0xff] %vm288, %v285
  // Predicated region
  $region10: #{tri_window_mamba_forward.5} parent=0 // pred_check
    _
  $region11: #{tri_window_mamba_forward.5} parent=0 // pred_check_branch
    %306 = sbr.rel (0) target = $region13
  $region12: #{tri_window_mamba_forward.5} parent=0 // pred_region
    _
  $region13: #{tri_window_mamba_forward.5} parent=0 // pred_fallthru
    _
  // Predicated region
  $region14: #{tri_window_mamba_forward.5} parent=0 // pred_check
    _
  $region15: #{tri_window_mamba_forward.5} parent=0 // pred_check_branch
    %308 = sbr.rel (0) target = $region17
  $region16: #{tri_window_mamba_forward.5} parent=0 // pred_region
    _
  $region17: #{tri_window_mamba_forward.5} parent=0 // pred_fallthru
    _

// kernel: tri_window_mamba_forward.4
$region0: #{tri_window_mamba_forward.4}
  #allocation0 [shape = 'u32[]', space=smem, size = 0x4, offset = 0x4, fixed_abs, tag = 'smem constant byte address 0x4 - core index']
  #allocation1 [shape = 'u32[144,128]{1,0:T(1,128)}', space=vmem, size = 0x12000, scoped, tag = 'internal scratch']
  #allocation2 [shape = 'f32[64,16,32]{2,1,0:T(8,128)}', space=vmem, size = 0x80000, scoped, tag = 'scratch operand']
  #allocation3 [shape = 'f32[64,16,32]{2,1,0:T(8,128)}', space=vmem, size = 0x80000, scoped, tag = 'scratch operand']
  #allocation4 [shape = 'f32[16,32]{1,0:T(8,128)}', space=vmem, size = 0x2000, scoped, tag = 'scratch operand']
  #allocation5 [shape = 'f32[64,32]{1,0:T(8,128)}', space=vmem, size = 0x8000, scoped, tag = 'scratch operand']
  %s0 = inlined_call_operand.vmem [shape: bf16[3,2,64,32], index: 0, kind: input, shape index: {}]
  %s1 = inlined_call_operand.vmem [shape: bf16[3,2,64,32], index: 1, kind: input, shape index: {}]
  %s2 = inlined_call_operand.vmem [shape: f32[3,4,32], index: 2, kind: input, shape index: {}]
  %s3 = inlined_call_operand.vmem [shape: f32[3,1,32], index: 3, kind: input, shape index: {}]
  %s4 = inlined_call_operand.vmem [shape: bf16[3,32,272], index: 4, kind: input, shape index: {}]
  %s5 = inlined_call_operand.vmem [shape: f32[3,1,32], index: 5, kind: input, shape index: {}]
  %s6 = inlined_call_operand.vmem [shape: f32[3,1,32], index: 6, kind: input, shape index: {}]
  %s7 = inlined_call_operand.vmem [shape: f32[3,16,32], index: 7, kind: input, shape index: {}]
  %s8 = inlined_call_operand.vmem [shape: f32[3,1,32], index: 8, kind: input, shape index: {}]
  %s9 = inlined_call_operand.vmem [shape: bf16[3,2,64,32], index: 9, kind: output, shape index: {}]
  %s10 = sld [smem:[#allocation0]]
  $region80: #{tri_window_mamba_forward.4} parent=0
    _
  %s12 = ssub.s32 1, %s10
  %s13 = scalar_select 0, %s12, %s10
  loop: start=0, step=1, limit=8
  $region2: #{tri_window_mamba_forward.4} parent=0 // loop_pre_header
    _
  $region3: #{tri_window_mamba_forward.4} parent=0 // loop_header
    %s15 = sphi 0, %s19
    %p16 = scmp.ge.s32.totalorder %s15, 8
    %s22 = sphi 0, %s41
    %s23 = sphi 0, %s37
    %s24 = sphi 0, %s33
    %s25 = sphi 0, %s22
    %s26 = sphi 0, %s23
    %s27 = sphi 0, %s24
    %s28 = sphi 0, %s25
    %s29 = sphi 0, %s26
    %s30 = sphi 0, %s27
    %s48 = sphi 0, %s50
    %s51 = sphi 0, %s48
    %s52 = sphi 0, %s51
    %s68 = sphi 0, %s52
    %s78 = sphi 0, %s80
    %s81 = sphi 0, %s78
    %s82 = sphi 0, %s81
    %s98 = sphi 0, %s82
    %s104 = sphi 0, %s106
    %s107 = sphi 0, %s104
    %s108 = sphi 0, %s107
    %s124 = sphi 0, %s108
    %s130 = sphi 0, %s132
    %s133 = sphi 0, %s130
    %s134 = sphi 0, %s133
    %s150 = sphi 0, %s134
    %s156 = sphi 0, %s158
    %s159 = sphi 0, %s156
    %s160 = sphi 0, %s159
    %s176 = sphi 0, %s160
    %s182 = sphi 0, %s184
    %s185 = sphi 0, %s182
    %s186 = sphi 0, %s185
    %s202 = sphi 0, %s186
    %s208 = sphi 0, %s210
    %s211 = sphi 0, %s208
    %s212 = sphi 0, %s211
    %s228 = sphi 0, %s212
    %s234 = sphi 0, %s236
    %s237 = sphi 0, %s234
    %s238 = sphi 0, %s237
    %s254 = sphi 0, %s238
    %s260 = sphi 0, %s262
    %s263 = sphi 0, %s260
    %s264 = sphi 0, %s263
    %s280 = sphi 0, %s264
    %s290 = sphi 0, %s292
    %s293 = sphi 0, %s290
    %s294 = sphi 0, %s293
    %s310 = sphi 0, %s294
  $region4: #{tri_window_mamba_forward.4} parent=0 // loop_header_branch
    %18 = sbr.rel (%p16) target = $region8
  $region5: #{tri_window_mamba_forward.4} parent=0 // loop_body
    %s20 = ssub.s32 %s15, 1
    %s21 = ssub.s32 %s15, 2
    %s31 = sadd.s32 1, %s24
    %p32 = scmp.ge.s32.totalorder %s31, 1
    %s33 = scalar_select %p32, 0, %s31
    %s34 = sadd.s32 1, %s23
    %s35 = scalar_select %p32, %s34, %s23
    %p36 = scmp.ge.s32.totalorder %s35, 2
    %s37 = scalar_select %p36, 0, %s35
    %s38 = sadd.s32 1, %s22
    %s39 = scalar_select %p36, %s38, %s22
    %p40 = scmp.ge.s32.totalorder %s39, 3
    %s41 = scalar_select %p40, 0, %s39
    %s42 = ssub.s32 %s22, %s41
    %s43 = ssub.s32 %s23, %s37
    %s44 = sor.u32 %s42, %s43
    %s45 = ssub.s32 %s24, %s33
    %s46 = sor.u32 %s44, %s45
    %p47 = scmp.eq.s32.totalorder %s46, 0
    %s49 = sadd.s32 %s48, 1
    %s50 = scalar_select %p47, %s48, %s49
    %p53 = pneg %p47
    %p54 = scmp.eq.s32.totalorder %s15, 5
    %p55 = por %p53, %p54
    %p56 = scmp.ne.s32.totalorder %s48, %s51
    %p57 = scmp.eq.s32.totalorder %s15, 0
    %p58 = por %p56, %p57
    %p59 = scmp.ne.s32.totalorder %s48, %s51
    %p60 = scmp.eq.s32.totalorder %s20, 5
    %p61 = por %p59, %p60
    %p62 = scmp.ne.s32.totalorder %s51, %s52
    %p63 = scmp.eq.s32.totalorder %s20, 0
    %p64 = por %p62, %p63
    %p65 = scmp.ne.s32.totalorder %s51, %s52
    %p66 = scmp.eq.s32.totalorder %s21, 5
    %p67 = por %p65, %p66
    %p69 = scmp.ne.s32.totalorder %s52, %s68
    %p70 = scmp.eq.s32.totalorder %s21, 0
    %p71 = por %p69, %p70
    %s72 = ssub.s32 %s22, %s41
    %s73 = ssub.s32 %s23, %s37
    %s74 = sor.u32 %s72, %s73
    %s75 = ssub.s32 %s24, %s33
    %s76 = sor.u32 %s74, %s75
    %p77 = scmp.eq.s32.totalorder %s76, 0
    %s79 = sadd.s32 %s78, 1
    %s80 = scalar_select %p77, %s78, %s79
    %p83 = pneg %p77
    %p84 = scmp.eq.s32.totalorder %s15, 5
    %p85 = por %p83, %p84
    %p86 = scmp.ne.s32.totalorder %s78, %s81
    %p87 = scmp.eq.s32.totalorder %s15, 0
    %p88 = por %p86, %p87
    %p89 = scmp.ne.s32.totalorder %s78, %s81
    %p90 = scmp.eq.s32.totalorder %s20, 5
    %p91 = por %p89, %p90
    %p92 = scmp.ne.s32.totalorder %s81, %s82
    %p93 = scmp.eq.s32.totalorder %s20, 0
    %p94 = por %p92, %p93
    %p95 = scmp.ne.s32.totalorder %s81, %s82
    %p96 = scmp.eq.s32.totalorder %s21, 5
    %p97 = por %p95, %p96
    %p99 = scmp.ne.s32.totalorder %s82, %s98
    %p100 = scmp.eq.s32.totalorder %s21, 0
    %p101 = por %p99, %p100
    %s102 = ssub.s32 %s22, %s41
    %p103 = scmp.eq.s32.totalorder %s102, 0
    %s105 = sadd.s32 %s104, 1
    %s106 = scalar_select %p103, %s104, %s105
    %p109 = pneg %p103
    %p110 = scmp.eq.s32.totalorder %s15, 5
    %p111 = por %p109, %p110
    %p112 = scmp.ne.s32.totalorder %s104, %s107
    %p113 = scmp.eq.s32.totalorder %s15, 0
    %p114 = por %p112, %p113
    %p115 = scmp.ne.s32.totalorder %s104, %s107
    %p116 = scmp.eq.s32.totalorder %s20, 5
    %p117 = por %p115, %p116
    %p118 = scmp.ne.s32.totalorder %s107, %s108
    %p119 = scmp.eq.s32.totalorder %s20, 0
    %p120 = por %p118, %p119
    %p121 = scmp.ne.s32.totalorder %s107, %s108
    %p122 = scmp.eq.s32.totalorder %s21, 5
    %p123 = por %p121, %p122
    %p125 = scmp.ne.s32.totalorder %s108, %s124
    %p126 = scmp.eq.s32.totalorder %s21, 0
    %p127 = por %p125, %p126
    %s128 = ssub.s32 %s22, %s41
    %p129 = scmp.eq.s32.totalorder %s128, 0
    %s131 = sadd.s32 %s130, 1
    %s132 = scalar_select %p129, %s130, %s131
    %p135 = pneg %p129
    %p136 = scmp.eq.s32.totalorder %s15, 5
    %p137 = por %p135, %p136
    %p138 = scmp.ne.s32.totalorder %s130, %s133
    %p139 = scmp.eq.s32.totalorder %s15, 0
    %p140 = por %p138, %p139
    %p141 = scmp.ne.s32.totalorder %s130, %s133
    %p142 = scmp.eq.s32.totalorder %s20, 5
    %p143 = por %p141, %p142
    %p144 = scmp.ne.s32.totalorder %s133, %s134
    %p145 = scmp.eq.s32.totalorder %s20, 0
    %p146 = por %p144, %p145
    %p147 = scmp.ne.s32.totalorder %s133, %s134
    %p148 = scmp.eq.s32.totalorder %s21, 5
    %p149 = por %p147, %p148
    %p151 = scmp.ne.s32.totalorder %s134, %s150
    %p152 = scmp.eq.s32.totalorder %s21, 0
    %p153 = por %p151, %p152
    %s154 = ssub.s32 %s22, %s41
    %p155 = scmp.eq.s32.totalorder %s154, 0
    %s157 = sadd.s32 %s156, 1
    %s158 = scalar_select %p155, %s156, %s157
    %p161 = pneg %p155
    %p162 = scmp.eq.s32.totalorder %s15, 5
    %p163 = por %p161, %p162
    %p164 = scmp.ne.s32.totalorder %s156, %s159
    %p165 = scmp.eq.s32.totalorder %s15, 0
    %p166 = por %p164, %p165
    %p167 = scmp.ne.s32.totalorder %s156, %s159
    %p168 = scmp.eq.s32.totalorder %s20, 5
    %p169 = por %p167, %p168
    %p170 = scmp.ne.s32.totalorder %s159, %s160
    %p171 = scmp.eq.s32.totalorder %s20, 0
    %p172 = por %p170, %p171
    %p173 = scmp.ne.s32.totalorder %s159, %s160
    %p174 = scmp.eq.s32.totalorder %s21, 5
    %p175 = por %p173, %p174
    %p177 = scmp.ne.s32.totalorder %s160, %s176
    %p178 = scmp.eq.s32.totalorder %s21, 0
    %p179 = por %p177, %p178
    %s180 = ssub.s32 %s22, %s41
    %p181 = scmp.eq.s32.totalorder %s180, 0
    %s183 = sadd.s32 %s182, 1
    %s184 = scalar_select %p181, %s182, %s183
    %p187 = pneg %p181
    %p188 = scmp.eq.s32.totalorder %s15, 5
    %p189 = por %p187, %p188
    %p190 = scmp.ne.s32.totalorder %s182, %s185
    %p191 = scmp.eq.s32.totalorder %s15, 0
    %p192 = por %p190, %p191
    %p193 = scmp.ne.s32.totalorder %s182, %s185
    %p194 = scmp.eq.s32.totalorder %s20, 5
    %p195 = por %p193, %p194
    %p196 = scmp.ne.s32.totalorder %s185, %s186
    %p197 = scmp.eq.s32.totalorder %s20, 0
    %p198 = por %p196, %p197
    %p199 = scmp.ne.s32.totalorder %s185, %s186
    %p200 = scmp.eq.s32.totalorder %s21, 5
    %p201 = por %p199, %p200
    %p203 = scmp.ne.s32.totalorder %s186, %s202
    %p204 = scmp.eq.s32.totalorder %s21, 0
    %p205 = por %p203, %p204
    %s206 = ssub.s32 %s22, %s41
    %p207 = scmp.eq.s32.totalorder %s206, 0
    %s209 = sadd.s32 %s208, 1
    %s210 = scalar_select %p207, %s208, %s209
    %p213 = pneg %p207
    %p214 = scmp.eq.s32.totalorder %s15, 5
    %p215 = por %p213, %p214
    %p216 = scmp.ne.s32.totalorder %s208, %s211
    %p217 = scmp.eq.s32.totalorder %s15, 0
    %p218 = por %p216, %p217
    %p219 = scmp.ne.s32.totalorder %s208, %s211
    %p220 = scmp.eq.s32.totalorder %s20, 5
    %p221 = por %p219, %p220
    %p222 = scmp.ne.s32.totalorder %s211, %s212
    %p223 = scmp.eq.s32.totalorder %s20, 0
    %p224 = por %p222, %p223
    %p225 = scmp.ne.s32.totalorder %s211, %s212
    %p226 = scmp.eq.s32.totalorder %s21, 5
    %p227 = por %p225, %p226
    %p229 = scmp.ne.s32.totalorder %s212, %s228
    %p230 = scmp.eq.s32.totalorder %s21, 0
    %p231 = por %p229, %p230
    %s232 = ssub.s32 %s22, %s41
    %p233 = scmp.eq.s32.totalorder %s232, 0
    %s235 = sadd.s32 %s234, 1
    %s236 = scalar_select %p233, %s234, %s235
    %p239 = pneg %p233
    %p240 = scmp.eq.s32.totalorder %s15, 5
    %p241 = por %p239, %p240
    %p242 = scmp.ne.s32.totalorder %s234, %s237
    %p243 = scmp.eq.s32.totalorder %s15, 0
    %p244 = por %p242, %p243
    %p245 = scmp.ne.s32.totalorder %s234, %s237
    %p246 = scmp.eq.s32.totalorder %s20, 5
    %p247 = por %p245, %p246
    %p248 = scmp.ne.s32.totalorder %s237, %s238
    %p249 = scmp.eq.s32.totalorder %s20, 0
    %p250 = por %p248, %p249
    %p251 = scmp.ne.s32.totalorder %s237, %s238
    %p252 = scmp.eq.s32.totalorder %s21, 5
    %p253 = por %p251, %p252
    %p255 = scmp.ne.s32.totalorder %s238, %s254
    %p256 = scmp.eq.s32.totalorder %s21, 0
    %p257 = por %p255, %p256
    %s258 = ssub.s32 %s22, %s41
    %p259 = scmp.eq.s32.totalorder %s258, 0
    %s261 = sadd.s32 %s260, 1
    %s262 = scalar_select %p259, %s260, %s261
    %p265 = pneg %p259
    %p266 = scmp.eq.s32.totalorder %s15, 5
    %p267 = por %p265, %p266
    %p268 = scmp.ne.s32.totalorder %s260, %s263
    %p269 = scmp.eq.s32.totalorder %s15, 0
    %p270 = por %p268, %p269
    %p271 = scmp.ne.s32.totalorder %s260, %s263
    %p272 = scmp.eq.s32.totalorder %s20, 5
    %p273 = por %p271, %p272
    %p274 = scmp.ne.s32.totalorder %s263, %s264
    %p275 = scmp.eq.s32.totalorder %s20, 0
    %p276 = por %p274, %p275
    %p277 = scmp.ne.s32.totalorder %s263, %s264
    %p278 = scmp.eq.s32.totalorder %s21, 5
    %p279 = por %p277, %p278
    %p281 = scmp.ne.s32.totalorder %s264, %s280
    %p282 = scmp.eq.s32.totalorder %s21, 0
    %p283 = por %p281, %p282
    %s284 = ssub.s32 %s22, %s41
    %s285 = ssub.s32 %s23, %s37
    %s286 = sor.u32 %s284, %s285
    %s287 = ssub.s32 %s24, %s33
    %s288 = sor.u32 %s286, %s287
    %p289 = scmp.eq.s32.totalorder %s288, 0
    %s291 = sadd.s32 %s290, 1
    %s292 = scalar_select %p289, %s290, %s291
    %p295 = pneg %p289
    %p296 = scmp.eq.s32.totalorder %s15, 5
    %p297 = por %p295, %p296
    %p298 = scmp.ne.s32.totalorder %s290, %s293
    %p299 = scmp.eq.s32.totalorder %s15, 0
    %p300 = por %p298, %p299
    %p301 = scmp.ne.s32.totalorder %s290, %s293
    %p302 = scmp.eq.s32.totalorder %s20, 5
    %p303 = por %p301, %p302
    %p304 = scmp.ne.s32.totalorder %s293, %s294
    %p305 = scmp.eq.s32.totalorder %s20, 0
    %p306 = por %p304, %p305
    %p307 = scmp.ne.s32.totalorder %s293, %s294
    %p308 = scmp.eq.s32.totalorder %s21, 5
    %p309 = por %p307, %p308
    %p311 = scmp.ne.s32.totalorder %s294, %s310
    %p312 = scmp.eq.s32.totalorder %s21, 0
    %p313 = por %p311, %p312
    %p314 = scmp.le.s32.totalorder 1, %s15
    %p315 = scmp.lt.s32.totalorder %s15, 7
    %p316 = pnand %p314, %p315
    %p317 = pneg %p316
    // Predicated region
    $region9: #{tri_window_mamba_forward.4} parent=5 // pred_check
      _
    $region10: #{tri_window_mamba_forward.4} parent=5 // pred_check_branch
      %319 = sbr.rel (%p316) target = $region12
    $region11: #{tri_window_mamba_forward.4} parent=5 // pred_region
      %s320 = ssub.s32 %s15, 1
    $region12: #{tri_window_mamba_forward.4} parent=5 // pred_fallthru
      _
    %p321 = scmp.lt.s32.totalorder %s15, 6
    // Predicated region
    $region13: #{tri_window_mamba_forward.4} parent=5 // pred_check
      %p322 = pneg %p321
    $region14: #{tri_window_mamba_forward.4} parent=5 // pred_check_branch
      %324 = sbr.rel (%p322) target = $region16
    $region15: #{tri_window_mamba_forward.4} parent=5 // pred_region
      // Predicated region
      $region17: #{tri_window_mamba_forward.4} parent=15 // pred_check
        %p325 = pneg %p58
      $region18: #{tri_window_mamba_forward.4} parent=15 // pred_check_branch
        %327 = sbr.rel (%p325) target = $region20
      $region19: #{tri_window_mamba_forward.4} parent=15 // pred_region
        %s328 = smul.u32 8, %s24
        %p329 = scmp.lt.s32.totalorder %s22, 2
        %s330 = scalar_select %p329, %s22, 2
        %p331 = scmp.lt.s32.totalorder %s23, 1
        %s332 = scalar_select %p331, %s23, 1
        %p333 = scmp.lt.s32.totalorder %s328, 7
        %s334 = scalar_select %p333, %s328, 7
        %s335 = smul.addr %s332, 8
        %s336 = sadd.s32 %s334, %s335
        %s337 = smul.addr %s330, 16
        %s338 = sadd.s32 %s336, %s337
        %s339 = smul.addr %s338, 4
        %s340 = scalar_lea.vmem %s0, %s339
        %s341 = smul.u32 8, %s24
      $region20: #{tri_window_mamba_forward.4} parent=15 // pred_fallthru
        _
      // Predicated region
      $region21: #{tri_window_mamba_forward.4} parent=15 // pred_check
        %p342 = pneg %p88
      $region22: #{tri_window_mamba_forward.4} parent=15 // pred_check_branch
        %344 = sbr.rel (%p342) target = $region24
      $region23: #{tri_window_mamba_forward.4} parent=15 // pred_region
        %s345 = smul.u32 8, %s24
        %p346 = scmp.lt.s32.totalorder %s22, 2
        %s347 = scalar_select %p346, %s22, 2
        %p348 = scmp.lt.s32.totalorder %s23, 1
        %s349 = scalar_select %p348, %s23, 1
        %p350 = scmp.lt.s32.totalorder %s345, 7
        %s351 = scalar_select %p350, %s345, 7
        %s352 = smul.addr %s349, 8
        %s353 = sadd.s32 %s351, %s352
        %s354 = smul.addr %s347, 16
        %s355 = sadd.s32 %s353, %s354
        %s356 = smul.addr %s355, 4
        %s357 = scalar_lea.vmem %s1, %s356
        %s358 = smul.u32 8, %s24
      $region24: #{tri_window_mamba_forward.4} parent=15 // pred_fallthru
        _
      // Predicated region
      $region25: #{tri_window_mamba_forward.4} parent=15 // pred_check
        %p359 = pneg %p114
      $region26: #{tri_window_mamba_forward.4} parent=15 // pred_check_branch
        %361 = sbr.rel (%p359) target = $region28
      $region27: #{tri_window_mamba_forward.4} parent=15 // pred_region
        %p362 = scmp.lt.s32.totalorder %s22, 2
        %s363 = scalar_select %p362, %s22, 2
        %s364 = smul.addr %s363, 4
        %s365 = scalar_lea.vmem %s2, %s364
      $region28: #{tri_window_mamba_forward.4} parent=15 // pred_fallthru
        _
      // Predicated region
      $region29: #{tri_window_mamba_forward.4} parent=15 // pred_check
        %p366 = pneg %p140
      $region30: #{tri_window_mamba_forward.4} parent=15 // pred_check_branch
        %368 = sbr.rel (%p366) target = $region32
      $region31: #{tri_window_mamba_forward.4} parent=15 // pred_region
        %p369 = scmp.lt.s32.totalorder %s22, 2
        %s370 = scalar_select %p369, %s22, 2
        %s371 = scalar_lea.vmem %s3, %s370
      $region32: #{tri_window_mamba_forward.4} parent=15 // pred_fallthru
        _
      // Predicated region
      $region33: #{tri_window_mamba_forward.4} parent=15 // pred_check
        %p372 = pneg %p166
      $region34: #{tri_window_mamba_forward.4} parent=15 // pred_check_branch
        %374 = sbr.rel (%p372) target = $region36
      $region35: #{tri_window_mamba_forward.4} parent=15 // pred_region
        %p375 = scmp.lt.s32.totalorder %s22, 2
        %s376 = scalar_select %p375, %s22, 2
        %s377 = smul.addr %s376, 12
        %s378 = smul.addr %s377, 4
        %s379 = scalar_lea.vmem %s4, %s378
      $region36: #{tri_window_mamba_forward.4} parent=15 // pred_fallthru
        _
      // Predicated region
      $region37: #{tri_window_mamba_forward.4} parent=15 // pred_check
        %p380 = pneg %p192
      $region38: #{tri_window_mamba_forward.4} parent=15 // pred_check_branch
        %382 = sbr.rel (%p380) target = $region40
      $region39: #{tri_window_mamba_forward.4} parent=15 // pred_region
        %p383 = scmp.lt.s32.totalorder %s22, 2
        %s384 = scalar_select %p383, %s22, 2
        %s385 = scalar_lea.vmem %s5, %s384
      $region40: #{tri_window_mamba_forward.4} parent=15 // pred_fallthru
        _
      // Predicated region
      $region41: #{tri_window_mamba_forward.4} parent=15 // pred_check
        %p386 = pneg %p218
      $region42: #{tri_window_mamba_forward.4} parent=15 // pred_check_branch
        %388 = sbr.rel (%p386) target = $region44
      $region43: #{tri_window_mamba_forward.4} parent=15 // pred_region
        %p389 = scmp.lt.s32.totalorder %s22, 2
        %s390 = scalar_select %p389, %s22, 2
        %s391 = scalar_lea.vmem %s6, %s390
      $region44: #{tri_window_mamba_forward.4} parent=15 // pred_fallthru
        _
      // Predicated region
      $region45: #{tri_window_mamba_forward.4} parent=15 // pred_check
        %p392 = pneg %p244
      $region46: #{tri_window_mamba_forward.4} parent=15 // pred_check_branch
        %394 = sbr.rel (%p392) target = $region48
      $region47: #{tri_window_mamba_forward.4} parent=15 // pred_region
        %p395 = scmp.lt.s32.totalorder %s22, 2
        %s396 = scalar_select %p395, %s22, 2
        %s397 = smul.addr %s396, 2
        %s398 = smul.addr %s397, 8
        %s399 = scalar_lea.vmem %s7, %s398
      $region48: #{tri_window_mamba_forward.4} parent=15 // pred_fallthru
        _
      // Predicated region
      $region49: #{tri_window_mamba_forward.4} parent=15 // pred_check
        %p400 = pneg %p270
      $region50: #{tri_window_mamba_forward.4} parent=15 // pred_check_branch
        %402 = sbr.rel (%p400) target = $region52
      $region51: #{tri_window_mamba_forward.4} parent=15 // pred_region
        %p403 = scmp.lt.s32.totalorder %s22, 2
        %s404 = scalar_select %p403, %s22, 2
        %s405 = scalar_lea.vmem %s8, %s404
      $region52: #{tri_window_mamba_forward.4} parent=15 // pred_fallthru
        _
    $region16: #{tri_window_mamba_forward.4} parent=5 // pred_fallthru
      _
    %p406 = scmp.le.s32.totalorder 1, %s15
    %p407 = scmp.lt.s32.totalorder %s15, 7
    %p408 = pnand %p406, %p407
    %p409 = pneg %p408
    // Predicated region
    $region53: #{tri_window_mamba_forward.4} parent=5 // pred_check
      _
    $region54: #{tri_window_mamba_forward.4} parent=5 // pred_check_branch
      %411 = sbr.rel (%p408) target = $region56
    $region55: #{tri_window_mamba_forward.4} parent=5 // pred_region
      %s412 = ssub.s32 %s15, 1
      %s413 = smul.u32 8, %s27
      %p414 = scmp.lt.s32.totalorder %s25, 2
      %s415 = scalar_select %p414, %s25, 2
      %p416 = scmp.lt.s32.totalorder %s26, 1
      %s417 = scalar_select %p416, %s26, 1
      %p418 = scmp.lt.s32.totalorder %s413, 7
      %s419 = scalar_select %p418, %s413, 7
      %s420 = smul.addr %s417, 8
      %s421 = sadd.s32 %s419, %s420
      %s422 = smul.addr %s415, 16
      %s423 = sadd.s32 %s421, %s422
      %s424 = smul.addr %s423, 4
      %s425 = scalar_lea.vmem %s0, %s424
      %p426 = pneg %p64
      %p427 = pneg %p61
      %s428 = smul.u32 8, %s27
      %p429 = scmp.lt.s32.totalorder %s25, 2
      %s430 = scalar_select %p429, %s25, 2
      %p431 = scmp.lt.s32.totalorder %s26, 1
      %s432 = scalar_select %p431, %s26, 1
      %p433 = scmp.lt.s32.totalorder %s428, 7
      %s434 = scalar_select %p433, %s428, 7
      %s435 = smul.addr %s432, 8
      %s436 = sadd.s32 %s434, %s435
      %s437 = smul.addr %s430, 16
      %s438 = sadd.s32 %s436, %s437
      %s439 = smul.addr %s438, 4
      %s440 = scalar_lea.vmem %s1, %s439
      %p441 = pneg %p94
      %p442 = pneg %p91
      %p443 = scmp.lt.s32.totalorder %s25, 2
      %s444 = scalar_select %p443, %s25, 2
      %s445 = smul.addr %s444, 4
      %s446 = scalar_lea.vmem %s2, %s445
      %p447 = pneg %p120
      %p448 = pneg %p117
      %p449 = scmp.lt.s32.totalorder %s25, 2
      %s450 = scalar_select %p449, %s25, 2
      %s451 = scalar_lea.vmem %s3, %s450
      %p452 = pneg %p146
      %p453 = pneg %p143
      %p454 = scmp.lt.s32.totalorder %s25, 2
      %s455 = scalar_select %p454, %s25, 2
      %s456 = smul.addr %s455, 12
      %s457 = smul.addr %s456, 4
      %s458 = scalar_lea.vmem %s4, %s457
      %p459 = pneg %p172
      %p460 = pneg %p169
      %p461 = scmp.lt.s32.totalorder %s25, 2
      %s462 = scalar_select %p461, %s25, 2
      %s463 = scalar_lea.vmem %s5, %s462
      %p464 = pneg %p198
      %p465 = pneg %p195
      %p466 = scmp.lt.s32.totalorder %s25, 2
      %s467 = scalar_select %p466, %s25, 2
      %s468 = scalar_lea.vmem %s6, %s467
      %p469 = pneg %p224
      %p470 = pneg %p221
      %p471 = scmp.lt.s32.totalorder %s25, 2
      %s472 = scalar_select %p471, %s25, 2
      %s473 = smul.addr %s472, 2
      %s474 = smul.addr %s473, 8
      %s475 = scalar_lea.vmem %s7, %s474
      %p476 = pneg %p250
      %p477 = pneg %p247
      %p478 = scmp.lt.s32.totalorder %s25, 2
      %s479 = scalar_select %p478, %s25, 2
      %s480 = scalar_lea.vmem %s8, %s479
      %p481 = pneg %p276
      %p482 = pneg %p273
      %p483 = pneg %p306
      %p484 = pneg %p303
      %s485 = smul.u32 8, %s27
      %p486 = scmp.lt.s32.totalorder %s25, 2
      %s487 = scalar_select %p486, %s25, 2
      %p488 = scmp.lt.s32.totalorder %s26, 1
      %s489 = scalar_select %p488, %s26, 1
      %p490 = scmp.lt.s32.totalorder %s485, 7
      %s491 = scalar_select %p490, %s485, 7
      %s492 = smul.addr %s489, 8
      %s493 = sadd.s32 %s491, %s492
      %s494 = smul.addr %s487, 16
      %s495 = sadd.s32 %s493, %s494
      %s496 = smul.addr %s495, 4
      %s497 = scalar_lea.vmem %s9, %s496
      %s498 = smul.u32 8, %s27
      %p499 = scmp.lt.s32.totalorder %s25, 2
      %s500 = scalar_select %p499, %s25, 2
      %p501 = scmp.lt.s32.totalorder %s26, 1
      %s502 = scalar_select %p501, %s26, 1
      %p503 = scmp.lt.s32.totalorder %s498, 7
      %s504 = scalar_select %p503, %s498, 7
      %s505 = smul.addr %s502, 8
      %s506 = sadd.s32 %s504, %s505
      %s507 = smul.addr %s500, 16
      %s508 = sadd.s32 %s506, %s507
      %s509 = smul.addr %s508, 4
      %s510 = scalar_lea.vmem %s0, %s509
      %s511 = smul.u32 8, %s27
      %s512 = smul.u32 8, %s27
      %p513 = scmp.lt.s32.totalorder %s25, 2
      %s514 = scalar_select %p513, %s25, 2
      %p515 = scmp.lt.s32.totalorder %s26, 1
      %s516 = scalar_select %p515, %s26, 1
      %p517 = scmp.lt.s32.totalorder %s512, 7
      %s518 = scalar_select %p517, %s512, 7
      %s519 = smul.addr %s516, 8
      %s520 = sadd.s32 %s518, %s519
      %s521 = smul.addr %s514, 16
      %s522 = sadd.s32 %s520, %s521
      %s523 = smul.addr %s522, 4
      %s524 = scalar_lea.vmem %s1, %s523
      %s525 = smul.u32 8, %s27
      %p526 = scmp.lt.s32.totalorder %s25, 2
      %s527 = scalar_select %p526, %s25, 2
      %s528 = smul.addr %s527, 4
      %s529 = scalar_lea.vmem %s2, %s528
      %p530 = scmp.lt.s32.totalorder %s25, 2
      %s531 = scalar_select %p530, %s25, 2
      %s532 = scalar_lea.vmem %s3, %s531
      %p533 = scmp.lt.s32.totalorder %s25, 2
      %s534 = scalar_select %p533, %s25, 2
      %s535 = smul.addr %s534, 12
      %s536 = smul.addr %s535, 4
      %s537 = scalar_lea.vmem %s4, %s536
      %p538 = scmp.lt.s32.totalorder %s25, 2
      %s539 = scalar_select %p538, %s25, 2
      %s540 = scalar_lea.vmem %s5, %s539
      %p541 = scmp.lt.s32.totalorder %s25, 2
      %s542 = scalar_select %p541, %s25, 2
      %s543 = scalar_lea.vmem %s6, %s542
      %p544 = scmp.lt.s32.totalorder %s25, 2
      %s545 = scalar_select %p544, %s25, 2
      %s546 = smul.addr %s545, 2
      %s547 = smul.addr %s546, 8
      %s548 = scalar_lea.vmem %s7, %s547
      %p549 = scmp.lt.s32.totalorder %s25, 2
      %s550 = scalar_select %p549, %s25, 2
      %s551 = scalar_lea.vmem %s8, %s550
      %s552 = smul.u32 8, %s27
      %p553 = scmp.lt.s32.totalorder %s25, 2
      %s554 = scalar_select %p553, %s25, 2
      %p555 = scmp.lt.s32.totalorder %s26, 1
      %s556 = scalar_select %p555, %s26, 1
      %p557 = scmp.lt.s32.totalorder %s552, 7
      %s558 = scalar_select %p557, %s552, 7
      %s559 = smul.addr %s556, 8
      %s560 = sadd.s32 %s558, %s559
      %s561 = smul.addr %s554, 16
      %s562 = sadd.s32 %s560, %s561
      %s563 = smul.addr %s562, 4
      %s564 = scalar_lea.vmem %s9, %s563
      %s565 = smul.u32 8, %s27
      %p567 = scmp.eq.s32.totalorder %s27, 0
      // Predicated region
      $region57: #{tri_window_mamba_forward.4} parent=55 // pred_check
        %p568 = pneg %p567
      $region58: #{tri_window_mamba_forward.4} parent=55 // pred_check_branch
        %570 = sbr.rel (%p568) target = $region60
      $region59: #{tri_window_mamba_forward.4} parent=55 // pred_region
        %vm571 = vcmask 261120
        %572 = vst.msk [vmem:[#allocation4] sm:$0xff] %vm571, 0.0
        %573 = vst.msk [vmem:[#allocation4 + $0x8] sm:$0xff] %vm571, 0.0
        %574 = vst.msk [vmem:[#allocation5] sm:$0xff] %vm571, 0.0
        %575 = vst.msk [vmem:[#allocation5 + $0x8] sm:$0xff] %vm571, 0.0
        %576 = vst.msk [vmem:[#allocation5 + $0x10] sm:$0xff] %vm571, 0.0
        %577 = vst.msk [vmem:[#allocation5 + $0x18] sm:$0xff] %vm571, 0.0
        %578 = vst.msk [vmem:[#allocation5 + $0x20] sm:$0xff] %vm571, 0.0
        %579 = vst.msk [vmem:[#allocation5 + $0x28] sm:$0xff] %vm571, 0.0
        %580 = vst.msk [vmem:[#allocation5 + $0x30] sm:$0xff] %vm571, 0.0
        %581 = vst.msk [vmem:[#allocation5 + $0x38] sm:$0xff] %vm571, 0.0
      $region60: #{tri_window_mamba_forward.4} parent=55 // pred_fallthru
        _
      %v582 = vld [vmem:[%s510] sm:$0xf]
      %v583 = vld [vmem:[%s510 + $0x4] sm:$0xf]
      %v584 = vld [vmem:[%s510 + $0x8] sm:$0xf]
      %v585 = vld [vmem:[%s510 + $0xc] sm:$0xf]
      %v586 = vld [vmem:[%s510 + $0x10] sm:$0xf]
      %v587 = vld [vmem:[%s510 + $0x14] sm:$0xf]
      %v588 = vld [vmem:[%s510 + $0x18] sm:$0xf]
      %v589 = vld [vmem:[%s510 + $0x1c] sm:$0xf]
      %v590 = vunpack.c.l.bf16 %v582
      %v591 = vunpack.c.l.bf16 %v583
      %v592 = vunpack.c.l.bf16 %v584
      %v593 = vunpack.c.l.bf16 %v585
      %v594 = vunpack.c.l.bf16 %v586
      %v595 = vunpack.c.l.bf16 %v587
      %v596 = vunpack.c.l.bf16 %v588
      %v597 = vunpack.c.l.bf16 %v589
      %v598 = vld [vmem:[%s524] sm:$0xf]
      %v599 = vld [vmem:[%s524 + $0x4] sm:$0xf]
      %v600 = vld [vmem:[%s524 + $0x8] sm:$0xf]
      %v601 = vld [vmem:[%s524 + $0xc] sm:$0xf]
      %v602 = vld [vmem:[%s524 + $0x10] sm:$0xf]
      %v603 = vld [vmem:[%s524 + $0x14] sm:$0xf]
      %v604 = vld [vmem:[%s524 + $0x18] sm:$0xf]
      %v605 = vld [vmem:[%s524 + $0x1c] sm:$0xf]
      %v606 = vunpack.c.l.bf16 %v598
      %v607 = vunpack.c.l.bf16 %v599
      %v608 = vunpack.c.l.bf16 %v600
      %v609 = vunpack.c.l.bf16 %v601
      %v610 = vunpack.c.l.bf16 %v602
      %v611 = vunpack.c.l.bf16 %v603
      %v612 = vunpack.c.l.bf16 %v604
      %v613 = vunpack.c.l.bf16 %v605
      %v614 = vld [vmem:[%s529] sm:$0xf]
      %v615 = vld [vmem:[#allocation5] sm:$0xff]
      %v616 = vld [vmem:[#allocation5 + $0x8] sm:$0xff]
      %v617 = vld [vmem:[#allocation5 + $0x10] sm:$0xff]
      %v618 = vld [vmem:[#allocation5 + $0x18] sm:$0xff]
      %v619 = vld [vmem:[#allocation5 + $0x20] sm:$0xff]
      %v620 = vld [vmem:[#allocation5 + $0x28] sm:$0xff]
      %v621 = vld [vmem:[#allocation5 + $0x30] sm:$0xff]
      %v622 = vld [vmem:[#allocation5 + $0x38] sm:$0xff]
      %v623 = vlaneseq
      %v624 = vshrl.u32 %v623, 7
      %v625 = vadd.s32 %v624, 8
      %v626 = vadd.s32 %v624, 16
      %v627 = vadd.s32 %v624, 24
      %v628 = vadd.s32 %v624, 32
      %v629 = vadd.s32 %v624, 40
      %v630 = vadd.s32 %v624, 48
      %v631 = vadd.s32 %v624, 56
      %v632 = vlaneseq
      %v633 = vshrl.u32 %v632, 7
      %v634 = vsub.s32 3, %v633
      %v635 = vrot.slane %v614, %v634
      %v636 = vmul.f32 %v590, %v635
      %v637 = vmul.f32 %v591, %v635
      %v638 = vmul.f32 %v592, %v635
      %v639 = vmul.f32 %v593, %v635
      %v640 = vmul.f32 %v594, %v635
      %v641 = vmul.f32 %v595, %v635
      %v642 = vmul.f32 %v596, %v635
      %v643 = vmul.f32 %v597, %v635
      %v644 = vrot.slane %v590, 5
      %v645 = vrot.slane %v591, 5
      %v646 = vrot.slane %v592, 5
      %v647 = vrot.slane %v593, 5
      %v648 = vrot.slane %v594, 5
      %v649 = vrot.slane %v595, 5
      %v650 = vrot.slane %v596, 5
      %v651 = vrot.slane %v597, 5
      %vm652 = vcmp.lt.s32.totalorder %v624, 3
      %v653 = vsel %vm652, %v650, %v651
      %v654 = vsel %vm652, %v649, %v650
      %v655 = vsel %vm652, %v648, %v649
      %v656 = vsel %vm652, %v647, %v648
      %v657 = vsel %vm652, %v646, %v647
      %v658 = vsel %vm652, %v645, %v646
      %v659 = vsel %vm652, %v644, %v645
      %v660 = vsel %vm652, %v651, %v644
      %v661 = vrot.slane %v615, 5
      %v662 = vrot.slane %v616, 5
      %v663 = vrot.slane %v617, 5
      %v664 = vrot.slane %v618, 5
      %v665 = vrot.slane %v619, 5
      %v666 = vrot.slane %v620, 5
      %v667 = vrot.slane %v621, 5
      %v668 = vrot.slane %v622, 5
      %v669 = vsel %vm652, %v667, %v668
      %v670 = vsel %vm652, %v666, %v667
      %v671 = vsel %vm652, %v665, %v666
      %v672 = vsel %vm652, %v664, %v665
      %v673 = vsel %vm652, %v663, %v664
      %v674 = vsel %vm652, %v662, %v663
      %v675 = vsel %vm652, %v661, %v662
      %v676 = vsel %vm652, %v668, %v661
      %vm677 = vcmp.ge.s32.totalorder %v624, 3
      %vm678 = vcmp.ge.s32.totalorder %v625, 3
      %vm679 = vcmp.ge.s32.totalorder %v626, 3
      %vm680 = vcmp.ge.s32.totalorder %v627, 3
      %vm681 = vcmp.ge.s32.totalorder %v628, 3
      %vm682 = vcmp.ge.s32.totalorder %v629, 3
      %vm683 = vcmp.ge.s32.totalorder %v630, 3
      %vm684 = vcmp.ge.s32.totalorder %v631, 3
      %v685 = vsel %vm677, %v660, %v676
      %v686 = vsel %vm678, %v659, %v675
      %v687 = vsel %vm679, %v658, %v674
      %v688 = vsel %vm680, %v657, %v673
      %v689 = vsel %vm681, %v656, %v672
      %v690 = vsel %vm682, %v655, %v671
      %v691 = vsel %vm683, %v654, %v670
      %v692 = vsel %vm684, %v653, %v669
      %v693 = vlaneseq
      %v694 = vshrl.u32 %v693, 7
      %v695 = vsub.s32 0, %v694
      %v696 = vrot.slane %v614, %v695
      %v697 = vmul.f32 %v685, %v696
      %v698 = vmul.f32 %v686, %v696
      %v699 = vmul.f32 %v687, %v696
      %v700 = vmul.f32 %v688, %v696
      %v701 = vmul.f32 %v689, %v696
      %v702 = vmul.f32 %v690, %v696
      %v703 = vmul.f32 %v691, %v696
      %v704 = vmul.f32 %v692, %v696
      %v705 = vadd.f32 %v636, %v697
      %v706 = vadd.f32 %v637, %v698
      %v707 = vadd.f32 %v638, %v699
      %v708 = vadd.f32 %v639, %v700
      %v709 = vadd.f32 %v640, %v701
      %v710 = vadd.f32 %v641, %v702
      %v711 = vadd.f32 %v642, %v703
      %v712 = vadd.f32 %v643, %v704
      %v713 = vrot.slane %v590, 6
      %v714 = vrot.slane %v591, 6
      %v715 = vrot.slane %v592, 6
      %v716 = vrot.slane %v593, 6
      %v717 = vrot.slane %v594, 6
      %v718 = vrot.slane %v595, 6
      %v719 = vrot.slane %v596, 6
      %v720 = vrot.slane %v597, 6
      %vm721 = vcmp.lt.s32.totalorder %v624, 2
      %v722 = vsel %vm721, %v719, %v720
      %v723 = vsel %vm721, %v718, %v719
      %v724 = vsel %vm721, %v717, %v718
      %v725 = vsel %vm721, %v716, %v717
      %v726 = vsel %vm721, %v715, %v716
      %v727 = vsel %vm721, %v714, %v715
      %v728 = vsel %vm721, %v713, %v714
      %v729 = vsel %vm721, %v720, %v713
      %v730 = vrot.slane %v615, 6
      %v731 = vrot.slane %v616, 6
      %v732 = vrot.slane %v617, 6
      %v733 = vrot.slane %v618, 6
      %v734 = vrot.slane %v619, 6
      %v735 = vrot.slane %v620, 6
      %v736 = vrot.slane %v621, 6
      %v737 = vrot.slane %v622, 6
      %v738 = vsel %vm721, %v736, %v737
      %v739 = vsel %vm721, %v735, %v736
      %v740 = vsel %vm721, %v734, %v735
      %v741 = vsel %vm721, %v733, %v734
      %v742 = vsel %vm721, %v732, %v733
      %v743 = vsel %vm721, %v731, %v732
      %v744 = vsel %vm721, %v730, %v731
      %v745 = vsel %vm721, %v737, %v730
      %vm746 = vcmp.ge.s32.totalorder %v624, 2
      %vm747 = vcmp.ge.s32.totalorder %v625, 2
      %vm748 = vcmp.ge.s32.totalorder %v626, 2
      %vm749 = vcmp.ge.s32.totalorder %v627, 2
      %vm750 = vcmp.ge.s32.totalorder %v628, 2
      %vm751 = vcmp.ge.s32.totalorder %v629, 2
      %vm752 = vcmp.ge.s32.totalorder %v630, 2
      %vm753 = vcmp.ge.s32.totalorder %v631, 2
      %v754 = vsel %vm746, %v729, %v745
      %v755 = vsel %vm747, %v728, %v744
      %v756 = vsel %vm748, %v727, %v743
      %v757 = vsel %vm749, %v726, %v742
      %v758 = vsel %vm750, %v725, %v741
      %v759 = vsel %vm751, %v724, %v740
      %v760 = vsel %vm752, %v723, %v739
      %v761 = vsel %vm753, %v722, %v738
      %v762 = vlaneseq
      %v763 = vshrl.u32 %v762, 7
      %v764 = vsub.s32 1, %v763
      %v765 = vrot.slane %v614, %v764
      %v766 = vmul.f32 %v754, %v765
      %v767 = vmul.f32 %v755, %v765
      %v768 = vmul.f32 %v756, %v765
      %v769 = vmul.f32 %v757, %v765
      %v770 = vmul.f32 %v758, %v765
      %v771 = vmul.f32 %v759, %v765
      %v772 = vmul.f32 %v760, %v765
      %v773 = vmul.f32 %v761, %v765
      %v774 = vadd.f32 %v705, %v766
      %v775 = vadd.f32 %v706, %v767
      %v776 = vadd.f32 %v707, %v768
      %v777 = vadd.f32 %v708, %v769
      %v778 = vadd.f32 %v709, %v770
      %v779 = vadd.f32 %v710, %v771
      %v780 = vadd.f32 %v711, %v772
      %v781 = vadd.f32 %v712, %v773
      %v782 = vrot.slane %v590, 7
      %v783 = vrot.slane %v591, 7
      %v784 = vrot.slane %v592, 7
      %v785 = vrot.slane %v593, 7
      %v786 = vrot.slane %v594, 7
      %v787 = vrot.slane %v595, 7
      %v788 = vrot.slane %v596, 7
      %v789 = vrot.slane %v597, 7
      %vm790 = vcmp.lt.s32.totalorder %v624, 1
      %v791 = vsel %vm790, %v788, %v789
      %v792 = vsel %vm790, %v787, %v788
      %v793 = vsel %vm790, %v786, %v787
      %v794 = vsel %vm790, %v785, %v786
      %v795 = vsel %vm790, %v784, %v785
      %v796 = vsel %vm790, %v783, %v784
      %v797 = vsel %vm790, %v782, %v783
      %v798 = vsel %vm790, %v789, %v782
      %v799 = vrot.slane %v615, 7
      %v800 = vrot.slane %v616, 7
      %v801 = vrot.slane %v617, 7
      %v802 = vrot.slane %v618, 7
      %v803 = vrot.slane %v619, 7
      %v804 = vrot.slane %v620, 7
      %v805 = vrot.slane %v621, 7
      %v806 = vrot.slane %v622, 7
      %v807 = vsel %vm790, %v805, %v806
      %v808 = vsel %vm790, %v804, %v805
      %v809 = vsel %vm790, %v803, %v804
      %v810 = vsel %vm790, %v802, %v803
      %v811 = vsel %vm790, %v801, %v802
      %v812 = vsel %vm790, %v800, %v801
      %v813 = vsel %vm790, %v799, %v800
      %v814 = vsel %vm790, %v806, %v799
      %vm815 = vcmp.ge.s32.totalorder %v624, 1
      %vm816 = vcmp.ge.s32.totalorder %v625, 1
      %vm817 = vcmp.ge.s32.totalorder %v626, 1
      %vm818 = vcmp.ge.s32.totalorder %v627, 1
      %vm819 = vcmp.ge.s32.totalorder %v628, 1
      %vm820 = vcmp.ge.s32.totalorder %v629, 1
      %vm821 = vcmp.ge.s32.totalorder %v630, 1
      %vm822 = vcmp.ge.s32.totalorder %v631, 1
      %v823 = vsel %vm815, %v798, %v814
      %v824 = vsel %vm816, %v797, %v813
      %v825 = vsel %vm817, %v796, %v812
      %v826 = vsel %vm818, %v795, %v811
      %v827 = vsel %vm819, %v794, %v810
      %v828 = vsel %vm820, %v793, %v809
      %v829 = vsel %vm821, %v792, %v808
      %v830 = vsel %vm822, %v791, %v807
      %v831 = vlaneseq
      %v832 = vshrl.u32 %v831, 7
      %v833 = vsub.s32 2, %v832
      %v834 = vrot.slane %v614, %v833
      %v835 = vmul.f32 %v823, %v834
      %v836 = vmul.f32 %v824, %v834
      %v837 = vmul.f32 %v825, %v834
      %v838 = vmul.f32 %v826, %v834
      %v839 = vmul.f32 %v827, %v834
      %v840 = vmul.f32 %v828, %v834
      %v841 = vmul.f32 %v829, %v834
      %v842 = vmul.f32 %v830, %v834
      %v843 = vadd.f32 %v774, %v835
      %v844 = vadd.f32 %v775, %v836
      %v845 = vadd.f32 %v776, %v837
      %v846 = vadd.f32 %v777, %v838
      %v847 = vadd.f32 %v778, %v839
      %v848 = vadd.f32 %v779, %v840
      %v849 = vadd.f32 %v780, %v841
      %v850 = vadd.f32 %v781, %v842
      %vm851 = vcmask 261120
      %852 = vst.msk [vmem:[#allocation5] sm:$0xff] %vm851, %v590
      %853 = vst.msk [vmem:[#allocation5 + $0x8] sm:$0xff] %vm851, %v591
      %854 = vst.msk [vmem:[#allocation5 + $0x10] sm:$0xff] %vm851, %v592
      %855 = vst.msk [vmem:[#allocation5 + $0x18] sm:$0xff] %vm851, %v593
      %856 = vst.msk [vmem:[#allocation5 + $0x20] sm:$0xff] %vm851, %v594
      %857 = vst.msk [vmem:[#allocation5 + $0x28] sm:$0xff] %vm851, %v595
      %858 = vst.msk [vmem:[#allocation5 + $0x30] sm:$0xff] %vm851, %v596
      %859 = vst.msk [vmem:[#allocation5 + $0x38] sm:$0xff] %vm851, %v597
      %v860 = vld [vmem:[%s532] sm:$0x1]
      %v862 = vlaneseq
      %v863 = vshrl.u32 %v862, 7
      %v864 = vsub.s32 0, %v863
      %v865 = vrot.slane %v860, %v864
      %v867 = vadd.f32 %v843, %v865
      %v868 = vadd.f32 %v844, %v865
      %v869 = vadd.f32 %v845, %v865
      %v870 = vadd.f32 %v846, %v865
      %v871 = vadd.f32 %v847, %v865
      %v872 = vadd.f32 %v848, %v865
      %v873 = vadd.f32 %v849, %v865
      %v874 = vadd.f32 %v850, %v865
      %v875 = vxor.u32 %v867, 2147483648
      %v876 = vxor.u32 %v868, 2147483648
      %v877 = vxor.u32 %v869, 2147483648
      %v878 = vxor.u32 %v870, 2147483648
      %v879 = vxor.u32 %v871, 2147483648
      %v880 = vxor.u32 %v872, 2147483648
      %v881 = vxor.u32 %v873, 2147483648
      %v882 = vxor.u32 %v874, 2147483648
      %v883 = vmul.f32 %v875, 1.442695
      %v884 = vpow.pop %v883
      %v885 = vmul.f32 %v876, 1.442695
      %v886 = vpow.pop %v885
      %v887 = vmul.f32 %v877, 1.442695
      %v888 = vpow.pop %v887
      %v889 = vmul.f32 %v878, 1.442695
      %v890 = vpow.pop %v889
      %v891 = vmul.f32 %v879, 1.442695
      %v892 = vpow.pop %v891
      %v893 = vmul.f32 %v880, 1.442695
      %v894 = vpow.pop %v893
      %v895 = vmul.f32 %v881, 1.442695
      %v896 = vpow.pop %v895
      %v897 = vmul.f32 %v882, 1.442695
      %v898 = vpow.pop %v897
      %v899 = vadd.f32 %v884, 1.0
      %v900 = vadd.f32 %v886, 1.0
      %v901 = vadd.f32 %v888, 1.0
      %v902 = vadd.f32 %v890, 1.0
      %v903 = vadd.f32 %v892, 1.0
      %v904 = vadd.f32 %v894, 1.0
      %v905 = vadd.f32 %v896, 1.0
      %v906 = vadd.f32 %v898, 1.0
      %v907 = vrcp.pop %v899
      %v908 = vmul.f32 1.0, %v907
      %v909 = vrcp.pop %v900
      %v910 = vmul.f32 1.0, %v909
      %v911 = vrcp.pop %v901
      %v912 = vmul.f32 1.0, %v911
      %v913 = vrcp.pop %v902
      %v914 = vmul.f32 1.0, %v913
      %v915 = vrcp.pop %v903
      %v916 = vmul.f32 1.0, %v915
      %v917 = vrcp.pop %v904
      %v918 = vmul.f32 1.0, %v917
      %v919 = vrcp.pop %v905
      %v920 = vmul.f32 1.0, %v919
      %v921 = vrcp.pop %v906
      %v922 = vmul.f32 1.0, %v921
      %v923 = vmul.f32 %v867, %v908
      %v924 = vmul.f32 %v868, %v910
      %v925 = vmul.f32 %v869, %v912
      %v926 = vmul.f32 %v870, %v914
      %v927 = vmul.f32 %v871, %v916
      %v928 = vmul.f32 %v872, %v918
      %v929 = vmul.f32 %v873, %v920
      %v930 = vmul.f32 %v874, %v922
      %v931 = vpack.c.bf16 %v924, %v923
      %v932 = vpack.c.bf16 %v926, %v925
      %v933 = vpack.c.bf16 %v928, %v927
      %v934 = vpack.c.bf16 %v930, %v929
      %v935 = vld [vmem:[%s537] sm:$0xff]
      %v936 = vld [vmem:[%s537 + $0x8] sm:$0xf]
      %v937 = vld [vmem:[%s537 + $0xc] sm:$0xff]
      %v938 = vld [vmem:[%s537 + $0x14] sm:$0xf]
      %v939 = vld [vmem:[%s537 + $0x18] sm:$0xff]
      %v940 = vld [vmem:[%s537 + $0x20] sm:$0xf]
      %v941 = vld [vmem:[%s537 + $0x24] sm:$0xff]
      %v942 = vld [vmem:[%s537 + $0x2c] sm:$0xf]
      %v951 = vunpack.c.l.b16 %v935
      %v952 = vunpack.c.h.b16 %v935
      %v953 = vunpack.c.l.b16 %v936
      %v954 = vunpack.c.l.b16 %v937
      %v955 = vunpack.c.h.b16 %v937
      %v956 = vunpack.c.l.b16 %v938
      %v957 = vunpack.c.l.b16 %v939
      %v958 = vunpack.c.h.b16 %v939
      %v959 = vunpack.c.l.b16 %v940
      %v960 = vunpack.c.l.b16 %v941
      %v961 = vunpack.c.h.b16 %v941
      %v962 = vunpack.c.l.b16 %v942
      %v963 = vpack.c.b16 %v954, %v951
      %v964 = vpack.c.b16 %v955, %v952
      %v965 = vpack.c.b16 %v956, %v953
      %v966 = vpack.c.b16 %v960, %v957
      %v967 = vpack.c.b16 %v961, %v958
      %v968 = vpack.c.b16 %v962, %v959
      %v976 = vsel %vm851, %v931, 0
      %v979 = vsel %vm851, %v932, 0
      %v982 = vsel %vm851, %v933, 0
      %v985 = vsel %vm851, %v934, 0
      %987 = vmatprep.subr.bf16.mxu0 %v964
      %988 = vmatpush1.bf16.msra.mxu0 %v963
      %989 = vmatprep.subr.bf16.mxu0 %v967
      %990 = vmatpush1.bf16.msra.mxu0 %v966
      %991 = vmatprep.subr.bf16.mxu0 0
      %992 = vmatpush1.bf16.msra.mxu0 0
      %993 = vmatprep.subr.bf16.mxu0 0
      %994 = vmatpush1.bf16.msra.mxu0 0
      %995 = vmatprep.subr.bf16.mxu0 0
      %996 = vmatpush1.bf16.msra.mxu0 0
      %997 = vmatprep.subr.bf16.mxu0 0
      %998 = vmatpush1.bf16.msra.mxu0 0
      %999 = vmatprep.subr.bf16.mxu0 0
      %1000 = vmatpush1.bf16.msra.mxu0 0
      %1001 = vmatprep.subr.bf16.mxu0 0
      %1002 = vmatpush1.bf16.msra.mxu0 0
      %1003 = vmatprep.subr.bf16.mxu0 0
      %1004 = vmatpush1.bf16.msra.mxu0 0
      %1005 = vmatprep.subr.bf16.mxu0 0
      %1006 = vmatpush1.bf16.msra.mxu0 0
      %1007 = vmatprep.subr.bf16.mxu0 0
      %1008 = vmatpush1.bf16.msra.mxu0 0
      %1009 = vmatprep.subr.bf16.mxu0 0
      %1010 = vmatpush1.bf16.msra.mxu0 0
      %1011 = vmatprep.subr.bf16.mxu0 0
      %1012 = vmatpush1.bf16.msra.mxu0 0
      %1013 = vmatprep.subr.bf16.mxu0 0
      %1014 = vmatpush1.bf16.msra.mxu0 0
      %1015 = vmatprep.subr.bf16.mxu0 0
      %1016 = vmatpush1.bf16.msra.mxu0 0
      %1017 = vmatprep.subr.bf16.mxu0 0
      %1018 = vmatpush1.bf16.msra.mxu0 0
      %1019 = vmatprep.mubr.bf16.mxu0 0
      %1020 = vmatmul.mubr.bf16.gmra.mrb[0].mxu0 %v976
      %v1021 = vpop.f32.mrb[0].mxu0
      %v1022 = vadd.f32 0.0, %v1021
      %v1023 = vpop.f32.mrb[0].mxu0
      %v1024 = vadd.f32 0.0, %v1023
      %v1025 = vpop.f32.mrb[0].mxu0
      %v1026 = vadd.f32 0.0, %v1025
      %v1027 = vpop.f32.mrb[0].mxu0
      %v1028 = vadd.f32 0.0, %v1027
      %1029 = vmatprep.mubr.bf16.mxu0 0
      %1030 = vmatmul.mubr.bf16.gmra.mrb[0].mxu0 %v979
      %v1031 = vpop.f32.mrb[0].mxu0
      %v1032 = vadd.f32 0.0, %v1031
      %v1033 = vpop.f32.mrb[0].mxu0
      %v1034 = vadd.f32 0.0, %v1033
      %v1035 = vpop.f32.mrb[0].mxu0
      %v1036 = vadd.f32 0.0, %v1035
      %v1037 = vpop.f32.mrb[0].mxu0
      %v1038 = vadd.f32 0.0, %v1037
      %1039 = vmatprep.mubr.bf16.mxu0 0
      %1040 = vmatmul.mubr.bf16.gmra.mrb[0].mxu0 %v982
      %v1041 = vpop.f32.mrb[0].mxu0
      %v1042 = vadd.f32 0.0, %v1041
      %v1043 = vpop.f32.mrb[0].mxu0
      %v1044 = vadd.f32 0.0, %v1043
      %v1045 = vpop.f32.mrb[0].mxu0
      %v1046 = vadd.f32 0.0, %v1045
      %v1047 = vpop.f32.mrb[0].mxu0
      %v1048 = vadd.f32 0.0, %v1047
      %1049 = vmatprep.mubr.bf16.mxu0 0
      %1050 = vmatmul.mubr.bf16.gmra.mrb[0].mxu0 %v985
      %v1051 = vpop.f32.mrb[0].mxu0
      %v1052 = vadd.f32 0.0, %v1051
      %v1053 = vpop.f32.mrb[0].mxu0
      %v1054 = vadd.f32 0.0, %v1053
      %v1055 = vpop.f32.mrb[0].mxu0
      %v1056 = vadd.f32 0.0, %v1055
      %v1057 = vpop.f32.mrb[0].mxu0
      %v1058 = vadd.f32 0.0, %v1057
      %1059 = vdwg.mxu0
      %1060 = vmatprep.subr.bf16.mxu0 0
      %1061 = vmatpush1.bf16.msra.mxu0 %v965
      %1062 = vmatprep.subr.bf16.mxu0 0
      %1063 = vmatpush1.bf16.msra.mxu0 %v968
      %1064 = vmatprep.subr.bf16.mxu0 0
      %1065 = vmatpush1.bf16.msra.mxu0 0
      %1066 = vmatprep.subr.bf16.mxu0 0
      %1067 = vmatpush1.bf16.msra.mxu0 0
      %1068 = vmatprep.subr.bf16.mxu0 0
      %1069 = vmatpush1.bf16.msra.mxu0 0
      %1070 = vmatprep.subr.bf16.mxu0 0
      %1071 = vmatpush1.bf16.msra.mxu0 0
      %1072 = vmatprep.subr.bf16.mxu0 0
      %1073 = vmatpush1.bf16.msra.mxu0 0
      %1074 = vmatprep.subr.bf16.mxu0 0
      %1075 = vmatpush1.bf16.msra.mxu0 0
      %1076 = vmatprep.subr.bf16.mxu0 0
      %1077 = vmatpush1.bf16.msra.mxu0 0
      %1078 = vmatprep.subr.bf16.mxu0 0
      %1079 = vmatpush1.bf16.msra.mxu0 0
      %1080 = vmatprep.subr.bf16.mxu0 0
      %1081 = vmatpush1.bf16.msra.mxu0 0
      %1082 = vmatprep.subr.bf16.mxu0 0
      %1083 = vmatpush1.bf16.msra.mxu0 0
      %1084 = vmatprep.subr.bf16.mxu0 0
      %1085 = vmatpush1.bf16.msra.mxu0 0
      %1086 = vmatprep.subr.bf16.mxu0 0
      %1087 = vmatpush1.bf16.msra.mxu0 0
      %1088 = vmatprep.subr.bf16.mxu0 0
      %1089 = vmatpush1.bf16.msra.mxu0 0
      %1090 = vmatprep.subr.bf16.mxu0 0
      %1091 = vmatpush1.bf16.msra.mxu0 0
      %1092 = vmatprep.mubr.bf16.mxu0 0
      %1093 = vmatmul.mubr.bf16.gmra.mrb[0].mxu0 %v976
      %v1094 = vpop.f32.mrb[0].mxu0
      %v1095 = vadd.f32 0.0, %v1094
      %v1096 = vpop.f32.mrb[0].mxu0
      %v1097 = vpop.f32.mrb[0].mxu0
      %v1098 = vadd.f32 0.0, %v1097
      %v1099 = vpop.f32.mrb[0].mxu0
      %1100 = vmatprep.mubr.bf16.mxu0 0
      %1101 = vmatmul.mubr.bf16.gmra.mrb[0].mxu0 %v979
      %v1102 = vpop.f32.mrb[0].mxu0
      %v1103 = vadd.f32 0.0, %v1102
      %v1104 = vpop.f32.mrb[0].mxu0
      %v1105 = vpop.f32.mrb[0].mxu0
      %v1106 = vadd.f32 0.0, %v1105
      %v1107 = vpop.f32.mrb[0].mxu0
      %1108 = vmatprep.mubr.bf16.mxu0 0
      %1109 = vmatmul.mubr.bf16.gmra.mrb[0].mxu0 %v982
      %v1110 = vpop.f32.mrb[0].mxu0
      %v1111 = vadd.f32 0.0, %v1110
      %v1112 = vpop.f32.mrb[0].mxu0
      %v1113 = vpop.f32.mrb[0].mxu0
      %v1114 = vadd.f32 0.0, %v1113
      %v1115 = vpop.f32.mrb[0].mxu0
      %1116 = vmatprep.mubr.bf16.mxu0 0
      %1117 = vmatmul.mubr.bf16.gmra.mrb[0].mxu0 %v985
      %v1118 = vpop.f32.mrb[0].mxu0
      %v1119 = vadd.f32 0.0, %v1118
      %v1120 = vpop.f32.mrb[0].mxu0
      %v1121 = vpop.f32.mrb[0].mxu0
      %v1122 = vadd.f32 0.0, %v1121
      %v1123 = vpop.f32.mrb[0].mxu0
      %1124 = vdwg.mxu0
      %v1125 = vld [vmem:[%s540] sm:$0x1]
      %v1126 = vld [vmem:[%s543] sm:$0x1]
      %v1128 = vlaneseq
      %v1129 = vshrl.u32 %v1128, 7
      %v1130 = vsub.s32 0, %v1129
      %v1131 = vrot.slane %v1126, %v1130
      %vm1133 = vcmask 7168
      %v1135 = vsel %vm1133, %v1022, 0
      %v1138 = vsel %vm1133, %v1026, 0
      %v1141 = vsel %vm1133, %v1032, 0
      %v1144 = vsel %vm1133, %v1036, 0
      %v1147 = vsel %vm1133, %v1042, 0
      %v1150 = vsel %vm1133, %v1046, 0
      %v1153 = vsel %vm1133, %v1052, 0
      %v1156 = vsel %vm1133, %v1056, 0
      %vm1158 = vcmask 1040384
      %v1160 = vsel %vm1158, %v1125, 0
      %1162 = vmatprep.subr.mxu0 0.0
      %1163 = vmatpush1.msra.mxu0 %v1160
      %1164 = vmatprep.subr.mxu0 0.0
      %1165 = vmatpush1.msra.mxu0 0.0
      %1166 = vmatprep.subr.mxu0 0.0
      %1167 = vmatpush1.msra.mxu0 0.0
      %1168 = vmatprep.subr.mxu0 0.0
      %1169 = vmatpush1.msra.mxu0 0.0
      %1170 = vmatprep.subr.mxu0 0.0
      %1171 = vmatpush1.msra.mxu0 0.0
      %1172 = vmatprep.subr.mxu0 0.0
      %1173 = vmatpush1.msra.mxu0 0.0
      %1174 = vmatprep.subr.mxu0 0.0
      %1175 = vmatpush1.msra.mxu0 0.0
      %1176 = vmatprep.subr.mxu0 0.0
      %1177 = vmatpush1.msra.mxu0 0.0
      %1178 = vmatprep.subr.mxu0 0.0
      %1179 = vmatpush1.msra.mxu0 0.0
      %1180 = vmatprep.subr.mxu0 0.0
      %1181 = vmatpush1.msra.mxu0 0.0
      %1182 = vmatprep.subr.mxu0 0.0
      %1183 = vmatpush1.msra.mxu0 0.0
      %1184 = vmatprep.subr.mxu0 0.0
      %1185 = vmatpush1.msra.mxu0 0.0
      %1186 = vmatprep.subr.mxu0 0.0
      %1187 = vmatpush1.msra.mxu0 0.0
      %1188 = vmatprep.subr.mxu0 0.0
      %1189 = vmatpush1.msra.mxu0 0.0
      %1190 = vmatprep.subr.mxu0 0.0
      %1191 = vmatpush1.msra.mxu0 0.0
      %1192 = vmatprep.subr.mxu0 0.0
      %1193 = vmatpush1.msra.mxu0 0.0
      %1194 = vmatprep.subr.mxu0 0.0
      %1195 = vmatpush1.msra.mxu0 0.0
      %1196 = vmatprep.subr.mxu0 0.0
      %1197 = vmatpush1.msra.mxu0 0.0
      %1198 = vmatprep.subr.mxu0 0.0
      %1199 = vmatpush1.msra.mxu0 0.0
      %1200 = vmatprep.subr.mxu0 0.0
      %1201 = vmatpush1.msra.mxu0 0.0
      %1202 = vmatprep.subr.mxu0 0.0
      %1203 = vmatpush1.msra.mxu0 0.0
      %1204 = vmatprep.subr.mxu0 0.0
      %1205 = vmatpush1.msra.mxu0 0.0
      %1206 = vmatprep.subr.mxu0 0.0
      %1207 = vmatpush1.msra.mxu0 0.0
      %1208 = vmatprep.subr.mxu0 0.0
      %1209 = vmatpush1.msra.mxu0 0.0
      %1210 = vmatprep.subr.mxu0 0.0
      %1211 = vmatpush1.msra.mxu0 0.0
      %1212 = vmatprep.subr.mxu0 0.0
      %1213 = vmatpush1.msra.mxu0 0.0
      %1214 = vmatprep.subr.mxu0 0.0
      %1215 = vmatpush1.msra.mxu0 0.0
      %1216 = vmatprep.subr.mxu0 0.0
      %1217 = vmatpush1.msra.mxu0 0.0
      %1218 = vmatprep.subr.mxu0 0.0
      %1219 = vmatpush1.msra.mxu0 0.0
      %1220 = vmatprep.subr.mxu0 0.0
      %1221 = vmatpush1.msra.mxu0 0.0
      %1222 = vmatprep.subr.mxu0 0.0
      %1223 = vmatpush1.msra.mxu0 0.0
      %1224 = vmatprep.subr.mxu0 0.0
      %1225 = vmatpush1.msra.mxu0 0.0
      %1226 = vmatprep.mubr.f32.mxu0 0.0
      %1227 = vmatmul.mubr.f32.gmra.mrb[0].mxu0 %v1135
      %v1228 = vpop.f32.mrb[0].mxu0
      %v1229 = vadd.f32 %v1131, %v1228
      %v1230 = vpop.f32.mrb[0].mxu0
      %1231 = vmatprep.mubr.f32.mxu0 0.0
      %1232 = vmatmul.mubr.f32.gmra.mrb[0].mxu0 %v1138
      %v1233 = vpop.f32.mrb[0].mxu0
      %v1234 = vadd.f32 %v1131, %v1233
      %v1235 = vpop.f32.mrb[0].mxu0
      %1236 = vmatprep.mubr.f32.mxu0 0.0
      %1237 = vmatmul.mubr.f32.gmra.mrb[0].mxu0 %v1141
      %v1238 = vpop.f32.mrb[0].mxu0
      %v1239 = vadd.f32 %v1131, %v1238
      %v1240 = vpop.f32.mrb[0].mxu0
      %1241 = vmatprep.mubr.f32.mxu0 0.0
      %1242 = vmatmul.mubr.f32.gmra.mrb[0].mxu0 %v1144
      %v1243 = vpop.f32.mrb[0].mxu0
      %v1244 = vadd.f32 %v1131, %v1243
      %v1245 = vpop.f32.mrb[0].mxu0
      %1246 = vmatprep.mubr.f32.mxu0 0.0
      %1247 = vmatmul.mubr.f32.gmra.mrb[0].mxu0 %v1147
      %v1248 = vpop.f32.mrb[0].mxu0
      %v1249 = vadd.f32 %v1131, %v1248
      %v1250 = vpop.f32.mrb[0].mxu0
      %1251 = vmatprep.mubr.f32.mxu0 0.0
      %1252 = vmatmul.mubr.f32.gmra.mrb[0].mxu0 %v1150
      %v1253 = vpop.f32.mrb[0].mxu0
      %v1254 = vadd.f32 %v1131, %v1253
      %v1255 = vpop.f32.mrb[0].mxu0
      %1256 = vmatprep.mubr.f32.mxu0 0.0
      %1257 = vmatmul.mubr.f32.gmra.mrb[0].mxu0 %v1153
      %v1258 = vpop.f32.mrb[0].mxu0
      %v1259 = vadd.f32 %v1131, %v1258
      %v1260 = vpop.f32.mrb[0].mxu0
      %1261 = vmatprep.mubr.f32.mxu0 0.0
      %1262 = vmatmul.mubr.f32.gmra.mrb[0].mxu0 %v1156
      %v1263 = vpop.f32.mrb[0].mxu0
      %v1264 = vadd.f32 %v1131, %v1263
      %v1265 = vpop.f32.mrb[0].mxu0
      %1266 = vdwg.mxu0
      %v1267 = vmax.f32 %v1229, 0.0
      %v1268 = vmax.f32 %v1234, 0.0
      %v1269 = vmax.f32 %v1239, 0.0
      %v1270 = vmax.f32 %v1244, 0.0
      %v1271 = vmax.f32 %v1249, 0.0
      %v1272 = vmax.f32 %v1254, 0.0
      %v1273 = vmax.f32 %v1259, 0.0
      %v1274 = vmax.f32 %v1264, 0.0
      %vm1275 = vcmp.ne.f32.partialorder %v1229, %v1229
      %vm1276 = vcmp.ne.f32.partialorder %v1234, %v1234
      %vm1277 = vcmp.ne.f32.partialorder %v1239, %v1239
      %vm1278 = vcmp.ne.f32.partialorder %v1244, %v1244
      %vm1279 = vcmp.ne.f32.partialorder %v1249, %v1249
      %vm1280 = vcmp.ne.f32.partialorder %v1254, %v1254
      %vm1281 = vcmp.ne.f32.partialorder %v1259, %v1259
      %vm1282 = vcmp.ne.f32.partialorder %v1264, %v1264
      %v1283 = vadd.f32 %v1229, 0.0
      %v1284 = vadd.f32 %v1234, 0.0
      %v1285 = vadd.f32 %v1239, 0.0
      %v1286 = vadd.f32 %v1244, 0.0
      %v1287 = vadd.f32 %v1249, 0.0
      %v1288 = vadd.f32 %v1254, 0.0
      %v1289 = vadd.f32 %v1259, 0.0
      %v1290 = vadd.f32 %v1264, 0.0
      %v1291 = vand.u32 2147483647, %v1229
      %v1292 = vand.u32 2147483647, %v1234
      %v1293 = vand.u32 2147483647, %v1239
      %v1294 = vand.u32 2147483647, %v1244
      %v1295 = vand.u32 2147483647, %v1249
      %v1296 = vand.u32 2147483647, %v1254
      %v1297 = vand.u32 2147483647, %v1259
      %v1298 = vand.u32 2147483647, %v1264
      %v1299 = vsub.f32 0.0, %v1291
      %v1300 = vsub.f32 0.0, %v1292
      %v1301 = vsub.f32 0.0, %v1293
      %v1302 = vsub.f32 0.0, %v1294
      %v1303 = vsub.f32 0.0, %v1295
      %v1304 = vsub.f32 0.0, %v1296
      %v1305 = vsub.f32 0.0, %v1297
      %v1306 = vsub.f32 0.0, %v1298
      %v1307 = vmul.f32 %v1299, 1.442695
      %v1308 = vpow.pop %v1307
      %v1309 = vmul.f32 %v1300, 1.442695
      %v1310 = vpow.pop %v1309
      %v1311 = vmul.f32 %v1301, 1.442695
      %v1312 = vpow.pop %v1311
      %v1313 = vmul.f32 %v1302, 1.442695
      %v1314 = vpow.pop %v1313
      %v1315 = vmul.f32 %v1303, 1.442695
      %v1316 = vpow.pop %v1315
      %v1317 = vmul.f32 %v1304, 1.442695
      %v1318 = vpow.pop %v1317
      %v1319 = vmul.f32 %v1305, 1.442695
      %v1320 = vpow.pop %v1319
      %v1321 = vmul.f32 %v1306, 1.442695
      %v1322 = vpow.pop %v1321
      %v1323 = vadd.f32 %v1308, 1.0
      %v1324 = vlog2.pop %v1323
      %v1325 = vmul.f32 %v1324, 0.6931472
      %v1326 = vmul.f32 -0.5, %v1308
      %v1327 = vadd.f32 %v1326, 1.0
      %v1328 = vmul.f32 %v1327, %v1308
      %v1329 = vand.u32 2147483647, %v1308
      %vm1330 = vcmp.lt.f32.partialorder %v1329, 0.0004427343
      %v1331 = vsel %vm1330, %v1328, %v1325
      %v1332 = vadd.f32 %v1310, 1.0
      %v1333 = vlog2.pop %v1332
      %v1334 = vmul.f32 %v1333, 0.6931472
      %v1335 = vmul.f32 -0.5, %v1310
      %v1336 = vadd.f32 %v1335, 1.0
      %v1337 = vmul.f32 %v1336, %v1310
      %v1338 = vand.u32 2147483647, %v1310
      %vm1339 = vcmp.lt.f32.partialorder %v1338, 0.0004427343
      %v1340 = vsel %vm1339, %v1337, %v1334
      %v1341 = vadd.f32 %v1312, 1.0
      %v1342 = vlog2.pop %v1341
      %v1343 = vmul.f32 %v1342, 0.6931472
      %v1344 = vmul.f32 -0.5, %v1312
      %v1345 = vadd.f32 %v1344, 1.0
      %v1346 = vmul.f32 %v1345, %v1312
      %v1347 = vand.u32 2147483647, %v1312
      %vm1348 = vcmp.lt.f32.partialorder %v1347, 0.0004427343
      %v1349 = vsel %vm1348, %v1346, %v1343
      %v1350 = vadd.f32 %v1314, 1.0
      %v1351 = vlog2.pop %v1350
      %v1352 = vmul.f32 %v1351, 0.6931472
      %v1353 = vmul.f32 -0.5, %v1314
      %v1354 = vadd.f32 %v1353, 1.0
      %v1355 = vmul.f32 %v1354, %v1314
      %v1356 = vand.u32 2147483647, %v1314
      %vm1357 = vcmp.lt.f32.partialorder %v1356, 0.0004427343
      %v1358 = vsel %vm1357, %v1355, %v1352
      %v1359 = vadd.f32 %v1316, 1.0
      %v1360 = vlog2.pop %v1359
      %v1361 = vmul.f32 %v1360, 0.6931472
      %v1362 = vmul.f32 -0.5, %v1316
      %v1363 = vadd.f32 %v1362, 1.0
      %v1364 = vmul.f32 %v1363, %v1316
      %v1365 = vand.u32 2147483647, %v1316
      %vm1366 = vcmp.lt.f32.partialorder %v1365, 0.0004427343
      %v1367 = vsel %vm1366, %v1364, %v1361
      %v1368 = vadd.f32 %v1318, 1.0
      %v1369 = vlog2.pop %v1368
      %v1370 = vmul.f32 %v1369, 0.6931472
      %v1371 = vmul.f32 -0.5, %v1318
      %v1372 = vadd.f32 %v1371, 1.0
      %v1373 = vmul.f32 %v1372, %v1318
      %v1374 = vand.u32 2147483647, %v1318
      %vm1375 = vcmp.lt.f32.partialorder %v1374, 0.0004427343
      %v1376 = vsel %vm1375, %v1373, %v1370
      %v1377 = vadd.f32 %v1320, 1.0
      %v1378 = vlog2.pop %v1377
      %v1379 = vmul.f32 %v1378, 0.6931472
      %v1380 = vmul.f32 -0.5, %v1320
      %v1381 = vadd.f32 %v1380, 1.0
      %v1382 = vmul.f32 %v1381, %v1320
      %v1383 = vand.u32 2147483647, %v1320
      %vm1384 = vcmp.lt.f32.partialorder %v1383, 0.0004427343
      %v1385 = vsel %vm1384, %v1382, %v1379
      %v1386 = vadd.f32 %v1322, 1.0
      %v1387 = vlog2.pop %v1386
      %v1388 = vmul.f32 %v1387, 0.6931472
      %v1389 = vmul.f32 -0.5, %v1322
      %v1390 = vadd.f32 %v1389, 1.0
      %v1391 = vmul.f32 %v1390, %v1322
      %v1392 = vand.u32 2147483647, %v1322
      %vm1393 = vcmp.lt.f32.partialorder %v1392, 0.0004427343
      %v1394 = vsel %vm1393, %v1391, %v1388
      %v1395 = vadd.f32 %v1267, %v1331
      %v1396 = vadd.f32 %v1268, %v1340
      %v1397 = vadd.f32 %v1269, %v1349
      %v1398 = vadd.f32 %v1270, %v1358
      %v1399 = vadd.f32 %v1271, %v1367
      %v1400 = vadd.f32 %v1272, %v1376
      %v1401 = vadd.f32 %v1273, %v1385
      %v1402 = vadd.f32 %v1274, %v1394
      %v1403 = vsel %vm1275, %v1283, %v1395
      %v1404 = vsel %vm1276, %v1284, %v1396
      %v1405 = vsel %vm1277, %v1285, %v1397
      %v1406 = vsel %vm1278, %v1286, %v1398
      %v1407 = vsel %vm1279, %v1287, %v1399
      %v1408 = vsel %vm1280, %v1288, %v1400
      %v1409 = vsel %vm1281, %v1289, %v1401
      %v1410 = vsel %vm1282, %v1290, %v1402
      %v1411 = vld [vmem:[%s548] sm:$0xff]
      %v1412 = vld [vmem:[%s548 + $0x8] sm:$0xff]
      %v1421 = vcombine.high %v1403, %v1403
      %v1423 = vunpack.c.l.s4 1966171168
      %v1424 = vunpack.c.0.s8 %v1423
      %v1425 = vlaneseq
      %v1426 = vshrl.u32 %v1425, 7
      %v1427 = vsub.s32 %v1424, %v1426
      %v1428 = vrot.slane %v1403, %v1427
      %v1430 = vunpack.c.l.s4 1966171168
      %v1431 = vunpack.c.0.s8 %v1430
      %v1432 = vlaneseq
      %v1433 = vshrl.u32 %v1432, 7
      %v1434 = vsub.s32 %v1431, %v1433
      %v1435 = vrot.slane %v1421, %v1434
      %v1436 = vcombine.high %v1428, %v1428
      %v1437 = vcombine.high %v1435, %v1435
      %v1439 = vunpack.c.l.s4 1966171168
      %v1440 = vunpack.c.0.s8 %v1439
      %v1441 = vlaneseq
      %v1442 = vshrl.u32 %v1441, 7
      %v1443 = vsub.s32 %v1440, %v1442
      %v1444 = vrot.slane %v1428, %v1443
      %v1446 = vunpack.c.l.s4 1966171168
      %v1447 = vunpack.c.0.s8 %v1446
      %v1448 = vlaneseq
      %v1449 = vshrl.u32 %v1448, 7
      %v1450 = vsub.s32 %v1447, %v1449
      %v1451 = vrot.slane %v1435, %v1450
      %v1453 = vunpack.c.l.s4 1966171168
      %v1454 = vunpack.c.0.s8 %v1453
      %v1455 = vlaneseq
      %v1456 = vshrl.u32 %v1455, 7
      %v1457 = vsub.s32 %v1454, %v1456
      %v1458 = vrot.slane %v1436, %v1457
      %v1460 = vunpack.c.l.s4 1966171168
      %v1461 = vunpack.c.0.s8 %v1460
      %v1462 = vlaneseq
      %v1463 = vshrl.u32 %v1462, 7
      %v1464 = vsub.s32 %v1461, %v1463
      %v1465 = vrot.slane %v1437, %v1464
      %v1466 = vcombine.high %v1444, %v1444
      %v1467 = vcombine.high %v1451, %v1451
      %v1468 = vcombine.high %v1458, %v1458
      %v1469 = vcombine.high %v1465, %v1465
      %v1470 = vcombine.high %v1404, %v1404
      %v1472 = vunpack.c.l.s4 1966171168
      %v1473 = vunpack.c.0.s8 %v1472
      %v1474 = vlaneseq
      %v1475 = vshrl.u32 %v1474, 7
      %v1476 = vsub.s32 %v1473, %v1475
      %v1477 = vrot.slane %v1404, %v1476
      %v1479 = vunpack.c.l.s4 1966171168
      %v1480 = vunpack.c.0.s8 %v1479
      %v1481 = vlaneseq
      %v1482 = vshrl.u32 %v1481, 7
      %v1483 = vsub.s32 %v1480, %v1482
      %v1484 = vrot.slane %v1470, %v1483
      %v1485 = vcombine.high %v1477, %v1477
      %v1486 = vcombine.high %v1484, %v1484
      %v1488 = vunpack.c.l.s4 1966171168
      %v1489 = vunpack.c.0.s8 %v1488
      %v1490 = vlaneseq
      %v1491 = vshrl.u32 %v1490, 7
      %v1492 = vsub.s32 %v1489, %v1491
      %v1493 = vrot.slane %v1477, %v1492
      %v1495 = vunpack.c.l.s4 1966171168
      %v1496 = vunpack.c.0.s8 %v1495
      %v1497 = vlaneseq
      %v1498 = vshrl.u32 %v1497, 7
      %v1499 = vsub.s32 %v1496, %v1498
      %v1500 = vrot.slane %v1484, %v1499
      %v1502 = vunpack.c.l.s4 1966171168
      %v1503 = vunpack.c.0.s8 %v1502
      %v1504 = vlaneseq
      %v1505 = vshrl.u32 %v1504, 7
      %v1506 = vsub.s32 %v1503, %v1505
      %v1507 = vrot.slane %v1485, %v1506
      %v1509 = vunpack.c.l.s4 1966171168
      %v1510 = vunpack.c.0.s8 %v1509
      %v1511 = vlaneseq
      %v1512 = vshrl.u32 %v1511, 7
      %v1513 = vsub.s32 %v1510, %v1512
      %v1514 = vrot.slane %v1486, %v1513
      %v1515 = vcombine.high %v1493, %v1493
      %v1516 = vcombine.high %v1500, %v1500
      %v1517 = vcombine.high %v1507, %v1507
      %v1518 = vcombine.high %v1514, %v1514
      %v1519 = vcombine.high %v1405, %v1405
      %v1521 = vunpack.c.l.s4 1966171168
      %v1522 = vunpack.c.0.s8 %v1521
      %v1523 = vlaneseq
      %v1524 = vshrl.u32 %v1523, 7
      %v1525 = vsub.s32 %v1522, %v1524
      %v1526 = vrot.slane %v1405, %v1525
      %v1528 = vunpack.c.l.s4 1966171168
      %v1529 = vunpack.c.0.s8 %v1528
      %v1530 = vlaneseq
      %v1531 = vshrl.u32 %v1530, 7
      %v1532 = vsub.s32 %v1529, %v1531
      %v1533 = vrot.slane %v1519, %v1532
      %v1534 = vcombine.high %v1526, %v1526
      %v1535 = vcombine.high %v1533, %v1533
      %v1537 = vunpack.c.l.s4 1966171168
      %v1538 = vunpack.c.0.s8 %v1537
      %v1539 = vlaneseq
      %v1540 = vshrl.u32 %v1539, 7
      %v1541 = vsub.s32 %v1538, %v1540
      %v1542 = vrot.slane %v1526, %v1541
      %v1544 = vunpack.c.l.s4 1966171168
      %v1545 = vunpack.c.0.s8 %v1544
      %v1546 = vlaneseq
      %v1547 = vshrl.u32 %v1546, 7
      %v1548 = vsub.s32 %v1545, %v1547
      %v1549 = vrot.slane %v1533, %v1548
      %v1551 = vunpack.c.l.s4 1966171168
      %v1552 = vunpack.c.0.s8 %v1551
      %v1553 = vlaneseq
      %v1554 = vshrl.u32 %v1553, 7
      %v1555 = vsub.s32 %v1552, %v1554
      %v1556 = vrot.slane %v1534, %v1555
      %v1558 = vunpack.c.l.s4 1966171168
      %v1559 = vunpack.c.0.s8 %v1558
      %v1560 = vlaneseq
      %v1561 = vshrl.u32 %v1560, 7
      %v1562 = vsub.s32 %v1559, %v1561
      %v1563 = vrot.slane %v1535, %v1562
      %v1564 = vcombine.high %v1542, %v1542
      %v1565 = vcombine.high %v1549, %v1549
      %v1566 = vcombine.high %v1556, %v1556
      %v1567 = vcombine.high %v1563, %v1563
      %v1568 = vcombine.high %v1406, %v1406
      %v1570 = vunpack.c.l.s4 1966171168
      %v1571 = vunpack.c.0.s8 %v1570
      %v1572 = vlaneseq
      %v1573 = vshrl.u32 %v1572, 7
      %v1574 = vsub.s32 %v1571, %v1573
      %v1575 = vrot.slane %v1406, %v1574
      %v1577 = vunpack.c.l.s4 1966171168
      %v1578 = vunpack.c.0.s8 %v1577
      %v1579 = vlaneseq
      %v1580 = vshrl.u32 %v1579, 7
      %v1581 = vsub.s32 %v1578, %v1580
      %v1582 = vrot.slane %v1568, %v1581
      %v1583 = vcombine.high %v1575, %v1575
      %v1584 = vcombine.high %v1582, %v1582
      %v1586 = vunpack.c.l.s4 1966171168
      %v1587 = vunpack.c.0.s8 %v1586
      %v1588 = vlaneseq
      %v1589 = vshrl.u32 %v1588, 7
      %v1590 = vsub.s32 %v1587, %v1589
      %v1591 = vrot.slane %v1575, %v1590
      %v1593 = vunpack.c.l.s4 1966171168
      %v1594 = vunpack.c.0.s8 %v1593
      %v1595 = vlaneseq
      %v1596 = vshrl.u32 %v1595, 7
      %v1597 = vsub.s32 %v1594, %v1596
      %v1598 = vrot.slane %v1582, %v1597
      %v1600 = vunpack.c.l.s4 1966171168
      %v1601 = vunpack.c.0.s8 %v1600
      %v1602 = vlaneseq
      %v1603 = vshrl.u32 %v1602, 7
      %v1604 = vsub.s32 %v1601, %v1603
      %v1605 = vrot.slane %v1583, %v1604
      %v1607 = vunpack.c.l.s4 1966171168
      %v1608 = vunpack.c.0.s8 %v1607
      %v1609 = vlaneseq
      %v1610 = vshrl.u32 %v1609, 7
      %v1611 = vsub.s32 %v1608, %v1610
      %v1612 = vrot.slane %v1584, %v1611
      %v1613 = vcombine.high %v1591, %v1591
      %v1614 = vcombine.high %v1598, %v1598
      %v1615 = vcombine.high %v1605, %v1605
      %v1616 = vcombine.high %v1612, %v1612
      %v1617 = vcombine.high %v1407, %v1407
      %v1619 = vunpack.c.l.s4 1966171168
      %v1620 = vunpack.c.0.s8 %v1619
      %v1621 = vlaneseq
      %v1622 = vshrl.u32 %v1621, 7
      %v1623 = vsub.s32 %v1620, %v1622
      %v1624 = vrot.slane %v1407, %v1623
      %v1626 = vunpack.c.l.s4 1966171168
      %v1627 = vunpack.c.0.s8 %v1626
      %v1628 = vlaneseq
      %v1629 = vshrl.u32 %v1628, 7
      %v1630 = vsub.s32 %v1627, %v1629
      %v1631 = vrot.slane %v1617, %v1630
      %v1632 = vcombine.high %v1624, %v1624
      %v1633 = vcombine.high %v1631, %v1631
      %v1635 = vunpack.c.l.s4 1966171168
      %v1636 = vunpack.c.0.s8 %v1635
      %v1637 = vlaneseq
      %v1638 = vshrl.u32 %v1637, 7
      %v1639 = vsub.s32 %v1636, %v1638
      %v1640 = vrot.slane %v1624, %v1639
      %v1642 = vunpack.c.l.s4 1966171168
      %v1643 = vunpack.c.0.s8 %v1642
      %v1644 = vlaneseq
      %v1645 = vshrl.u32 %v1644, 7
      %v1646 = vsub.s32 %v1643, %v1645
      %v1647 = vrot.slane %v1631, %v1646
      %v1649 = vunpack.c.l.s4 1966171168
      %v1650 = vunpack.c.0.s8 %v1649
      %v1651 = vlaneseq
      %v1652 = vshrl.u32 %v1651, 7
      %v1653 = vsub.s32 %v1650, %v1652
      %v1654 = vrot.slane %v1632, %v1653
      %v1656 = vunpack.c.l.s4 1966171168
      %v1657 = vunpack.c.0.s8 %v1656
      %v1658 = vlaneseq
      %v1659 = vshrl.u32 %v1658, 7
      %v1660 = vsub.s32 %v1657, %v1659
      %v1661 = vrot.slane %v1633, %v1660
      %v1662 = vcombine.high %v1640, %v1640
      %v1663 = vcombine.high %v1647, %v1647
      %v1664 = vcombine.high %v1654, %v1654
      %v1665 = vcombine.high %v1661, %v1661
      %v1666 = vcombine.high %v1408, %v1408
      %v1668 = vunpack.c.l.s4 1966171168
      %v1669 = vunpack.c.0.s8 %v1668
      %v1670 = vlaneseq
      %v1671 = vshrl.u32 %v1670, 7
      %v1672 = vsub.s32 %v1669, %v1671
      %v1673 = vrot.slane %v1408, %v1672
      %v1675 = vunpack.c.l.s4 1966171168
      %v1676 = vunpack.c.0.s8 %v1675
      %v1677 = vlaneseq
      %v1678 = vshrl.u32 %v1677, 7
      %v1679 = vsub.s32 %v1676, %v1678
      %v1680 = vrot.slane %v1666, %v1679
      %v1681 = vcombine.high %v1673, %v1673
      %v1682 = vcombine.high %v1680, %v1680
      %v1684 = vunpack.c.l.s4 1966171168
      %v1685 = vunpack.c.0.s8 %v1684
      %v1686 = vlaneseq
      %v1687 = vshrl.u32 %v1686, 7
      %v1688 = vsub.s32 %v1685, %v1687
      %v1689 = vrot.slane %v1673, %v1688
      %v1691 = vunpack.c.l.s4 1966171168
      %v1692 = vunpack.c.0.s8 %v1691
      %v1693 = vlaneseq
      %v1694 = vshrl.u32 %v1693, 7
      %v1695 = vsub.s32 %v1692, %v1694
      %v1696 = vrot.slane %v1680, %v1695
      %v1698 = vunpack.c.l.s4 1966171168
      %v1699 = vunpack.c.0.s8 %v1698
      %v1700 = vlaneseq
      %v1701 = vshrl.u32 %v1700, 7
      %v1702 = vsub.s32 %v1699, %v1701
      %v1703 = vrot.slane %v1681, %v1702
      %v1705 = vunpack.c.l.s4 1966171168
      %v1706 = vunpack.c.0.s8 %v1705
      %v1707 = vlaneseq
      %v1708 = vshrl.u32 %v1707, 7
      %v1709 = vsub.s32 %v1706, %v1708
      %v1710 = vrot.slane %v1682, %v1709
      %v1711 = vcombine.high %v1689, %v1689
      %v1712 = vcombine.high %v1696, %v1696
      %v1713 = vcombine.high %v1703, %v1703
      %v1714 = vcombine.high %v1710, %v1710
      %v1715 = vcombine.high %v1409, %v1409
      %v1717 = vunpack.c.l.s4 1966171168
      %v1718 = vunpack.c.0.s8 %v1717
      %v1719 = vlaneseq
      %v1720 = vshrl.u32 %v1719, 7
      %v1721 = vsub.s32 %v1718, %v1720
      %v1722 = vrot.slane %v1409, %v1721
      %v1724 = vunpack.c.l.s4 1966171168
      %v1725 = vunpack.c.0.s8 %v1724
      %v1726 = vlaneseq
      %v1727 = vshrl.u32 %v1726, 7
      %v1728 = vsub.s32 %v1725, %v1727
      %v1729 = vrot.slane %v1715, %v1728
      %v1730 = vcombine.high %v1722, %v1722
      %v1731 = vcombine.high %v1729, %v1729
      %v1733 = vunpack.c.l.s4 1966171168
      %v1734 = vunpack.c.0.s8 %v1733
      %v1735 = vlaneseq
      %v1736 = vshrl.u32 %v1735, 7
      %v1737 = vsub.s32 %v1734, %v1736
      %v1738 = vrot.slane %v1722, %v1737
      %v1740 = vunpack.c.l.s4 1966171168
      %v1741 = vunpack.c.0.s8 %v1740
      %v1742 = vlaneseq
      %v1743 = vshrl.u32 %v1742, 7
      %v1744 = vsub.s32 %v1741, %v1743
      %v1745 = vrot.slane %v1729, %v1744
      %v1747 = vunpack.c.l.s4 1966171168
      %v1748 = vunpack.c.0.s8 %v1747
      %v1749 = vlaneseq
      %v1750 = vshrl.u32 %v1749, 7
      %v1751 = vsub.s32 %v1748, %v1750
      %v1752 = vrot.slane %v1730, %v1751
      %v1754 = vunpack.c.l.s4 1966171168
      %v1755 = vunpack.c.0.s8 %v1754
      %v1756 = vlaneseq
      %v1757 = vshrl.u32 %v1756, 7
      %v1758 = vsub.s32 %v1755, %v1757
      %v1759 = vrot.slane %v1731, %v1758
      %v1760 = vcombine.high %v1738, %v1738
      %v1761 = vcombine.high %v1745, %v1745
      %v1762 = vcombine.high %v1752, %v1752
      %v1763 = vcombine.high %v1759, %v1759
      %v1764 = vcombine.high %v1410, %v1410
      %v1766 = vunpack.c.l.s4 1966171168
      %v1767 = vunpack.c.0.s8 %v1766
      %v1768 = vlaneseq
      %v1769 = vshrl.u32 %v1768, 7
      %v1770 = vsub.s32 %v1767, %v1769
      %v1771 = vrot.slane %v1410, %v1770
      %v1773 = vunpack.c.l.s4 1966171168
      %v1774 = vunpack.c.0.s8 %v1773
      %v1775 = vlaneseq
      %v1776 = vshrl.u32 %v1775, 7
      %v1777 = vsub.s32 %v1774, %v1776
      %v1778 = vrot.slane %v1764, %v1777
      %v1779 = vcombine.high %v1771, %v1771
      %v1780 = vcombine.high %v1778, %v1778
      %v1782 = vunpack.c.l.s4 1966171168
      %v1783 = vunpack.c.0.s8 %v1782
      %v1784 = vlaneseq
      %v1785 = vshrl.u32 %v1784, 7
      %v1786 = vsub.s32 %v1783, %v1785
      %v1787 = vrot.slane %v1771, %v1786
      %v1789 = vunpack.c.l.s4 1966171168
      %v1790 = vunpack.c.0.s8 %v1789
      %v1791 = vlaneseq
      %v1792 = vshrl.u32 %v1791, 7
      %v1793 = vsub.s32 %v1790, %v1792
      %v1794 = vrot.slane %v1778, %v1793
      %v1796 = vunpack.c.l.s4 1966171168
      %v1797 = vunpack.c.0.s8 %v1796
      %v1798 = vlaneseq
      %v1799 = vshrl.u32 %v1798, 7
      %v1800 = vsub.s32 %v1797, %v1799
      %v1801 = vrot.slane %v1779, %v1800
      %v1803 = vunpack.c.l.s4 1966171168
      %v1804 = vunpack.c.0.s8 %v1803
      %v1805 = vlaneseq
      %v1806 = vshrl.u32 %v1805, 7
      %v1807 = vsub.s32 %v1804, %v1806
      %v1808 = vrot.slane %v1780, %v1807
      %v1809 = vcombine.high %v1787, %v1787
      %v1810 = vcombine.high %v1794, %v1794
      %v1811 = vcombine.high %v1801, %v1801
      %v1812 = vcombine.high %v1808, %v1808
      %v1813 = vlaneseq
      %v1814 = vshrl.u32 %v1813, 7
      %v1815 = vsub.s32 0, %v1814
      %v1816 = vrot.slane %v1444, %v1815
      %v1817 = vlaneseq
      %v1818 = vshrl.u32 %v1817, 7
      %v1819 = vsub.s32 0, %v1818
      %v1820 = vrot.slane %v1458, %v1819
      %v1821 = vlaneseq
      %v1822 = vshrl.u32 %v1821, 7
      %v1823 = vsub.s32 0, %v1822
      %v1824 = vrot.slane %v1466, %v1823
      %v1825 = vlaneseq
      %v1826 = vshrl.u32 %v1825, 7
      %v1827 = vsub.s32 0, %v1826
      %v1828 = vrot.slane %v1468, %v1827
      %v1829 = vlaneseq
      %v1830 = vshrl.u32 %v1829, 7
      %v1831 = vsub.s32 0, %v1830
      %v1832 = vrot.slane %v1451, %v1831
      %v1833 = vlaneseq
      %v1834 = vshrl.u32 %v1833, 7
      %v1835 = vsub.s32 0, %v1834
      %v1836 = vrot.slane %v1465, %v1835
      %v1837 = vlaneseq
      %v1838 = vshrl.u32 %v1837, 7
      %v1839 = vsub.s32 0, %v1838
      %v1840 = vrot.slane %v1467, %v1839
      %v1841 = vlaneseq
      %v1842 = vshrl.u32 %v1841, 7
      %v1843 = vsub.s32 0, %v1842
      %v1844 = vrot.slane %v1469, %v1843
      %v1845 = vlaneseq
      %v1846 = vshrl.u32 %v1845, 7
      %v1847 = vsub.s32 0, %v1846
      %v1848 = vrot.slane %v1493, %v1847
      %v1849 = vlaneseq
      %v1850 = vshrl.u32 %v1849, 7
      %v1851 = vsub.s32 0, %v1850
      %v1852 = vrot.slane %v1507, %v1851
      %v1853 = vlaneseq
      %v1854 = vshrl.u32 %v1853, 7
      %v1855 = vsub.s32 0, %v1854
      %v1856 = vrot.slane %v1515, %v1855
      %v1857 = vlaneseq
      %v1858 = vshrl.u32 %v1857, 7
      %v1859 = vsub.s32 0, %v1858
      %v1860 = vrot.slane %v1517, %v1859
      %v1861 = vlaneseq
      %v1862 = vshrl.u32 %v1861, 7
      %v1863 = vsub.s32 0, %v1862
      %v1864 = vrot.slane %v1500, %v1863
      %v1865 = vlaneseq
      %v1866 = vshrl.u32 %v1865, 7
      %v1867 = vsub.s32 0, %v1866
      %v1868 = vrot.slane %v1514, %v1867
      %v1869 = vlaneseq
      %v1870 = vshrl.u32 %v1869, 7
      %v1871 = vsub.s32 0, %v1870
      %v1872 = vrot.slane %v1516, %v1871
      %v1873 = vlaneseq
      %v1874 = vshrl.u32 %v1873, 7
      %v1875 = vsub.s32 0, %v1874
      %v1876 = vrot.slane %v1518, %v1875
      %v1877 = vlaneseq
      %v1878 = vshrl.u32 %v1877, 7
      %v1879 = vsub.s32 0, %v1878
      %v1880 = vrot.slane %v1542, %v1879
      %v1881 = vlaneseq
      %v1882 = vshrl.u32 %v1881, 7
      %v1883 = vsub.s32 0, %v1882
      %v1884 = vrot.slane %v1556, %v1883
      %v1885 = vlaneseq
      %v1886 = vshrl.u32 %v1885, 7
      %v1887 = vsub.s32 0, %v1886
      %v1888 = vrot.slane %v1564, %v1887
      %v1889 = vlaneseq
      %v1890 = vshrl.u32 %v1889, 7
      %v1891 = vsub.s32 0, %v1890
      %v1892 = vrot.slane %v1566, %v1891
      %v1893 = vlaneseq
      %v1894 = vshrl.u32 %v1893, 7
      %v1895 = vsub.s32 0, %v1894
      %v1896 = vrot.slane %v1549, %v1895
      %v1897 = vlaneseq
      %v1898 = vshrl.u32 %v1897, 7
      %v1899 = vsub.s32 0, %v1898
      %v1900 = vrot.slane %v1563, %v1899
      %v1901 = vlaneseq
      %v1902 = vshrl.u32 %v1901, 7
      %v1903 = vsub.s32 0, %v1902
      %v1904 = vrot.slane %v1565, %v1903
      %v1905 = vlaneseq
      %v1906 = vshrl.u32 %v1905, 7
      %v1907 = vsub.s32 0, %v1906
      %v1908 = vrot.slane %v1567, %v1907
      %v1909 = vlaneseq
      %v1910 = vshrl.u32 %v1909, 7
      %v1911 = vsub.s32 0, %v1910
      %v1912 = vrot.slane %v1591, %v1911
      %v1913 = vlaneseq
      %v1914 = vshrl.u32 %v1913, 7
      %v1915 = vsub.s32 0, %v1914
      %v1916 = vrot.slane %v1605, %v1915
      %v1917 = vlaneseq
      %v1918 = vshrl.u32 %v1917, 7
      %v1919 = vsub.s32 0, %v1918
      %v1920 = vrot.slane %v1613, %v1919
      %v1921 = vlaneseq
      %v1922 = vshrl.u32 %v1921, 7
      %v1923 = vsub.s32 0, %v1922
      %v1924 = vrot.slane %v1615, %v1923
      %v1925 = vlaneseq
      %v1926 = vshrl.u32 %v1925, 7
      %v1927 = vsub.s32 0, %v1926
      %v1928 = vrot.slane %v1598, %v1927
      %v1929 = vlaneseq
      %v1930 = vshrl.u32 %v1929, 7
      %v1931 = vsub.s32 0, %v1930
      %v1932 = vrot.slane %v1612, %v1931
      %v1933 = vlaneseq
      %v1934 = vshrl.u32 %v1933, 7
      %v1935 = vsub.s32 0, %v1934
      %v1936 = vrot.slane %v1614, %v1935
      %v1937 = vlaneseq
      %v1938 = vshrl.u32 %v1937, 7
      %v1939 = vsub.s32 0, %v1938
      %v1940 = vrot.slane %v1616, %v1939
      %v1941 = vlaneseq
      %v1942 = vshrl.u32 %v1941, 7
      %v1943 = vsub.s32 0, %v1942
      %v1944 = vrot.slane %v1640, %v1943
      %v1945 = vlaneseq
      %v1946 = vshrl.u32 %v1945, 7
      %v1947 = vsub.s32 0, %v1946
      %v1948 = vrot.slane %v1654, %v1947
      %v1949 = vlaneseq
      %v1950 = vshrl.u32 %v1949, 7
      %v1951 = vsub.s32 0, %v1950
      %v1952 = vrot.slane %v1662, %v1951
      %v1953 = vlaneseq
      %v1954 = vshrl.u32 %v1953, 7
      %v1955 = vsub.s32 0, %v1954
      %v1956 = vrot.slane %v1664, %v1955
      %v1957 = vlaneseq
      %v1958 = vshrl.u32 %v1957, 7
      %v1959 = vsub.s32 0, %v1958
      %v1960 = vrot.slane %v1647, %v1959
      %v1961 = vlaneseq
      %v1962 = vshrl.u32 %v1961, 7
      %v1963 = vsub.s32 0, %v1962
      %v1964 = vrot.slane %v1661, %v1963
      %v1965 = vlaneseq
      %v1966 = vshrl.u32 %v1965, 7
      %v1967 = vsub.s32 0, %v1966
      %v1968 = vrot.slane %v1663, %v1967
      %v1969 = vlaneseq
      %v1970 = vshrl.u32 %v1969, 7
      %v1971 = vsub.s32 0, %v1970
      %v1972 = vrot.slane %v1665, %v1971
      %v1973 = vlaneseq
      %v1974 = vshrl.u32 %v1973, 7
      %v1975 = vsub.s32 0, %v1974
      %v1976 = vrot.slane %v1689, %v1975
      %v1977 = vlaneseq
      %v1978 = vshrl.u32 %v1977, 7
      %v1979 = vsub.s32 0, %v1978
      %v1980 = vrot.slane %v1703, %v1979
      %v1981 = vlaneseq
      %v1982 = vshrl.u32 %v1981, 7
      %v1983 = vsub.s32 0, %v1982
      %v1984 = vrot.slane %v1711, %v1983
      %v1985 = vlaneseq
      %v1986 = vshrl.u32 %v1985, 7
      %v1987 = vsub.s32 0, %v1986
      %v1988 = vrot.slane %v1713, %v1987
      %v1989 = vlaneseq
      %v1990 = vshrl.u32 %v1989, 7
      %v1991 = vsub.s32 0, %v1990
      %v1992 = vrot.slane %v1696, %v1991
      %v1993 = vlaneseq
      %v1994 = vshrl.u32 %v1993, 7
      %v1995 = vsub.s32 0, %v1994
      %v1996 = vrot.slane %v1710, %v1995
      %v1997 = vlaneseq
      %v1998 = vshrl.u32 %v1997, 7
      %v1999 = vsub.s32 0, %v1998
      %v2000 = vrot.slane %v1712, %v1999
      %v2001 = vlaneseq
      %v2002 = vshrl.u32 %v2001, 7
      %v2003 = vsub.s32 0, %v2002
      %v2004 = vrot.slane %v1714, %v2003
      %v2005 = vlaneseq
      %v2006 = vshrl.u32 %v2005, 7
      %v2007 = vsub.s32 0, %v2006
      %v2008 = vrot.slane %v1738, %v2007
      %v2009 = vlaneseq
      %v2010 = vshrl.u32 %v2009, 7
      %v2011 = vsub.s32 0, %v2010
      %v2012 = vrot.slane %v1752, %v2011
      %v2013 = vlaneseq
      %v2014 = vshrl.u32 %v2013, 7
      %v2015 = vsub.s32 0, %v2014
      %v2016 = vrot.slane %v1760, %v2015
      %v2017 = vlaneseq
      %v2018 = vshrl.u32 %v2017, 7
      %v2019 = vsub.s32 0, %v2018
      %v2020 = vrot.slane %v1762, %v2019
      %v2021 = vlaneseq
      %v2022 = vshrl.u32 %v2021, 7
      %v2023 = vsub.s32 0, %v2022
      %v2024 = vrot.slane %v1745, %v2023
      %v2025 = vlaneseq
      %v2026 = vshrl.u32 %v2025, 7
      %v2027 = vsub.s32 0, %v2026
      %v2028 = vrot.slane %v1759, %v2027
      %v2029 = vlaneseq
      %v2030 = vshrl.u32 %v2029, 7
      %v2031 = vsub.s32 0, %v2030
      %v2032 = vrot.slane %v1761, %v2031
      %v2033 = vlaneseq
      %v2034 = vshrl.u32 %v2033, 7
      %v2035 = vsub.s32 0, %v2034
      %v2036 = vrot.slane %v1763, %v2035
      %v2037 = vlaneseq
      %v2038 = vshrl.u32 %v2037, 7
      %v2039 = vsub.s32 0, %v2038
      %v2040 = vrot.slane %v1787, %v2039
      %v2041 = vlaneseq
      %v2042 = vshrl.u32 %v2041, 7
      %v2043 = vsub.s32 0, %v2042
      %v2044 = vrot.slane %v1801, %v2043
      %v2045 = vlaneseq
      %v2046 = vshrl.u32 %v2045, 7
      %v2047 = vsub.s32 0, %v2046
      %v2048 = vrot.slane %v1809, %v2047
      %v2049 = vlaneseq
      %v2050 = vshrl.u32 %v2049, 7
      %v2051 = vsub.s32 0, %v2050
      %v2052 = vrot.slane %v1811, %v2051
      %v2053 = vlaneseq
      %v2054 = vshrl.u32 %v2053, 7
      %v2055 = vsub.s32 0, %v2054
      %v2056 = vrot.slane %v1794, %v2055
      %v2057 = vlaneseq
      %v2058 = vshrl.u32 %v2057, 7
      %v2059 = vsub.s32 0, %v2058
      %v2060 = vrot.slane %v1808, %v2059
      %v2061 = vlaneseq
      %v2062 = vshrl.u32 %v2061, 7
      %v2063 = vsub.s32 0, %v2062
      %v2064 = vrot.slane %v1810, %v2063
      %v2065 = vlaneseq
      %v2066 = vshrl.u32 %v2065, 7
      %v2067 = vsub.s32 0, %v2066
      %v2068 = vrot.slane %v1812, %v2067
      %v2133 = vmul.f32 %v1816, %v1411
      %v2134 = vmul.f32 %v1816, %v1412
      %v2135 = vmul.f32 %v1820, %v1411
      %v2136 = vmul.f32 %v1820, %v1412
      %v2137 = vmul.f32 %v1824, %v1411
      %v2138 = vmul.f32 %v1824, %v1412
      %v2139 = vmul.f32 %v1828, %v1411
      %v2140 = vmul.f32 %v1828, %v1412
      %v2141 = vmul.f32 %v1832, %v1411
      %v2142 = vmul.f32 %v1832, %v1412
      %v2143 = vmul.f32 %v1836, %v1411
      %v2144 = vmul.f32 %v1836, %v1412
      %v2145 = vmul.f32 %v1840, %v1411
      %v2146 = vmul.f32 %v1840, %v1412
      %v2147 = vmul.f32 %v1844, %v1411
      %v2148 = vmul.f32 %v1844, %v1412
      %v2149 = vmul.f32 %v1848, %v1411
      %v2150 = vmul.f32 %v1848, %v1412
      %v2151 = vmul.f32 %v1852, %v1411
      %v2152 = vmul.f32 %v1852, %v1412
      %v2153 = vmul.f32 %v1856, %v1411
      %v2154 = vmul.f32 %v1856, %v1412
      %v2155 = vmul.f32 %v1860, %v1411
      %v2156 = vmul.f32 %v1860, %v1412
      %v2157 = vmul.f32 %v1864, %v1411
      %v2158 = vmul.f32 %v1864, %v1412
      %v2159 = vmul.f32 %v1868, %v1411
      %v2160 = vmul.f32 %v1868, %v1412
      %v2161 = vmul.f32 %v1872, %v1411
      %v2162 = vmul.f32 %v1872, %v1412
      %v2163 = vmul.f32 %v1876, %v1411
      %v2164 = vmul.f32 %v1876, %v1412
      %v2165 = vmul.f32 %v1880, %v1411
      %v2166 = vmul.f32 %v1880, %v1412
      %v2167 = vmul.f32 %v1884, %v1411
      %v2168 = vmul.f32 %v1884, %v1412
      %v2169 = vmul.f32 %v1888, %v1411
      %v2170 = vmul.f32 %v1888, %v1412
      %v2171 = vmul.f32 %v1892, %v1411
      %v2172 = vmul.f32 %v1892, %v1412
      %v2173 = vmul.f32 %v1896, %v1411
      %v2174 = vmul.f32 %v1896, %v1412
      %v2175 = vmul.f32 %v1900, %v1411
      %v2176 = vmul.f32 %v1900, %v1412
      %v2177 = vmul.f32 %v1904, %v1411
      %v2178 = vmul.f32 %v1904, %v1412
      %v2179 = vmul.f32 %v1908, %v1411
      %v2180 = vmul.f32 %v1908, %v1412
      %v2181 = vmul.f32 %v1912, %v1411
      %v2182 = vmul.f32 %v1912, %v1412
      %v2183 = vmul.f32 %v1916, %v1411
      %v2184 = vmul.f32 %v1916, %v1412
      %v2185 = vmul.f32 %v1920, %v1411
      %v2186 = vmul.f32 %v1920, %v1412
      %v2187 = vmul.f32 %v1924, %v1411
      %v2188 = vmul.f32 %v1924, %v1412
      %v2189 = vmul.f32 %v1928, %v1411
      %v2190 = vmul.f32 %v1928, %v1412
      %v2191 = vmul.f32 %v1932, %v1411
      %v2192 = vmul.f32 %v1932, %v1412
      %v2193 = vmul.f32 %v1936, %v1411
      %v2194 = vmul.f32 %v1936, %v1412
      %v2195 = vmul.f32 %v1940, %v1411
      %v2196 = vmul.f32 %v1940, %v1412
      %v2197 = vmul.f32 %v1944, %v1411
      %v2198 = vmul.f32 %v1944, %v1412
      %v2199 = vmul.f32 %v1948, %v1411
      %v2200 = vmul.f32 %v1948, %v1412
      %v2201 = vmul.f32 %v1952, %v1411
      %v2202 = vmul.f32 %v1952, %v1412
      %v2203 = vmul.f32 %v1956, %v1411
      %v2204 = vmul.f32 %v1956, %v1412
      %v2205 = vmul.f32 %v1960, %v1411
      %v2206 = vmul.f32 %v1960, %v1412
      %v2207 = vmul.f32 %v1964, %v1411
      %v2208 = vmul.f32 %v1964, %v1412
      %v2209 = vmul.f32 %v1968, %v1411
      %v2210 = vmul.f32 %v1968, %v1412
      %v2211 = vmul.f32 %v1972, %v1411
      %v2212 = vmul.f32 %v1972, %v1412
      %v2213 = vmul.f32 %v1976, %v1411
      %v2214 = vmul.f32 %v1976, %v1412
      %v2215 = vmul.f32 %v1980, %v1411
      %v2216 = vmul.f32 %v1980, %v1412
      %v2217 = vmul.f32 %v1984, %v1411
      %v2218 = vmul.f32 %v1984, %v1412
      %v2219 = vmul.f32 %v1988, %v1411
      %v2220 = vmul.f32 %v1988, %v1412
      %v2221 = vmul.f32 %v1992, %v1411
      %v2222 = vmul.f32 %v1992, %v1412
      %v2223 = vmul.f32 %v1996, %v1411
      %v2224 = vmul.f32 %v1996, %v1412
      %v2225 = vmul.f32 %v2000, %v1411
      %v2226 = vmul.f32 %v2000, %v1412
      %v2227 = vmul.f32 %v2004, %v1411
      %v2228 = vmul.f32 %v2004, %v1412
      %v2229 = vmul.f32 %v2008, %v1411
      %v2230 = vmul.f32 %v2008, %v1412
      %v2231 = vmul.f32 %v2012, %v1411
      %v2232 = vmul.f32 %v2012, %v1412
      %v2233 = vmul.f32 %v2016, %v1411
      %v2234 = vmul.f32 %v2016, %v1412
      %v2235 = vmul.f32 %v2020, %v1411
      %v2236 = vmul.f32 %v2020, %v1412
      %v2237 = vmul.f32 %v2024, %v1411
      %v2238 = vmul.f32 %v2024, %v1412
      %v2239 = vmul.f32 %v2028, %v1411
      %v2240 = vmul.f32 %v2028, %v1412
      %v2241 = vmul.f32 %v2032, %v1411
      %v2242 = vmul.f32 %v2032, %v1412
      %v2243 = vmul.f32 %v2036, %v1411
      %v2244 = vmul.f32 %v2036, %v1412
      %v2245 = vmul.f32 %v2040, %v1411
      %v2246 = vmul.f32 %v2040, %v1412
      %v2247 = vmul.f32 %v2044, %v1411
      %v2248 = vmul.f32 %v2044, %v1412
      %v2249 = vmul.f32 %v2048, %v1411
      %v2250 = vmul.f32 %v2048, %v1412
      %v2251 = vmul.f32 %v2052, %v1411
      %v2252 = vmul.f32 %v2052, %v1412
      %v2253 = vmul.f32 %v2056, %v1411
      %v2254 = vmul.f32 %v2056, %v1412
      %v2255 = vmul.f32 %v2060, %v1411
      %v2256 = vmul.f32 %v2060, %v1412
      %v2257 = vmul.f32 %v2064, %v1411
      %v2258 = vmul.f32 %v2064, %v1412
      %v2259 = vmul.f32 %v2068, %v1411
      %v2260 = vmul.f32 %v2068, %v1412
      %v2261 = vmul.f32 %v2133, 1.442695
      %v2262 = vpow.pop %v2261
      %v2263 = vmul.f32 %v2134, 1.442695
      %v2264 = vpow.pop %v2263
      %v2265 = vmul.f32 %v2135, 1.442695
      %v2266 = vpow.pop %v2265
      %v2267 = vmul.f32 %v2136, 1.442695
      %v2268 = vpow.pop %v2267
      %v2269 = vmul.f32 %v2137, 1.442695
      %v2270 = vpow.pop %v2269
      %v2271 = vmul.f32 %v2138, 1.442695
      %v2272 = vpow.pop %v2271
      %v2273 = vmul.f32 %v2139, 1.442695
      %v2274 = vpow.pop %v2273
      %v2275 = vmul.f32 %v2140, 1.442695
      %v2276 = vpow.pop %v2275
      %v2277 = vmul.f32 %v2141, 1.442695
      %v2278 = vpow.pop %v2277
      %v2279 = vmul.f32 %v2142, 1.442695
      %v2280 = vpow.pop %v2279
      %v2281 = vmul.f32 %v2143, 1.442695
      %v2282 = vpow.pop %v2281
      %v2283 = vmul.f32 %v2144, 1.442695
      %v2284 = vpow.pop %v2283
      %v2285 = vmul.f32 %v2145, 1.442695
      %v2286 = vpow.pop %v2285
      %v2287 = vmul.f32 %v2146, 1.442695
      %v2288 = vpow.pop %v2287
      %v2289 = vmul.f32 %v2147, 1.442695
      %v2290 = vpow.pop %v2289
      %v2291 = vmul.f32 %v2148, 1.442695
      %v2292 = vpow.pop %v2291
      %v2293 = vmul.f32 %v2149, 1.442695
      %v2294 = vpow.pop %v2293
      %v2295 = vmul.f32 %v2150, 1.442695
      %v2296 = vpow.pop %v2295
      %v2297 = vmul.f32 %v2151, 1.442695
      %v2298 = vpow.pop %v2297
      %v2299 = vmul.f32 %v2152, 1.442695
      %v2300 = vpow.pop %v2299
      %v2301 = vmul.f32 %v2153, 1.442695
      %v2302 = vpow.pop %v2301
      %v2303 = vmul.f32 %v2154, 1.442695
      %v2304 = vpow.pop %v2303
      %v2305 = vmul.f32 %v2155, 1.442695
      %v2306 = vpow.pop %v2305
      %v2307 = vmul.f32 %v2156, 1.442695
      %v2308 = vpow.pop %v2307
      %v2309 = vmul.f32 %v2157, 1.442695
      %v2310 = vpow.pop %v2309
      %v2311 = vmul.f32 %v2158, 1.442695
      %v2312 = vpow.pop %v2311
      %v2313 = vmul.f32 %v2159, 1.442695
      %v2314 = vpow.pop %v2313
      %v2315 = vmul.f32 %v2160, 1.442695
      %v2316 = vpow.pop %v2315
      %v2317 = vmul.f32 %v2161, 1.442695
      %v2318 = vpow.pop %v2317
      %v2319 = vmul.f32 %v2162, 1.442695
      %v2320 = vpow.pop %v2319
      %v2321 = vmul.f32 %v2163, 1.442695
      %v2322 = vpow.pop %v2321
      %v2323 = vmul.f32 %v2164, 1.442695
      %v2324 = vpow.pop %v2323
      %v2325 = vmul.f32 %v2165, 1.442695
      %v2326 = vpow.pop %v2325
      %v2327 = vmul.f32 %v2166, 1.442695
      %v2328 = vpow.pop %v2327
      %v2329 = vmul.f32 %v2167, 1.442695
      %v2330 = vpow.pop %v2329
      %v2331 = vmul.f32 %v2168, 1.442695
      %v2332 = vpow.pop %v2331
      %v2333 = vmul.f32 %v2169, 1.442695
      %v2334 = vpow.pop %v2333
      %v2335 = vmul.f32 %v2170, 1.442695
      %v2336 = vpow.pop %v2335
      %v2337 = vmul.f32 %v2171, 1.442695
      %v2338 = vpow.pop %v2337
      %v2339 = vmul.f32 %v2172, 1.442695
      %v2340 = vpow.pop %v2339
      %v2341 = vmul.f32 %v2173, 1.442695
      %v2342 = vpow.pop %v2341
      %v2343 = vmul.f32 %v2174, 1.442695
      %v2344 = vpow.pop %v2343
      %v2345 = vmul.f32 %v2175, 1.442695
      %v2346 = vpow.pop %v2345
      %v2347 = vmul.f32 %v2176, 1.442695
      %v2348 = vpow.pop %v2347
      %v2349 = vmul.f32 %v2177, 1.442695
      %v2350 = vpow.pop %v2349
      %v2351 = vmul.f32 %v2178, 1.442695
      %v2352 = vpow.pop %v2351
      %v2353 = vmul.f32 %v2179, 1.442695
      %v2354 = vpow.pop %v2353
      %v2355 = vmul.f32 %v2180, 1.442695
      %v2356 = vpow.pop %v2355
      %v2357 = vmul.f32 %v2181, 1.442695
      %v2358 = vpow.pop %v2357
      %v2359 = vmul.f32 %v2182, 1.442695
      %v2360 = vpow.pop %v2359
      %v2361 = vmul.f32 %v2183, 1.442695
      %v2362 = vpow.pop %v2361
      %v2363 = vmul.f32 %v2184, 1.442695
      %v2364 = vpow.pop %v2363
      %v2365 = vmul.f32 %v2185, 1.442695
      %v2366 = vpow.pop %v2365
      %v2367 = vmul.f32 %v2186, 1.442695
      %v2368 = vpow.pop %v2367
      %v2369 = vmul.f32 %v2187, 1.442695
      %v2370 = vpow.pop %v2369
      %v2371 = vmul.f32 %v2188, 1.442695
      %v2372 = vpow.pop %v2371
      %v2373 = vmul.f32 %v2189, 1.442695
      %v2374 = vpow.pop %v2373
      %v2375 = vmul.f32 %v2190, 1.442695
      %v2376 = vpow.pop %v2375
      %v2377 = vmul.f32 %v2191, 1.442695
      %v2378 = vpow.pop %v2377
      %v2379 = vmul.f32 %v2192, 1.442695
      %v2380 = vpow.pop %v2379
      %v2381 = vmul.f32 %v2193, 1.442695
      %v2382 = vpow.pop %v2381
      %v2383 = vmul.f32 %v2194, 1.442695
      %v2384 = vpow.pop %v2383
      %v2385 = vmul.f32 %v2195, 1.442695
      %v2386 = vpow.pop %v2385
      %v2387 = vmul.f32 %v2196, 1.442695
      %v2388 = vpow.pop %v2387
      %v2389 = vmul.f32 %v2197, 1.442695
      %v2390 = vpow.pop %v2389
      %v2391 = vmul.f32 %v2198, 1.442695
      %v2392 = vpow.pop %v2391
      %v2393 = vmul.f32 %v2199, 1.442695
      %v2394 = vpow.pop %v2393
      %v2395 = vmul.f32 %v2200, 1.442695
      %v2396 = vpow.pop %v2395
      %v2397 = vmul.f32 %v2201, 1.442695
      %v2398 = vpow.pop %v2397
      %v2399 = vmul.f32 %v2202, 1.442695
      %v2400 = vpow.pop %v2399
      %v2401 = vmul.f32 %v2203, 1.442695
      %v2402 = vpow.pop %v2401
      %v2403 = vmul.f32 %v2204, 1.442695
      %v2404 = vpow.pop %v2403
      %v2405 = vmul.f32 %v2205, 1.442695
      %v2406 = vpow.pop %v2405
      %v2407 = vmul.f32 %v2206, 1.442695
      %v2408 = vpow.pop %v2407
      %v2409 = vmul.f32 %v2207, 1.442695
      %v2410 = vpow.pop %v2409
      %v2411 = vmul.f32 %v2208, 1.442695
      %v2412 = vpow.pop %v2411
      %v2413 = vmul.f32 %v2209, 1.442695
      %v2414 = vpow.pop %v2413
      %v2415 = vmul.f32 %v2210, 1.442695
      %v2416 = vpow.pop %v2415
      %v2417 = vmul.f32 %v2211, 1.442695
      %v2418 = vpow.pop %v2417
      %v2419 = vmul.f32 %v2212, 1.442695
      %v2420 = vpow.pop %v2419
      %v2421 = vmul.f32 %v2213, 1.442695
      %v2422 = vpow.pop %v2421
      %v2423 = vmul.f32 %v2214, 1.442695
      %v2424 = vpow.pop %v2423
      %v2425 = vmul.f32 %v2215, 1.442695
      %v2426 = vpow.pop %v2425
      %v2427 = vmul.f32 %v2216, 1.442695
      %v2428 = vpow.pop %v2427
      %v2429 = vmul.f32 %v2217, 1.442695
      %v2430 = vpow.pop %v2429
      %v2431 = vmul.f32 %v2218, 1.442695
      %v2432 = vpow.pop %v2431
      %v2433 = vmul.f32 %v2219, 1.442695
      %v2434 = vpow.pop %v2433
      %v2435 = vmul.f32 %v2220, 1.442695
      %v2436 = vpow.pop %v2435
      %v2437 = vmul.f32 %v2221, 1.442695
      %v2438 = vpow.pop %v2437
      %v2439 = vmul.f32 %v2222, 1.442695
      %v2440 = vpow.pop %v2439
      %v2441 = vmul.f32 %v2223, 1.442695
      %v2442 = vpow.pop %v2441
      %v2443 = vmul.f32 %v2224, 1.442695
      %v2444 = vpow.pop %v2443
      %v2445 = vmul.f32 %v2225, 1.442695
      %v2446 = vpow.pop %v2445
      %v2447 = vmul.f32 %v2226, 1.442695
      %v2448 = vpow.pop %v2447
      %v2449 = vmul.f32 %v2227, 1.442695
      %v2450 = vpow.pop %v2449
      %v2451 = vmul.f32 %v2228, 1.442695
      %v2452 = vpow.pop %v2451
      %v2453 = vmul.f32 %v2229, 1.442695
      %v2454 = vpow.pop %v2453
      %v2455 = vmul.f32 %v2230, 1.442695
      %v2456 = vpow.pop %v2455
      %v2457 = vmul.f32 %v2231, 1.442695
      %v2458 = vpow.pop %v2457
      %v2459 = vmul.f32 %v2232, 1.442695
      %v2460 = vpow.pop %v2459
      %v2461 = vmul.f32 %v2233, 1.442695
      %v2462 = vpow.pop %v2461
      %v2463 = vmul.f32 %v2234, 1.442695
      %v2464 = vpow.pop %v2463
      %v2465 = vmul.f32 %v2235, 1.442695
      %v2466 = vpow.pop %v2465
      %v2467 = vmul.f32 %v2236, 1.442695
      %v2468 = vpow.pop %v2467
      %v2469 = vmul.f32 %v2237, 1.442695
      %v2470 = vpow.pop %v2469
      %v2471 = vmul.f32 %v2238, 1.442695
      %v2472 = vpow.pop %v2471
      %v2473 = vmul.f32 %v2239, 1.442695
      %v2474 = vpow.pop %v2473
      %v2475 = vmul.f32 %v2240, 1.442695
      %v2476 = vpow.pop %v2475
      %v2477 = vmul.f32 %v2241, 1.442695
      %v2478 = vpow.pop %v2477
      %v2479 = vmul.f32 %v2242, 1.442695
      %v2480 = vpow.pop %v2479
      %v2481 = vmul.f32 %v2243, 1.442695
      %v2482 = vpow.pop %v2481
      %v2483 = vmul.f32 %v2244, 1.442695
      %v2484 = vpow.pop %v2483
      %v2485 = vmul.f32 %v2245, 1.442695
      %v2486 = vpow.pop %v2485
      %v2487 = vmul.f32 %v2246, 1.442695
      %v2488 = vpow.pop %v2487
      %v2489 = vmul.f32 %v2247, 1.442695
      %v2490 = vpow.pop %v2489
      %v2491 = vmul.f32 %v2248, 1.442695
      %v2492 = vpow.pop %v2491
      %v2493 = vmul.f32 %v2249, 1.442695
      %v2494 = vpow.pop %v2493
      %v2495 = vmul.f32 %v2250, 1.442695
      %v2496 = vpow.pop %v2495
      %v2497 = vmul.f32 %v2251, 1.442695
      %v2498 = vpow.pop %v2497
      %v2499 = vmul.f32 %v2252, 1.442695
      %v2500 = vpow.pop %v2499
      %v2501 = vmul.f32 %v2253, 1.442695
      %v2502 = vpow.pop %v2501
      %v2503 = vmul.f32 %v2254, 1.442695
      %v2504 = vpow.pop %v2503
      %v2505 = vmul.f32 %v2255, 1.442695
      %v2506 = vpow.pop %v2505
      %v2507 = vmul.f32 %v2256, 1.442695
      %v2508 = vpow.pop %v2507
      %v2509 = vmul.f32 %v2257, 1.442695
      %v2510 = vpow.pop %v2509
      %v2511 = vmul.f32 %v2258, 1.442695
      %v2512 = vpow.pop %v2511
      %v2513 = vmul.f32 %v2259, 1.442695
      %v2514 = vpow.pop %v2513
      %v2515 = vmul.f32 %v2260, 1.442695
      %v2516 = vpow.pop %v2515
      %2517 = vst.msk [vmem:[#allocation2] sm:$0xff] %vm851, %v2262
      %2518 = vst.msk [vmem:[#allocation2 + $0x8] sm:$0xff] %vm851, %v2264
      %2519 = vst.msk [vmem:[#allocation2 + $0x10] sm:$0xff] %vm851, %v2266
      %2520 = vst.msk [vmem:[#allocation2 + $0x18] sm:$0xff] %vm851, %v2268
      %2521 = vst.msk [vmem:[#allocation2 + $0x20] sm:$0xff] %vm851, %v2270
      %2522 = vst.msk [vmem:[#allocation2 + $0x28] sm:$0xff] %vm851, %v2272
      %2523 = vst.msk [vmem:[#allocation2 + $0x30] sm:$0xff] %vm851, %v2274
      %2524 = vst.msk [vmem:[#allocation2 + $0x38] sm:$0xff] %vm851, %v2276
      %2525 = vst.msk [vmem:[#allocation2 + $0x40] sm:$0xff] %vm851, %v2278
      %2526 = vst.msk [vmem:[#allocation2 + $0x48] sm:$0xff] %vm851, %v2280
      %2527 = vst.msk [vmem:[#allocation2 + $0x50] sm:$0xff] %vm851, %v2282
      %2528 = vst.msk [vmem:[#allocation2 + $0x58] sm:$0xff] %vm851, %v2284
      %2529 = vst.msk [vmem:[#allocation2 + $0x60] sm:$0xff] %vm851, %v2286
      %2530 = vst.msk [vmem:[#allocation2 + $0x68] sm:$0xff] %vm851, %v2288
      %2531 = vst.msk [vmem:[#allocation2 + $0x70] sm:$0xff] %vm851, %v2290
      %2532 = vst.msk [vmem:[#allocation2 + $0x78] sm:$0xff] %vm851, %v2292
      %2533 = vst.msk [vmem:[#allocation2 + $0x80] sm:$0xff] %vm851, %v2294
      %2534 = vst.msk [vmem:[#allocation2 + $0x88] sm:$0xff] %vm851, %v2296
      %2535 = vst.msk [vmem:[#allocation2 + $0x90] sm:$0xff] %vm851, %v2298
      %2536 = vst.msk [vmem:[#allocation2 + $0x98] sm:$0xff] %vm851, %v2300
      %2537 = vst.msk [vmem:[#allocation2 + $0xa0] sm:$0xff] %vm851, %v2302
      %2538 = vst.msk [vmem:[#allocation2 + $0xa8] sm:$0xff] %vm851, %v2304
      %2539 = vst.msk [vmem:[#allocation2 + $0xb0] sm:$0xff] %vm851, %v2306
      %2540 = vst.msk [vmem:[#allocation2 + $0xb8] sm:$0xff] %vm851, %v2308
      %2541 = vst.msk [vmem:[#allocation2 + $0xc0] sm:$0xff] %vm851, %v2310
      %2542 = vst.msk [vmem:[#allocation2 + $0xc8] sm:$0xff] %vm851, %v2312
      %2543 = vst.msk [vmem:[#allocation2 + $0xd0] sm:$0xff] %vm851, %v2314
      %2544 = vst.msk [vmem:[#allocation2 + $0xd8] sm:$0xff] %vm851, %v2316
      %2545 = vst.msk [vmem:[#allocation2 + $0xe0] sm:$0xff] %vm851, %v2318
      %2546 = vst.msk [vmem:[#allocation2 + $0xe8] sm:$0xff] %vm851, %v2320
      %2547 = vst.msk [vmem:[#allocation2 + $0xf0] sm:$0xff] %vm851, %v2322
      %2548 = vst.msk [vmem:[#allocation2 + $0xf8] sm:$0xff] %vm851, %v2324
      %2549 = vst.msk [vmem:[#allocation2 + $0x100] sm:$0xff] %vm851, %v2326
      %2550 = vst.msk [vmem:[#allocation2 + $0x108] sm:$0xff] %vm851, %v2328
      %2551 = vst.msk [vmem:[#allocation2 + $0x110] sm:$0xff] %vm851, %v2330
      %2552 = vst.msk [vmem:[#allocation2 + $0x118] sm:$0xff] %vm851, %v2332
      %2553 = vst.msk [vmem:[#allocation2 + $0x120] sm:$0xff] %vm851, %v2334
      %2554 = vst.msk [vmem:[#allocation2 + $0x128] sm:$0xff] %vm851, %v2336
      %2555 = vst.msk [vmem:[#allocation2 + $0x130] sm:$0xff] %vm851, %v2338
      %2556 = vst.msk [vmem:[#allocation2 + $0x138] sm:$0xff] %vm851, %v2340
      %2557 = vst.msk [vmem:[#allocation2 + $0x140] sm:$0xff] %vm851, %v2342
      %2558 = vst.msk [vmem:[#allocation2 + $0x148] sm:$0xff] %vm851, %v2344
      %2559 = vst.msk [vmem:[#allocation2 + $0x150] sm:$0xff] %vm851, %v2346
      %2560 = vst.msk [vmem:[#allocation2 + $0x158] sm:$0xff] %vm851, %v2348
      %2561 = vst.msk [vmem:[#allocation2 + $0x160] sm:$0xff] %vm851, %v2350
      %2562 = vst.msk [vmem:[#allocation2 + $0x168] sm:$0xff] %vm851, %v2352
      %2563 = vst.msk [vmem:[#allocation2 + $0x170] sm:$0xff] %vm851, %v2354
      %2564 = vst.msk [vmem:[#allocation2 + $0x178] sm:$0xff] %vm851, %v2356
      %2565 = vst.msk [vmem:[#allocation2 + $0x180] sm:$0xff] %vm851, %v2358
      %2566 = vst.msk [vmem:[#allocation2 + $0x188] sm:$0xff] %vm851, %v2360
      %2567 = vst.msk [vmem:[#allocation2 + $0x190] sm:$0xff] %vm851, %v2362
      %2568 = vst.msk [vmem:[#allocation2 + $0x198] sm:$0xff] %vm851, %v2364
      %2569 = vst.msk [vmem:[#allocation2 + $0x1a0] sm:$0xff] %vm851, %v2366
      %2570 = vst.msk [vmem:[#allocation2 + $0x1a8] sm:$0xff] %vm851, %v2368
      %2571 = vst.msk [vmem:[#allocation2 + $0x1b0] sm:$0xff] %vm851, %v2370
      %2572 = vst.msk [vmem:[#allocation2 + $0x1b8] sm:$0xff] %vm851, %v2372
      %2573 = vst.msk [vmem:[#allocation2 + $0x1c0] sm:$0xff] %vm851, %v2374
      %2574 = vst.msk [vmem:[#allocation2 + $0x1c8] sm:$0xff] %vm851, %v2376
      %2575 = vst.msk [vmem:[#allocation2 + $0x1d0] sm:$0xff] %vm851, %v2378
      %2576 = vst.msk [vmem:[#allocation2 + $0x1d8] sm:$0xff] %vm851, %v2380
      %2577 = vst.msk [vmem:[#allocation2 + $0x1e0] sm:$0xff] %vm851, %v2382
      %2578 = vst.msk [vmem:[#allocation2 + $0x1e8] sm:$0xff] %vm851, %v2384
      %2579 = vst.msk [vmem:[#allocation2 + $0x1f0] sm:$0xff] %vm851, %v2386
      %2580 = vst.msk [vmem:[#allocation2 + $0x1f8] sm:$0xff] %vm851, %v2388
      %2581 = vst.msk [vmem:[#allocation2 + $0x200] sm:$0xff] %vm851, %v2390
      %2582 = vst.msk [vmem:[#allocation2 + $0x208] sm:$0xff] %vm851, %v2392
      %2583 = vst.msk [vmem:[#allocation2 + $0x210] sm:$0xff] %vm851, %v2394
      %2584 = vst.msk [vmem:[#allocation2 + $0x218] sm:$0xff] %vm851, %v2396
      %2585 = vst.msk [vmem:[#allocation2 + $0x220] sm:$0xff] %vm851, %v2398
      %2586 = vst.msk [vmem:[#allocation2 + $0x228] sm:$0xff] %vm851, %v2400
      %2587 = vst.msk [vmem:[#allocation2 + $0x230] sm:$0xff] %vm851, %v2402
      %2588 = vst.msk [vmem:[#allocation2 + $0x238] sm:$0xff] %vm851, %v2404
      %2589 = vst.msk [vmem:[#allocation2 + $0x240] sm:$0xff] %vm851, %v2406
      %2590 = vst.msk [vmem:[#allocation2 + $0x248] sm:$0xff] %vm851, %v2408
      %2591 = vst.msk [vmem:[#allocation2 + $0x250] sm:$0xff] %vm851, %v2410
      %2592 = vst.msk [vmem:[#allocation2 + $0x258] sm:$0xff] %vm851, %v2412
      %2593 = vst.msk [vmem:[#allocation2 + $0x260] sm:$0xff] %vm851, %v2414
      %2594 = vst.msk [vmem:[#allocation2 + $0x268] sm:$0xff] %vm851, %v2416
      %2595 = vst.msk [vmem:[#allocation2 + $0x270] sm:$0xff] %vm851, %v2418
      %2596 = vst.msk [vmem:[#allocation2 + $0x278] sm:$0xff] %vm851, %v2420
      %2597 = vst.msk [vmem:[#allocation2 + $0x280] sm:$0xff] %vm851, %v2422
      %2598 = vst.msk [vmem:[#allocation2 + $0x288] sm:$0xff] %vm851, %v2424
      %2599 = vst.msk [vmem:[#allocation2 + $0x290] sm:$0xff] %vm851, %v2426
      %2600 = vst.msk [vmem:[#allocation2 + $0x298] sm:$0xff] %vm851, %v2428
      %2601 = vst.msk [vmem:[#allocation2 + $0x2a0] sm:$0xff] %vm851, %v2430
      %2602 = vst.msk [vmem:[#allocation2 + $0x2a8] sm:$0xff] %vm851, %v2432
      %2603 = vst.msk [vmem:[#allocation2 + $0x2b0] sm:$0xff] %vm851, %v2434
      %2604 = vst.msk [vmem:[#allocation2 + $0x2b8] sm:$0xff] %vm851, %v2436
      %2605 = vst.msk [vmem:[#allocation2 + $0x2c0] sm:$0xff] %vm851, %v2438
      %2606 = vst.msk [vmem:[#allocation2 + $0x2c8] sm:$0xff] %vm851, %v2440
      %2607 = vst.msk [vmem:[#allocation2 + $0x2d0] sm:$0xff] %vm851, %v2442
      %2608 = vst.msk [vmem:[#allocation2 + $0x2d8] sm:$0xff] %vm851, %v2444
      %2609 = vst.msk [vmem:[#allocation2 + $0x2e0] sm:$0xff] %vm851, %v2446
      %2610 = vst.msk [vmem:[#allocation2 + $0x2e8] sm:$0xff] %vm851, %v2448
      %2611 = vst.msk [vmem:[#allocation2 + $0x2f0] sm:$0xff] %vm851, %v2450
      %2612 = vst.msk [vmem:[#allocation2 + $0x2f8] sm:$0xff] %vm851, %v2452
      %2613 = vst.msk [vmem:[#allocation2 + $0x300] sm:$0xff] %vm851, %v2454
      %2614 = vst.msk [vmem:[#allocation2 + $0x308] sm:$0xff] %vm851, %v2456
      %2615 = vst.msk [vmem:[#allocation2 + $0x310] sm:$0xff] %vm851, %v2458
      %2616 = vst.msk [vmem:[#allocation2 + $0x318] sm:$0xff] %vm851, %v2460
      %2617 = vst.msk [vmem:[#allocation2 + $0x320] sm:$0xff] %vm851, %v2462
      %2618 = vst.msk [vmem:[#allocation2 + $0x328] sm:$0xff] %vm851, %v2464
      %2619 = vst.msk [vmem:[#allocation2 + $0x330] sm:$0xff] %vm851, %v2466
      %2620 = vst.msk [vmem:[#allocation2 + $0x338] sm:$0xff] %vm851, %v2468
      %2621 = vst.msk [vmem:[#allocation2 + $0x340] sm:$0xff] %vm851, %v2470
      %2622 = vst.msk [vmem:[#allocation2 + $0x348] sm:$0xff] %vm851, %v2472
      %2623 = vst.msk [vmem:[#allocation2 + $0x350] sm:$0xff] %vm851, %v2474
      %2624 = vst.msk [vmem:[#allocation2 + $0x358] sm:$0xff] %vm851, %v2476
      %2625 = vst.msk [vmem:[#allocation2 + $0x360] sm:$0xff] %vm851, %v2478
      %2626 = vst.msk [vmem:[#allocation2 + $0x368] sm:$0xff] %vm851, %v2480
      %2627 = vst.msk [vmem:[#allocation2 + $0x370] sm:$0xff] %vm851, %v2482
      %2628 = vst.msk [vmem:[#allocation2 + $0x378] sm:$0xff] %vm851, %v2484
      %2629 = vst.msk [vmem:[#allocation2 + $0x380] sm:$0xff] %vm851, %v2486
      %2630 = vst.msk [vmem:[#allocation2 + $0x388] sm:$0xff] %vm851, %v2488
      %2631 = vst.msk [vmem:[#allocation2 + $0x390] sm:$0xff] %vm851, %v2490
      %2632 = vst.msk [vmem:[#allocation2 + $0x398] sm:$0xff] %vm851, %v2492
      %2633 = vst.msk [vmem:[#allocation2 + $0x3a0] sm:$0xff] %vm851, %v2494
      %2634 = vst.msk [vmem:[#allocation2 + $0x3a8] sm:$0xff] %vm851, %v2496
      %2635 = vst.msk [vmem:[#allocation2 + $0x3b0] sm:$0xff] %vm851, %v2498
      %2636 = vst.msk [vmem:[#allocation2 + $0x3b8] sm:$0xff] %vm851, %v2500
      %2637 = vst.msk [vmem:[#allocation2 + $0x3c0] sm:$0xff] %vm851, %v2502
      %2638 = vst.msk [vmem:[#allocation2 + $0x3c8] sm:$0xff] %vm851, %v2504
      %2639 = vst.msk [vmem:[#allocation2 + $0x3d0] sm:$0xff] %vm851, %v2506
      %2640 = vst.msk [vmem:[#allocation2 + $0x3d8] sm:$0xff] %vm851, %v2508
      %2641 = vst.msk [vmem:[#allocation2 + $0x3e0] sm:$0xff] %vm851, %v2510
      %2642 = vst.msk [vmem:[#allocation2 + $0x3e8] sm:$0xff] %vm851, %v2512
      %2643 = vst.msk [vmem:[#allocation2 + $0x3f0] sm:$0xff] %vm851, %v2514
      %2644 = vst.msk [vmem:[#allocation2 + $0x3f8] sm:$0xff] %vm851, %v2516
      %v2645 = vmul.f32 %v1403, %v923
      %v2646 = vmul.f32 %v1404, %v924
      %v2647 = vmul.f32 %v1405, %v925
      %v2648 = vmul.f32 %v1406, %v926
      %v2649 = vmul.f32 %v1407, %v927
      %v2650 = vmul.f32 %v1408, %v928
      %v2651 = vmul.f32 %v1409, %v929
      %v2652 = vmul.f32 %v1410, %v930
      %v2661 = vcombine.high %v2645, %v2645
      %v2663 = vunpack.c.l.s4 1966171168
      %v2664 = vunpack.c.0.s8 %v2663
      %v2665 = vlaneseq
      %v2666 = vshrl.u32 %v2665, 7
      %v2667 = vsub.s32 %v2664, %v2666
      %v2668 = vrot.slane %v2645, %v2667
      %v2670 = vunpack.c.l.s4 1966171168
      %v2671 = vunpack.c.0.s8 %v2670
      %v2672 = vlaneseq
      %v2673 = vshrl.u32 %v2672, 7
      %v2674 = vsub.s32 %v2671, %v2673
      %v2675 = vrot.slane %v2661, %v2674
      %v2676 = vcombine.high %v2668, %v2668
      %v2677 = vcombine.high %v2675, %v2675
      %v2679 = vunpack.c.l.s4 1966171168
      %v2680 = vunpack.c.0.s8 %v2679
      %v2681 = vlaneseq
      %v2682 = vshrl.u32 %v2681, 7
      %v2683 = vsub.s32 %v2680, %v2682
      %v2684 = vrot.slane %v2668, %v2683
      %v2686 = vunpack.c.l.s4 1966171168
      %v2687 = vunpack.c.0.s8 %v2686
      %v2688 = vlaneseq
      %v2689 = vshrl.u32 %v2688, 7
      %v2690 = vsub.s32 %v2687, %v2689
      %v2691 = vrot.slane %v2675, %v2690
      %v2693 = vunpack.c.l.s4 1966171168
      %v2694 = vunpack.c.0.s8 %v2693
      %v2695 = vlaneseq
      %v2696 = vshrl.u32 %v2695, 7
      %v2697 = vsub.s32 %v2694, %v2696
      %v2698 = vrot.slane %v2676, %v2697
      %v2700 = vunpack.c.l.s4 1966171168
      %v2701 = vunpack.c.0.s8 %v2700
      %v2702 = vlaneseq
      %v2703 = vshrl.u32 %v2702, 7
      %v2704 = vsub.s32 %v2701, %v2703
      %v2705 = vrot.slane %v2677, %v2704
      %v2706 = vcombine.high %v2684, %v2684
      %v2707 = vcombine.high %v2691, %v2691
      %v2708 = vcombine.high %v2698, %v2698
      %v2709 = vcombine.high %v2705, %v2705
      %v2710 = vcombine.high %v2646, %v2646
      %v2712 = vunpack.c.l.s4 1966171168
      %v2713 = vunpack.c.0.s8 %v2712
      %v2714 = vlaneseq
      %v2715 = vshrl.u32 %v2714, 7
      %v2716 = vsub.s32 %v2713, %v2715
      %v2717 = vrot.slane %v2646, %v2716
      %v2719 = vunpack.c.l.s4 1966171168
      %v2720 = vunpack.c.0.s8 %v2719
      %v2721 = vlaneseq
      %v2722 = vshrl.u32 %v2721, 7
      %v2723 = vsub.s32 %v2720, %v2722
      %v2724 = vrot.slane %v2710, %v2723
      %v2725 = vcombine.high %v2717, %v2717
      %v2726 = vcombine.high %v2724, %v2724
      %v2728 = vunpack.c.l.s4 1966171168
      %v2729 = vunpack.c.0.s8 %v2728
      %v2730 = vlaneseq
      %v2731 = vshrl.u32 %v2730, 7
      %v2732 = vsub.s32 %v2729, %v2731
      %v2733 = vrot.slane %v2717, %v2732
      %v2735 = vunpack.c.l.s4 1966171168
      %v2736 = vunpack.c.0.s8 %v2735
      %v2737 = vlaneseq
      %v2738 = vshrl.u32 %v2737, 7
      %v2739 = vsub.s32 %v2736, %v2738
      %v2740 = vrot.slane %v2724, %v2739
      %v2742 = vunpack.c.l.s4 1966171168
      %v2743 = vunpack.c.0.s8 %v2742
      %v2744 = vlaneseq
      %v2745 = vshrl.u32 %v2744, 7
      %v2746 = vsub.s32 %v2743, %v2745
      %v2747 = vrot.slane %v2725, %v2746
      %v2749 = vunpack.c.l.s4 1966171168
      %v2750 = vunpack.c.0.s8 %v2749
      %v2751 = vlaneseq
      %v2752 = vshrl.u32 %v2751, 7
      %v2753 = vsub.s32 %v2750, %v2752
      %v2754 = vrot.slane %v2726, %v2753
      %v2755 = vcombine.high %v2733, %v2733
      %v2756 = vcombine.high %v2740, %v2740
      %v2757 = vcombine.high %v2747, %v2747
      %v2758 = vcombine.high %v2754, %v2754
      %v2759 = vcombine.high %v2647, %v2647
      %v2761 = vunpack.c.l.s4 1966171168
      %v2762 = vunpack.c.0.s8 %v2761
      %v2763 = vlaneseq
      %v2764 = vshrl.u32 %v2763, 7
      %v2765 = vsub.s32 %v2762, %v2764
      %v2766 = vrot.slane %v2647, %v2765
      %v2768 = vunpack.c.l.s4 1966171168
      %v2769 = vunpack.c.0.s8 %v2768
      %v2770 = vlaneseq
      %v2771 = vshrl.u32 %v2770, 7
      %v2772 = vsub.s32 %v2769, %v2771
      %v2773 = vrot.slane %v2759, %v2772
      %v2774 = vcombine.high %v2766, %v2766
      %v2775 = vcombine.high %v2773, %v2773
      %v2777 = vunpack.c.l.s4 1966171168
      %v2778 = vunpack.c.0.s8 %v2777
      %v2779 = vlaneseq
      %v2780 = vshrl.u32 %v2779, 7
      %v2781 = vsub.s32 %v2778, %v2780
      %v2782 = vrot.slane %v2766, %v2781
      %v2784 = vunpack.c.l.s4 1966171168
      %v2785 = vunpack.c.0.s8 %v2784
      %v2786 = vlaneseq
      %v2787 = vshrl.u32 %v2786, 7
      %v2788 = vsub.s32 %v2785, %v2787
      %v2789 = vrot.slane %v2773, %v2788
      %v2791 = vunpack.c.l.s4 1966171168
      %v2792 = vunpack.c.0.s8 %v2791
      %v2793 = vlaneseq
      %v2794 = vshrl.u32 %v2793, 7
      %v2795 = vsub.s32 %v2792, %v2794
      %v2796 = vrot.slane %v2774, %v2795
      %v2798 = vunpack.c.l.s4 1966171168
      %v2799 = vunpack.c.0.s8 %v2798
      %v2800 = vlaneseq
      %v2801 = vshrl.u32 %v2800, 7
      %v2802 = vsub.s32 %v2799, %v2801
      %v2803 = vrot.slane %v2775, %v2802
      %v2804 = vcombine.high %v2782, %v2782
      %v2805 = vcombine.high %v2789, %v2789
      %v2806 = vcombine.high %v2796, %v2796
      %v2807 = vcombine.high %v2803, %v2803
      %v2808 = vcombine.high %v2648, %v2648
      %v2810 = vunpack.c.l.s4 1966171168
      %v2811 = vunpack.c.0.s8 %v2810
      %v2812 = vlaneseq
      %v2813 = vshrl.u32 %v2812, 7
      %v2814 = vsub.s32 %v2811, %v2813
      %v2815 = vrot.slane %v2648, %v2814
      %v2817 = vunpack.c.l.s4 1966171168
      %v2818 = vunpack.c.0.s8 %v2817
      %v2819 = vlaneseq
      %v2820 = vshrl.u32 %v2819, 7
      %v2821 = vsub.s32 %v2818, %v2820
      %v2822 = vrot.slane %v2808, %v2821
      %v2823 = vcombine.high %v2815, %v2815
      %v2824 = vcombine.high %v2822, %v2822
      %v2826 = vunpack.c.l.s4 1966171168
      %v2827 = vunpack.c.0.s8 %v2826
      %v2828 = vlaneseq
      %v2829 = vshrl.u32 %v2828, 7
      %v2830 = vsub.s32 %v2827, %v2829
      %v2831 = vrot.slane %v2815, %v2830
      %v2833 = vunpack.c.l.s4 1966171168
      %v2834 = vunpack.c.0.s8 %v2833
      %v2835 = vlaneseq
      %v2836 = vshrl.u32 %v2835, 7
      %v2837 = vsub.s32 %v2834, %v2836
      %v2838 = vrot.slane %v2822, %v2837
      %v2840 = vunpack.c.l.s4 1966171168
      %v2841 = vunpack.c.0.s8 %v2840
      %v2842 = vlaneseq
      %v2843 = vshrl.u32 %v2842, 7
      %v2844 = vsub.s32 %v2841, %v2843
      %v2845 = vrot.slane %v2823, %v2844
      %v2847 = vunpack.c.l.s4 1966171168
      %v2848 = vunpack.c.0.s8 %v2847
      %v2849 = vlaneseq
      %v2850 = vshrl.u32 %v2849, 7
      %v2851 = vsub.s32 %v2848, %v2850
      %v2852 = vrot.slane %v2824, %v2851
      %v2853 = vcombine.high %v2831, %v2831
      %v2854 = vcombine.high %v2838, %v2838
      %v2855 = vcombine.high %v2845, %v2845
      %v2856 = vcombine.high %v2852, %v2852
      %v2857 = vcombine.high %v2649, %v2649
      %v2859 = vunpack.c.l.s4 1966171168
      %v2860 = vunpack.c.0.s8 %v2859
      %v2861 = vlaneseq
      %v2862 = vshrl.u32 %v2861, 7
      %v2863 = vsub.s32 %v2860, %v2862
      %v2864 = vrot.slane %v2649, %v2863
      %v2866 = vunpack.c.l.s4 1966171168
      %v2867 = vunpack.c.0.s8 %v2866
      %v2868 = vlaneseq
      %v2869 = vshrl.u32 %v2868, 7
      %v2870 = vsub.s32 %v2867, %v2869
      %v2871 = vrot.slane %v2857, %v2870
      %v2872 = vcombine.high %v2864, %v2864
      %v2873 = vcombine.high %v2871, %v2871
      %v2875 = vunpack.c.l.s4 1966171168
      %v2876 = vunpack.c.0.s8 %v2875
      %v2877 = vlaneseq
      %v2878 = vshrl.u32 %v2877, 7
      %v2879 = vsub.s32 %v2876, %v2878
      %v2880 = vrot.slane %v2864, %v2879
      %v2882 = vunpack.c.l.s4 1966171168
      %v2883 = vunpack.c.0.s8 %v2882
      %v2884 = vlaneseq
      %v2885 = vshrl.u32 %v2884, 7
      %v2886 = vsub.s32 %v2883, %v2885
      %v2887 = vrot.slane %v2871, %v2886
      %v2889 = vunpack.c.l.s4 1966171168
      %v2890 = vunpack.c.0.s8 %v2889
      %v2891 = vlaneseq
      %v2892 = vshrl.u32 %v2891, 7
      %v2893 = vsub.s32 %v2890, %v2892
      %v2894 = vrot.slane %v2872, %v2893
      %v2896 = vunpack.c.l.s4 1966171168
      %v2897 = vunpack.c.0.s8 %v2896
      %v2898 = vlaneseq
      %v2899 = vshrl.u32 %v2898, 7
      %v2900 = vsub.s32 %v2897, %v2899
      %v2901 = vrot.slane %v2873, %v2900
      %v2902 = vcombine.high %v2880, %v2880
      %v2903 = vcombine.high %v2887, %v2887
      %v2904 = vcombine.high %v2894, %v2894
      %v2905 = vcombine.high %v2901, %v2901
      %v2906 = vcombine.high %v2650, %v2650
      %v2908 = vunpack.c.l.s4 1966171168
      %v2909 = vunpack.c.0.s8 %v2908
      %v2910 = vlaneseq
      %v2911 = vshrl.u32 %v2910, 7
      %v2912 = vsub.s32 %v2909, %v2911
      %v2913 = vrot.slane %v2650, %v2912
      %v2915 = vunpack.c.l.s4 1966171168
      %v2916 = vunpack.c.0.s8 %v2915
      %v2917 = vlaneseq
      %v2918 = vshrl.u32 %v2917, 7
      %v2919 = vsub.s32 %v2916, %v2918
      %v2920 = vrot.slane %v2906, %v2919
      %v2921 = vcombine.high %v2913, %v2913
      %v2922 = vcombine.high %v2920, %v2920
      %v2924 = vunpack.c.l.s4 1966171168
      %v2925 = vunpack.c.0.s8 %v2924
      %v2926 = vlaneseq
      %v2927 = vshrl.u32 %v2926, 7
      %v2928 = vsub.s32 %v2925, %v2927
      %v2929 = vrot.slane %v2913, %v2928
      %v2931 = vunpack.c.l.s4 1966171168
      %v2932 = vunpack.c.0.s8 %v2931
      %v2933 = vlaneseq
      %v2934 = vshrl.u32 %v2933, 7
      %v2935 = vsub.s32 %v2932, %v2934
      %v2936 = vrot.slane %v2920, %v2935
      %v2938 = vunpack.c.l.s4 1966171168
      %v2939 = vunpack.c.0.s8 %v2938
      %v2940 = vlaneseq
      %v2941 = vshrl.u32 %v2940, 7
      %v2942 = vsub.s32 %v2939, %v2941
      %v2943 = vrot.slane %v2921, %v2942
      %v2945 = vunpack.c.l.s4 1966171168
      %v2946 = vunpack.c.0.s8 %v2945
      %v2947 = vlaneseq
      %v2948 = vshrl.u32 %v2947, 7
      %v2949 = vsub.s32 %v2946, %v2948
      %v2950 = vrot.slane %v2922, %v2949
      %v2951 = vcombine.high %v2929, %v2929
      %v2952 = vcombine.high %v2936, %v2936
      %v2953 = vcombine.high %v2943, %v2943
      %v2954 = vcombine.high %v2950, %v2950
      %v2955 = vcombine.high %v2651, %v2651
      %v2957 = vunpack.c.l.s4 1966171168
      %v2958 = vunpack.c.0.s8 %v2957
      %v2959 = vlaneseq
      %v2960 = vshrl.u32 %v2959, 7
      %v2961 = vsub.s32 %v2958, %v2960
      %v2962 = vrot.slane %v2651, %v2961
      %v2964 = vunpack.c.l.s4 1966171168
      %v2965 = vunpack.c.0.s8 %v2964
      %v2966 = vlaneseq
      %v2967 = vshrl.u32 %v2966, 7
      %v2968 = vsub.s32 %v2965, %v2967
      %v2969 = vrot.slane %v2955, %v2968
      %v2970 = vcombine.high %v2962, %v2962
      %v2971 = vcombine.high %v2969, %v2969
      %v2973 = vunpack.c.l.s4 1966171168
      %v2974 = vunpack.c.0.s8 %v2973
      %v2975 = vlaneseq
      %v2976 = vshrl.u32 %v2975, 7
      %v2977 = vsub.s32 %v2974, %v2976
      %v2978 = vrot.slane %v2962, %v2977
      %v2980 = vunpack.c.l.s4 1966171168
      %v2981 = vunpack.c.0.s8 %v2980
      %v2982 = vlaneseq
      %v2983 = vshrl.u32 %v2982, 7
      %v2984 = vsub.s32 %v2981, %v2983
      %v2985 = vrot.slane %v2969, %v2984
      %v2987 = vunpack.c.l.s4 1966171168
      %v2988 = vunpack.c.0.s8 %v2987
      %v2989 = vlaneseq
      %v2990 = vshrl.u32 %v2989, 7
      %v2991 = vsub.s32 %v2988, %v2990
      %v2992 = vrot.slane %v2970, %v2991
      %v2994 = vunpack.c.l.s4 1966171168
      %v2995 = vunpack.c.0.s8 %v2994
      %v2996 = vlaneseq
      %v2997 = vshrl.u32 %v2996, 7
      %v2998 = vsub.s32 %v2995, %v2997
      %v2999 = vrot.slane %v2971, %v2998
      %v3000 = vcombine.high %v2978, %v2978
      %v3001 = vcombine.high %v2985, %v2985
      %v3002 = vcombine.high %v2992, %v2992
      %v3003 = vcombine.high %v2999, %v2999
      %v3004 = vcombine.high %v2652, %v2652
      %v3006 = vunpack.c.l.s4 1966171168
      %v3007 = vunpack.c.0.s8 %v3006
      %v3008 = vlaneseq
      %v3009 = vshrl.u32 %v3008, 7
      %v3010 = vsub.s32 %v3007, %v3009
      %v3011 = vrot.slane %v2652, %v3010
      %v3013 = vunpack.c.l.s4 1966171168
      %v3014 = vunpack.c.0.s8 %v3013
      %v3015 = vlaneseq
      %v3016 = vshrl.u32 %v3015, 7
      %v3017 = vsub.s32 %v3014, %v3016
      %v3018 = vrot.slane %v3004, %v3017
      %v3019 = vcombine.high %v3011, %v3011
      %v3020 = vcombine.high %v3018, %v3018
      %v3022 = vunpack.c.l.s4 1966171168
      %v3023 = vunpack.c.0.s8 %v3022
      %v3024 = vlaneseq
      %v3025 = vshrl.u32 %v3024, 7
      %v3026 = vsub.s32 %v3023, %v3025
      %v3027 = vrot.slane %v3011, %v3026
      %v3029 = vunpack.c.l.s4 1966171168
      %v3030 = vunpack.c.0.s8 %v3029
      %v3031 = vlaneseq
      %v3032 = vshrl.u32 %v3031, 7
      %v3033 = vsub.s32 %v3030, %v3032
      %v3034 = vrot.slane %v3018, %v3033
      %v3036 = vunpack.c.l.s4 1966171168
      %v3037 = vunpack.c.0.s8 %v3036
      %v3038 = vlaneseq
      %v3039 = vshrl.u32 %v3038, 7
      %v3040 = vsub.s32 %v3037, %v3039
      %v3041 = vrot.slane %v3019, %v3040
      %v3043 = vunpack.c.l.s4 1966171168
      %v3044 = vunpack.c.0.s8 %v3043
      %v3045 = vlaneseq
      %v3046 = vshrl.u32 %v3045, 7
      %v3047 = vsub.s32 %v3044, %v3046
      %v3048 = vrot.slane %v3020, %v3047
      %v3049 = vcombine.high %v3027, %v3027
      %v3050 = vcombine.high %v3034, %v3034
      %v3051 = vcombine.high %v3041, %v3041
      %v3052 = vcombine.high %v3048, %v3048
      %v3053 = vlaneseq
      %v3054 = vshrl.u32 %v3053, 7
      %v3055 = vsub.s32 0, %v3054
      %v3056 = vrot.slane %v1024, %v3055
      %3058 = vbcast.lane.b32.xlu0 %v3056, 256
      %v3059 = vpop.permute.xlu0 %3058
      %s3061 = sor.u32 256, 8
      %3062 = vbcast.lane.b32.xlu0 %v3056, %s3061
      %v3063 = vpop.permute.xlu0 %3062
      %v3064 = vlaneseq
      %v3065 = vshrl.u32 %v3064, 7
      %v3066 = vsub.s32 1, %v3065
      %v3067 = vrot.slane %v1024, %v3066
      %3069 = vbcast.lane.b32.xlu0 %v3067, 256
      %v3070 = vpop.permute.xlu0 %3069
      %s3072 = sor.u32 256, 8
      %3073 = vbcast.lane.b32.xlu0 %v3067, %s3072
      %v3074 = vpop.permute.xlu0 %3073
      %v3075 = vlaneseq
      %v3076 = vshrl.u32 %v3075, 7
      %v3077 = vsub.s32 2, %v3076
      %v3078 = vrot.slane %v1024, %v3077
      %3080 = vbcast.lane.b32.xlu0 %v3078, 256
      %v3081 = vpop.permute.xlu0 %3080
      %s3083 = sor.u32 256, 8
      %3084 = vbcast.lane.b32.xlu0 %v3078, %s3083
      %v3085 = vpop.permute.xlu0 %3084
      %v3086 = vlaneseq
      %v3087 = vshrl.u32 %v3086, 7
      %v3088 = vsub.s32 3, %v3087
      %v3089 = vrot.slane %v1024, %v3088
      %3091 = vbcast.lane.b32.xlu0 %v3089, 256
      %v3092 = vpop.permute.xlu0 %3091
      %s3094 = sor.u32 256, 8
      %3095 = vbcast.lane.b32.xlu0 %v3089, %s3094
      %v3096 = vpop.permute.xlu0 %3095
      %v3097 = vlaneseq
      %v3098 = vshrl.u32 %v3097, 7
      %v3099 = vsub.s32 4, %v3098
      %v3100 = vrot.slane %v1024, %v3099
      %3102 = vbcast.lane.b32.xlu0 %v3100, 256
      %v3103 = vpop.permute.xlu0 %3102
      %s3105 = sor.u32 256, 8
      %3106 = vbcast.lane.b32.xlu0 %v3100, %s3105
      %v3107 = vpop.permute.xlu0 %3106
      %v3108 = vlaneseq
      %v3109 = vshrl.u32 %v3108, 7
      %v3110 = vsub.s32 5, %v3109
      %v3111 = vrot.slane %v1024, %v3110
      %3113 = vbcast.lane.b32.xlu0 %v3111, 256
      %v3114 = vpop.permute.xlu0 %3113
      %s3116 = sor.u32 256, 8
      %3117 = vbcast.lane.b32.xlu0 %v3111, %s3116
      %v3118 = vpop.permute.xlu0 %3117
      %v3119 = vlaneseq
      %v3120 = vshrl.u32 %v3119, 7
      %v3121 = vsub.s32 6, %v3120
      %v3122 = vrot.slane %v1024, %v3121
      %3124 = vbcast.lane.b32.xlu0 %v3122, 256
      %v3125 = vpop.permute.xlu0 %3124
      %s3127 = sor.u32 256, 8
      %3128 = vbcast.lane.b32.xlu0 %v3122, %s3127
      %v3129 = vpop.permute.xlu0 %3128
      %v3130 = vlaneseq
      %v3131 = vshrl.u32 %v3130, 7
      %v3132 = vsub.s32 7, %v3131
      %v3133 = vrot.slane %v1024, %v3132
      %3135 = vbcast.lane.b32.xlu0 %v3133, 256
      %v3136 = vpop.permute.xlu0 %3135
      %s3138 = sor.u32 256, 8
      %3139 = vbcast.lane.b32.xlu0 %v3133, %s3138
      %v3140 = vpop.permute.xlu0 %3139
      %v3141 = vlaneseq
      %v3142 = vshrl.u32 %v3141, 7
      %v3143 = vsub.s32 0, %v3142
      %v3144 = vrot.slane %v1028, %v3143
      %3146 = vbcast.lane.b32.xlu0 %v3144, 256
      %v3147 = vpop.permute.xlu0 %3146
      %s3149 = sor.u32 256, 8
      %3150 = vbcast.lane.b32.xlu0 %v3144, %s3149
      %v3151 = vpop.permute.xlu0 %3150
      %v3152 = vlaneseq
      %v3153 = vshrl.u32 %v3152, 7
      %v3154 = vsub.s32 1, %v3153
      %v3155 = vrot.slane %v1028, %v3154
      %3157 = vbcast.lane.b32.xlu0 %v3155, 256
      %v3158 = vpop.permute.xlu0 %3157
      %s3160 = sor.u32 256, 8
      %3161 = vbcast.lane.b32.xlu0 %v3155, %s3160
      %v3162 = vpop.permute.xlu0 %3161
      %v3163 = vlaneseq
      %v3164 = vshrl.u32 %v3163, 7
      %v3165 = vsub.s32 2, %v3164
      %v3166 = vrot.slane %v1028, %v3165
      %3168 = vbcast.lane.b32.xlu0 %v3166, 256
      %v3169 = vpop.permute.xlu0 %3168
      %s3171 = sor.u32 256, 8
      %3172 = vbcast.lane.b32.xlu0 %v3166, %s3171
      %v3173 = vpop.permute.xlu0 %3172
      %v3174 = vlaneseq
      %v3175 = vshrl.u32 %v3174, 7
      %v3176 = vsub.s32 3, %v3175
      %v3177 = vrot.slane %v1028, %v3176
      %3179 = vbcast.lane.b32.xlu0 %v3177, 256
      %v3180 = vpop.permute.xlu0 %3179
      %s3182 = sor.u32 256, 8
      %3183 = vbcast.lane.b32.xlu0 %v3177, %s3182
      %v3184 = vpop.permute.xlu0 %3183
      %v3185 = vlaneseq
      %v3186 = vshrl.u32 %v3185, 7
      %v3187 = vsub.s32 4, %v3186
      %v3188 = vrot.slane %v1028, %v3187
      %3190 = vbcast.lane.b32.xlu0 %v3188, 256
      %v3191 = vpop.permute.xlu0 %3190
      %s3193 = sor.u32 256, 8
      %3194 = vbcast.lane.b32.xlu0 %v3188, %s3193
      %v3195 = vpop.permute.xlu0 %3194
      %v3196 = vlaneseq
      %v3197 = vshrl.u32 %v3196, 7
      %v3198 = vsub.s32 5, %v3197
      %v3199 = vrot.slane %v1028, %v3198
      %3201 = vbcast.lane.b32.xlu0 %v3199, 256
      %v3202 = vpop.permute.xlu0 %3201
      %s3204 = sor.u32 256, 8
      %3205 = vbcast.lane.b32.xlu0 %v3199, %s3204
      %v3206 = vpop.permute.xlu0 %3205
      %v3207 = vlaneseq
      %v3208 = vshrl.u32 %v3207, 7
      %v3209 = vsub.s32 6, %v3208
      %v3210 = vrot.slane %v1028, %v3209
      %3212 = vbcast.lane.b32.xlu0 %v3210, 256
      %v3213 = vpop.permute.xlu0 %3212
      %s3215 = sor.u32 256, 8
      %3216 = vbcast.lane.b32.xlu0 %v3210, %s3215
      %v3217 = vpop.permute.xlu0 %3216
      %v3218 = vlaneseq
      %v3219 = vshrl.u32 %v3218, 7
      %v3220 = vsub.s32 7, %v3219
      %v3221 = vrot.slane %v1028, %v3220
      %3223 = vbcast.lane.b32.xlu0 %v3221, 256
      %v3224 = vpop.permute.xlu0 %3223
      %s3226 = sor.u32 256, 8
      %3227 = vbcast.lane.b32.xlu0 %v3221, %s3226
      %v3228 = vpop.permute.xlu0 %3227
      %v3229 = vlaneseq
      %v3230 = vshrl.u32 %v3229, 7
      %v3231 = vsub.s32 0, %v3230
      %v3232 = vrot.slane %v1034, %v3231
      %3234 = vbcast.lane.b32.xlu0 %v3232, 256
      %v3235 = vpop.permute.xlu0 %3234
      %s3237 = sor.u32 256, 8
      %3238 = vbcast.lane.b32.xlu0 %v3232, %s3237
      %v3239 = vpop.permute.xlu0 %3238
      %v3240 = vlaneseq
      %v3241 = vshrl.u32 %v3240, 7
      %v3242 = vsub.s32 1, %v3241
      %v3243 = vrot.slane %v1034, %v3242
      %3245 = vbcast.lane.b32.xlu0 %v3243, 256
      %v3246 = vpop.permute.xlu0 %3245
      %s3248 = sor.u32 256, 8
      %3249 = vbcast.lane.b32.xlu0 %v3243, %s3248
      %v3250 = vpop.permute.xlu0 %3249
      %v3251 = vlaneseq
      %v3252 = vshrl.u32 %v3251, 7
      %v3253 = vsub.s32 2, %v3252
      %v3254 = vrot.slane %v1034, %v3253
      %3256 = vbcast.lane.b32.xlu0 %v3254, 256
      %v3257 = vpop.permute.xlu0 %3256
      %s3259 = sor.u32 256, 8
      %3260 = vbcast.lane.b32.xlu0 %v3254, %s3259
      %v3261 = vpop.permute.xlu0 %3260
      %v3262 = vlaneseq
      %v3263 = vshrl.u32 %v3262, 7
      %v3264 = vsub.s32 3, %v3263
      %v3265 = vrot.slane %v1034, %v3264
      %3267 = vbcast.lane.b32.xlu0 %v3265, 256
      %v3268 = vpop.permute.xlu0 %3267
      %s3270 = sor.u32 256, 8
      %3271 = vbcast.lane.b32.xlu0 %v3265, %s3270
      %v3272 = vpop.permute.xlu0 %3271
      %v3273 = vlaneseq
      %v3274 = vshrl.u32 %v3273, 7
      %v3275 = vsub.s32 4, %v3274
      %v3276 = vrot.slane %v1034, %v3275
      %3278 = vbcast.lane.b32.xlu0 %v3276, 256
      %v3279 = vpop.permute.xlu0 %3278
      %s3281 = sor.u32 256, 8
      %3282 = vbcast.lane.b32.xlu0 %v3276, %s3281
      %v3283 = vpop.permute.xlu0 %3282
      %v3284 = vlaneseq
      %v3285 = vshrl.u32 %v3284, 7
      %v3286 = vsub.s32 5, %v3285
      %v3287 = vrot.slane %v1034, %v3286
      %3289 = vbcast.lane.b32.xlu0 %v3287, 256
      %v3290 = vpop.permute.xlu0 %3289
      %s3292 = sor.u32 256, 8
      %3293 = vbcast.lane.b32.xlu0 %v3287, %s3292
      %v3294 = vpop.permute.xlu0 %3293
      %v3295 = vlaneseq
      %v3296 = vshrl.u32 %v3295, 7
      %v3297 = vsub.s32 6, %v3296
      %v3298 = vrot.slane %v1034, %v3297
      %3300 = vbcast.lane.b32.xlu0 %v3298, 256
      %v3301 = vpop.permute.xlu0 %3300
      %s3303 = sor.u32 256, 8
      %3304 = vbcast.lane.b32.xlu0 %v3298, %s3303
      %v3305 = vpop.permute.xlu0 %3304
      %v3306 = vlaneseq
      %v3307 = vshrl.u32 %v3306, 7
      %v3308 = vsub.s32 7, %v3307
      %v3309 = vrot.slane %v1034, %v3308
      %3311 = vbcast.lane.b32.xlu0 %v3309, 256
      %v3312 = vpop.permute.xlu0 %3311
      %s3314 = sor.u32 256, 8
      %3315 = vbcast.lane.b32.xlu0 %v3309, %s3314
      %v3316 = vpop.permute.xlu0 %3315
      %v3317 = vlaneseq
      %v3318 = vshrl.u32 %v3317, 7
      %v3319 = vsub.s32 0, %v3318
      %v3320 = vrot.slane %v1038, %v3319
      %3322 = vbcast.lane.b32.xlu0 %v3320, 256
      %v3323 = vpop.permute.xlu0 %3322
      %s3325 = sor.u32 256, 8
      %3326 = vbcast.lane.b32.xlu0 %v3320, %s3325
      %v3327 = vpop.permute.xlu0 %3326
      %v3328 = vlaneseq
      %v3329 = vshrl.u32 %v3328, 7
      %v3330 = vsub.s32 1, %v3329
      %v3331 = vrot.slane %v1038, %v3330
      %3333 = vbcast.lane.b32.xlu0 %v3331, 256
      %v3334 = vpop.permute.xlu0 %3333
      %s3336 = sor.u32 256, 8
      %3337 = vbcast.lane.b32.xlu0 %v3331, %s3336
      %v3338 = vpop.permute.xlu0 %3337
      %v3339 = vlaneseq
      %v3340 = vshrl.u32 %v3339, 7
      %v3341 = vsub.s32 2, %v3340
      %v3342 = vrot.slane %v1038, %v3341
      %3344 = vbcast.lane.b32.xlu0 %v3342, 256
      %v3345 = vpop.permute.xlu0 %3344
      %s3347 = sor.u32 256, 8
      %3348 = vbcast.lane.b32.xlu0 %v3342, %s3347
      %v3349 = vpop.permute.xlu0 %3348
      %v3350 = vlaneseq
      %v3351 = vshrl.u32 %v3350, 7
      %v3352 = vsub.s32 3, %v3351
      %v3353 = vrot.slane %v1038, %v3352
      %3355 = vbcast.lane.b32.xlu0 %v3353, 256
      %v3356 = vpop.permute.xlu0 %3355
      %s3358 = sor.u32 256, 8
      %3359 = vbcast.lane.b32.xlu0 %v3353, %s3358
      %v3360 = vpop.permute.xlu0 %3359
      %v3361 = vlaneseq
      %v3362 = vshrl.u32 %v3361, 7
      %v3363 = vsub.s32 4, %v3362
      %v3364 = vrot.slane %v1038, %v3363
      %3366 = vbcast.lane.b32.xlu0 %v3364, 256
      %v3367 = vpop.permute.xlu0 %3366
      %s3369 = sor.u32 256, 8
      %3370 = vbcast.lane.b32.xlu0 %v3364, %s3369
      %v3371 = vpop.permute.xlu0 %3370
      %v3372 = vlaneseq
      %v3373 = vshrl.u32 %v3372, 7
      %v3374 = vsub.s32 5, %v3373
      %v3375 = vrot.slane %v1038, %v3374
      %3377 = vbcast.lane.b32.xlu0 %v3375, 256
      %v3378 = vpop.permute.xlu0 %3377
      %s3380 = sor.u32 256, 8
      %3381 = vbcast.lane.b32.xlu0 %v3375, %s3380
      %v3382 = vpop.permute.xlu0 %3381
      %v3383 = vlaneseq
      %v3384 = vshrl.u32 %v3383, 7
      %v3385 = vsub.s32 6, %v3384
      %v3386 = vrot.slane %v1038, %v3385
      %3388 = vbcast.lane.b32.xlu0 %v3386, 256
      %v3389 = vpop.permute.xlu0 %3388
      %s3391 = sor.u32 256, 8
      %3392 = vbcast.lane.b32.xlu0 %v3386, %s3391
      %v3393 = vpop.permute.xlu0 %3392
      %v3394 = vlaneseq
      %v3395 = vshrl.u32 %v3394, 7
      %v3396 = vsub.s32 7, %v3395
      %v3397 = vrot.slane %v1038, %v3396
      %3399 = vbcast.lane.b32.xlu0 %v3397, 256
      %v3400 = vpop.permute.xlu0 %3399
      %s3402 = sor.u32 256, 8
      %3403 = vbcast.lane.b32.xlu0 %v3397, %s3402
      %v3404 = vpop.permute.xlu0 %3403
      %v3405 = vlaneseq
      %v3406 = vshrl.u32 %v3405, 7
      %v3407 = vsub.s32 0, %v3406
      %v3408 = vrot.slane %v1044, %v3407
      %3410 = vbcast.lane.b32.xlu0 %v3408, 256
      %v3411 = vpop.permute.xlu0 %3410
      %s3413 = sor.u32 256, 8
      %3414 = vbcast.lane.b32.xlu0 %v3408, %s3413
      %v3415 = vpop.permute.xlu0 %3414
      %v3416 = vlaneseq
      %v3417 = vshrl.u32 %v3416, 7
      %v3418 = vsub.s32 1, %v3417
      %v3419 = vrot.slane %v1044, %v3418
      %3421 = vbcast.lane.b32.xlu0 %v3419, 256
      %v3422 = vpop.permute.xlu0 %3421
      %s3424 = sor.u32 256, 8
      %3425 = vbcast.lane.b32.xlu0 %v3419, %s3424
      %v3426 = vpop.permute.xlu0 %3425
      %v3427 = vlaneseq
      %v3428 = vshrl.u32 %v3427, 7
      %v3429 = vsub.s32 2, %v3428
      %v3430 = vrot.slane %v1044, %v3429
      %3432 = vbcast.lane.b32.xlu0 %v3430, 256
      %v3433 = vpop.permute.xlu0 %3432
      %s3435 = sor.u32 256, 8
      %3436 = vbcast.lane.b32.xlu0 %v3430, %s3435
      %v3437 = vpop.permute.xlu0 %3436
      %v3438 = vlaneseq
      %v3439 = vshrl.u32 %v3438, 7
      %v3440 = vsub.s32 3, %v3439
      %v3441 = vrot.slane %v1044, %v3440
      %3443 = vbcast.lane.b32.xlu0 %v3441, 256
      %v3444 = vpop.permute.xlu0 %3443
      %s3446 = sor.u32 256, 8
      %3447 = vbcast.lane.b32.xlu0 %v3441, %s3446
      %v3448 = vpop.permute.xlu0 %3447
      %v3449 = vlaneseq
      %v3450 = vshrl.u32 %v3449, 7
      %v3451 = vsub.s32 4, %v3450
      %v3452 = vrot.slane %v1044, %v3451
      %3454 = vbcast.lane.b32.xlu0 %v3452, 256
      %v3455 = vpop.permute.xlu0 %3454
      %s3457 = sor.u32 256, 8
      %3458 = vbcast.lane.b32.xlu0 %v3452, %s3457
      %v3459 = vpop.permute.xlu0 %3458
      %v3460 = vlaneseq
      %v3461 = vshrl.u32 %v3460, 7
      %v3462 = vsub.s32 5, %v3461
      %v3463 = vrot.slane %v1044, %v3462
      %3465 = vbcast.lane.b32.xlu0 %v3463, 256
      %v3466 = vpop.permute.xlu0 %3465
      %s3468 = sor.u32 256, 8
      %3469 = vbcast.lane.b32.xlu0 %v3463, %s3468
      %v3470 = vpop.permute.xlu0 %3469
      %v3471 = vlaneseq
      %v3472 = vshrl.u32 %v3471, 7
      %v3473 = vsub.s32 6, %v3472
      %v3474 = vrot.slane %v1044, %v3473
      %3476 = vbcast.lane.b32.xlu0 %v3474, 256
      %v3477 = vpop.permute.xlu0 %3476
      %s3479 = sor.u32 256, 8
      %3480 = vbcast.lane.b32.xlu0 %v3474, %s3479
      %v3481 = vpop.permute.xlu0 %3480
      %v3482 = vlaneseq
      %v3483 = vshrl.u32 %v3482, 7
      %v3484 = vsub.s32 7, %v3483
      %v3485 = vrot.slane %v1044, %v3484
      %3487 = vbcast.lane.b32.xlu0 %v3485, 256
      %v3488 = vpop.permute.xlu0 %3487
      %s3490 = sor.u32 256, 8
      %3491 = vbcast.lane.b32.xlu0 %v3485, %s3490
      %v3492 = vpop.permute.xlu0 %3491
      %v3493 = vlaneseq
      %v3494 = vshrl.u32 %v3493, 7
      %v3495 = vsub.s32 0, %v3494
      %v3496 = vrot.slane %v1048, %v3495
      %3498 = vbcast.lane.b32.xlu0 %v3496, 256
      %v3499 = vpop.permute.xlu0 %3498
      %s3501 = sor.u32 256, 8
      %3502 = vbcast.lane.b32.xlu0 %v3496, %s3501
      %v3503 = vpop.permute.xlu0 %3502
      %v3504 = vlaneseq
      %v3505 = vshrl.u32 %v3504, 7
      %v3506 = vsub.s32 1, %v3505
      %v3507 = vrot.slane %v1048, %v3506
      %3509 = vbcast.lane.b32.xlu0 %v3507, 256
      %v3510 = vpop.permute.xlu0 %3509
      %s3512 = sor.u32 256, 8
      %3513 = vbcast.lane.b32.xlu0 %v3507, %s3512
      %v3514 = vpop.permute.xlu0 %3513
      %v3515 = vlaneseq
      %v3516 = vshrl.u32 %v3515, 7
      %v3517 = vsub.s32 2, %v3516
      %v3518 = vrot.slane %v1048, %v3517
      %3520 = vbcast.lane.b32.xlu0 %v3518, 256
      %v3521 = vpop.permute.xlu0 %3520
      %s3523 = sor.u32 256, 8
      %3524 = vbcast.lane.b32.xlu0 %v3518, %s3523
      %v3525 = vpop.permute.xlu0 %3524
      %v3526 = vlaneseq
      %v3527 = vshrl.u32 %v3526, 7
      %v3528 = vsub.s32 3, %v3527
      %v3529 = vrot.slane %v1048, %v3528
      %3531 = vbcast.lane.b32.xlu0 %v3529, 256
      %v3532 = vpop.permute.xlu0 %3531
      %s3534 = sor.u32 256, 8
      %3535 = vbcast.lane.b32.xlu0 %v3529, %s3534
      %v3536 = vpop.permute.xlu0 %3535
      %v3537 = vlaneseq
      %v3538 = vshrl.u32 %v3537, 7
      %v3539 = vsub.s32 4, %v3538
      %v3540 = vrot.slane %v1048, %v3539
      %3542 = vbcast.lane.b32.xlu0 %v3540, 256
      %v3543 = vpop.permute.xlu0 %3542
      %s3545 = sor.u32 256, 8
      %3546 = vbcast.lane.b32.xlu0 %v3540, %s3545
      %v3547 = vpop.permute.xlu0 %3546
      %v3548 = vlaneseq
      %v3549 = vshrl.u32 %v3548, 7
      %v3550 = vsub.s32 5, %v3549
      %v3551 = vrot.slane %v1048, %v3550
      %3553 = vbcast.lane.b32.xlu0 %v3551, 256
      %v3554 = vpop.permute.xlu0 %3553
      %s3556 = sor.u32 256, 8
      %3557 = vbcast.lane.b32.xlu0 %v3551, %s3556
      %v3558 = vpop.permute.xlu0 %3557
      %v3559 = vlaneseq
      %v3560 = vshrl.u32 %v3559, 7
      %v3561 = vsub.s32 6, %v3560
      %v3562 = vrot.slane %v1048, %v3561
      %3564 = vbcast.lane.b32.xlu0 %v3562, 256
      %v3565 = vpop.permute.xlu0 %3564
      %s3567 = sor.u32 256, 8
      %3568 = vbcast.lane.b32.xlu0 %v3562, %s3567
      %v3569 = vpop.permute.xlu0 %3568
      %v3570 = vlaneseq
      %v3571 = vshrl.u32 %v3570, 7
      %v3572 = vsub.s32 7, %v3571
      %v3573 = vrot.slane %v1048, %v3572
      %3575 = vbcast.lane.b32.xlu0 %v3573, 256
      %v3576 = vpop.permute.xlu0 %3575
      %s3578 = sor.u32 256, 8
      %3579 = vbcast.lane.b32.xlu0 %v3573, %s3578
      %v3580 = vpop.permute.xlu0 %3579
      %v3581 = vlaneseq
      %v3582 = vshrl.u32 %v3581, 7
      %v3583 = vsub.s32 0, %v3582
      %v3584 = vrot.slane %v1054, %v3583
      %3586 = vbcast.lane.b32.xlu0 %v3584, 256
      %v3587 = vpop.permute.xlu0 %3586
      %s3589 = sor.u32 256, 8
      %3590 = vbcast.lane.b32.xlu0 %v3584, %s3589
      %v3591 = vpop.permute.xlu0 %3590
      %v3592 = vlaneseq
      %v3593 = vshrl.u32 %v3592, 7
      %v3594 = vsub.s32 1, %v3593
      %v3595 = vrot.slane %v1054, %v3594
      %3597 = vbcast.lane.b32.xlu0 %v3595, 256
      %v3598 = vpop.permute.xlu0 %3597
      %s3600 = sor.u32 256, 8
      %3601 = vbcast.lane.b32.xlu0 %v3595, %s3600
      %v3602 = vpop.permute.xlu0 %3601
      %v3603 = vlaneseq
      %v3604 = vshrl.u32 %v3603, 7
      %v3605 = vsub.s32 2, %v3604
      %v3606 = vrot.slane %v1054, %v3605
      %3608 = vbcast.lane.b32.xlu0 %v3606, 256
      %v3609 = vpop.permute.xlu0 %3608
      %s3611 = sor.u32 256, 8
      %3612 = vbcast.lane.b32.xlu0 %v3606, %s3611
      %v3613 = vpop.permute.xlu0 %3612
      %v3614 = vlaneseq
      %v3615 = vshrl.u32 %v3614, 7
      %v3616 = vsub.s32 3, %v3615
      %v3617 = vrot.slane %v1054, %v3616
      %3619 = vbcast.lane.b32.xlu0 %v3617, 256
      %v3620 = vpop.permute.xlu0 %3619
      %s3622 = sor.u32 256, 8
      %3623 = vbcast.lane.b32.xlu0 %v3617, %s3622
      %v3624 = vpop.permute.xlu0 %3623
      %v3625 = vlaneseq
      %v3626 = vshrl.u32 %v3625, 7
      %v3627 = vsub.s32 4, %v3626
      %v3628 = vrot.slane %v1054, %v3627
      %3630 = vbcast.lane.b32.xlu0 %v3628, 256
      %v3631 = vpop.permute.xlu0 %3630
      %s3633 = sor.u32 256, 8
      %3634 = vbcast.lane.b32.xlu0 %v3628, %s3633
      %v3635 = vpop.permute.xlu0 %3634
      %v3636 = vlaneseq
      %v3637 = vshrl.u32 %v3636, 7
      %v3638 = vsub.s32 5, %v3637
      %v3639 = vrot.slane %v1054, %v3638
      %3641 = vbcast.lane.b32.xlu0 %v3639, 256
      %v3642 = vpop.permute.xlu0 %3641
      %s3644 = sor.u32 256, 8
      %3645 = vbcast.lane.b32.xlu0 %v3639, %s3644
      %v3646 = vpop.permute.xlu0 %3645
      %v3647 = vlaneseq
      %v3648 = vshrl.u32 %v3647, 7
      %v3649 = vsub.s32 6, %v3648
      %v3650 = vrot.slane %v1054, %v3649
      %3652 = vbcast.lane.b32.xlu0 %v3650, 256
      %v3653 = vpop.permute.xlu0 %3652
      %s3655 = sor.u32 256, 8
      %3656 = vbcast.lane.b32.xlu0 %v3650, %s3655
      %v3657 = vpop.permute.xlu0 %3656
      %v3658 = vlaneseq
      %v3659 = vshrl.u32 %v3658, 7
      %v3660 = vsub.s32 7, %v3659
      %v3661 = vrot.slane %v1054, %v3660
      %3663 = vbcast.lane.b32.xlu0 %v3661, 256
      %v3664 = vpop.permute.xlu0 %3663
      %s3666 = sor.u32 256, 8
      %3667 = vbcast.lane.b32.xlu0 %v3661, %s3666
      %v3668 = vpop.permute.xlu0 %3667
      %v3669 = vlaneseq
      %v3670 = vshrl.u32 %v3669, 7
      %v3671 = vsub.s32 0, %v3670
      %v3672 = vrot.slane %v1058, %v3671
      %3674 = vbcast.lane.b32.xlu0 %v3672, 256
      %v3675 = vpop.permute.xlu0 %3674
      %s3677 = sor.u32 256, 8
      %3678 = vbcast.lane.b32.xlu0 %v3672, %s3677
      %v3679 = vpop.permute.xlu0 %3678
      %v3680 = vlaneseq
      %v3681 = vshrl.u32 %v3680, 7
      %v3682 = vsub.s32 1, %v3681
      %v3683 = vrot.slane %v1058, %v3682
      %3685 = vbcast.lane.b32.xlu0 %v3683, 256
      %v3686 = vpop.permute.xlu0 %3685
      %s3688 = sor.u32 256, 8
      %3689 = vbcast.lane.b32.xlu0 %v3683, %s3688
      %v3690 = vpop.permute.xlu0 %3689
      %v3691 = vlaneseq
      %v3692 = vshrl.u32 %v3691, 7
      %v3693 = vsub.s32 2, %v3692
      %v3694 = vrot.slane %v1058, %v3693
      %3696 = vbcast.lane.b32.xlu0 %v3694, 256
      %v3697 = vpop.permute.xlu0 %3696
      %s3699 = sor.u32 256, 8
      %3700 = vbcast.lane.b32.xlu0 %v3694, %s3699
      %v3701 = vpop.permute.xlu0 %3700
      %v3702 = vlaneseq
      %v3703 = vshrl.u32 %v3702, 7
      %v3704 = vsub.s32 3, %v3703
      %v3705 = vrot.slane %v1058, %v3704
      %3707 = vbcast.lane.b32.xlu0 %v3705, 256
      %v3708 = vpop.permute.xlu0 %3707
      %s3710 = sor.u32 256, 8
      %3711 = vbcast.lane.b32.xlu0 %v3705, %s3710
      %v3712 = vpop.permute.xlu0 %3711
      %v3713 = vlaneseq
      %v3714 = vshrl.u32 %v3713, 7
      %v3715 = vsub.s32 4, %v3714
      %v3716 = vrot.slane %v1058, %v3715
      %3718 = vbcast.lane.b32.xlu0 %v3716, 256
      %v3719 = vpop.permute.xlu0 %3718
      %s3721 = sor.u32 256, 8
      %3722 = vbcast.lane.b32.xlu0 %v3716, %s3721
      %v3723 = vpop.permute.xlu0 %3722
      %v3724 = vlaneseq
      %v3725 = vshrl.u32 %v3724, 7
      %v3726 = vsub.s32 5, %v3725
      %v3727 = vrot.slane %v1058, %v3726
      %3729 = vbcast.lane.b32.xlu0 %v3727, 256
      %v3730 = vpop.permute.xlu0 %3729
      %s3732 = sor.u32 256, 8
      %3733 = vbcast.lane.b32.xlu0 %v3727, %s3732
      %v3734 = vpop.permute.xlu0 %3733
      %v3735 = vlaneseq
      %v3736 = vshrl.u32 %v3735, 7
      %v3737 = vsub.s32 6, %v3736
      %v3738 = vrot.slane %v1058, %v3737
      %3740 = vbcast.lane.b32.xlu0 %v3738, 256
      %v3741 = vpop.permute.xlu0 %3740
      %s3743 = sor.u32 256, 8
      %3744 = vbcast.lane.b32.xlu0 %v3738, %s3743
      %v3745 = vpop.permute.xlu0 %3744
      %v3746 = vlaneseq
      %v3747 = vshrl.u32 %v3746, 7
      %v3748 = vsub.s32 7, %v3747
      %v3749 = vrot.slane %v1058, %v3748
      %3751 = vbcast.lane.b32.xlu0 %v3749, 256
      %v3752 = vpop.permute.xlu0 %3751
      %s3754 = sor.u32 256, 8
      %3755 = vbcast.lane.b32.xlu0 %v3749, %s3754
      %v3756 = vpop.permute.xlu0 %3755
      %v3757 = vlaneseq
      %v3758 = vshrl.u32 %v3757, 7
      %v3759 = vsub.s32 0, %v3758
      %v3760 = vrot.slane %v2684, %v3759
      %v3761 = vlaneseq
      %v3762 = vshrl.u32 %v3761, 7
      %v3763 = vsub.s32 0, %v3762
      %v3764 = vrot.slane %v2698, %v3763
      %v3765 = vlaneseq
      %v3766 = vshrl.u32 %v3765, 7
      %v3767 = vsub.s32 0, %v3766
      %v3768 = vrot.slane %v2706, %v3767
      %v3769 = vlaneseq
      %v3770 = vshrl.u32 %v3769, 7
      %v3771 = vsub.s32 0, %v3770
      %v3772 = vrot.slane %v2708, %v3771
      %v3773 = vlaneseq
      %v3774 = vshrl.u32 %v3773, 7
      %v3775 = vsub.s32 0, %v3774
      %v3776 = vrot.slane %v2691, %v3775
      %v3777 = vlaneseq
      %v3778 = vshrl.u32 %v3777, 7
      %v3779 = vsub.s32 0, %v3778
      %v3780 = vrot.slane %v2705, %v3779
      %v3781 = vlaneseq
      %v3782 = vshrl.u32 %v3781, 7
      %v3783 = vsub.s32 0, %v3782
      %v3784 = vrot.slane %v2707, %v3783
      %v3785 = vlaneseq
      %v3786 = vshrl.u32 %v3785, 7
      %v3787 = vsub.s32 0, %v3786
      %v3788 = vrot.slane %v2709, %v3787
      %v3789 = vlaneseq
      %v3790 = vshrl.u32 %v3789, 7
      %v3791 = vsub.s32 0, %v3790
      %v3792 = vrot.slane %v2733, %v3791
      %v3793 = vlaneseq
      %v3794 = vshrl.u32 %v3793, 7
      %v3795 = vsub.s32 0, %v3794
      %v3796 = vrot.slane %v2747, %v3795
      %v3797 = vlaneseq
      %v3798 = vshrl.u32 %v3797, 7
      %v3799 = vsub.s32 0, %v3798
      %v3800 = vrot.slane %v2755, %v3799
      %v3801 = vlaneseq
      %v3802 = vshrl.u32 %v3801, 7
      %v3803 = vsub.s32 0, %v3802
      %v3804 = vrot.slane %v2757, %v3803
      %v3805 = vlaneseq
      %v3806 = vshrl.u32 %v3805, 7
      %v3807 = vsub.s32 0, %v3806
      %v3808 = vrot.slane %v2740, %v3807
      %v3809 = vlaneseq
      %v3810 = vshrl.u32 %v3809, 7
      %v3811 = vsub.s32 0, %v3810
      %v3812 = vrot.slane %v2754, %v3811
      %v3813 = vlaneseq
      %v3814 = vshrl.u32 %v3813, 7
      %v3815 = vsub.s32 0, %v3814
      %v3816 = vrot.slane %v2756, %v3815
      %v3817 = vlaneseq
      %v3818 = vshrl.u32 %v3817, 7
      %v3819 = vsub.s32 0, %v3818
      %v3820 = vrot.slane %v2758, %v3819
      %v3821 = vlaneseq
      %v3822 = vshrl.u32 %v3821, 7
      %v3823 = vsub.s32 0, %v3822
      %v3824 = vrot.slane %v2782, %v3823
      %v3825 = vlaneseq
      %v3826 = vshrl.u32 %v3825, 7
      %v3827 = vsub.s32 0, %v3826
      %v3828 = vrot.slane %v2796, %v3827
      %v3829 = vlaneseq
      %v3830 = vshrl.u32 %v3829, 7
      %v3831 = vsub.s32 0, %v3830
      %v3832 = vrot.slane %v2804, %v3831
      %v3833 = vlaneseq
      %v3834 = vshrl.u32 %v3833, 7
      %v3835 = vsub.s32 0, %v3834
      %v3836 = vrot.slane %v2806, %v3835
      %v3837 = vlaneseq
      %v3838 = vshrl.u32 %v3837, 7
      %v3839 = vsub.s32 0, %v3838
      %v3840 = vrot.slane %v2789, %v3839
      %v3841 = vlaneseq
      %v3842 = vshrl.u32 %v3841, 7
      %v3843 = vsub.s32 0, %v3842
      %v3844 = vrot.slane %v2803, %v3843
      %v3845 = vlaneseq
      %v3846 = vshrl.u32 %v3845, 7
      %v3847 = vsub.s32 0, %v3846
      %v3848 = vrot.slane %v2805, %v3847
      %v3849 = vlaneseq
      %v3850 = vshrl.u32 %v3849, 7
      %v3851 = vsub.s32 0, %v3850
      %v3852 = vrot.slane %v2807, %v3851
      %v3853 = vlaneseq
      %v3854 = vshrl.u32 %v3853, 7
      %v3855 = vsub.s32 0, %v3854
      %v3856 = vrot.slane %v2831, %v3855
      %v3857 = vlaneseq
      %v3858 = vshrl.u32 %v3857, 7
      %v3859 = vsub.s32 0, %v3858
      %v3860 = vrot.slane %v2845, %v3859
      %v3861 = vlaneseq
      %v3862 = vshrl.u32 %v3861, 7
      %v3863 = vsub.s32 0, %v3862
      %v3864 = vrot.slane %v2853, %v3863
      %v3865 = vlaneseq
      %v3866 = vshrl.u32 %v3865, 7
      %v3867 = vsub.s32 0, %v3866
      %v3868 = vrot.slane %v2855, %v3867
      %v3869 = vlaneseq
      %v3870 = vshrl.u32 %v3869, 7
      %v3871 = vsub.s32 0, %v3870
      %v3872 = vrot.slane %v2838, %v3871
      %v3873 = vlaneseq
      %v3874 = vshrl.u32 %v3873, 7
      %v3875 = vsub.s32 0, %v3874
      %v3876 = vrot.slane %v2852, %v3875
      %v3877 = vlaneseq
      %v3878 = vshrl.u32 %v3877, 7
      %v3879 = vsub.s32 0, %v3878
      %v3880 = vrot.slane %v2854, %v3879
      %v3881 = vlaneseq
      %v3882 = vshrl.u32 %v3881, 7
      %v3883 = vsub.s32 0, %v3882
      %v3884 = vrot.slane %v2856, %v3883
      %v3885 = vlaneseq
      %v3886 = vshrl.u32 %v3885, 7
      %v3887 = vsub.s32 0, %v3886
      %v3888 = vrot.slane %v2880, %v3887
      %v3889 = vlaneseq
      %v3890 = vshrl.u32 %v3889, 7
      %v3891 = vsub.s32 0, %v3890
      %v3892 = vrot.slane %v2894, %v3891
      %v3893 = vlaneseq
      %v3894 = vshrl.u32 %v3893, 7
      %v3895 = vsub.s32 0, %v3894
      %v3896 = vrot.slane %v2902, %v3895
      %v3897 = vlaneseq
      %v3898 = vshrl.u32 %v3897, 7
      %v3899 = vsub.s32 0, %v3898
      %v3900 = vrot.slane %v2904, %v3899
      %v3901 = vlaneseq
      %v3902 = vshrl.u32 %v3901, 7
      %v3903 = vsub.s32 0, %v3902
      %v3904 = vrot.slane %v2887, %v3903
      %v3905 = vlaneseq
      %v3906 = vshrl.u32 %v3905, 7
      %v3907 = vsub.s32 0, %v3906
      %v3908 = vrot.slane %v2901, %v3907
      %v3909 = vlaneseq
      %v3910 = vshrl.u32 %v3909, 7
      %v3911 = vsub.s32 0, %v3910
      %v3912 = vrot.slane %v2903, %v3911
      %v3913 = vlaneseq
      %v3914 = vshrl.u32 %v3913, 7
      %v3915 = vsub.s32 0, %v3914
      %v3916 = vrot.slane %v2905, %v3915
      %v3917 = vlaneseq
      %v3918 = vshrl.u32 %v3917, 7
      %v3919 = vsub.s32 0, %v3918
      %v3920 = vrot.slane %v2929, %v3919
      %v3921 = vlaneseq
      %v3922 = vshrl.u32 %v3921, 7
      %v3923 = vsub.s32 0, %v3922
      %v3924 = vrot.slane %v2943, %v3923
      %v3925 = vlaneseq
      %v3926 = vshrl.u32 %v3925, 7
      %v3927 = vsub.s32 0, %v3926
      %v3928 = vrot.slane %v2951, %v3927
      %v3929 = vlaneseq
      %v3930 = vshrl.u32 %v3929, 7
      %v3931 = vsub.s32 0, %v3930
      %v3932 = vrot.slane %v2953, %v3931
      %v3933 = vlaneseq
      %v3934 = vshrl.u32 %v3933, 7
      %v3935 = vsub.s32 0, %v3934
      %v3936 = vrot.slane %v2936, %v3935
      %v3937 = vlaneseq
      %v3938 = vshrl.u32 %v3937, 7
      %v3939 = vsub.s32 0, %v3938
      %v3940 = vrot.slane %v2950, %v3939
      %v3941 = vlaneseq
      %v3942 = vshrl.u32 %v3941, 7
      %v3943 = vsub.s32 0, %v3942
      %v3944 = vrot.slane %v2952, %v3943
      %v3945 = vlaneseq
      %v3946 = vshrl.u32 %v3945, 7
      %v3947 = vsub.s32 0, %v3946
      %v3948 = vrot.slane %v2954, %v3947
      %v3949 = vlaneseq
      %v3950 = vshrl.u32 %v3949, 7
      %v3951 = vsub.s32 0, %v3950
      %v3952 = vrot.slane %v2978, %v3951
      %v3953 = vlaneseq
      %v3954 = vshrl.u32 %v3953, 7
      %v3955 = vsub.s32 0, %v3954
      %v3956 = vrot.slane %v2992, %v3955
      %v3957 = vlaneseq
      %v3958 = vshrl.u32 %v3957, 7
      %v3959 = vsub.s32 0, %v3958
      %v3960 = vrot.slane %v3000, %v3959
      %v3961 = vlaneseq
      %v3962 = vshrl.u32 %v3961, 7
      %v3963 = vsub.s32 0, %v3962
      %v3964 = vrot.slane %v3002, %v3963
      %v3965 = vlaneseq
      %v3966 = vshrl.u32 %v3965, 7
      %v3967 = vsub.s32 0, %v3966
      %v3968 = vrot.slane %v2985, %v3967
      %v3969 = vlaneseq
      %v3970 = vshrl.u32 %v3969, 7
      %v3971 = vsub.s32 0, %v3970
      %v3972 = vrot.slane %v2999, %v3971
      %v3973 = vlaneseq
      %v3974 = vshrl.u32 %v3973, 7
      %v3975 = vsub.s32 0, %v3974
      %v3976 = vrot.slane %v3001, %v3975
      %v3977 = vlaneseq
      %v3978 = vshrl.u32 %v3977, 7
      %v3979 = vsub.s32 0, %v3978
      %v3980 = vrot.slane %v3003, %v3979
      %v3981 = vlaneseq
      %v3982 = vshrl.u32 %v3981, 7
      %v3983 = vsub.s32 0, %v3982
      %v3984 = vrot.slane %v3027, %v3983
      %v3985 = vlaneseq
      %v3986 = vshrl.u32 %v3985, 7
      %v3987 = vsub.s32 0, %v3986
      %v3988 = vrot.slane %v3041, %v3987
      %v3989 = vlaneseq
      %v3990 = vshrl.u32 %v3989, 7
      %v3991 = vsub.s32 0, %v3990
      %v3992 = vrot.slane %v3049, %v3991
      %v3993 = vlaneseq
      %v3994 = vshrl.u32 %v3993, 7
      %v3995 = vsub.s32 0, %v3994
      %v3996 = vrot.slane %v3051, %v3995
      %v3997 = vlaneseq
      %v3998 = vshrl.u32 %v3997, 7
      %v3999 = vsub.s32 0, %v3998
      %v4000 = vrot.slane %v3034, %v3999
      %v4001 = vlaneseq
      %v4002 = vshrl.u32 %v4001, 7
      %v4003 = vsub.s32 0, %v4002
      %v4004 = vrot.slane %v3048, %v4003
      %v4005 = vlaneseq
      %v4006 = vshrl.u32 %v4005, 7
      %v4007 = vsub.s32 0, %v4006
      %v4008 = vrot.slane %v3050, %v4007
      %v4009 = vlaneseq
      %v4010 = vshrl.u32 %v4009, 7
      %v4011 = vsub.s32 0, %v4010
      %v4012 = vrot.slane %v3052, %v4011
      %v4077 = vmul.f32 %v3760, %v3059
      %v4078 = vmul.f32 %v3760, %v3063
      %v4079 = vmul.f32 %v3764, %v3070
      %v4080 = vmul.f32 %v3764, %v3074
      %v4081 = vmul.f32 %v3768, %v3081
      %v4082 = vmul.f32 %v3768, %v3085
      %v4083 = vmul.f32 %v3772, %v3092
      %v4084 = vmul.f32 %v3772, %v3096
      %v4085 = vmul.f32 %v3776, %v3103
      %v4086 = vmul.f32 %v3776, %v3107
      %v4087 = vmul.f32 %v3780, %v3114
      %v4088 = vmul.f32 %v3780, %v3118
      %v4089 = vmul.f32 %v3784, %v3125
      %v4090 = vmul.f32 %v3784, %v3129
      %v4091 = vmul.f32 %v3788, %v3136
      %v4092 = vmul.f32 %v3788, %v3140
      %v4093 = vmul.f32 %v3792, %v3147
      %v4094 = vmul.f32 %v3792, %v3151
      %v4095 = vmul.f32 %v3796, %v3158
      %v4096 = vmul.f32 %v3796, %v3162
      %v4097 = vmul.f32 %v3800, %v3169
      %v4098 = vmul.f32 %v3800, %v3173
      %v4099 = vmul.f32 %v3804, %v3180
      %v4100 = vmul.f32 %v3804, %v3184
      %v4101 = vmul.f32 %v3808, %v3191
      %v4102 = vmul.f32 %v3808, %v3195
      %v4103 = vmul.f32 %v3812, %v3202
      %v4104 = vmul.f32 %v3812, %v3206
      %v4105 = vmul.f32 %v3816, %v3213
      %v4106 = vmul.f32 %v3816, %v3217
      %v4107 = vmul.f32 %v3820, %v3224
      %v4108 = vmul.f32 %v3820, %v3228
      %v4109 = vmul.f32 %v3824, %v3235
      %v4110 = vmul.f32 %v3824, %v3239
      %v4111 = vmul.f32 %v3828, %v3246
      %v4112 = vmul.f32 %v3828, %v3250
      %v4113 = vmul.f32 %v3832, %v3257
      %v4114 = vmul.f32 %v3832, %v3261
      %v4115 = vmul.f32 %v3836, %v3268
      %v4116 = vmul.f32 %v3836, %v3272
      %v4117 = vmul.f32 %v3840, %v3279
      %v4118 = vmul.f32 %v3840, %v3283
      %v4119 = vmul.f32 %v3844, %v3290
      %v4120 = vmul.f32 %v3844, %v3294
      %v4121 = vmul.f32 %v3848, %v3301
      %v4122 = vmul.f32 %v3848, %v3305
      %v4123 = vmul.f32 %v3852, %v3312
      %v4124 = vmul.f32 %v3852, %v3316
      %v4125 = vmul.f32 %v3856, %v3323
      %v4126 = vmul.f32 %v3856, %v3327
      %v4127 = vmul.f32 %v3860, %v3334
      %v4128 = vmul.f32 %v3860, %v3338
      %v4129 = vmul.f32 %v3864, %v3345
      %v4130 = vmul.f32 %v3864, %v3349
      %v4131 = vmul.f32 %v3868, %v3356
      %v4132 = vmul.f32 %v3868, %v3360
      %v4133 = vmul.f32 %v3872, %v3367
      %v4134 = vmul.f32 %v3872, %v3371
      %v4135 = vmul.f32 %v3876, %v3378
      %v4136 = vmul.f32 %v3876, %v3382
      %v4137 = vmul.f32 %v3880, %v3389
      %v4138 = vmul.f32 %v3880, %v3393
      %v4139 = vmul.f32 %v3884, %v3400
      %v4140 = vmul.f32 %v3884, %v3404
      %v4141 = vmul.f32 %v3888, %v3411
      %v4142 = vmul.f32 %v3888, %v3415
      %v4143 = vmul.f32 %v3892, %v3422
      %v4144 = vmul.f32 %v3892, %v3426
      %v4145 = vmul.f32 %v3896, %v3433
      %v4146 = vmul.f32 %v3896, %v3437
      %v4147 = vmul.f32 %v3900, %v3444
      %v4148 = vmul.f32 %v3900, %v3448
      %v4149 = vmul.f32 %v3904, %v3455
      %v4150 = vmul.f32 %v3904, %v3459
      %v4151 = vmul.f32 %v3908, %v3466
      %v4152 = vmul.f32 %v3908, %v3470
      %v4153 = vmul.f32 %v3912, %v3477
      %v4154 = vmul.f32 %v3912, %v3481
      %v4155 = vmul.f32 %v3916, %v3488
      %v4156 = vmul.f32 %v3916, %v3492
      %v4157 = vmul.f32 %v3920, %v3499
      %v4158 = vmul.f32 %v3920, %v3503
      %v4159 = vmul.f32 %v3924, %v3510
      %v4160 = vmul.f32 %v3924, %v3514
      %v4161 = vmul.f32 %v3928, %v3521
      %v4162 = vmul.f32 %v3928, %v3525
      %v4163 = vmul.f32 %v3932, %v3532
      %v4164 = vmul.f32 %v3932, %v3536
      %v4165 = vmul.f32 %v3936, %v3543
      %v4166 = vmul.f32 %v3936, %v3547
      %v4167 = vmul.f32 %v3940, %v3554
      %v4168 = vmul.f32 %v3940, %v3558
      %v4169 = vmul.f32 %v3944, %v3565
      %v4170 = vmul.f32 %v3944, %v3569
      %v4171 = vmul.f32 %v3948, %v3576
      %v4172 = vmul.f32 %v3948, %v3580
      %v4173 = vmul.f32 %v3952, %v3587
      %v4174 = vmul.f32 %v3952, %v3591
      %v4175 = vmul.f32 %v3956, %v3598
      %v4176 = vmul.f32 %v3956, %v3602
      %v4177 = vmul.f32 %v3960, %v3609
      %v4178 = vmul.f32 %v3960, %v3613
      %v4179 = vmul.f32 %v3964, %v3620
      %v4180 = vmul.f32 %v3964, %v3624
      %v4181 = vmul.f32 %v3968, %v3631
      %v4182 = vmul.f32 %v3968, %v3635
      %v4183 = vmul.f32 %v3972, %v3642
      %v4184 = vmul.f32 %v3972, %v3646
      %v4185 = vmul.f32 %v3976, %v3653
      %v4186 = vmul.f32 %v3976, %v3657
      %v4187 = vmul.f32 %v3980, %v3664
      %v4188 = vmul.f32 %v3980, %v3668
      %v4189 = vmul.f32 %v3984, %v3675
      %v4190 = vmul.f32 %v3984, %v3679
      %v4191 = vmul.f32 %v3988, %v3686
      %v4192 = vmul.f32 %v3988, %v3690
      %v4193 = vmul.f32 %v3992, %v3697
      %v4194 = vmul.f32 %v3992, %v3701
      %v4195 = vmul.f32 %v3996, %v3708
      %v4196 = vmul.f32 %v3996, %v3712
      %v4197 = vmul.f32 %v4000, %v3719
      %v4198 = vmul.f32 %v4000, %v3723
      %v4199 = vmul.f32 %v4004, %v3730
      %v4200 = vmul.f32 %v4004, %v3734
      %v4201 = vmul.f32 %v4008, %v3741
      %v4202 = vmul.f32 %v4008, %v3745
      %v4203 = vmul.f32 %v4012, %v3752
      %v4204 = vmul.f32 %v4012, %v3756
      %4205 = vst.msk [vmem:[#allocation3] sm:$0xff] %vm851, %v4077
      %4206 = vst.msk [vmem:[#allocation3 + $0x8] sm:$0xff] %vm851, %v4078
      %4207 = vst.msk [vmem:[#allocation3 + $0x10] sm:$0xff] %vm851, %v4079
      %4208 = vst.msk [vmem:[#allocation3 + $0x18] sm:$0xff] %vm851, %v4080
      %4209 = vst.msk [vmem:[#allocation3 + $0x20] sm:$0xff] %vm851, %v4081
      %4210 = vst.msk [vmem:[#allocation3 + $0x28] sm:$0xff] %vm851, %v4082
      %4211 = vst.msk [vmem:[#allocation3 + $0x30] sm:$0xff] %vm851, %v4083
      %4212 = vst.msk [vmem:[#allocation3 + $0x38] sm:$0xff] %vm851, %v4084
      %4213 = vst.msk [vmem:[#allocation3 + $0x40] sm:$0xff] %vm851, %v4085
      %4214 = vst.msk [vmem:[#allocation3 + $0x48] sm:$0xff] %vm851, %v4086
      %4215 = vst.msk [vmem:[#allocation3 + $0x50] sm:$0xff] %vm851, %v4087
      %4216 = vst.msk [vmem:[#allocation3 + $0x58] sm:$0xff] %vm851, %v4088
      %4217 = vst.msk [vmem:[#allocation3 + $0x60] sm:$0xff] %vm851, %v4089
      %4218 = vst.msk [vmem:[#allocation3 + $0x68] sm:$0xff] %vm851, %v4090
      %4219 = vst.msk [vmem:[#allocation3 + $0x70] sm:$0xff] %vm851, %v4091
      %4220 = vst.msk [vmem:[#allocation3 + $0x78] sm:$0xff] %vm851, %v4092
      %4221 = vst.msk [vmem:[#allocation3 + $0x80] sm:$0xff] %vm851, %v4093
      %4222 = vst.msk [vmem:[#allocation3 + $0x88] sm:$0xff] %vm851, %v4094
      %4223 = vst.msk [vmem:[#allocation3 + $0x90] sm:$0xff] %vm851, %v4095
      %4224 = vst.msk [vmem:[#allocation3 + $0x98] sm:$0xff] %vm851, %v4096
      %4225 = vst.msk [vmem:[#allocation3 + $0xa0] sm:$0xff] %vm851, %v4097
      %4226 = vst.msk [vmem:[#allocation3 + $0xa8] sm:$0xff] %vm851, %v4098
      %4227 = vst.msk [vmem:[#allocation3 + $0xb0] sm:$0xff] %vm851, %v4099
      %4228 = vst.msk [vmem:[#allocation3 + $0xb8] sm:$0xff] %vm851, %v4100
      %4229 = vst.msk [vmem:[#allocation3 + $0xc0] sm:$0xff] %vm851, %v4101
      %4230 = vst.msk [vmem:[#allocation3 + $0xc8] sm:$0xff] %vm851, %v4102
      %4231 = vst.msk [vmem:[#allocation3 + $0xd0] sm:$0xff] %vm851, %v4103
      %4232 = vst.msk [vmem:[#allocation3 + $0xd8] sm:$0xff] %vm851, %v4104
      %4233 = vst.msk [vmem:[#allocation3 + $0xe0] sm:$0xff] %vm851, %v4105
      %4234 = vst.msk [vmem:[#allocation3 + $0xe8] sm:$0xff] %vm851, %v4106
      %4235 = vst.msk [vmem:[#allocation3 + $0xf0] sm:$0xff] %vm851, %v4107
      %4236 = vst.msk [vmem:[#allocation3 + $0xf8] sm:$0xff] %vm851, %v4108
      %4237 = vst.msk [vmem:[#allocation3 + $0x100] sm:$0xff] %vm851, %v4109
      %4238 = vst.msk [vmem:[#allocation3 + $0x108] sm:$0xff] %vm851, %v4110
      %4239 = vst.msk [vmem:[#allocation3 + $0x110] sm:$0xff] %vm851, %v4111
      %4240 = vst.msk [vmem:[#allocation3 + $0x118] sm:$0xff] %vm851, %v4112
      %4241 = vst.msk [vmem:[#allocation3 + $0x120] sm:$0xff] %vm851, %v4113
      %4242 = vst.msk [vmem:[#allocation3 + $0x128] sm:$0xff] %vm851, %v4114
      %4243 = vst.msk [vmem:[#allocation3 + $0x130] sm:$0xff] %vm851, %v4115
      %4244 = vst.msk [vmem:[#allocation3 + $0x138] sm:$0xff] %vm851, %v4116
      %4245 = vst.msk [vmem:[#allocation3 + $0x140] sm:$0xff] %vm851, %v4117
      %4246 = vst.msk [vmem:[#allocation3 + $0x148] sm:$0xff] %vm851, %v4118
      %4247 = vst.msk [vmem:[#allocation3 + $0x150] sm:$0xff] %vm851, %v4119
      %4248 = vst.msk [vmem:[#allocation3 + $0x158] sm:$0xff] %vm851, %v4120
      %4249 = vst.msk [vmem:[#allocation3 + $0x160] sm:$0xff] %vm851, %v4121
      %4250 = vst.msk [vmem:[#allocation3 + $0x168] sm:$0xff] %vm851, %v4122
      %4251 = vst.msk [vmem:[#allocation3 + $0x170] sm:$0xff] %vm851, %v4123
      %4252 = vst.msk [vmem:[#allocation3 + $0x178] sm:$0xff] %vm851, %v4124
      %4253 = vst.msk [vmem:[#allocation3 + $0x180] sm:$0xff] %vm851, %v4125
      %4254 = vst.msk [vmem:[#allocation3 + $0x188] sm:$0xff] %vm851, %v4126
      %4255 = vst.msk [vmem:[#allocation3 + $0x190] sm:$0xff] %vm851, %v4127
      %4256 = vst.msk [vmem:[#allocation3 + $0x198] sm:$0xff] %vm851, %v4128
      %4257 = vst.msk [vmem:[#allocation3 + $0x1a0] sm:$0xff] %vm851, %v4129
      %4258 = vst.msk [vmem:[#allocation3 + $0x1a8] sm:$0xff] %vm851, %v4130
      %4259 = vst.msk [vmem:[#allocation3 + $0x1b0] sm:$0xff] %vm851, %v4131
      %4260 = vst.msk [vmem:[#allocation3 + $0x1b8] sm:$0xff] %vm851, %v4132
      %4261 = vst.msk [vmem:[#allocation3 + $0x1c0] sm:$0xff] %vm851, %v4133
      %4262 = vst.msk [vmem:[#allocation3 + $0x1c8] sm:$0xff] %vm851, %v4134
      %4263 = vst.msk [vmem:[#allocation3 + $0x1d0] sm:$0xff] %vm851, %v4135
      %4264 = vst.msk [vmem:[#allocation3 + $0x1d8] sm:$0xff] %vm851, %v4136
      %4265 = vst.msk [vmem:[#allocation3 + $0x1e0] sm:$0xff] %vm851, %v4137
      %4266 = vst.msk [vmem:[#allocation3 + $0x1e8] sm:$0xff] %vm851, %v4138
      %4267 = vst.msk [vmem:[#allocation3 + $0x1f0] sm:$0xff] %vm851, %v4139
      %4268 = vst.msk [vmem:[#allocation3 + $0x1f8] sm:$0xff] %vm851, %v4140
      %4269 = vst.msk [vmem:[#allocation3 + $0x200] sm:$0xff] %vm851, %v4141
      %4270 = vst.msk [vmem:[#allocation3 + $0x208] sm:$0xff] %vm851, %v4142
      %4271 = vst.msk [vmem:[#allocation3 + $0x210] sm:$0xff] %vm851, %v4143
      %4272 = vst.msk [vmem:[#allocation3 + $0x218] sm:$0xff] %vm851, %v4144
      %4273 = vst.msk [vmem:[#allocation3 + $0x220] sm:$0xff] %vm851, %v4145
      %4274 = vst.msk [vmem:[#allocation3 + $0x228] sm:$0xff] %vm851, %v4146
      %4275 = vst.msk [vmem:[#allocation3 + $0x230] sm:$0xff] %vm851, %v4147
      %4276 = vst.msk [vmem:[#allocation3 + $0x238] sm:$0xff] %vm851, %v4148
      %4277 = vst.msk [vmem:[#allocation3 + $0x240] sm:$0xff] %vm851, %v4149
      %4278 = vst.msk [vmem:[#allocation3 + $0x248] sm:$0xff] %vm851, %v4150
      %4279 = vst.msk [vmem:[#allocation3 + $0x250] sm:$0xff] %vm851, %v4151
      %4280 = vst.msk [vmem:[#allocation3 + $0x258] sm:$0xff] %vm851, %v4152
      %4281 = vst.msk [vmem:[#allocation3 + $0x260] sm:$0xff] %vm851, %v4153
      %4282 = vst.msk [vmem:[#allocation3 + $0x268] sm:$0xff] %vm851, %v4154
      %4283 = vst.msk [vmem:[#allocation3 + $0x270] sm:$0xff] %vm851, %v4155
      %4284 = vst.msk [vmem:[#allocation3 + $0x278] sm:$0xff] %vm851, %v4156
      %4285 = vst.msk [vmem:[#allocation3 + $0x280] sm:$0xff] %vm851, %v4157
      %4286 = vst.msk [vmem:[#allocation3 + $0x288] sm:$0xff] %vm851, %v4158
      %4287 = vst.msk [vmem:[#allocation3 + $0x290] sm:$0xff] %vm851, %v4159
      %4288 = vst.msk [vmem:[#allocation3 + $0x298] sm:$0xff] %vm851, %v4160
      %4289 = vst.msk [vmem:[#allocation3 + $0x2a0] sm:$0xff] %vm851, %v4161
      %4290 = vst.msk [vmem:[#allocation3 + $0x2a8] sm:$0xff] %vm851, %v4162
      %4291 = vst.msk [vmem:[#allocation3 + $0x2b0] sm:$0xff] %vm851, %v4163
      %4292 = vst.msk [vmem:[#allocation3 + $0x2b8] sm:$0xff] %vm851, %v4164
      %4293 = vst.msk [vmem:[#allocation3 + $0x2c0] sm:$0xff] %vm851, %v4165
      %4294 = vst.msk [vmem:[#allocation3 + $0x2c8] sm:$0xff] %vm851, %v4166
      %4295 = vst.msk [vmem:[#allocation3 + $0x2d0] sm:$0xff] %vm851, %v4167
      %4296 = vst.msk [vmem:[#allocation3 + $0x2d8] sm:$0xff] %vm851, %v4168
      %4297 = vst.msk [vmem:[#allocation3 + $0x2e0] sm:$0xff] %vm851, %v4169
      %4298 = vst.msk [vmem:[#allocation3 + $0x2e8] sm:$0xff] %vm851, %v4170
      %4299 = vst.msk [vmem:[#allocation3 + $0x2f0] sm:$0xff] %vm851, %v4171
      %4300 = vst.msk [vmem:[#allocation3 + $0x2f8] sm:$0xff] %vm851, %v4172
      %4301 = vst.msk [vmem:[#allocation3 + $0x300] sm:$0xff] %vm851, %v4173
      %4302 = vst.msk [vmem:[#allocation3 + $0x308] sm:$0xff] %vm851, %v4174
      %4303 = vst.msk [vmem:[#allocation3 + $0x310] sm:$0xff] %vm851, %v4175
      %4304 = vst.msk [vmem:[#allocation3 + $0x318] sm:$0xff] %vm851, %v4176
      %4305 = vst.msk [vmem:[#allocation3 + $0x320] sm:$0xff] %vm851, %v4177
      %4306 = vst.msk [vmem:[#allocation3 + $0x328] sm:$0xff] %vm851, %v4178
      %4307 = vst.msk [vmem:[#allocation3 + $0x330] sm:$0xff] %vm851, %v4179
      %4308 = vst.msk [vmem:[#allocation3 + $0x338] sm:$0xff] %vm851, %v4180
      %4309 = vst.msk [vmem:[#allocation3 + $0x340] sm:$0xff] %vm851, %v4181
      %4310 = vst.msk [vmem:[#allocation3 + $0x348] sm:$0xff] %vm851, %v4182
      %4311 = vst.msk [vmem:[#allocation3 + $0x350] sm:$0xff] %vm851, %v4183
      %4312 = vst.msk [vmem:[#allocation3 + $0x358] sm:$0xff] %vm851, %v4184
      %4313 = vst.msk [vmem:[#allocation3 + $0x360] sm:$0xff] %vm851, %v4185
      %4314 = vst.msk [vmem:[#allocation3 + $0x368] sm:$0xff] %vm851, %v4186
      %4315 = vst.msk [vmem:[#allocation3 + $0x370] sm:$0xff] %vm851, %v4187
      %4316 = vst.msk [vmem:[#allocation3 + $0x378] sm:$0xff] %vm851, %v4188
      %4317 = vst.msk [vmem:[#allocation3 + $0x380] sm:$0xff] %vm851, %v4189
      %4318 = vst.msk [vmem:[#allocation3 + $0x388] sm:$0xff] %vm851, %v4190
      %4319 = vst.msk [vmem:[#allocation3 + $0x390] sm:$0xff] %vm851, %v4191
      %4320 = vst.msk [vmem:[#allocation3 + $0x398] sm:$0xff] %vm851, %v4192
      %4321 = vst.msk [vmem:[#allocation3 + $0x3a0] sm:$0xff] %vm851, %v4193
      %4322 = vst.msk [vmem:[#allocation3 + $0x3a8] sm:$0xff] %vm851, %v4194
      %4323 = vst.msk [vmem:[#allocation3 + $0x3b0] sm:$0xff] %vm851, %v4195
      %4324 = vst.msk [vmem:[#allocation3 + $0x3b8] sm:$0xff] %vm851, %v4196
      %4325 = vst.msk [vmem:[#allocation3 + $0x3c0] sm:$0xff] %vm851, %v4197
      %4326 = vst.msk [vmem:[#allocation3 + $0x3c8] sm:$0xff] %vm851, %v4198
      %4327 = vst.msk [vmem:[#allocation3 + $0x3d0] sm:$0xff] %vm851, %v4199
      %4328 = vst.msk [vmem:[#allocation3 + $0x3d8] sm:$0xff] %vm851, %v4200
      %4329 = vst.msk [vmem:[#allocation3 + $0x3e0] sm:$0xff] %vm851, %v4201
      %4330 = vst.msk [vmem:[#allocation3 + $0x3e8] sm:$0xff] %vm851, %v4202
      %4331 = vst.msk [vmem:[#allocation3 + $0x3f0] sm:$0xff] %vm851, %v4203
      %4332 = vst.msk [vmem:[#allocation3 + $0x3f8] sm:$0xff] %vm851, %v4204
      %v4333 = vld [vmem:[#allocation4] sm:$0xff]
      %v4334 = vld [vmem:[#allocation4 + $0x8] sm:$0xff]
      loop: start=0, step=1, limit=8
      $region61: #{tri_window_mamba_forward.4} parent=55 // loop_pre_header
        _
      $region62: #{tri_window_mamba_forward.4} parent=55 // loop_header
        %s4336 = sphi 0, %s4340
        %p4337 = scmp.ge.s32.totalorder %s4336, 8
        %v4341 = vphi %v4333, %v4451
        %v4342 = vphi %v4334, %v4452
      $region63: #{tri_window_mamba_forward.4} parent=55 // loop_header_branch
        %4339 = sbr.rel (%p4337) target = $region67
      $region64: #{tri_window_mamba_forward.4} parent=55 // loop_body
        %s4343 = smul.u32 %s4336, 8
        %s4344 = smul.u32 %s4343, 16
        %s4345 = scalar_lea.vmem [#allocation2], %s4344
        %v4346 = vld [vmem:[%s4345] sm:$0xff]
        %v4347 = vld [vmem:[%s4345 + $0x8] sm:$0xff]
        %v4348 = vmul.f32 %v4346, %v4341
        %v4349 = vmul.f32 %v4347, %v4342
        %s4350 = scalar_lea.vmem [#allocation3], %s4344
        %v4351 = vld [vmem:[%s4350] sm:$0xff]
        %v4352 = vld [vmem:[%s4350 + $0x8] sm:$0xff]
        %v4353 = vadd.f32 %v4348, %v4351
        %v4354 = vadd.f32 %v4349, %v4352
        %4355 = vst.msk [vmem:[%s4350] sm:$0xff] %vm851, %v4353
        %4356 = vst.msk [vmem:[%s4350 + $0x8] sm:$0xff] %vm851, %v4354
        %s4357 = sadd.s32 %s4343, 1
        %s4358 = smul.u32 %s4357, 16
        %s4359 = scalar_lea.vmem [#allocation2], %s4358
        %v4360 = vld [vmem:[%s4359] sm:$0xff]
        %v4361 = vld [vmem:[%s4359 + $0x8] sm:$0xff]
        %v4362 = vmul.f32 %v4360, %v4353
        %v4363 = vmul.f32 %v4361, %v4354
        %s4364 = scalar_lea.vmem [#allocation3], %s4358
        %v4365 = vld [vmem:[%s4364] sm:$0xff]
        %v4366 = vld [vmem:[%s4364 + $0x8] sm:$0xff]
        %v4367 = vadd.f32 %v4362, %v4365
        %v4368 = vadd.f32 %v4363, %v4366
        %4369 = vst.msk [vmem:[%s4364] sm:$0xff] %vm851, %v4367
        %4370 = vst.msk [vmem:[%s4364 + $0x8] sm:$0xff] %vm851, %v4368
        %s4371 = sadd.s32 %s4343, 2
        %s4372 = smul.u32 %s4371, 16
        %s4373 = scalar_lea.vmem [#allocation2], %s4372
        %v4374 = vld [vmem:[%s4373] sm:$0xff]
        %v4375 = vld [vmem:[%s4373 + $0x8] sm:$0xff]
        %v4376 = vmul.f32 %v4374, %v4367
        %v4377 = vmul.f32 %v4375, %v4368
        %s4378 = scalar_lea.vmem [#allocation3], %s4372
        %v4379 = vld [vmem:[%s4378] sm:$0xff]
        %v4380 = vld [vmem:[%s4378 + $0x8] sm:$0xff]
        %v4381 = vadd.f32 %v4376, %v4379
        %v4382 = vadd.f32 %v4377, %v4380
        %4383 = vst.msk [vmem:[%s4378] sm:$0xff] %vm851, %v4381
        %4384 = vst.msk [vmem:[%s4378 + $0x8] sm:$0xff] %vm851, %v4382
        %s4385 = sadd.s32 %s4343, 3
        %s4386 = smul.u32 %s4385, 16
        %s4387 = scalar_lea.vmem [#allocation2], %s4386
        %v4388 = vld [vmem:[%s4387] sm:$0xff]
        %v4389 = vld [vmem:[%s4387 + $0x8] sm:$0xff]
        %v4390 = vmul.f32 %v4388, %v4381
        %v4391 = vmul.f32 %v4389, %v4382
        %s4392 = scalar_lea.vmem [#allocation3], %s4386
        %v4393 = vld [vmem:[%s4392] sm:$0xff]
        %v4394 = vld [vmem:[%s4392 + $0x8] sm:$0xff]
        %v4395 = vadd.f32 %v4390, %v4393
        %v4396 = vadd.f32 %v4391, %v4394
        %4397 = vst.msk [vmem:[%s4392] sm:$0xff] %vm851, %v4395
        %4398 = vst.msk [vmem:[%s4392 + $0x8] sm:$0xff] %vm851, %v4396
        %s4399 = sadd.s32 %s4343, 4
        %s4400 = smul.u32 %s4399, 16
        %s4401 = scalar_lea.vmem [#allocation2], %s4400
        %v4402 = vld [vmem:[%s4401] sm:$0xff]
        %v4403 = vld [vmem:[%s4401 + $0x8] sm:$0xff]
        %v4404 = vmul.f32 %v4402, %v4395
        %v4405 = vmul.f32 %v4403, %v4396
        %s4406 = scalar_lea.vmem [#allocation3], %s4400
        %v4407 = vld [vmem:[%s4406] sm:$0xff]
        %v4408 = vld [vmem:[%s4406 + $0x8] sm:$0xff]
        %v4409 = vadd.f32 %v4404, %v4407
        %v4410 = vadd.f32 %v4405, %v4408
        %4411 = vst.msk [vmem:[%s4406] sm:$0xff] %vm851, %v4409
        %4412 = vst.msk [vmem:[%s4406 + $0x8] sm:$0xff] %vm851, %v4410
        %s4413 = sadd.s32 %s4343, 5
        %s4414 = smul.u32 %s4413, 16
        %s4415 = scalar_lea.vmem [#allocation2], %s4414
        %v4416 = vld [vmem:[%s4415] sm:$0xff]
        %v4417 = vld [vmem:[%s4415 + $0x8] sm:$0xff]
        %v4418 = vmul.f32 %v4416, %v4409
        %v4419 = vmul.f32 %v4417, %v4410
        %s4420 = scalar_lea.vmem [#allocation3], %s4414
        %v4421 = vld [vmem:[%s4420] sm:$0xff]
        %v4422 = vld [vmem:[%s4420 + $0x8] sm:$0xff]
        %v4423 = vadd.f32 %v4418, %v4421
        %v4424 = vadd.f32 %v4419, %v4422
        %4425 = vst.msk [vmem:[%s4420] sm:$0xff] %vm851, %v4423
        %4426 = vst.msk [vmem:[%s4420 + $0x8] sm:$0xff] %vm851, %v4424
        %s4427 = sadd.s32 %s4343, 6
        %s4428 = smul.u32 %s4427, 16
        %s4429 = scalar_lea.vmem [#allocation2], %s4428
        %v4430 = vld [vmem:[%s4429] sm:$0xff]
        %v4431 = vld [vmem:[%s4429 + $0x8] sm:$0xff]
        %v4432 = vmul.f32 %v4430, %v4423
        %v4433 = vmul.f32 %v4431, %v4424
        %s4434 = scalar_lea.vmem [#allocation3], %s4428
        %v4435 = vld [vmem:[%s4434] sm:$0xff]
        %v4436 = vld [vmem:[%s4434 + $0x8] sm:$0xff]
        %v4437 = vadd.f32 %v4432, %v4435
        %v4438 = vadd.f32 %v4433, %v4436
        %4439 = vst.msk [vmem:[%s4434] sm:$0xff] %vm851, %v4437
        %4440 = vst.msk [vmem:[%s4434 + $0x8] sm:$0xff] %vm851, %v4438
        %s4441 = sadd.s32 %s4343, 7
        %s4442 = smul.u32 %s4441, 16
        %s4443 = scalar_lea.vmem [#allocation2], %s4442
        %v4444 = vld [vmem:[%s4443] sm:$0xff]
        %v4445 = vld [vmem:[%s4443 + $0x8] sm:$0xff]
        %v4446 = vmul.f32 %v4444, %v4437
        %v4447 = vmul.f32 %v4445, %v4438
        %s4448 = scalar_lea.vmem [#allocation3], %s4442
        %v4449 = vld [vmem:[%s4448] sm:$0xff]
        %v4450 = vld [vmem:[%s4448 + $0x8] sm:$0xff]
        %v4451 = vadd.f32 %v4446, %v4449
        %v4452 = vadd.f32 %v4447, %v4450
        %4453 = vst.msk [vmem:[%s4448] sm:$0xff] %vm851, %v4451
        %4454 = vst.msk [vmem:[%s4448 + $0x8] sm:$0xff] %vm851, %v4452
      $region65: #{tri_window_mamba_forward.4} parent=55 // loop_footer
        %s4340 = sadd.s32 1, %s4336
      $region66: #{tri_window_mamba_forward.4} parent=55 // loop_footer_branch
        %4335 = sbr.rel target = $region62
      $region67: #{tri_window_mamba_forward.4} parent=55 // loop_exit
        _
      %4455 = vst.msk [vmem:[#allocation4] sm:$0xff] %vm851, %v4341
      %4456 = vst.msk [vmem:[#allocation4 + $0x8] sm:$0xff] %vm851, %v4342
      %v4457 = vld [vmem:[#allocation3] sm:$0xff]
      %v4458 = vld [vmem:[#allocation3 + $0x8] sm:$0xff]
      %v4459 = vld [vmem:[#allocation3 + $0x10] sm:$0xff]
      %v4460 = vld [vmem:[#allocation3 + $0x18] sm:$0xff]
      %v4461 = vld [vmem:[#allocation3 + $0x20] sm:$0xff]
      %v4462 = vld [vmem:[#allocation3 + $0x28] sm:$0xff]
      %v4463 = vld [vmem:[#allocation3 + $0x30] sm:$0xff]
      %v4464 = vld [vmem:[#allocation3 + $0x38] sm:$0xff]
      %v4465 = vld [vmem:[#allocation3 + $0x40] sm:$0xff]
      %v4466 = vld [vmem:[#allocation3 + $0x48] sm:$0xff]
      %v4467 = vld [vmem:[#allocation3 + $0x50] sm:$0xff]
      %v4468 = vld [vmem:[#allocation3 + $0x58] sm:$0xff]
      %v4469 = vld [vmem:[#allocation3 + $0x60] sm:$0xff]
      %v4470 = vld [vmem:[#allocation3 + $0x68] sm:$0xff]
      %v4471 = vld [vmem:[#allocation3 + $0x70] sm:$0xff]
      %v4472 = vld [vmem:[#allocation3 + $0x78] sm:$0xff]
      %v4473 = vld [vmem:[#allocation3 + $0x80] sm:$0xff]
      %v4474 = vld [vmem:[#allocation3 + $0x88] sm:$0xff]
      %v4475 = vld [vmem:[#allocation3 + $0x90] sm:$0xff]
      %v4476 = vld [vmem:[#allocation3 + $0x98] sm:$0xff]
      %v4477 = vld [vmem:[#allocation3 + $0xa0] sm:$0xff]
      %v4478 = vld [vmem:[#allocation3 + $0xa8] sm:$0xff]
      %v4479 = vld [vmem:[#allocation3 + $0xb0] sm:$0xff]
      %v4480 = vld [vmem:[#allocation3 + $0xb8] sm:$0xff]
      %v4481 = vld [vmem:[#allocation3 + $0xc0] sm:$0xff]
      %v4482 = vld [vmem:[#allocation3 + $0xc8] sm:$0xff]
      %v4483 = vld [vmem:[#allocation3 + $0xd0] sm:$0xff]
      %v4484 = vld [vmem:[#allocation3 + $0xd8] sm:$0xff]
      %v4485 = vld [vmem:[#allocation3 + $0xe0] sm:$0xff]
      %v4486 = vld [vmem:[#allocation3 + $0xe8] sm:$0xff]
      %v4487 = vld [vmem:[#allocation3 + $0xf0] sm:$0xff]
      %v4488 = vld [vmem:[#allocation3 + $0xf8] sm:$0xff]
      %v4489 = vld [vmem:[#allocation3 + $0x100] sm:$0xff]
      %v4490 = vld [vmem:[#allocation3 + $0x108] sm:$0xff]
      %v4491 = vld [vmem:[#allocation3 + $0x110] sm:$0xff]
      %v4492 = vld [vmem:[#allocation3 + $0x118] sm:$0xff]
      %v4493 = vld [vmem:[#allocation3 + $0x120] sm:$0xff]
      %v4494 = vld [vmem:[#allocation3 + $0x128] sm:$0xff]
      %v4495 = vld [vmem:[#allocation3 + $0x130] sm:$0xff]
      %v4496 = vld [vmem:[#allocation3 + $0x138] sm:$0xff]
      %v4497 = vld [vmem:[#allocation3 + $0x140] sm:$0xff]
      %v4498 = vld [vmem:[#allocation3 + $0x148] sm:$0xff]
      %v4499 = vld [vmem:[#allocation3 + $0x150] sm:$0xff]
      %v4500 = vld [vmem:[#allocation3 + $0x158] sm:$0xff]
      %v4501 = vld [vmem:[#allocation3 + $0x160] sm:$0xff]
      %v4502 = vld [vmem:[#allocation3 + $0x168] sm:$0xff]
      %v4503 = vld [vmem:[#allocation3 + $0x170] sm:$0xff]
      %v4504 = vld [vmem:[#allocation3 + $0x178] sm:$0xff]
      %v4505 = vld [vmem:[#allocation3 + $0x180] sm:$0xff]
      %v4506 = vld [vmem:[#allocation3 + $0x188] sm:$0xff]
      %v4507 = vld [vmem:[#allocation3 + $0x190] sm:$0xff]
      %v4508 = vld [vmem:[#allocation3 + $0x198] sm:$0xff]
      %v4509 = vld [vmem:[#allocation3 + $0x1a0] sm:$0xff]
      %v4510 = vld [vmem:[#allocation3 + $0x1a8] sm:$0xff]
      %v4511 = vld [vmem:[#allocation3 + $0x1b0] sm:$0xff]
      %v4512 = vld [vmem:[#allocation3 + $0x1b8] sm:$0xff]
      %v4513 = vld [vmem:[#allocation3 + $0x1c0] sm:$0xff]
      %v4514 = vld [vmem:[#allocation3 + $0x1c8] sm:$0xff]
      %v4515 = vld [vmem:[#allocation3 + $0x1d0] sm:$0xff]
      %v4516 = vld [vmem:[#allocation3 + $0x1d8] sm:$0xff]
      %v4517 = vld [vmem:[#allocation3 + $0x1e0] sm:$0xff]
      %v4518 = vld [vmem:[#allocation3 + $0x1e8] sm:$0xff]
      %v4519 = vld [vmem:[#allocation3 + $0x1f0] sm:$0xff]
      %v4520 = vld [vmem:[#allocation3 + $0x1f8] sm:$0xff]
      %v4521 = vld [vmem:[#allocation3 + $0x200] sm:$0xff]
      %v4522 = vld [vmem:[#allocation3 + $0x208] sm:$0xff]
      %v4523 = vld [vmem:[#allocation3 + $0x210] sm:$0xff]
      %v4524 = vld [vmem:[#allocation3 + $0x218] sm:$0xff]
      %v4525 = vld [vmem:[#allocation3 + $0x220] sm:$0xff]
      %v4526 = vld [vmem:[#allocation3 + $0x228] sm:$0xff]
      %v4527 = vld [vmem:[#allocation3 + $0x230] sm:$0xff]
      %v4528 = vld [vmem:[#allocation3 + $0x238] sm:$0xff]
      %v4529 = vld [vmem:[#allocation3 + $0x240] sm:$0xff]
      %v4530 = vld [vmem:[#allocation3 + $0x248] sm:$0xff]
      %v4531 = vld [vmem:[#allocation3 + $0x250] sm:$0xff]
      %v4532 = vld [vmem:[#allocation3 + $0x258] sm:$0xff]
      %v4533 = vld [vmem:[#allocation3 + $0x260] sm:$0xff]
      %v4534 = vld [vmem:[#allocation3 + $0x268] sm:$0xff]
      %v4535 = vld [vmem:[#allocation3 + $0x270] sm:$0xff]
      %v4536 = vld [vmem:[#allocation3 + $0x278] sm:$0xff]
      %v4537 = vld [vmem:[#allocation3 + $0x280] sm:$0xff]
      %v4538 = vld [vmem:[#allocation3 + $0x288] sm:$0xff]
      %v4539 = vld [vmem:[#allocation3 + $0x290] sm:$0xff]
      %v4540 = vld [vmem:[#allocation3 + $0x298] sm:$0xff]
      %v4541 = vld [vmem:[#allocation3 + $0x2a0] sm:$0xff]
      %v4542 = vld [vmem:[#allocation3 + $0x2a8] sm:$0xff]
      %v4543 = vld [vmem:[#allocation3 + $0x2b0] sm:$0xff]
      %v4544 = vld [vmem:[#allocation3 + $0x2b8] sm:$0xff]
      %v4545 = vld [vmem:[#allocation3 + $0x2c0] sm:$0xff]
      %v4546 = vld [vmem:[#allocation3 + $0x2c8] sm:$0xff]
      %v4547 = vld [vmem:[#allocation3 + $0x2d0] sm:$0xff]
      %v4548 = vld [vmem:[#allocation3 + $0x2d8] sm:$0xff]
      %v4549 = vld [vmem:[#allocation3 + $0x2e0] sm:$0xff]
      %v4550 = vld [vmem:[#allocation3 + $0x2e8] sm:$0xff]
      %v4551 = vld [vmem:[#allocation3 + $0x2f0] sm:$0xff]
      %v4552 = vld [vmem:[#allocation3 + $0x2f8] sm:$0xff]
      %v4553 = vld [vmem:[#allocation3 + $0x300] sm:$0xff]
      %v4554 = vld [vmem:[#allocation3 + $0x308] sm:$0xff]
      %v4555 = vld [vmem:[#allocation3 + $0x310] sm:$0xff]
      %v4556 = vld [vmem:[#allocation3 + $0x318] sm:$0xff]
      %v4557 = vld [vmem:[#allocation3 + $0x320] sm:$0xff]
      %v4558 = vld [vmem:[#allocation3 + $0x328] sm:$0xff]
      %v4559 = vld [vmem:[#allocation3 + $0x330] sm:$0xff]
      %v4560 = vld [vmem:[#allocation3 + $0x338] sm:$0xff]
      %v4561 = vld [vmem:[#allocation3 + $0x340] sm:$0xff]
      %v4562 = vld [vmem:[#allocation3 + $0x348] sm:$0xff]
      %v4563 = vld [vmem:[#allocation3 + $0x350] sm:$0xff]
      %v4564 = vld [vmem:[#allocation3 + $0x358] sm:$0xff]
      %v4565 = vld [vmem:[#allocation3 + $0x360] sm:$0xff]
      %v4566 = vld [vmem:[#allocation3 + $0x368] sm:$0xff]
      %v4567 = vld [vmem:[#allocation3 + $0x370] sm:$0xff]
      %v4568 = vld [vmem:[#allocation3 + $0x378] sm:$0xff]
      %v4569 = vld [vmem:[#allocation3 + $0x380] sm:$0xff]
      %v4570 = vld [vmem:[#allocation3 + $0x388] sm:$0xff]
      %v4571 = vld [vmem:[#allocation3 + $0x390] sm:$0xff]
      %v4572 = vld [vmem:[#allocation3 + $0x398] sm:$0xff]
      %v4573 = vld [vmem:[#allocation3 + $0x3a0] sm:$0xff]
      %v4574 = vld [vmem:[#allocation3 + $0x3a8] sm:$0xff]
      %v4575 = vld [vmem:[#allocation3 + $0x3b0] sm:$0xff]
      %v4576 = vld [vmem:[#allocation3 + $0x3b8] sm:$0xff]
      %v4577 = vld [vmem:[#allocation3 + $0x3c0] sm:$0xff]
      %v4578 = vld [vmem:[#allocation3 + $0x3c8] sm:$0xff]
      %v4579 = vld [vmem:[#allocation3 + $0x3d0] sm:$0xff]
      %v4580 = vld [vmem:[#allocation3 + $0x3d8] sm:$0xff]
      %v4581 = vld [vmem:[#allocation3 + $0x3e0] sm:$0xff]
      %v4582 = vld [vmem:[#allocation3 + $0x3e8] sm:$0xff]
      %v4583 = vld [vmem:[#allocation3 + $0x3f0] sm:$0xff]
      %v4584 = vld [vmem:[#allocation3 + $0x3f8] sm:$0xff]
      %v4585 = vlaneseq
      %v4586 = vshrl.u32 %v4585, 7
      %v4587 = vsub.s32 0, %v4586
      %v4588 = vrot.slane %v1095, %v4587
      %4590 = vbcast.lane.b32.xlu0 %v4588, 256
      %v4591 = vpop.permute.xlu0 %4590
      %s4593 = sor.u32 256, 8
      %4594 = vbcast.lane.b32.xlu0 %v4588, %s4593
      %v4595 = vpop.permute.xlu0 %4594
      %v4596 = vlaneseq
      %v4597 = vshrl.u32 %v4596, 7
      %v4598 = vsub.s32 1, %v4597
      %v4599 = vrot.slane %v1095, %v4598
      %4601 = vbcast.lane.b32.xlu0 %v4599, 256
      %v4602 = vpop.permute.xlu0 %4601
      %s4604 = sor.u32 256, 8
      %4605 = vbcast.lane.b32.xlu0 %v4599, %s4604
      %v4606 = vpop.permute.xlu0 %4605
      %v4607 = vlaneseq
      %v4608 = vshrl.u32 %v4607, 7
      %v4609 = vsub.s32 2, %v4608
      %v4610 = vrot.slane %v1095, %v4609
      %4612 = vbcast.lane.b32.xlu0 %v4610, 256
      %v4613 = vpop.permute.xlu0 %4612
      %s4615 = sor.u32 256, 8
      %4616 = vbcast.lane.b32.xlu0 %v4610, %s4615
      %v4617 = vpop.permute.xlu0 %4616
      %v4618 = vlaneseq
      %v4619 = vshrl.u32 %v4618, 7
      %v4620 = vsub.s32 3, %v4619
      %v4621 = vrot.slane %v1095, %v4620
      %4623 = vbcast.lane.b32.xlu0 %v4621, 256
      %v4624 = vpop.permute.xlu0 %4623
      %s4626 = sor.u32 256, 8
      %4627 = vbcast.lane.b32.xlu0 %v4621, %s4626
      %v4628 = vpop.permute.xlu0 %4627
      %v4629 = vlaneseq
      %v4630 = vshrl.u32 %v4629, 7
      %v4631 = vsub.s32 4, %v4630
      %v4632 = vrot.slane %v1095, %v4631
      %4634 = vbcast.lane.b32.xlu0 %v4632, 256
      %v4635 = vpop.permute.xlu0 %4634
      %s4637 = sor.u32 256, 8
      %4638 = vbcast.lane.b32.xlu0 %v4632, %s4637
      %v4639 = vpop.permute.xlu0 %4638
      %v4640 = vlaneseq
      %v4641 = vshrl.u32 %v4640, 7
      %v4642 = vsub.s32 5, %v4641
      %v4643 = vrot.slane %v1095, %v4642
      %4645 = vbcast.lane.b32.xlu0 %v4643, 256
      %v4646 = vpop.permute.xlu0 %4645
      %s4648 = sor.u32 256, 8
      %4649 = vbcast.lane.b32.xlu0 %v4643, %s4648
      %v4650 = vpop.permute.xlu0 %4649
      %v4651 = vlaneseq
      %v4652 = vshrl.u32 %v4651, 7
      %v4653 = vsub.s32 6, %v4652
      %v4654 = vrot.slane %v1095, %v4653
      %4656 = vbcast.lane.b32.xlu0 %v4654, 256
      %v4657 = vpop.permute.xlu0 %4656
      %s4659 = sor.u32 256, 8
      %4660 = vbcast.lane.b32.xlu0 %v4654, %s4659
      %v4661 = vpop.permute.xlu0 %4660
      %v4662 = vlaneseq
      %v4663 = vshrl.u32 %v4662, 7
      %v4664 = vsub.s32 7, %v4663
      %v4665 = vrot.slane %v1095, %v4664
      %4667 = vbcast.lane.b32.xlu0 %v4665, 256
      %v4668 = vpop.permute.xlu0 %4667
      %s4670 = sor.u32 256, 8
      %4671 = vbcast.lane.b32.xlu0 %v4665, %s4670
      %v4672 = vpop.permute.xlu0 %4671
      %v4673 = vlaneseq
      %v4674 = vshrl.u32 %v4673, 7
      %v4675 = vsub.s32 0, %v4674
      %v4676 = vrot.slane %v1098, %v4675
      %4678 = vbcast.lane.b32.xlu0 %v4676, 256
      %v4679 = vpop.permute.xlu0 %4678
      %s4681 = sor.u32 256, 8
      %4682 = vbcast.lane.b32.xlu0 %v4676, %s4681
      %v4683 = vpop.permute.xlu0 %4682
      %v4684 = vlaneseq
      %v4685 = vshrl.u32 %v4684, 7
      %v4686 = vsub.s32 1, %v4685
      %v4687 = vrot.slane %v1098, %v4686
      %4689 = vbcast.lane.b32.xlu0 %v4687, 256
      %v4690 = vpop.permute.xlu0 %4689
      %s4692 = sor.u32 256, 8
      %4693 = vbcast.lane.b32.xlu0 %v4687, %s4692
      %v4694 = vpop.permute.xlu0 %4693
      %v4695 = vlaneseq
      %v4696 = vshrl.u32 %v4695, 7
      %v4697 = vsub.s32 2, %v4696
      %v4698 = vrot.slane %v1098, %v4697
      %4700 = vbcast.lane.b32.xlu0 %v4698, 256
      %v4701 = vpop.permute.xlu0 %4700
      %s4703 = sor.u32 256, 8
      %4704 = vbcast.lane.b32.xlu0 %v4698, %s4703
      %v4705 = vpop.permute.xlu0 %4704
      %v4706 = vlaneseq
      %v4707 = vshrl.u32 %v4706, 7
      %v4708 = vsub.s32 3, %v4707
      %v4709 = vrot.slane %v1098, %v4708
      %4711 = vbcast.lane.b32.xlu0 %v4709, 256
      %v4712 = vpop.permute.xlu0 %4711
      %s4714 = sor.u32 256, 8
      %4715 = vbcast.lane.b32.xlu0 %v4709, %s4714
      %v4716 = vpop.permute.xlu0 %4715
      %v4717 = vlaneseq
      %v4718 = vshrl.u32 %v4717, 7
      %v4719 = vsub.s32 4, %v4718
      %v4720 = vrot.slane %v1098, %v4719
      %4722 = vbcast.lane.b32.xlu0 %v4720, 256
      %v4723 = vpop.permute.xlu0 %4722
      %s4725 = sor.u32 256, 8
      %4726 = vbcast.lane.b32.xlu0 %v4720, %s4725
      %v4727 = vpop.permute.xlu0 %4726
      %v4728 = vlaneseq
      %v4729 = vshrl.u32 %v4728, 7
      %v4730 = vsub.s32 5, %v4729
      %v4731 = vrot.slane %v1098, %v4730
      %4733 = vbcast.lane.b32.xlu0 %v4731, 256
      %v4734 = vpop.permute.xlu0 %4733
      %s4736 = sor.u32 256, 8
      %4737 = vbcast.lane.b32.xlu0 %v4731, %s4736
      %v4738 = vpop.permute.xlu0 %4737
      %v4739 = vlaneseq
      %v4740 = vshrl.u32 %v4739, 7
      %v4741 = vsub.s32 6, %v4740
      %v4742 = vrot.slane %v1098, %v4741
      %4744 = vbcast.lane.b32.xlu0 %v4742, 256
      %v4745 = vpop.permute.xlu0 %4744
      %s4747 = sor.u32 256, 8
      %4748 = vbcast.lane.b32.xlu0 %v4742, %s4747
      %v4749 = vpop.permute.xlu0 %4748
      %v4750 = vlaneseq
      %v4751 = vshrl.u32 %v4750, 7
      %v4752 = vsub.s32 7, %v4751
      %v4753 = vrot.slane %v1098, %v4752
      %4755 = vbcast.lane.b32.xlu0 %v4753, 256
      %v4756 = vpop.permute.xlu0 %4755
      %s4758 = sor.u32 256, 8
      %4759 = vbcast.lane.b32.xlu0 %v4753, %s4758
      %v4760 = vpop.permute.xlu0 %4759
      %v4761 = vlaneseq
      %v4762 = vshrl.u32 %v4761, 7
      %v4763 = vsub.s32 0, %v4762
      %v4764 = vrot.slane %v1103, %v4763
      %4766 = vbcast.lane.b32.xlu0 %v4764, 256
      %v4767 = vpop.permute.xlu0 %4766
      %s4769 = sor.u32 256, 8
      %4770 = vbcast.lane.b32.xlu0 %v4764, %s4769
      %v4771 = vpop.permute.xlu0 %4770
      %v4772 = vlaneseq
      %v4773 = vshrl.u32 %v4772, 7
      %v4774 = vsub.s32 1, %v4773
      %v4775 = vrot.slane %v1103, %v4774
      %4777 = vbcast.lane.b32.xlu0 %v4775, 256
      %v4778 = vpop.permute.xlu0 %4777
      %s4780 = sor.u32 256, 8
      %4781 = vbcast.lane.b32.xlu0 %v4775, %s4780
      %v4782 = vpop.permute.xlu0 %4781
      %v4783 = vlaneseq
      %v4784 = vshrl.u32 %v4783, 7
      %v4785 = vsub.s32 2, %v4784
      %v4786 = vrot.slane %v1103, %v4785
      %4788 = vbcast.lane.b32.xlu0 %v4786, 256
      %v4789 = vpop.permute.xlu0 %4788
      %s4791 = sor.u32 256, 8
      %4792 = vbcast.lane.b32.xlu0 %v4786, %s4791
      %v4793 = vpop.permute.xlu0 %4792
      %v4794 = vlaneseq
      %v4795 = vshrl.u32 %v4794, 7
      %v4796 = vsub.s32 3, %v4795
      %v4797 = vrot.slane %v1103, %v4796
      %4799 = vbcast.lane.b32.xlu0 %v4797, 256
      %v4800 = vpop.permute.xlu0 %4799
      %s4802 = sor.u32 256, 8
      %4803 = vbcast.lane.b32.xlu0 %v4797, %s4802
      %v4804 = vpop.permute.xlu0 %4803
      %v4805 = vlaneseq
      %v4806 = vshrl.u32 %v4805, 7
      %v4807 = vsub.s32 4, %v4806
      %v4808 = vrot.slane %v1103, %v4807
      %4810 = vbcast.lane.b32.xlu0 %v4808, 256
      %v4811 = vpop.permute.xlu0 %4810
      %s4813 = sor.u32 256, 8
      %4814 = vbcast.lane.b32.xlu0 %v4808, %s4813
      %v4815 = vpop.permute.xlu0 %4814
      %v4816 = vlaneseq
      %v4817 = vshrl.u32 %v4816, 7
      %v4818 = vsub.s32 5, %v4817
      %v4819 = vrot.slane %v1103, %v4818
      %4821 = vbcast.lane.b32.xlu0 %v4819, 256
      %v4822 = vpop.permute.xlu0 %4821
      %s4824 = sor.u32 256, 8
      %4825 = vbcast.lane.b32.xlu0 %v4819, %s4824
      %v4826 = vpop.permute.xlu0 %4825
      %v4827 = vlaneseq
      %v4828 = vshrl.u32 %v4827, 7
      %v4829 = vsub.s32 6, %v4828
      %v4830 = vrot.slane %v1103, %v4829
      %4832 = vbcast.lane.b32.xlu0 %v4830, 256
      %v4833 = vpop.permute.xlu0 %4832
      %s4835 = sor.u32 256, 8
      %4836 = vbcast.lane.b32.xlu0 %v4830, %s4835
      %v4837 = vpop.permute.xlu0 %4836
      %v4838 = vlaneseq
      %v4839 = vshrl.u32 %v4838, 7
      %v4840 = vsub.s32 7, %v4839
      %v4841 = vrot.slane %v1103, %v4840
      %4843 = vbcast.lane.b32.xlu0 %v4841, 256
      %v4844 = vpop.permute.xlu0 %4843
      %s4846 = sor.u32 256, 8
      %4847 = vbcast.lane.b32.xlu0 %v4841, %s4846
      %v4848 = vpop.permute.xlu0 %4847
      %v4849 = vlaneseq
      %v4850 = vshrl.u32 %v4849, 7
      %v4851 = vsub.s32 0, %v4850
      %v4852 = vrot.slane %v1106, %v4851
      %4854 = vbcast.lane.b32.xlu0 %v4852, 256
      %v4855 = vpop.permute.xlu0 %4854
      %s4857 = sor.u32 256, 8
      %4858 = vbcast.lane.b32.xlu0 %v4852, %s4857
      %v4859 = vpop.permute.xlu0 %4858
      %v4860 = vlaneseq
      %v4861 = vshrl.u32 %v4860, 7
      %v4862 = vsub.s32 1, %v4861
      %v4863 = vrot.slane %v1106, %v4862
      %4865 = vbcast.lane.b32.xlu0 %v4863, 256
      %v4866 = vpop.permute.xlu0 %4865
      %s4868 = sor.u32 256, 8
      %4869 = vbcast.lane.b32.xlu0 %v4863, %s4868
      %v4870 = vpop.permute.xlu0 %4869
      %v4871 = vlaneseq
      %v4872 = vshrl.u32 %v4871, 7
      %v4873 = vsub.s32 2, %v4872
      %v4874 = vrot.slane %v1106, %v4873
      %4876 = vbcast.lane.b32.xlu0 %v4874, 256
      %v4877 = vpop.permute.xlu0 %4876
      %s4879 = sor.u32 256, 8
      %4880 = vbcast.lane.b32.xlu0 %v4874, %s4879
      %v4881 = vpop.permute.xlu0 %4880
      %v4882 = vlaneseq
      %v4883 = vshrl.u32 %v4882, 7
      %v4884 = vsub.s32 3, %v4883
      %v4885 = vrot.slane %v1106, %v4884
      %4887 = vbcast.lane.b32.xlu0 %v4885, 256
      %v4888 = vpop.permute.xlu0 %4887
      %s4890 = sor.u32 256, 8
      %4891 = vbcast.lane.b32.xlu0 %v4885, %s4890
      %v4892 = vpop.permute.xlu0 %4891
      %v4893 = vlaneseq
      %v4894 = vshrl.u32 %v4893, 7
      %v4895 = vsub.s32 4, %v4894
      %v4896 = vrot.slane %v1106, %v4895
      %4898 = vbcast.lane.b32.xlu0 %v4896, 256
      %v4899 = vpop.permute.xlu0 %4898
      %s4901 = sor.u32 256, 8
      %4902 = vbcast.lane.b32.xlu0 %v4896, %s4901
      %v4903 = vpop.permute.xlu0 %4902
      %v4904 = vlaneseq
      %v4905 = vshrl.u32 %v4904, 7
      %v4906 = vsub.s32 5, %v4905
      %v4907 = vrot.slane %v1106, %v4906
      %4909 = vbcast.lane.b32.xlu0 %v4907, 256
      %v4910 = vpop.permute.xlu0 %4909
      %s4912 = sor.u32 256, 8
      %4913 = vbcast.lane.b32.xlu0 %v4907, %s4912
      %v4914 = vpop.permute.xlu0 %4913
      %v4915 = vlaneseq
      %v4916 = vshrl.u32 %v4915, 7
      %v4917 = vsub.s32 6, %v4916
      %v4918 = vrot.slane %v1106, %v4917
      %4920 = vbcast.lane.b32.xlu0 %v4918, 256
      %v4921 = vpop.permute.xlu0 %4920
      %s4923 = sor.u32 256, 8
      %4924 = vbcast.lane.b32.xlu0 %v4918, %s4923
      %v4925 = vpop.permute.xlu0 %4924
      %v4926 = vlaneseq
      %v4927 = vshrl.u32 %v4926, 7
      %v4928 = vsub.s32 7, %v4927
      %v4929 = vrot.slane %v1106, %v4928
      %4931 = vbcast.lane.b32.xlu0 %v4929, 256
      %v4932 = vpop.permute.xlu0 %4931
      %s4934 = sor.u32 256, 8
      %4935 = vbcast.lane.b32.xlu0 %v4929, %s4934
      %v4936 = vpop.permute.xlu0 %4935
      %v4937 = vlaneseq
      %v4938 = vshrl.u32 %v4937, 7
      %v4939 = vsub.s32 0, %v4938
      %v4940 = vrot.slane %v1111, %v4939
      %4942 = vbcast.lane.b32.xlu0 %v4940, 256
      %v4943 = vpop.permute.xlu0 %4942
      %s4945 = sor.u32 256, 8
      %4946 = vbcast.lane.b32.xlu0 %v4940, %s4945
      %v4947 = vpop.permute.xlu0 %4946
      %v4948 = vlaneseq
      %v4949 = vshrl.u32 %v4948, 7
      %v4950 = vsub.s32 1, %v4949
      %v4951 = vrot.slane %v1111, %v4950
      %4953 = vbcast.lane.b32.xlu0 %v4951, 256
      %v4954 = vpop.permute.xlu0 %4953
      %s4956 = sor.u32 256, 8
      %4957 = vbcast.lane.b32.xlu0 %v4951, %s4956
      %v4958 = vpop.permute.xlu0 %4957
      %v4959 = vlaneseq
      %v4960 = vshrl.u32 %v4959, 7
      %v4961 = vsub.s32 2, %v4960
      %v4962 = vrot.slane %v1111, %v4961
      %4964 = vbcast.lane.b32.xlu0 %v4962, 256
      %v4965 = vpop.permute.xlu0 %4964
      %s4967 = sor.u32 256, 8
      %4968 = vbcast.lane.b32.xlu0 %v4962, %s4967
      %v4969 = vpop.permute.xlu0 %4968
      %v4970 = vlaneseq
      %v4971 = vshrl.u32 %v4970, 7
      %v4972 = vsub.s32 3, %v4971
      %v4973 = vrot.slane %v1111, %v4972
      %4975 = vbcast.lane.b32.xlu0 %v4973, 256
      %v4976 = vpop.permute.xlu0 %4975
      %s4978 = sor.u32 256, 8
      %4979 = vbcast.lane.b32.xlu0 %v4973, %s4978
      %v4980 = vpop.permute.xlu0 %4979
      %v4981 = vlaneseq
      %v4982 = vshrl.u32 %v4981, 7
      %v4983 = vsub.s32 4, %v4982
      %v4984 = vrot.slane %v1111, %v4983
      %4986 = vbcast.lane.b32.xlu0 %v4984, 256
      %v4987 = vpop.permute.xlu0 %4986
      %s4989 = sor.u32 256, 8
      %4990 = vbcast.lane.b32.xlu0 %v4984, %s4989
      %v4991 = vpop.permute.xlu0 %4990
      %v4992 = vlaneseq
      %v4993 = vshrl.u32 %v4992, 7
      %v4994 = vsub.s32 5, %v4993
      %v4995 = vrot.slane %v1111, %v4994
      %4997 = vbcast.lane.b32.xlu0 %v4995, 256
      %v4998 = vpop.permute.xlu0 %4997
      %s5000 = sor.u32 256, 8
      %5001 = vbcast.lane.b32.xlu0 %v4995, %s5000
      %v5002 = vpop.permute.xlu0 %5001
      %v5003 = vlaneseq
      %v5004 = vshrl.u32 %v5003, 7
      %v5005 = vsub.s32 6, %v5004
      %v5006 = vrot.slane %v1111, %v5005
      %5008 = vbcast.lane.b32.xlu0 %v5006, 256
      %v5009 = vpop.permute.xlu0 %5008
      %s5011 = sor.u32 256, 8
      %5012 = vbcast.lane.b32.xlu0 %v5006, %s5011
      %v5013 = vpop.permute.xlu0 %5012
      %v5014 = vlaneseq
      %v5015 = vshrl.u32 %v5014, 7
      %v5016 = vsub.s32 7, %v5015
      %v5017 = vrot.slane %v1111, %v5016
      %5019 = vbcast.lane.b32.xlu0 %v5017, 256
      %v5020 = vpop.permute.xlu0 %5019
      %s5022 = sor.u32 256, 8
      %5023 = vbcast.lane.b32.xlu0 %v5017, %s5022
      %v5024 = vpop.permute.xlu0 %5023
      %v5025 = vlaneseq
      %v5026 = vshrl.u32 %v5025, 7
      %v5027 = vsub.s32 0, %v5026
      %v5028 = vrot.slane %v1114, %v5027
      %5030 = vbcast.lane.b32.xlu0 %v5028, 256
      %v5031 = vpop.permute.xlu0 %5030
      %s5033 = sor.u32 256, 8
      %5034 = vbcast.lane.b32.xlu0 %v5028, %s5033
      %v5035 = vpop.permute.xlu0 %5034
      %v5036 = vlaneseq
      %v5037 = vshrl.u32 %v5036, 7
      %v5038 = vsub.s32 1, %v5037
      %v5039 = vrot.slane %v1114, %v5038
      %5041 = vbcast.lane.b32.xlu0 %v5039, 256
      %v5042 = vpop.permute.xlu0 %5041
      %s5044 = sor.u32 256, 8
      %5045 = vbcast.lane.b32.xlu0 %v5039, %s5044
      %v5046 = vpop.permute.xlu0 %5045
      %v5047 = vlaneseq
      %v5048 = vshrl.u32 %v5047, 7
      %v5049 = vsub.s32 2, %v5048
      %v5050 = vrot.slane %v1114, %v5049
      %5052 = vbcast.lane.b32.xlu0 %v5050, 256
      %v5053 = vpop.permute.xlu0 %5052
      %s5055 = sor.u32 256, 8
      %5056 = vbcast.lane.b32.xlu0 %v5050, %s5055
      %v5057 = vpop.permute.xlu0 %5056
      %v5058 = vlaneseq
      %v5059 = vshrl.u32 %v5058, 7
      %v5060 = vsub.s32 3, %v5059
      %v5061 = vrot.slane %v1114, %v5060
      %5063 = vbcast.lane.b32.xlu0 %v5061, 256
      %v5064 = vpop.permute.xlu0 %5063
      %s5066 = sor.u32 256, 8
      %5067 = vbcast.lane.b32.xlu0 %v5061, %s5066
      %v5068 = vpop.permute.xlu0 %5067
      %v5069 = vlaneseq
      %v5070 = vshrl.u32 %v5069, 7
      %v5071 = vsub.s32 4, %v5070
      %v5072 = vrot.slane %v1114, %v5071
      %5074 = vbcast.lane.b32.xlu0 %v5072, 256
      %v5075 = vpop.permute.xlu0 %5074
      %s5077 = sor.u32 256, 8
      %5078 = vbcast.lane.b32.xlu0 %v5072, %s5077
      %v5079 = vpop.permute.xlu0 %5078
      %v5080 = vlaneseq
      %v5081 = vshrl.u32 %v5080, 7
      %v5082 = vsub.s32 5, %v5081
      %v5083 = vrot.slane %v1114, %v5082
      %5085 = vbcast.lane.b32.xlu0 %v5083, 256
      %v5086 = vpop.permute.xlu0 %5085
      %s5088 = sor.u32 256, 8
      %5089 = vbcast.lane.b32.xlu0 %v5083, %s5088
      %v5090 = vpop.permute.xlu0 %5089
      %v5091 = vlaneseq
      %v5092 = vshrl.u32 %v5091, 7
      %v5093 = vsub.s32 6, %v5092
      %v5094 = vrot.slane %v1114, %v5093
      %5096 = vbcast.lane.b32.xlu0 %v5094, 256
      %v5097 = vpop.permute.xlu0 %5096
      %s5099 = sor.u32 256, 8
      %5100 = vbcast.lane.b32.xlu0 %v5094, %s5099
      %v5101 = vpop.permute.xlu0 %5100
      %v5102 = vlaneseq
      %v5103 = vshrl.u32 %v5102, 7
      %v5104 = vsub.s32 7, %v5103
      %v5105 = vrot.slane %v1114, %v5104
      %5107 = vbcast.lane.b32.xlu0 %v5105, 256
      %v5108 = vpop.permute.xlu0 %5107
      %s5110 = sor.u32 256, 8
      %5111 = vbcast.lane.b32.xlu0 %v5105, %s5110
      %v5112 = vpop.permute.xlu0 %5111
      %v5113 = vlaneseq
      %v5114 = vshrl.u32 %v5113, 7
      %v5115 = vsub.s32 0, %v5114
      %v5116 = vrot.slane %v1119, %v5115
      %5118 = vbcast.lane.b32.xlu0 %v5116, 256
      %v5119 = vpop.permute.xlu0 %5118
      %s5121 = sor.u32 256, 8
      %5122 = vbcast.lane.b32.xlu0 %v5116, %s5121
      %v5123 = vpop.permute.xlu0 %5122
      %v5124 = vlaneseq
      %v5125 = vshrl.u32 %v5124, 7
      %v5126 = vsub.s32 1, %v5125
      %v5127 = vrot.slane %v1119, %v5126
      %5129 = vbcast.lane.b32.xlu0 %v5127, 256
      %v5130 = vpop.permute.xlu0 %5129
      %s5132 = sor.u32 256, 8
      %5133 = vbcast.lane.b32.xlu0 %v5127, %s5132
      %v5134 = vpop.permute.xlu0 %5133
      %v5135 = vlaneseq
      %v5136 = vshrl.u32 %v5135, 7
      %v5137 = vsub.s32 2, %v5136
      %v5138 = vrot.slane %v1119, %v5137
      %5140 = vbcast.lane.b32.xlu0 %v5138, 256
      %v5141 = vpop.permute.xlu0 %5140
      %s5143 = sor.u32 256, 8
      %5144 = vbcast.lane.b32.xlu0 %v5138, %s5143
      %v5145 = vpop.permute.xlu0 %5144
      %v5146 = vlaneseq
      %v5147 = vshrl.u32 %v5146, 7
      %v5148 = vsub.s32 3, %v5147
      %v5149 = vrot.slane %v1119, %v5148
      %5151 = vbcast.lane.b32.xlu0 %v5149, 256
      %v5152 = vpop.permute.xlu0 %5151
      %s5154 = sor.u32 256, 8
      %5155 = vbcast.lane.b32.xlu0 %v5149, %s5154
      %v5156 = vpop.permute.xlu0 %5155
      %v5157 = vlaneseq
      %v5158 = vshrl.u32 %v5157, 7
      %v5159 = vsub.s32 4, %v5158
      %v5160 = vrot.slane %v1119, %v5159
      %5162 = vbcast.lane.b32.xlu0 %v5160, 256
      %v5163 = vpop.permute.xlu0 %5162
      %s5165 = sor.u32 256, 8
      %5166 = vbcast.lane.b32.xlu0 %v5160, %s5165
      %v5167 = vpop.permute.xlu0 %5166
      %v5168 = vlaneseq
      %v5169 = vshrl.u32 %v5168, 7
      %v5170 = vsub.s32 5, %v5169
      %v5171 = vrot.slane %v1119, %v5170
      %5173 = vbcast.lane.b32.xlu0 %v5171, 256
      %v5174 = vpop.permute.xlu0 %5173
      %s5176 = sor.u32 256, 8
      %5177 = vbcast.lane.b32.xlu0 %v5171, %s5176
      %v5178 = vpop.permute.xlu0 %5177
      %v5179 = vlaneseq
      %v5180 = vshrl.u32 %v5179, 7
      %v5181 = vsub.s32 6, %v5180
      %v5182 = vrot.slane %v1119, %v5181
      %5184 = vbcast.lane.b32.xlu0 %v5182, 256
      %v5185 = vpop.permute.xlu0 %5184
      %s5187 = sor.u32 256, 8
      %5188 = vbcast.lane.b32.xlu0 %v5182, %s5187
      %v5189 = vpop.permute.xlu0 %5188
      %v5190 = vlaneseq
      %v5191 = vshrl.u32 %v5190, 7
      %v5192 = vsub.s32 7, %v5191
      %v5193 = vrot.slane %v1119, %v5192
      %5195 = vbcast.lane.b32.xlu0 %v5193, 256
      %v5196 = vpop.permute.xlu0 %5195
      %s5198 = sor.u32 256, 8
      %5199 = vbcast.lane.b32.xlu0 %v5193, %s5198
      %v5200 = vpop.permute.xlu0 %5199
      %v5201 = vlaneseq
      %v5202 = vshrl.u32 %v5201, 7
      %v5203 = vsub.s32 0, %v5202
      %v5204 = vrot.slane %v1122, %v5203
      %5206 = vbcast.lane.b32.xlu0 %v5204, 256
      %v5207 = vpop.permute.xlu0 %5206
      %s5209 = sor.u32 256, 8
      %5210 = vbcast.lane.b32.xlu0 %v5204, %s5209
      %v5211 = vpop.permute.xlu0 %5210
      %v5212 = vlaneseq
      %v5213 = vshrl.u32 %v5212, 7
      %v5214 = vsub.s32 1, %v5213
      %v5215 = vrot.slane %v1122, %v5214
      %5217 = vbcast.lane.b32.xlu0 %v5215, 256
      %v5218 = vpop.permute.xlu0 %5217
      %s5220 = sor.u32 256, 8
      %5221 = vbcast.lane.b32.xlu0 %v5215, %s5220
      %v5222 = vpop.permute.xlu0 %5221
      %v5223 = vlaneseq
      %v5224 = vshrl.u32 %v5223, 7
      %v5225 = vsub.s32 2, %v5224
      %v5226 = vrot.slane %v1122, %v5225
      %5228 = vbcast.lane.b32.xlu0 %v5226, 256
      %v5229 = vpop.permute.xlu0 %5228
      %s5231 = sor.u32 256, 8
      %5232 = vbcast.lane.b32.xlu0 %v5226, %s5231
      %v5233 = vpop.permute.xlu0 %5232
      %v5234 = vlaneseq
      %v5235 = vshrl.u32 %v5234, 7
      %v5236 = vsub.s32 3, %v5235
      %v5237 = vrot.slane %v1122, %v5236
      %5239 = vbcast.lane.b32.xlu0 %v5237, 256
      %v5240 = vpop.permute.xlu0 %5239
      %s5242 = sor.u32 256, 8
      %5243 = vbcast.lane.b32.xlu0 %v5237, %s5242
      %v5244 = vpop.permute.xlu0 %5243
      %v5245 = vlaneseq
      %v5246 = vshrl.u32 %v5245, 7
      %v5247 = vsub.s32 4, %v5246
      %v5248 = vrot.slane %v1122, %v5247
      %5250 = vbcast.lane.b32.xlu0 %v5248, 256
      %v5251 = vpop.permute.xlu0 %5250
      %s5253 = sor.u32 256, 8
      %5254 = vbcast.lane.b32.xlu0 %v5248, %s5253
      %v5255 = vpop.permute.xlu0 %5254
      %v5256 = vlaneseq
      %v5257 = vshrl.u32 %v5256, 7
      %v5258 = vsub.s32 5, %v5257
      %v5259 = vrot.slane %v1122, %v5258
      %5261 = vbcast.lane.b32.xlu0 %v5259, 256
      %v5262 = vpop.permute.xlu0 %5261
      %s5264 = sor.u32 256, 8
      %5265 = vbcast.lane.b32.xlu0 %v5259, %s5264
      %v5266 = vpop.permute.xlu0 %5265
      %v5267 = vlaneseq
      %v5268 = vshrl.u32 %v5267, 7
      %v5269 = vsub.s32 6, %v5268
      %v5270 = vrot.slane %v1122, %v5269
      %5272 = vbcast.lane.b32.xlu0 %v5270, 256
      %v5273 = vpop.permute.xlu0 %5272
      %s5275 = sor.u32 256, 8
      %5276 = vbcast.lane.b32.xlu0 %v5270, %s5275
      %v5277 = vpop.permute.xlu0 %5276
      %v5278 = vlaneseq
      %v5279 = vshrl.u32 %v5278, 7
      %v5280 = vsub.s32 7, %v5279
      %v5281 = vrot.slane %v1122, %v5280
      %5283 = vbcast.lane.b32.xlu0 %v5281, 256
      %v5284 = vpop.permute.xlu0 %5283
      %s5286 = sor.u32 256, 8
      %5287 = vbcast.lane.b32.xlu0 %v5281, %s5286
      %v5288 = vpop.permute.xlu0 %5287
      %v5289 = vmul.f32 %v4457, %v4591
      %v5290 = vmul.f32 %v4458, %v4595
      %v5291 = vmul.f32 %v4459, %v4602
      %v5292 = vmul.f32 %v4460, %v4606
      %v5293 = vmul.f32 %v4461, %v4613
      %v5294 = vmul.f32 %v4462, %v4617
      %v5295 = vmul.f32 %v4463, %v4624
      %v5296 = vmul.f32 %v4464, %v4628
      %v5297 = vmul.f32 %v4465, %v4635
      %v5298 = vmul.f32 %v4466, %v4639
      %v5299 = vmul.f32 %v4467, %v4646
      %v5300 = vmul.f32 %v4468, %v4650
      %v5301 = vmul.f32 %v4469, %v4657
      %v5302 = vmul.f32 %v4470, %v4661
      %v5303 = vmul.f32 %v4471, %v4668
      %v5304 = vmul.f32 %v4472, %v4672
      %v5305 = vmul.f32 %v4473, %v4679
      %v5306 = vmul.f32 %v4474, %v4683
      %v5307 = vmul.f32 %v4475, %v4690
      %v5308 = vmul.f32 %v4476, %v4694
      %v5309 = vmul.f32 %v4477, %v4701
      %v5310 = vmul.f32 %v4478, %v4705
      %v5311 = vmul.f32 %v4479, %v4712
      %v5312 = vmul.f32 %v4480, %v4716
      %v5313 = vmul.f32 %v4481, %v4723
      %v5314 = vmul.f32 %v4482, %v4727
      %v5315 = vmul.f32 %v4483, %v4734
      %v5316 = vmul.f32 %v4484, %v4738
      %v5317 = vmul.f32 %v4485, %v4745
      %v5318 = vmul.f32 %v4486, %v4749
      %v5319 = vmul.f32 %v4487, %v4756
      %v5320 = vmul.f32 %v4488, %v4760
      %v5321 = vmul.f32 %v4489, %v4767
      %v5322 = vmul.f32 %v4490, %v4771
      %v5323 = vmul.f32 %v4491, %v4778
      %v5324 = vmul.f32 %v4492, %v4782
      %v5325 = vmul.f32 %v4493, %v4789
      %v5326 = vmul.f32 %v4494, %v4793
      %v5327 = vmul.f32 %v4495, %v4800
      %v5328 = vmul.f32 %v4496, %v4804
      %v5329 = vmul.f32 %v4497, %v4811
      %v5330 = vmul.f32 %v4498, %v4815
      %v5331 = vmul.f32 %v4499, %v4822
      %v5332 = vmul.f32 %v4500, %v4826
      %v5333 = vmul.f32 %v4501, %v4833
      %v5334 = vmul.f32 %v4502, %v4837
      %v5335 = vmul.f32 %v4503, %v4844
      %v5336 = vmul.f32 %v4504, %v4848
      %v5337 = vmul.f32 %v4505, %v4855
      %v5338 = vmul.f32 %v4506, %v4859
      %v5339 = vmul.f32 %v4507, %v4866
      %v5340 = vmul.f32 %v4508, %v4870
      %v5341 = vmul.f32 %v4509, %v4877
      %v5342 = vmul.f32 %v4510, %v4881
      %v5343 = vmul.f32 %v4511, %v4888
      %v5344 = vmul.f32 %v4512, %v4892
      %v5345 = vmul.f32 %v4513, %v4899
      %v5346 = vmul.f32 %v4514, %v4903
      %v5347 = vmul.f32 %v4515, %v4910
      %v5348 = vmul.f32 %v4516, %v4914
      %v5349 = vmul.f32 %v4517, %v4921
      %v5350 = vmul.f32 %v4518, %v4925
      %v5351 = vmul.f32 %v4519, %v4932
      %v5352 = vmul.f32 %v4520, %v4936
      %v5353 = vmul.f32 %v4521, %v4943
      %v5354 = vmul.f32 %v4522, %v4947
      %v5355 = vmul.f32 %v4523, %v4954
      %v5356 = vmul.f32 %v4524, %v4958
      %v5357 = vmul.f32 %v4525, %v4965
      %v5358 = vmul.f32 %v4526, %v4969
      %v5359 = vmul.f32 %v4527, %v4976
      %v5360 = vmul.f32 %v4528, %v4980
      %v5361 = vmul.f32 %v4529, %v4987
      %v5362 = vmul.f32 %v4530, %v4991
      %v5363 = vmul.f32 %v4531, %v4998
      %v5364 = vmul.f32 %v4532, %v5002
      %v5365 = vmul.f32 %v4533, %v5009
      %v5366 = vmul.f32 %v4534, %v5013
      %v5367 = vmul.f32 %v4535, %v5020
      %v5368 = vmul.f32 %v4536, %v5024
      %v5369 = vmul.f32 %v4537, %v5031
      %v5370 = vmul.f32 %v4538, %v5035
      %v5371 = vmul.f32 %v4539, %v5042
      %v5372 = vmul.f32 %v4540, %v5046
      %v5373 = vmul.f32 %v4541, %v5053
      %v5374 = vmul.f32 %v4542, %v5057
      %v5375 = vmul.f32 %v4543, %v5064
      %v5376 = vmul.f32 %v4544, %v5068
      %v5377 = vmul.f32 %v4545, %v5075
      %v5378 = vmul.f32 %v4546, %v5079
      %v5379 = vmul.f32 %v4547, %v5086
      %v5380 = vmul.f32 %v4548, %v5090
      %v5381 = vmul.f32 %v4549, %v5097
      %v5382 = vmul.f32 %v4550, %v5101
      %v5383 = vmul.f32 %v4551, %v5108
      %v5384 = vmul.f32 %v4552, %v5112
      %v5385 = vmul.f32 %v4553, %v5119
      %v5386 = vmul.f32 %v4554, %v5123
      %v5387 = vmul.f32 %v4555, %v5130
      %v5388 = vmul.f32 %v4556, %v5134
      %v5389 = vmul.f32 %v4557, %v5141
      %v5390 = vmul.f32 %v4558, %v5145
      %v5391 = vmul.f32 %v4559, %v5152
      %v5392 = vmul.f32 %v4560, %v5156
      %v5393 = vmul.f32 %v4561, %v5163
      %v5394 = vmul.f32 %v4562, %v5167
      %v5395 = vmul.f32 %v4563, %v5174
      %v5396 = vmul.f32 %v4564, %v5178
      %v5397 = vmul.f32 %v4565, %v5185
      %v5398 = vmul.f32 %v4566, %v5189
      %v5399 = vmul.f32 %v4567, %v5196
      %v5400 = vmul.f32 %v4568, %v5200
      %v5401 = vmul.f32 %v4569, %v5207
      %v5402 = vmul.f32 %v4570, %v5211
      %v5403 = vmul.f32 %v4571, %v5218
      %v5404 = vmul.f32 %v4572, %v5222
      %v5405 = vmul.f32 %v4573, %v5229
      %v5406 = vmul.f32 %v4574, %v5233
      %v5407 = vmul.f32 %v4575, %v5240
      %v5408 = vmul.f32 %v4576, %v5244
      %v5409 = vmul.f32 %v4577, %v5251
      %v5410 = vmul.f32 %v4578, %v5255
      %v5411 = vmul.f32 %v4579, %v5262
      %v5412 = vmul.f32 %v4580, %v5266
      %v5413 = vmul.f32 %v4581, %v5273
      %v5414 = vmul.f32 %v4582, %v5277
      %v5415 = vmul.f32 %v4583, %v5284
      %v5416 = vmul.f32 %v4584, %v5288
      %v5417 = vsel %vm851, %v5289, 0.0
      %v5418 = vsel %vm851, %v5290, 0.0
      %v5419 = vadd.f32 %v5417, %v5418
      %v5420 = vrot.slane %v5419, 4
      %v5421 = vadd.f32 %v5419, %v5420
      %v5422 = vrot.slane %v5421, 2
      %v5423 = vadd.f32 %v5421, %v5422
      %v5424 = vrot.slane %v5423, 1
      %v5425 = vadd.f32 %v5423, %v5424
      %v5426 = vsel %vm851, %v5291, 0.0
      %v5427 = vsel %vm851, %v5292, 0.0
      %v5428 = vadd.f32 %v5426, %v5427
      %v5429 = vrot.slane %v5428, 4
      %v5430 = vadd.f32 %v5428, %v5429
      %v5431 = vrot.slane %v5430, 2
      %v5432 = vadd.f32 %v5430, %v5431
      %v5433 = vrot.slane %v5432, 1
      %v5434 = vadd.f32 %v5432, %v5433
      %v5435 = vsel %vm851, %v5293, 0.0
      %v5436 = vsel %vm851, %v5294, 0.0
      %v5437 = vadd.f32 %v5435, %v5436
      %v5438 = vrot.slane %v5437, 4
      %v5439 = vadd.f32 %v5437, %v5438
      %v5440 = vrot.slane %v5439, 2
      %v5441 = vadd.f32 %v5439, %v5440
      %v5442 = vrot.slane %v5441, 1
      %v5443 = vadd.f32 %v5441, %v5442
      %v5444 = vsel %vm851, %v5295, 0.0
      %v5445 = vsel %vm851, %v5296, 0.0
      %v5446 = vadd.f32 %v5444, %v5445
      %v5447 = vrot.slane %v5446, 4
      %v5448 = vadd.f32 %v5446, %v5447
      %v5449 = vrot.slane %v5448, 2
      %v5450 = vadd.f32 %v5448, %v5449
      %v5451 = vrot.slane %v5450, 1
      %v5452 = vadd.f32 %v5450, %v5451
      %v5453 = vsel %vm851, %v5297, 0.0
      %v5454 = vsel %vm851, %v5298, 0.0
      %v5455 = vadd.f32 %v5453, %v5454
      %v5456 = vrot.slane %v5455, 4
      %v5457 = vadd.f32 %v5455, %v5456
      %v5458 = vrot.slane %v5457, 2
      %v5459 = vadd.f32 %v5457, %v5458
      %v5460 = vrot.slane %v5459, 1
      %v5461 = vadd.f32 %v5459, %v5460
      %v5462 = vsel %vm851, %v5299, 0.0
      %v5463 = vsel %vm851, %v5300, 0.0
      %v5464 = vadd.f32 %v5462, %v5463
      %v5465 = vrot.slane %v5464, 4
      %v5466 = vadd.f32 %v5464, %v5465
      %v5467 = vrot.slane %v5466, 2
      %v5468 = vadd.f32 %v5466, %v5467
      %v5469 = vrot.slane %v5468, 1
      %v5470 = vadd.f32 %v5468, %v5469
      %v5471 = vsel %vm851, %v5301, 0.0
      %v5472 = vsel %vm851, %v5302, 0.0
      %v5473 = vadd.f32 %v5471, %v5472
      %v5474 = vrot.slane %v5473, 4
      %v5475 = vadd.f32 %v5473, %v5474
      %v5476 = vrot.slane %v5475, 2
      %v5477 = vadd.f32 %v5475, %v5476
      %v5478 = vrot.slane %v5477, 1
      %v5479 = vadd.f32 %v5477, %v5478
      %v5480 = vsel %vm851, %v5303, 0.0
      %v5481 = vsel %vm851, %v5304, 0.0
      %v5482 = vadd.f32 %v5480, %v5481
      %v5483 = vrot.slane %v5482, 4
      %v5484 = vadd.f32 %v5482, %v5483
      %v5485 = vrot.slane %v5484, 2
      %v5486 = vadd.f32 %v5484, %v5485
      %v5487 = vrot.slane %v5486, 1
      %v5488 = vadd.f32 %v5486, %v5487
      %v5489 = vsel %vm851, %v5305, 0.0
      %v5490 = vsel %vm851, %v5306, 0.0
      %v5491 = vadd.f32 %v5489, %v5490
      %v5492 = vrot.slane %v5491, 4
      %v5493 = vadd.f32 %v5491, %v5492
      %v5494 = vrot.slane %v5493, 2
      %v5495 = vadd.f32 %v5493, %v5494
      %v5496 = vrot.slane %v5495, 1
      %v5497 = vadd.f32 %v5495, %v5496
      %v5498 = vsel %vm851, %v5307, 0.0
      %v5499 = vsel %vm851, %v5308, 0.0
      %v5500 = vadd.f32 %v5498, %v5499
      %v5501 = vrot.slane %v5500, 4
      %v5502 = vadd.f32 %v5500, %v5501
      %v5503 = vrot.slane %v5502, 2
      %v5504 = vadd.f32 %v5502, %v5503
      %v5505 = vrot.slane %v5504, 1
      %v5506 = vadd.f32 %v5504, %v5505
      %v5507 = vsel %vm851, %v5309, 0.0
      %v5508 = vsel %vm851, %v5310, 0.0
      %v5509 = vadd.f32 %v5507, %v5508
      %v5510 = vrot.slane %v5509, 4
      %v5511 = vadd.f32 %v5509, %v5510
      %v5512 = vrot.slane %v5511, 2
      %v5513 = vadd.f32 %v5511, %v5512
      %v5514 = vrot.slane %v5513, 1
      %v5515 = vadd.f32 %v5513, %v5514
      %v5516 = vsel %vm851, %v5311, 0.0
      %v5517 = vsel %vm851, %v5312, 0.0
      %v5518 = vadd.f32 %v5516, %v5517
      %v5519 = vrot.slane %v5518, 4
      %v5520 = vadd.f32 %v5518, %v5519
      %v5521 = vrot.slane %v5520, 2
      %v5522 = vadd.f32 %v5520, %v5521
      %v5523 = vrot.slane %v5522, 1
      %v5524 = vadd.f32 %v5522, %v5523
      %v5525 = vsel %vm851, %v5313, 0.0
      %v5526 = vsel %vm851, %v5314, 0.0
      %v5527 = vadd.f32 %v5525, %v5526
      %v5528 = vrot.slane %v5527, 4
      %v5529 = vadd.f32 %v5527, %v5528
      %v5530 = vrot.slane %v5529, 2
      %v5531 = vadd.f32 %v5529, %v5530
      %v5532 = vrot.slane %v5531, 1
      %v5533 = vadd.f32 %v5531, %v5532
      %v5534 = vsel %vm851, %v5315, 0.0
      %v5535 = vsel %vm851, %v5316, 0.0
      %v5536 = vadd.f32 %v5534, %v5535
      %v5537 = vrot.slane %v5536, 4
      %v5538 = vadd.f32 %v5536, %v5537
      %v5539 = vrot.slane %v5538, 2
      %v5540 = vadd.f32 %v5538, %v5539
      %v5541 = vrot.slane %v5540, 1
      %v5542 = vadd.f32 %v5540, %v5541
      %v5543 = vsel %vm851, %v5317, 0.0
      %v5544 = vsel %vm851, %v5318, 0.0
      %v5545 = vadd.f32 %v5543, %v5544
      %v5546 = vrot.slane %v5545, 4
      %v5547 = vadd.f32 %v5545, %v5546
      %v5548 = vrot.slane %v5547, 2
      %v5549 = vadd.f32 %v5547, %v5548
      %v5550 = vrot.slane %v5549, 1
      %v5551 = vadd.f32 %v5549, %v5550
      %v5552 = vsel %vm851, %v5319, 0.0
      %v5553 = vsel %vm851, %v5320, 0.0
      %v5554 = vadd.f32 %v5552, %v5553
      %v5555 = vrot.slane %v5554, 4
      %v5556 = vadd.f32 %v5554, %v5555
      %v5557 = vrot.slane %v5556, 2
      %v5558 = vadd.f32 %v5556, %v5557
      %v5559 = vrot.slane %v5558, 1
      %v5560 = vadd.f32 %v5558, %v5559
      %v5561 = vsel %vm851, %v5321, 0.0
      %v5562 = vsel %vm851, %v5322, 0.0
      %v5563 = vadd.f32 %v5561, %v5562
      %v5564 = vrot.slane %v5563, 4
      %v5565 = vadd.f32 %v5563, %v5564
      %v5566 = vrot.slane %v5565, 2
      %v5567 = vadd.f32 %v5565, %v5566
      %v5568 = vrot.slane %v5567, 1
      %v5569 = vadd.f32 %v5567, %v5568
      %v5570 = vsel %vm851, %v5323, 0.0
      %v5571 = vsel %vm851, %v5324, 0.0
      %v5572 = vadd.f32 %v5570, %v5571
      %v5573 = vrot.slane %v5572, 4
      %v5574 = vadd.f32 %v5572, %v5573
      %v5575 = vrot.slane %v5574, 2
      %v5576 = vadd.f32 %v5574, %v5575
      %v5577 = vrot.slane %v5576, 1
      %v5578 = vadd.f32 %v5576, %v5577
      %v5579 = vsel %vm851, %v5325, 0.0
      %v5580 = vsel %vm851, %v5326, 0.0
      %v5581 = vadd.f32 %v5579, %v5580
      %v5582 = vrot.slane %v5581, 4
      %v5583 = vadd.f32 %v5581, %v5582
      %v5584 = vrot.slane %v5583, 2
      %v5585 = vadd.f32 %v5583, %v5584
      %v5586 = vrot.slane %v5585, 1
      %v5587 = vadd.f32 %v5585, %v5586
      %v5588 = vsel %vm851, %v5327, 0.0
      %v5589 = vsel %vm851, %v5328, 0.0
      %v5590 = vadd.f32 %v5588, %v5589
      %v5591 = vrot.slane %v5590, 4
      %v5592 = vadd.f32 %v5590, %v5591
      %v5593 = vrot.slane %v5592, 2
      %v5594 = vadd.f32 %v5592, %v5593
      %v5595 = vrot.slane %v5594, 1
      %v5596 = vadd.f32 %v5594, %v5595
      %v5597 = vsel %vm851, %v5329, 0.0
      %v5598 = vsel %vm851, %v5330, 0.0
      %v5599 = vadd.f32 %v5597, %v5598
      %v5600 = vrot.slane %v5599, 4
      %v5601 = vadd.f32 %v5599, %v5600
      %v5602 = vrot.slane %v5601, 2
      %v5603 = vadd.f32 %v5601, %v5602
      %v5604 = vrot.slane %v5603, 1
      %v5605 = vadd.f32 %v5603, %v5604
      %v5606 = vsel %vm851, %v5331, 0.0
      %v5607 = vsel %vm851, %v5332, 0.0
      %v5608 = vadd.f32 %v5606, %v5607
      %v5609 = vrot.slane %v5608, 4
      %v5610 = vadd.f32 %v5608, %v5609
      %v5611 = vrot.slane %v5610, 2
      %v5612 = vadd.f32 %v5610, %v5611
      %v5613 = vrot.slane %v5612, 1
      %v5614 = vadd.f32 %v5612, %v5613
      %v5615 = vsel %vm851, %v5333, 0.0
      %v5616 = vsel %vm851, %v5334, 0.0
      %v5617 = vadd.f32 %v5615, %v5616
      %v5618 = vrot.slane %v5617, 4
      %v5619 = vadd.f32 %v5617, %v5618
      %v5620 = vrot.slane %v5619, 2
      %v5621 = vadd.f32 %v5619, %v5620
      %v5622 = vrot.slane %v5621, 1
      %v5623 = vadd.f32 %v5621, %v5622
      %v5624 = vsel %vm851, %v5335, 0.0
      %v5625 = vsel %vm851, %v5336, 0.0
      %v5626 = vadd.f32 %v5624, %v5625
      %v5627 = vrot.slane %v5626, 4
      %v5628 = vadd.f32 %v5626, %v5627
      %v5629 = vrot.slane %v5628, 2
      %v5630 = vadd.f32 %v5628, %v5629
      %v5631 = vrot.slane %v5630, 1
      %v5632 = vadd.f32 %v5630, %v5631
      %v5633 = vsel %vm851, %v5337, 0.0
      %v5634 = vsel %vm851, %v5338, 0.0
      %v5635 = vadd.f32 %v5633, %v5634
      %v5636 = vrot.slane %v5635, 4
      %v5637 = vadd.f32 %v5635, %v5636
      %v5638 = vrot.slane %v5637, 2
      %v5639 = vadd.f32 %v5637, %v5638
      %v5640 = vrot.slane %v5639, 1
      %v5641 = vadd.f32 %v5639, %v5640
      %v5642 = vsel %vm851, %v5339, 0.0
      %v5643 = vsel %vm851, %v5340, 0.0
      %v5644 = vadd.f32 %v5642, %v5643
      %v5645 = vrot.slane %v5644, 4
      %v5646 = vadd.f32 %v5644, %v5645
      %v5647 = vrot.slane %v5646, 2
      %v5648 = vadd.f32 %v5646, %v5647
      %v5649 = vrot.slane %v5648, 1
      %v5650 = vadd.f32 %v5648, %v5649
      %v5651 = vsel %vm851, %v5341, 0.0
      %v5652 = vsel %vm851, %v5342, 0.0
      %v5653 = vadd.f32 %v5651, %v5652
      %v5654 = vrot.slane %v5653, 4
      %v5655 = vadd.f32 %v5653, %v5654
      %v5656 = vrot.slane %v5655, 2
      %v5657 = vadd.f32 %v5655, %v5656
      %v5658 = vrot.slane %v5657, 1
      %v5659 = vadd.f32 %v5657, %v5658
      %v5660 = vsel %vm851, %v5343, 0.0
      %v5661 = vsel %vm851, %v5344, 0.0
      %v5662 = vadd.f32 %v5660, %v5661
      %v5663 = vrot.slane %v5662, 4
      %v5664 = vadd.f32 %v5662, %v5663
      %v5665 = vrot.slane %v5664, 2
      %v5666 = vadd.f32 %v5664, %v5665
      %v5667 = vrot.slane %v5666, 1
      %v5668 = vadd.f32 %v5666, %v5667
      %v5669 = vsel %vm851, %v5345, 0.0
      %v5670 = vsel %vm851, %v5346, 0.0
      %v5671 = vadd.f32 %v5669, %v5670
      %v5672 = vrot.slane %v5671, 4
      %v5673 = vadd.f32 %v5671, %v5672
      %v5674 = vrot.slane %v5673, 2
      %v5675 = vadd.f32 %v5673, %v5674
      %v5676 = vrot.slane %v5675, 1
      %v5677 = vadd.f32 %v5675, %v5676
      %v5678 = vsel %vm851, %v5347, 0.0
      %v5679 = vsel %vm851, %v5348, 0.0
      %v5680 = vadd.f32 %v5678, %v5679
      %v5681 = vrot.slane %v5680, 4
      %v5682 = vadd.f32 %v5680, %v5681
      %v5683 = vrot.slane %v5682, 2
      %v5684 = vadd.f32 %v5682, %v5683
      %v5685 = vrot.slane %v5684, 1
      %v5686 = vadd.f32 %v5684, %v5685
      %v5687 = vsel %vm851, %v5349, 0.0
      %v5688 = vsel %vm851, %v5350, 0.0
      %v5689 = vadd.f32 %v5687, %v5688
      %v5690 = vrot.slane %v5689, 4
      %v5691 = vadd.f32 %v5689, %v5690
      %v5692 = vrot.slane %v5691, 2
      %v5693 = vadd.f32 %v5691, %v5692
      %v5694 = vrot.slane %v5693, 1
      %v5695 = vadd.f32 %v5693, %v5694
      %v5696 = vsel %vm851, %v5351, 0.0
      %v5697 = vsel %vm851, %v5352, 0.0
      %v5698 = vadd.f32 %v5696, %v5697
      %v5699 = vrot.slane %v5698, 4
      %v5700 = vadd.f32 %v5698, %v5699
      %v5701 = vrot.slane %v5700, 2
      %v5702 = vadd.f32 %v5700, %v5701
      %v5703 = vrot.slane %v5702, 1
      %v5704 = vadd.f32 %v5702, %v5703
      %v5705 = vsel %vm851, %v5353, 0.0
      %v5706 = vsel %vm851, %v5354, 0.0
      %v5707 = vadd.f32 %v5705, %v5706
      %v5708 = vrot.slane %v5707, 4
      %v5709 = vadd.f32 %v5707, %v5708
      %v5710 = vrot.slane %v5709, 2
      %v5711 = vadd.f32 %v5709, %v5710
      %v5712 = vrot.slane %v5711, 1
      %v5713 = vadd.f32 %v5711, %v5712
      %v5714 = vsel %vm851, %v5355, 0.0
      %v5715 = vsel %vm851, %v5356, 0.0
      %v5716 = vadd.f32 %v5714, %v5715
      %v5717 = vrot.slane %v5716, 4
      %v5718 = vadd.f32 %v5716, %v5717
      %v5719 = vrot.slane %v5718, 2
      %v5720 = vadd.f32 %v5718, %v5719
      %v5721 = vrot.slane %v5720, 1
      %v5722 = vadd.f32 %v5720, %v5721
      %v5723 = vsel %vm851, %v5357, 0.0
      %v5724 = vsel %vm851, %v5358, 0.0
      %v5725 = vadd.f32 %v5723, %v5724
      %v5726 = vrot.slane %v5725, 4
      %v5727 = vadd.f32 %v5725, %v5726
      %v5728 = vrot.slane %v5727, 2
      %v5729 = vadd.f32 %v5727, %v5728
      %v5730 = vrot.slane %v5729, 1
      %v5731 = vadd.f32 %v5729, %v5730
      %v5732 = vsel %vm851, %v5359, 0.0
      %v5733 = vsel %vm851, %v5360, 0.0
      %v5734 = vadd.f32 %v5732, %v5733
      %v5735 = vrot.slane %v5734, 4
      %v5736 = vadd.f32 %v5734, %v5735
      %v5737 = vrot.slane %v5736, 2
      %v5738 = vadd.f32 %v5736, %v5737
      %v5739 = vrot.slane %v5738, 1
      %v5740 = vadd.f32 %v5738, %v5739
      %v5741 = vsel %vm851, %v5361, 0.0
      %v5742 = vsel %vm851, %v5362, 0.0
      %v5743 = vadd.f32 %v5741, %v5742
      %v5744 = vrot.slane %v5743, 4
      %v5745 = vadd.f32 %v5743, %v5744
      %v5746 = vrot.slane %v5745, 2
      %v5747 = vadd.f32 %v5745, %v5746
      %v5748 = vrot.slane %v5747, 1
      %v5749 = vadd.f32 %v5747, %v5748
      %v5750 = vsel %vm851, %v5363, 0.0
      %v5751 = vsel %vm851, %v5364, 0.0
      %v5752 = vadd.f32 %v5750, %v5751
      %v5753 = vrot.slane %v5752, 4
      %v5754 = vadd.f32 %v5752, %v5753
      %v5755 = vrot.slane %v5754, 2
      %v5756 = vadd.f32 %v5754, %v5755
      %v5757 = vrot.slane %v5756, 1
      %v5758 = vadd.f32 %v5756, %v5757
      %v5759 = vsel %vm851, %v5365, 0.0
      %v5760 = vsel %vm851, %v5366, 0.0
      %v5761 = vadd.f32 %v5759, %v5760
      %v5762 = vrot.slane %v5761, 4
      %v5763 = vadd.f32 %v5761, %v5762
      %v5764 = vrot.slane %v5763, 2
      %v5765 = vadd.f32 %v5763, %v5764
      %v5766 = vrot.slane %v5765, 1
      %v5767 = vadd.f32 %v5765, %v5766
      %v5768 = vsel %vm851, %v5367, 0.0
      %v5769 = vsel %vm851, %v5368, 0.0
      %v5770 = vadd.f32 %v5768, %v5769
      %v5771 = vrot.slane %v5770, 4
      %v5772 = vadd.f32 %v5770, %v5771
      %v5773 = vrot.slane %v5772, 2
      %v5774 = vadd.f32 %v5772, %v5773
      %v5775 = vrot.slane %v5774, 1
      %v5776 = vadd.f32 %v5774, %v5775
      %v5777 = vsel %vm851, %v5369, 0.0
      %v5778 = vsel %vm851, %v5370, 0.0
      %v5779 = vadd.f32 %v5777, %v5778
      %v5780 = vrot.slane %v5779, 4
      %v5781 = vadd.f32 %v5779, %v5780
      %v5782 = vrot.slane %v5781, 2
      %v5783 = vadd.f32 %v5781, %v5782
      %v5784 = vrot.slane %v5783, 1
      %v5785 = vadd.f32 %v5783, %v5784
      %v5786 = vsel %vm851, %v5371, 0.0
      %v5787 = vsel %vm851, %v5372, 0.0
      %v5788 = vadd.f32 %v5786, %v5787
      %v5789 = vrot.slane %v5788, 4
      %v5790 = vadd.f32 %v5788, %v5789
      %v5791 = vrot.slane %v5790, 2
      %v5792 = vadd.f32 %v5790, %v5791
      %v5793 = vrot.slane %v5792, 1
      %v5794 = vadd.f32 %v5792, %v5793
      %v5795 = vsel %vm851, %v5373, 0.0
      %v5796 = vsel %vm851, %v5374, 0.0
      %v5797 = vadd.f32 %v5795, %v5796
      %v5798 = vrot.slane %v5797, 4
      %v5799 = vadd.f32 %v5797, %v5798
      %v5800 = vrot.slane %v5799, 2
      %v5801 = vadd.f32 %v5799, %v5800
      %v5802 = vrot.slane %v5801, 1
      %v5803 = vadd.f32 %v5801, %v5802
      %v5804 = vsel %vm851, %v5375, 0.0
      %v5805 = vsel %vm851, %v5376, 0.0
      %v5806 = vadd.f32 %v5804, %v5805
      %v5807 = vrot.slane %v5806, 4
      %v5808 = vadd.f32 %v5806, %v5807
      %v5809 = vrot.slane %v5808, 2
      %v5810 = vadd.f32 %v5808, %v5809
      %v5811 = vrot.slane %v5810, 1
      %v5812 = vadd.f32 %v5810, %v5811
      %v5813 = vsel %vm851, %v5377, 0.0
      %v5814 = vsel %vm851, %v5378, 0.0
      %v5815 = vadd.f32 %v5813, %v5814
      %v5816 = vrot.slane %v5815, 4
      %v5817 = vadd.f32 %v5815, %v5816
      %v5818 = vrot.slane %v5817, 2
      %v5819 = vadd.f32 %v5817, %v5818
      %v5820 = vrot.slane %v5819, 1
      %v5821 = vadd.f32 %v5819, %v5820
      %v5822 = vsel %vm851, %v5379, 0.0
      %v5823 = vsel %vm851, %v5380, 0.0
      %v5824 = vadd.f32 %v5822, %v5823
      %v5825 = vrot.slane %v5824, 4
      %v5826 = vadd.f32 %v5824, %v5825
      %v5827 = vrot.slane %v5826, 2
      %v5828 = vadd.f32 %v5826, %v5827
      %v5829 = vrot.slane %v5828, 1
      %v5830 = vadd.f32 %v5828, %v5829
      %v5831 = vsel %vm851, %v5381, 0.0
      %v5832 = vsel %vm851, %v5382, 0.0
      %v5833 = vadd.f32 %v5831, %v5832
      %v5834 = vrot.slane %v5833, 4
      %v5835 = vadd.f32 %v5833, %v5834
      %v5836 = vrot.slane %v5835, 2
      %v5837 = vadd.f32 %v5835, %v5836
      %v5838 = vrot.slane %v5837, 1
      %v5839 = vadd.f32 %v5837, %v5838
      %v5840 = vsel %vm851, %v5383, 0.0
      %v5841 = vsel %vm851, %v5384, 0.0
      %v5842 = vadd.f32 %v5840, %v5841
      %v5843 = vrot.slane %v5842, 4
      %v5844 = vadd.f32 %v5842, %v5843
      %v5845 = vrot.slane %v5844, 2
      %v5846 = vadd.f32 %v5844, %v5845
      %v5847 = vrot.slane %v5846, 1
      %v5848 = vadd.f32 %v5846, %v5847
      %v5849 = vsel %vm851, %v5385, 0.0
      %v5850 = vsel %vm851, %v5386, 0.0
      %v5851 = vadd.f32 %v5849, %v5850
      %v5852 = vrot.slane %v5851, 4
      %v5853 = vadd.f32 %v5851, %v5852
      %v5854 = vrot.slane %v5853, 2
      %v5855 = vadd.f32 %v5853, %v5854
      %v5856 = vrot.slane %v5855, 1
      %v5857 = vadd.f32 %v5855, %v5856
      %v5858 = vsel %vm851, %v5387, 0.0
      %v5859 = vsel %vm851, %v5388, 0.0
      %v5860 = vadd.f32 %v5858, %v5859
      %v5861 = vrot.slane %v5860, 4
      %v5862 = vadd.f32 %v5860, %v5861
      %v5863 = vrot.slane %v5862, 2
      %v5864 = vadd.f32 %v5862, %v5863
      %v5865 = vrot.slane %v5864, 1
      %v5866 = vadd.f32 %v5864, %v5865
      %v5867 = vsel %vm851, %v5389, 0.0
      %v5868 = vsel %vm851, %v5390, 0.0
      %v5869 = vadd.f32 %v5867, %v5868
      %v5870 = vrot.slane %v5869, 4
      %v5871 = vadd.f32 %v5869, %v5870
      %v5872 = vrot.slane %v5871, 2
      %v5873 = vadd.f32 %v5871, %v5872
      %v5874 = vrot.slane %v5873, 1
      %v5875 = vadd.f32 %v5873, %v5874
      %v5876 = vsel %vm851, %v5391, 0.0
      %v5877 = vsel %vm851, %v5392, 0.0
      %v5878 = vadd.f32 %v5876, %v5877
      %v5879 = vrot.slane %v5878, 4
      %v5880 = vadd.f32 %v5878, %v5879
      %v5881 = vrot.slane %v5880, 2
      %v5882 = vadd.f32 %v5880, %v5881
      %v5883 = vrot.slane %v5882, 1
      %v5884 = vadd.f32 %v5882, %v5883
      %v5885 = vsel %vm851, %v5393, 0.0
      %v5886 = vsel %vm851, %v5394, 0.0
      %v5887 = vadd.f32 %v5885, %v5886
      %v5888 = vrot.slane %v5887, 4
      %v5889 = vadd.f32 %v5887, %v5888
      %v5890 = vrot.slane %v5889, 2
      %v5891 = vadd.f32 %v5889, %v5890
      %v5892 = vrot.slane %v5891, 1
      %v5893 = vadd.f32 %v5891, %v5892
      %v5894 = vsel %vm851, %v5395, 0.0
      %v5895 = vsel %vm851, %v5396, 0.0
      %v5896 = vadd.f32 %v5894, %v5895
      %v5897 = vrot.slane %v5896, 4
      %v5898 = vadd.f32 %v5896, %v5897
      %v5899 = vrot.slane %v5898, 2
      %v5900 = vadd.f32 %v5898, %v5899
      %v5901 = vrot.slane %v5900, 1
      %v5902 = vadd.f32 %v5900, %v5901
      %v5903 = vsel %vm851, %v5397, 0.0
      %v5904 = vsel %vm851, %v5398, 0.0
      %v5905 = vadd.f32 %v5903, %v5904
      %v5906 = vrot.slane %v5905, 4
      %v5907 = vadd.f32 %v5905, %v5906
      %v5908 = vrot.slane %v5907, 2
      %v5909 = vadd.f32 %v5907, %v5908
      %v5910 = vrot.slane %v5909, 1
      %v5911 = vadd.f32 %v5909, %v5910
      %v5912 = vsel %vm851, %v5399, 0.0
      %v5913 = vsel %vm851, %v5400, 0.0
      %v5914 = vadd.f32 %v5912, %v5913
      %v5915 = vrot.slane %v5914, 4
      %v5916 = vadd.f32 %v5914, %v5915
      %v5917 = vrot.slane %v5916, 2
      %v5918 = vadd.f32 %v5916, %v5917
      %v5919 = vrot.slane %v5918, 1
      %v5920 = vadd.f32 %v5918, %v5919
      %v5921 = vsel %vm851, %v5401, 0.0
      %v5922 = vsel %vm851, %v5402, 0.0
      %v5923 = vadd.f32 %v5921, %v5922
      %v5924 = vrot.slane %v5923, 4
      %v5925 = vadd.f32 %v5923, %v5924
      %v5926 = vrot.slane %v5925, 2
      %v5927 = vadd.f32 %v5925, %v5926
      %v5928 = vrot.slane %v5927, 1
      %v5929 = vadd.f32 %v5927, %v5928
      %v5930 = vsel %vm851, %v5403, 0.0
      %v5931 = vsel %vm851, %v5404, 0.0
      %v5932 = vadd.f32 %v5930, %v5931
      %v5933 = vrot.slane %v5932, 4
      %v5934 = vadd.f32 %v5932, %v5933
      %v5935 = vrot.slane %v5934, 2
      %v5936 = vadd.f32 %v5934, %v5935
      %v5937 = vrot.slane %v5936, 1
      %v5938 = vadd.f32 %v5936, %v5937
      %v5939 = vsel %vm851, %v5405, 0.0
      %v5940 = vsel %vm851, %v5406, 0.0
      %v5941 = vadd.f32 %v5939, %v5940
      %v5942 = vrot.slane %v5941, 4
      %v5943 = vadd.f32 %v5941, %v5942
      %v5944 = vrot.slane %v5943, 2
      %v5945 = vadd.f32 %v5943, %v5944
      %v5946 = vrot.slane %v5945, 1
      %v5947 = vadd.f32 %v5945, %v5946
      %v5948 = vsel %vm851, %v5407, 0.0
      %v5949 = vsel %vm851, %v5408, 0.0
      %v5950 = vadd.f32 %v5948, %v5949
      %v5951 = vrot.slane %v5950, 4
      %v5952 = vadd.f32 %v5950, %v5951
      %v5953 = vrot.slane %v5952, 2
      %v5954 = vadd.f32 %v5952, %v5953
      %v5955 = vrot.slane %v5954, 1
      %v5956 = vadd.f32 %v5954, %v5955
      %v5957 = vsel %vm851, %v5409, 0.0
      %v5958 = vsel %vm851, %v5410, 0.0
      %v5959 = vadd.f32 %v5957, %v5958
      %v5960 = vrot.slane %v5959, 4
      %v5961 = vadd.f32 %v5959, %v5960
      %v5962 = vrot.slane %v5961, 2
      %v5963 = vadd.f32 %v5961, %v5962
      %v5964 = vrot.slane %v5963, 1
      %v5965 = vadd.f32 %v5963, %v5964
      %v5966 = vsel %vm851, %v5411, 0.0
      %v5967 = vsel %vm851, %v5412, 0.0
      %v5968 = vadd.f32 %v5966, %v5967
      %v5969 = vrot.slane %v5968, 4
      %v5970 = vadd.f32 %v5968, %v5969
      %v5971 = vrot.slane %v5970, 2
      %v5972 = vadd.f32 %v5970, %v5971
      %v5973 = vrot.slane %v5972, 1
      %v5974 = vadd.f32 %v5972, %v5973
      %v5975 = vsel %vm851, %v5413, 0.0
      %v5976 = vsel %vm851, %v5414, 0.0
      %v5977 = vadd.f32 %v5975, %v5976
      %v5978 = vrot.slane %v5977, 4
      %v5979 = vadd.f32 %v5977, %v5978
      %v5980 = vrot.slane %v5979, 2
      %v5981 = vadd.f32 %v5979, %v5980
      %v5982 = vrot.slane %v5981, 1
      %v5983 = vadd.f32 %v5981, %v5982
      %v5984 = vsel %vm851, %v5415, 0.0
      %v5985 = vsel %vm851, %v5416, 0.0
      %v5986 = vadd.f32 %v5984, %v5985
      %v5987 = vrot.slane %v5986, 4
      %v5988 = vadd.f32 %v5986, %v5987
      %v5989 = vrot.slane %v5988, 2
      %v5990 = vadd.f32 %v5988, %v5989
      %v5991 = vrot.slane %v5990, 1
      %v5992 = vadd.f32 %v5990, %v5991
      %v5993 = vld [vmem:[%s551] sm:$0x1]
      %v5995 = vlaneseq
      %v5996 = vshrl.u32 %v5995, 7
      %v5997 = vsub.s32 0, %v5996
      %v5998 = vrot.slane %v5993, %v5997
      %v6000 = vmul.f32 %v923, %v5998
      %v6001 = vmul.f32 %v924, %v5998
      %v6002 = vmul.f32 %v925, %v5998
      %v6003 = vmul.f32 %v926, %v5998
      %v6004 = vmul.f32 %v927, %v5998
      %v6005 = vmul.f32 %v928, %v5998
      %v6006 = vmul.f32 %v929, %v5998
      %v6007 = vmul.f32 %v930, %v5998
      %v6016 = vrot.slane %v6000, 1
      %v6017 = vrot.slane %v6000, 2
      %v6018 = vrot.slane %v6000, 3
      %v6019 = vrot.slane %v6000, 4
      %v6020 = vrot.slane %v6000, 5
      %v6021 = vrot.slane %v6000, 6
      %v6022 = vrot.slane %v6000, 7
      %v6023 = vrot.slane %v6001, 1
      %v6024 = vrot.slane %v6001, 2
      %v6025 = vrot.slane %v6001, 3
      %v6026 = vrot.slane %v6001, 4
      %v6027 = vrot.slane %v6001, 5
      %v6028 = vrot.slane %v6001, 6
      %v6029 = vrot.slane %v6001, 7
      %v6030 = vrot.slane %v6002, 1
      %v6031 = vrot.slane %v6002, 2
      %v6032 = vrot.slane %v6002, 3
      %v6033 = vrot.slane %v6002, 4
      %v6034 = vrot.slane %v6002, 5
      %v6035 = vrot.slane %v6002, 6
      %v6036 = vrot.slane %v6002, 7
      %v6037 = vrot.slane %v6003, 1
      %v6038 = vrot.slane %v6003, 2
      %v6039 = vrot.slane %v6003, 3
      %v6040 = vrot.slane %v6003, 4
      %v6041 = vrot.slane %v6003, 5
      %v6042 = vrot.slane %v6003, 6
      %v6043 = vrot.slane %v6003, 7
      %v6044 = vrot.slane %v6004, 1
      %v6045 = vrot.slane %v6004, 2
      %v6046 = vrot.slane %v6004, 3
      %v6047 = vrot.slane %v6004, 4
      %v6048 = vrot.slane %v6004, 5
      %v6049 = vrot.slane %v6004, 6
      %v6050 = vrot.slane %v6004, 7
      %v6051 = vrot.slane %v6005, 1
      %v6052 = vrot.slane %v6005, 2
      %v6053 = vrot.slane %v6005, 3
      %v6054 = vrot.slane %v6005, 4
      %v6055 = vrot.slane %v6005, 5
      %v6056 = vrot.slane %v6005, 6
      %v6057 = vrot.slane %v6005, 7
      %v6058 = vrot.slane %v6006, 1
      %v6059 = vrot.slane %v6006, 2
      %v6060 = vrot.slane %v6006, 3
      %v6061 = vrot.slane %v6006, 4
      %v6062 = vrot.slane %v6006, 5
      %v6063 = vrot.slane %v6006, 6
      %v6064 = vrot.slane %v6006, 7
      %v6065 = vrot.slane %v6007, 1
      %v6066 = vrot.slane %v6007, 2
      %v6067 = vrot.slane %v6007, 3
      %v6068 = vrot.slane %v6007, 4
      %v6069 = vrot.slane %v6007, 5
      %v6070 = vrot.slane %v6007, 6
      %v6071 = vrot.slane %v6007, 7
      %v6136 = vadd.f32 %v5425, %v6000
      %v6137 = vadd.f32 %v5434, %v6016
      %v6138 = vadd.f32 %v5443, %v6017
      %v6139 = vadd.f32 %v5452, %v6018
      %v6140 = vadd.f32 %v5461, %v6019
      %v6141 = vadd.f32 %v5470, %v6020
      %v6142 = vadd.f32 %v5479, %v6021
      %v6143 = vadd.f32 %v5488, %v6022
      %v6144 = vadd.f32 %v5497, %v6001
      %v6145 = vadd.f32 %v5506, %v6023
      %v6146 = vadd.f32 %v5515, %v6024
      %v6147 = vadd.f32 %v5524, %v6025
      %v6148 = vadd.f32 %v5533, %v6026
      %v6149 = vadd.f32 %v5542, %v6027
      %v6150 = vadd.f32 %v5551, %v6028
      %v6151 = vadd.f32 %v5560, %v6029
      %v6152 = vadd.f32 %v5569, %v6002
      %v6153 = vadd.f32 %v5578, %v6030
      %v6154 = vadd.f32 %v5587, %v6031
      %v6155 = vadd.f32 %v5596, %v6032
      %v6156 = vadd.f32 %v5605, %v6033
      %v6157 = vadd.f32 %v5614, %v6034
      %v6158 = vadd.f32 %v5623, %v6035
      %v6159 = vadd.f32 %v5632, %v6036
      %v6160 = vadd.f32 %v5641, %v6003
      %v6161 = vadd.f32 %v5650, %v6037
      %v6162 = vadd.f32 %v5659, %v6038
      %v6163 = vadd.f32 %v5668, %v6039
      %v6164 = vadd.f32 %v5677, %v6040
      %v6165 = vadd.f32 %v5686, %v6041
      %v6166 = vadd.f32 %v5695, %v6042
      %v6167 = vadd.f32 %v5704, %v6043
      %v6168 = vadd.f32 %v5713, %v6004
      %v6169 = vadd.f32 %v5722, %v6044
      %v6170 = vadd.f32 %v5731, %v6045
      %v6171 = vadd.f32 %v5740, %v6046
      %v6172 = vadd.f32 %v5749, %v6047
      %v6173 = vadd.f32 %v5758, %v6048
      %v6174 = vadd.f32 %v5767, %v6049
      %v6175 = vadd.f32 %v5776, %v6050
      %v6176 = vadd.f32 %v5785, %v6005
      %v6177 = vadd.f32 %v5794, %v6051
      %v6178 = vadd.f32 %v5803, %v6052
      %v6179 = vadd.f32 %v5812, %v6053
      %v6180 = vadd.f32 %v5821, %v6054
      %v6181 = vadd.f32 %v5830, %v6055
      %v6182 = vadd.f32 %v5839, %v6056
      %v6183 = vadd.f32 %v5848, %v6057
      %v6184 = vadd.f32 %v5857, %v6006
      %v6185 = vadd.f32 %v5866, %v6058
      %v6186 = vadd.f32 %v5875, %v6059
      %v6187 = vadd.f32 %v5884, %v6060
      %v6188 = vadd.f32 %v5893, %v6061
      %v6189 = vadd.f32 %v5902, %v6062
      %v6190 = vadd.f32 %v5911, %v6063
      %v6191 = vadd.f32 %v5920, %v6064
      %v6192 = vadd.f32 %v5929, %v6007
      %v6193 = vadd.f32 %v5938, %v6065
      %v6194 = vadd.f32 %v5947, %v6066
      %v6195 = vadd.f32 %v5956, %v6067
      %v6196 = vadd.f32 %v5965, %v6068
      %v6197 = vadd.f32 %v5974, %v6069
      %v6198 = vadd.f32 %v5983, %v6070
      %v6199 = vadd.f32 %v5992, %v6071
      %v6200 = vxor.u32 %v606, 2147483648
      %v6201 = vxor.u32 %v607, 2147483648
      %v6202 = vxor.u32 %v608, 2147483648
      %v6203 = vxor.u32 %v609, 2147483648
      %v6204 = vxor.u32 %v610, 2147483648
      %v6205 = vxor.u32 %v611, 2147483648
      %v6206 = vxor.u32 %v612, 2147483648
      %v6207 = vxor.u32 %v613, 2147483648
      %v6208 = vmul.f32 %v6200, 1.442695
      %v6209 = vpow.pop %v6208
      %v6210 = vmul.f32 %v6201, 1.442695
      %v6211 = vpow.pop %v6210
      %v6212 = vmul.f32 %v6202, 1.442695
      %v6213 = vpow.pop %v6212
      %v6214 = vmul.f32 %v6203, 1.442695
      %v6215 = vpow.pop %v6214
      %v6216 = vmul.f32 %v6204, 1.442695
      %v6217 = vpow.pop %v6216
      %v6218 = vmul.f32 %v6205, 1.442695
      %v6219 = vpow.pop %v6218
      %v6220 = vmul.f32 %v6206, 1.442695
      %v6221 = vpow.pop %v6220
      %v6222 = vmul.f32 %v6207, 1.442695
      %v6223 = vpow.pop %v6222
      %v6224 = vadd.f32 %v6209, 1.0
      %v6225 = vadd.f32 %v6211, 1.0
      %v6226 = vadd.f32 %v6213, 1.0
      %v6227 = vadd.f32 %v6215, 1.0
      %v6228 = vadd.f32 %v6217, 1.0
      %v6229 = vadd.f32 %v6219, 1.0
      %v6230 = vadd.f32 %v6221, 1.0
      %v6231 = vadd.f32 %v6223, 1.0
      %v6232 = vrcp.pop %v6224
      %v6233 = vmul.f32 1.0, %v6232
      %v6234 = vrcp.pop %v6225
      %v6235 = vmul.f32 1.0, %v6234
      %v6236 = vrcp.pop %v6226
      %v6237 = vmul.f32 1.0, %v6236
      %v6238 = vrcp.pop %v6227
      %v6239 = vmul.f32 1.0, %v6238
      %v6240 = vrcp.pop %v6228
      %v6241 = vmul.f32 1.0, %v6240
      %v6242 = vrcp.pop %v6229
      %v6243 = vmul.f32 1.0, %v6242
      %v6244 = vrcp.pop %v6230
      %v6245 = vmul.f32 1.0, %v6244
      %v6246 = vrcp.pop %v6231
      %v6247 = vmul.f32 1.0, %v6246
      %v6248 = vmul.f32 %v606, %v6233
      %v6249 = vmul.f32 %v607, %v6235
      %v6250 = vmul.f32 %v608, %v6237
      %v6251 = vmul.f32 %v609, %v6239
      %v6252 = vmul.f32 %v610, %v6241
      %v6253 = vmul.f32 %v611, %v6243
      %v6254 = vmul.f32 %v612, %v6245
      %v6255 = vmul.f32 %v613, %v6247
      %v6264 = vrot.slane %v6248, 1
      %v6265 = vrot.slane %v6248, 2
      %v6266 = vrot.slane %v6248, 3
      %v6267 = vrot.slane %v6248, 4
      %v6268 = vrot.slane %v6248, 5
      %v6269 = vrot.slane %v6248, 6
      %v6270 = vrot.slane %v6248, 7
      %v6271 = vrot.slane %v6249, 1
      %v6272 = vrot.slane %v6249, 2
      %v6273 = vrot.slane %v6249, 3
      %v6274 = vrot.slane %v6249, 4
      %v6275 = vrot.slane %v6249, 5
      %v6276 = vrot.slane %v6249, 6
      %v6277 = vrot.slane %v6249, 7
      %v6278 = vrot.slane %v6250, 1
      %v6279 = vrot.slane %v6250, 2
      %v6280 = vrot.slane %v6250, 3
      %v6281 = vrot.slane %v6250, 4
      %v6282 = vrot.slane %v6250, 5
      %v6283 = vrot.slane %v6250, 6
      %v6284 = vrot.slane %v6250, 7
      %v6285 = vrot.slane %v6251, 1
      %v6286 = vrot.slane %v6251, 2
      %v6287 = vrot.slane %v6251, 3
      %v6288 = vrot.slane %v6251, 4
      %v6289 = vrot.slane %v6251, 5
      %v6290 = vrot.slane %v6251, 6
      %v6291 = vrot.slane %v6251, 7
      %v6292 = vrot.slane %v6252, 1
      %v6293 = vrot.slane %v6252, 2
      %v6294 = vrot.slane %v6252, 3
      %v6295 = vrot.slane %v6252, 4
      %v6296 = vrot.slane %v6252, 5
      %v6297 = vrot.slane %v6252, 6
      %v6298 = vrot.slane %v6252, 7
      %v6299 = vrot.slane %v6253, 1
      %v6300 = vrot.slane %v6253, 2
      %v6301 = vrot.slane %v6253, 3
      %v6302 = vrot.slane %v6253, 4
      %v6303 = vrot.slane %v6253, 5
      %v6304 = vrot.slane %v6253, 6
      %v6305 = vrot.slane %v6253, 7
      %v6306 = vrot.slane %v6254, 1
      %v6307 = vrot.slane %v6254, 2
      %v6308 = vrot.slane %v6254, 3
      %v6309 = vrot.slane %v6254, 4
      %v6310 = vrot.slane %v6254, 5
      %v6311 = vrot.slane %v6254, 6
      %v6312 = vrot.slane %v6254, 7
      %v6313 = vrot.slane %v6255, 1
      %v6314 = vrot.slane %v6255, 2
      %v6315 = vrot.slane %v6255, 3
      %v6316 = vrot.slane %v6255, 4
      %v6317 = vrot.slane %v6255, 5
      %v6318 = vrot.slane %v6255, 6
      %v6319 = vrot.slane %v6255, 7
      %v6384 = vmul.f32 %v6136, %v6248
      %v6385 = vmul.f32 %v6137, %v6264
      %v6386 = vmul.f32 %v6138, %v6265
      %v6387 = vmul.f32 %v6139, %v6266
      %v6388 = vmul.f32 %v6140, %v6267
      %v6389 = vmul.f32 %v6141, %v6268
      %v6390 = vmul.f32 %v6142, %v6269
      %v6391 = vmul.f32 %v6143, %v6270
      %v6392 = vmul.f32 %v6144, %v6249
      %v6393 = vmul.f32 %v6145, %v6271
      %v6394 = vmul.f32 %v6146, %v6272
      %v6395 = vmul.f32 %v6147, %v6273
      %v6396 = vmul.f32 %v6148, %v6274
      %v6397 = vmul.f32 %v6149, %v6275
      %v6398 = vmul.f32 %v6150, %v6276
      %v6399 = vmul.f32 %v6151, %v6277
      %v6400 = vmul.f32 %v6152, %v6250
      %v6401 = vmul.f32 %v6153, %v6278
      %v6402 = vmul.f32 %v6154, %v6279
      %v6403 = vmul.f32 %v6155, %v6280
      %v6404 = vmul.f32 %v6156, %v6281
      %v6405 = vmul.f32 %v6157, %v6282
      %v6406 = vmul.f32 %v6158, %v6283
      %v6407 = vmul.f32 %v6159, %v6284
      %v6408 = vmul.f32 %v6160, %v6251
      %v6409 = vmul.f32 %v6161, %v6285
      %v6410 = vmul.f32 %v6162, %v6286
      %v6411 = vmul.f32 %v6163, %v6287
      %v6412 = vmul.f32 %v6164, %v6288
      %v6413 = vmul.f32 %v6165, %v6289
      %v6414 = vmul.f32 %v6166, %v6290
      %v6415 = vmul.f32 %v6167, %v6291
      %v6416 = vmul.f32 %v6168, %v6252
      %v6417 = vmul.f32 %v6169, %v6292
      %v6418 = vmul.f32 %v6170, %v6293
      %v6419 = vmul.f32 %v6171, %v6294
      %v6420 = vmul.f32 %v6172, %v6295
      %v6421 = vmul.f32 %v6173, %v6296
      %v6422 = vmul.f32 %v6174, %v6297
      %v6423 = vmul.f32 %v6175, %v6298
      %v6424 = vmul.f32 %v6176, %v6253
      %v6425 = vmul.f32 %v6177, %v6299
      %v6426 = vmul.f32 %v6178, %v6300
      %v6427 = vmul.f32 %v6179, %v6301
      %v6428 = vmul.f32 %v6180, %v6302
      %v6429 = vmul.f32 %v6181, %v6303
      %v6430 = vmul.f32 %v6182, %v6304
      %v6431 = vmul.f32 %v6183, %v6305
      %v6432 = vmul.f32 %v6184, %v6254
      %v6433 = vmul.f32 %v6185, %v6306
      %v6434 = vmul.f32 %v6186, %v6307
      %v6435 = vmul.f32 %v6187, %v6308
      %v6436 = vmul.f32 %v6188, %v6309
      %v6437 = vmul.f32 %v6189, %v6310
      %v6438 = vmul.f32 %v6190, %v6311
      %v6439 = vmul.f32 %v6191, %v6312
      %v6440 = vmul.f32 %v6192, %v6255
      %v6441 = vmul.f32 %v6193, %v6313
      %v6442 = vmul.f32 %v6194, %v6314
      %v6443 = vmul.f32 %v6195, %v6315
      %v6444 = vmul.f32 %v6196, %v6316
      %v6445 = vmul.f32 %v6197, %v6317
      %v6446 = vmul.f32 %v6198, %v6318
      %v6447 = vmul.f32 %v6199, %v6319
      %v6448 = vpack.c.bf16 %v6384, %v6384
      %v6449 = vpack.c.bf16 %v6385, %v6385
      %v6450 = vpack.c.bf16 %v6386, %v6386
      %v6451 = vpack.c.bf16 %v6387, %v6387
      %v6452 = vpack.c.bf16 %v6388, %v6388
      %v6453 = vpack.c.bf16 %v6389, %v6389
      %v6454 = vpack.c.bf16 %v6390, %v6390
      %v6455 = vpack.c.bf16 %v6391, %v6391
      %v6456 = vpack.c.bf16 %v6392, %v6392
      %v6457 = vpack.c.bf16 %v6393, %v6393
      %v6458 = vpack.c.bf16 %v6394, %v6394
      %v6459 = vpack.c.bf16 %v6395, %v6395
      %v6460 = vpack.c.bf16 %v6396, %v6396
      %v6461 = vpack.c.bf16 %v6397, %v6397
      %v6462 = vpack.c.bf16 %v6398, %v6398
      %v6463 = vpack.c.bf16 %v6399, %v6399
      %v6464 = vpack.c.bf16 %v6400, %v6400
      %v6465 = vpack.c.bf16 %v6401, %v6401
      %v6466 = vpack.c.bf16 %v6402, %v6402
      %v6467 = vpack.c.bf16 %v6403, %v6403
      %v6468 = vpack.c.bf16 %v6404, %v6404
      %v6469 = vpack.c.bf16 %v6405, %v6405
      %v6470 = vpack.c.bf16 %v6406, %v6406
      %v6471 = vpack.c.bf16 %v6407, %v6407
      %v6472 = vpack.c.bf16 %v6408, %v6408
      %v6473 = vpack.c.bf16 %v6409, %v6409
      %v6474 = vpack.c.bf16 %v6410, %v6410
      %v6475 = vpack.c.bf16 %v6411, %v6411
      %v6476 = vpack.c.bf16 %v6412, %v6412
      %v6477 = vpack.c.bf16 %v6413, %v6413
      %v6478 = vpack.c.bf16 %v6414, %v6414
      %v6479 = vpack.c.bf16 %v6415, %v6415
      %v6480 = vpack.c.bf16 %v6416, %v6416
      %v6481 = vpack.c.bf16 %v6417, %v6417
      %v6482 = vpack.c.bf16 %v6418, %v6418
      %v6483 = vpack.c.bf16 %v6419, %v6419
      %v6484 = vpack.c.bf16 %v6420, %v6420
      %v6485 = vpack.c.bf16 %v6421, %v6421
      %v6486 = vpack.c.bf16 %v6422, %v6422
      %v6487 = vpack.c.bf16 %v6423, %v6423
      %v6488 = vpack.c.bf16 %v6424, %v6424
      %v6489 = vpack.c.bf16 %v6425, %v6425
      %v6490 = vpack.c.bf16 %v6426, %v6426
      %v6491 = vpack.c.bf16 %v6427, %v6427
      %v6492 = vpack.c.bf16 %v6428, %v6428
      %v6493 = vpack.c.bf16 %v6429, %v6429
      %v6494 = vpack.c.bf16 %v6430, %v6430
      %v6495 = vpack.c.bf16 %v6431, %v6431
      %v6496 = vpack.c.bf16 %v6432, %v6432
      %v6497 = vpack.c.bf16 %v6433, %v6433
      %v6498 = vpack.c.bf16 %v6434, %v6434
      %v6499 = vpack.c.bf16 %v6435, %v6435
      %v6500 = vpack.c.bf16 %v6436, %v6436
      %v6501 = vpack.c.bf16 %v6437, %v6437
      %v6502 = vpack.c.bf16 %v6438, %v6438
      %v6503 = vpack.c.bf16 %v6439, %v6439
      %v6504 = vpack.c.bf16 %v6440, %v6440
      %v6505 = vpack.c.bf16 %v6441, %v6441
      %v6506 = vpack.c.bf16 %v6442, %v6442
      %v6507 = vpack.c.bf16 %v6443, %v6443
      %v6508 = vpack.c.bf16 %v6444, %v6444
      %v6509 = vpack.c.bf16 %v6445, %v6445
      %v6510 = vpack.c.bf16 %v6446, %v6446
      %v6511 = vpack.c.bf16 %v6447, %v6447
      %v6576 = vunpack.c.l.b16 %v6448
      %v6577 = vunpack.c.l.b16 %v6449
      %v6578 = vunpack.c.l.b16 %v6450
      %v6579 = vunpack.c.l.b16 %v6451
      %v6580 = vunpack.c.l.b16 %v6452
      %v6581 = vunpack.c.l.b16 %v6453
      %v6582 = vunpack.c.l.b16 %v6454
      %v6583 = vunpack.c.l.b16 %v6455
      %v6584 = vunpack.c.l.b16 %v6456
      %v6585 = vunpack.c.l.b16 %v6457
      %v6586 = vunpack.c.l.b16 %v6458
      %v6587 = vunpack.c.l.b16 %v6459
      %v6588 = vunpack.c.l.b16 %v6460
      %v6589 = vunpack.c.l.b16 %v6461
      %v6590 = vunpack.c.l.b16 %v6462
      %v6591 = vunpack.c.l.b16 %v6463
      %v6592 = vunpack.c.l.b16 %v6464
      %v6593 = vunpack.c.l.b16 %v6465
      %v6594 = vunpack.c.l.b16 %v6466
      %v6595 = vunpack.c.l.b16 %v6467
      %v6596 = vunpack.c.l.b16 %v6468
      %v6597 = vunpack.c.l.b16 %v6469
      %v6598 = vunpack.c.l.b16 %v6470
      %v6599 = vunpack.c.l.b16 %v6471
      %v6600 = vunpack.c.l.b16 %v6472
      %v6601 = vunpack.c.l.b16 %v6473
      %v6602 = vunpack.c.l.b16 %v6474
      %v6603 = vunpack.c.l.b16 %v6475
      %v6604 = vunpack.c.l.b16 %v6476
      %v6605 = vunpack.c.l.b16 %v6477
      %v6606 = vunpack.c.l.b16 %v6478
      %v6607 = vunpack.c.l.b16 %v6479
      %v6608 = vunpack.c.l.b16 %v6480
      %v6609 = vunpack.c.l.b16 %v6481
      %v6610 = vunpack.c.l.b16 %v6482
      %v6611 = vunpack.c.l.b16 %v6483
      %v6612 = vunpack.c.l.b16 %v6484
      %v6613 = vunpack.c.l.b16 %v6485
      %v6614 = vunpack.c.l.b16 %v6486
      %v6615 = vunpack.c.l.b16 %v6487
      %v6616 = vunpack.c.l.b16 %v6488
      %v6617 = vunpack.c.l.b16 %v6489
      %v6618 = vunpack.c.l.b16 %v6490
      %v6619 = vunpack.c.l.b16 %v6491
      %v6620 = vunpack.c.l.b16 %v6492
      %v6621 = vunpack.c.l.b16 %v6493
      %v6622 = vunpack.c.l.b16 %v6494
      %v6623 = vunpack.c.l.b16 %v6495
      %v6624 = vunpack.c.l.b16 %v6496
      %v6625 = vunpack.c.l.b16 %v6497
      %v6626 = vunpack.c.l.b16 %v6498
      %v6627 = vunpack.c.l.b16 %v6499
      %v6628 = vunpack.c.l.b16 %v6500
      %v6629 = vunpack.c.l.b16 %v6501
      %v6630 = vunpack.c.l.b16 %v6502
      %v6631 = vunpack.c.l.b16 %v6503
      %v6632 = vunpack.c.l.b16 %v6504
      %v6633 = vunpack.c.l.b16 %v6505
      %v6634 = vunpack.c.l.b16 %v6506
      %v6635 = vunpack.c.l.b16 %v6507
      %v6636 = vunpack.c.l.b16 %v6508
      %v6637 = vunpack.c.l.b16 %v6509
      %v6638 = vunpack.c.l.b16 %v6510
      %v6639 = vunpack.c.l.b16 %v6511
      %v6640 = vpack.c.b16 %v6576, %v6576
      %v6641 = vpack.c.b16 %v6577, %v6577
      %v6642 = vpack.c.b16 %v6578, %v6578
      %v6643 = vpack.c.b16 %v6579, %v6579
      %v6644 = vpack.c.b16 %v6580, %v6580
      %v6645 = vpack.c.b16 %v6581, %v6581
      %v6646 = vpack.c.b16 %v6582, %v6582
      %v6647 = vpack.c.b16 %v6583, %v6583
      %v6648 = vpack.c.b16 %v6584, %v6584
      %v6649 = vpack.c.b16 %v6585, %v6585
      %v6650 = vpack.c.b16 %v6586, %v6586
      %v6651 = vpack.c.b16 %v6587, %v6587
      %v6652 = vpack.c.b16 %v6588, %v6588
      %v6653 = vpack.c.b16 %v6589, %v6589
      %v6654 = vpack.c.b16 %v6590, %v6590
      %v6655 = vpack.c.b16 %v6591, %v6591
      %v6656 = vpack.c.b16 %v6592, %v6592
      %v6657 = vpack.c.b16 %v6593, %v6593
      %v6658 = vpack.c.b16 %v6594, %v6594
      %v6659 = vpack.c.b16 %v6595, %v6595
      %v6660 = vpack.c.b16 %v6596, %v6596
      %v6661 = vpack.c.b16 %v6597, %v6597
      %v6662 = vpack.c.b16 %v6598, %v6598
      %v6663 = vpack.c.b16 %v6599, %v6599
      %v6664 = vpack.c.b16 %v6600, %v6600
      %v6665 = vpack.c.b16 %v6601, %v6601
      %v6666 = vpack.c.b16 %v6602, %v6602
      %v6667 = vpack.c.b16 %v6603, %v6603
      %v6668 = vpack.c.b16 %v6604, %v6604
      %v6669 = vpack.c.b16 %v6605, %v6605
      %v6670 = vpack.c.b16 %v6606, %v6606
      %v6671 = vpack.c.b16 %v6607, %v6607
      %v6672 = vpack.c.b16 %v6608, %v6608
      %v6673 = vpack.c.b16 %v6609, %v6609
      %v6674 = vpack.c.b16 %v6610, %v6610
      %v6675 = vpack.c.b16 %v6611, %v6611
      %v6676 = vpack.c.b16 %v6612, %v6612
      %v6677 = vpack.c.b16 %v6613, %v6613
      %v6678 = vpack.c.b16 %v6614, %v6614
      %v6679 = vpack.c.b16 %v6615, %v6615
      %v6680 = vpack.c.b16 %v6616, %v6616
      %v6681 = vpack.c.b16 %v6617, %v6617
      %v6682 = vpack.c.b16 %v6618, %v6618
      %v6683 = vpack.c.b16 %v6619, %v6619
      %v6684 = vpack.c.b16 %v6620, %v6620
      %v6685 = vpack.c.b16 %v6621, %v6621
      %v6686 = vpack.c.b16 %v6622, %v6622
      %v6687 = vpack.c.b16 %v6623, %v6623
      %v6688 = vpack.c.b16 %v6624, %v6624
      %v6689 = vpack.c.b16 %v6625, %v6625
      %v6690 = vpack.c.b16 %v6626, %v6626
      %v6691 = vpack.c.b16 %v6627, %v6627
      %v6692 = vpack.c.b16 %v6628, %v6628
      %v6693 = vpack.c.b16 %v6629, %v6629
      %v6694 = vpack.c.b16 %v6630, %v6630
      %v6695 = vpack.c.b16 %v6631, %v6631
      %v6696 = vpack.c.b16 %v6632, %v6632
      %v6697 = vpack.c.b16 %v6633, %v6633
      %v6698 = vpack.c.b16 %v6634, %v6634
      %v6699 = vpack.c.b16 %v6635, %v6635
      %v6700 = vpack.c.b16 %v6636, %v6636
      %v6701 = vpack.c.b16 %v6637, %v6637
      %v6702 = vpack.c.b16 %v6638, %v6638
      %v6703 = vpack.c.b16 %v6639, %v6639
      %v6704 = vunpack.c.l.b16 %v6640
      %v6705 = vunpack.c.l.b16 %v6641
      %v6706 = vunpack.c.l.b16 %v6642
      %v6707 = vunpack.c.l.b16 %v6643
      %v6708 = vunpack.c.l.b16 %v6644
      %v6709 = vunpack.c.l.b16 %v6645
      %v6710 = vunpack.c.l.b16 %v6646
      %v6711 = vunpack.c.l.b16 %v6647
      %v6712 = vunpack.c.l.b16 %v6648
      %v6713 = vunpack.c.l.b16 %v6649
      %v6714 = vunpack.c.l.b16 %v6650
      %v6715 = vunpack.c.l.b16 %v6651
      %v6716 = vunpack.c.l.b16 %v6652
      %v6717 = vunpack.c.l.b16 %v6653
      %v6718 = vunpack.c.l.b16 %v6654
      %v6719 = vunpack.c.l.b16 %v6655
      %v6720 = vunpack.c.l.b16 %v6656
      %v6721 = vunpack.c.l.b16 %v6657
      %v6722 = vunpack.c.l.b16 %v6658
      %v6723 = vunpack.c.l.b16 %v6659
      %v6724 = vunpack.c.l.b16 %v6660
      %v6725 = vunpack.c.l.b16 %v6661
      %v6726 = vunpack.c.l.b16 %v6662
      %v6727 = vunpack.c.l.b16 %v6663
      %v6728 = vunpack.c.l.b16 %v6664
      %v6729 = vunpack.c.l.b16 %v6665
      %v6730 = vunpack.c.l.b16 %v6666
      %v6731 = vunpack.c.l.b16 %v6667
      %v6732 = vunpack.c.l.b16 %v6668
      %v6733 = vunpack.c.l.b16 %v6669
      %v6734 = vunpack.c.l.b16 %v6670
      %v6735 = vunpack.c.l.b16 %v6671
      %v6736 = vunpack.c.l.b16 %v6672
      %v6737 = vunpack.c.l.b16 %v6673
      %v6738 = vunpack.c.l.b16 %v6674
      %v6739 = vunpack.c.l.b16 %v6675
      %v6740 = vunpack.c.l.b16 %v6676
      %v6741 = vunpack.c.l.b16 %v6677
      %v6742 = vunpack.c.l.b16 %v6678
      %v6743 = vunpack.c.l.b16 %v6679
      %v6744 = vunpack.c.l.b16 %v6680
      %v6745 = vunpack.c.l.b16 %v6681
      %v6746 = vunpack.c.l.b16 %v6682
      %v6747 = vunpack.c.l.b16 %v6683
      %v6748 = vunpack.c.l.b16 %v6684
      %v6749 = vunpack.c.l.b16 %v6685
      %v6750 = vunpack.c.l.b16 %v6686
      %v6751 = vunpack.c.l.b16 %v6687
      %v6752 = vunpack.c.l.b16 %v6688
      %v6753 = vunpack.c.l.b16 %v6689
      %v6754 = vunpack.c.l.b16 %v6690
      %v6755 = vunpack.c.l.b16 %v6691
      %v6756 = vunpack.c.l.b16 %v6692
      %v6757 = vunpack.c.l.b16 %v6693
      %v6758 = vunpack.c.l.b16 %v6694
      %v6759 = vunpack.c.l.b16 %v6695
      %v6760 = vunpack.c.l.b16 %v6696
      %v6761 = vunpack.c.l.b16 %v6697
      %v6762 = vunpack.c.l.b16 %v6698
      %v6763 = vunpack.c.l.b16 %v6699
      %v6764 = vunpack.c.l.b16 %v6700
      %v6765 = vunpack.c.l.b16 %v6701
      %v6766 = vunpack.c.l.b16 %v6702
      %v6767 = vunpack.c.l.b16 %v6703
      %v6768 = vrot.slane %v6705, 7
      %vm6769 = vcmask 1041409
      %v6770 = vsel %vm6769, %v6768, %v6704
      %v6771 = vrot.slane %v6706, 6
      %vm6772 = vcmask 1042434
      %v6773 = vsel %vm6772, %v6771, %v6770
      %v6774 = vrot.slane %v6707, 5
      %vm6775 = vcmask 1043459
      %v6776 = vsel %vm6775, %v6774, %v6773
      %v6777 = vrot.slane %v6708, 4
      %vm6778 = vcmask 1044484
      %v6779 = vsel %vm6778, %v6777, %v6776
      %v6780 = vrot.slane %v6709, 3
      %vm6781 = vcmask 1045509
      %v6782 = vsel %vm6781, %v6780, %v6779
      %v6783 = vrot.slane %v6710, 2
      %vm6784 = vcmask 1046534
      %v6785 = vsel %vm6784, %v6783, %v6782
      %v6786 = vrot.slane %v6711, 1
      %vm6787 = vcmask 1047559
      %v6788 = vsel %vm6787, %v6786, %v6785
      %v6789 = vrot.slane %v6713, 7
      %v6790 = vsel %vm6769, %v6789, %v6712
      %v6791 = vrot.slane %v6714, 6
      %v6792 = vsel %vm6772, %v6791, %v6790
      %v6793 = vrot.slane %v6715, 5
      %v6794 = vsel %vm6775, %v6793, %v6792
      %v6795 = vrot.slane %v6716, 4
      %v6796 = vsel %vm6778, %v6795, %v6794
      %v6797 = vrot.slane %v6717, 3
      %v6798 = vsel %vm6781, %v6797, %v6796
      %v6799 = vrot.slane %v6718, 2
      %v6800 = vsel %vm6784, %v6799, %v6798
      %v6801 = vrot.slane %v6719, 1
      %v6802 = vsel %vm6787, %v6801, %v6800
      %v6803 = vrot.slane %v6721, 7
      %v6804 = vsel %vm6769, %v6803, %v6720
      %v6805 = vrot.slane %v6722, 6
      %v6806 = vsel %vm6772, %v6805, %v6804
      %v6807 = vrot.slane %v6723, 5
      %v6808 = vsel %vm6775, %v6807, %v6806
      %v6809 = vrot.slane %v6724, 4
      %v6810 = vsel %vm6778, %v6809, %v6808
      %v6811 = vrot.slane %v6725, 3
      %v6812 = vsel %vm6781, %v6811, %v6810
      %v6813 = vrot.slane %v6726, 2
      %v6814 = vsel %vm6784, %v6813, %v6812
      %v6815 = vrot.slane %v6727, 1
      %v6816 = vsel %vm6787, %v6815, %v6814
      %v6817 = vrot.slane %v6729, 7
      %v6818 = vsel %vm6769, %v6817, %v6728
      %v6819 = vrot.slane %v6730, 6
      %v6820 = vsel %vm6772, %v6819, %v6818
      %v6821 = vrot.slane %v6731, 5
      %v6822 = vsel %vm6775, %v6821, %v6820
      %v6823 = vrot.slane %v6732, 4
      %v6824 = vsel %vm6778, %v6823, %v6822
      %v6825 = vrot.slane %v6733, 3
      %v6826 = vsel %vm6781, %v6825, %v6824
      %v6827 = vrot.slane %v6734, 2
      %v6828 = vsel %vm6784, %v6827, %v6826
      %v6829 = vrot.slane %v6735, 1
      %v6830 = vsel %vm6787, %v6829, %v6828
      %v6831 = vrot.slane %v6737, 7
      %v6832 = vsel %vm6769, %v6831, %v6736
      %v6833 = vrot.slane %v6738, 6
      %v6834 = vsel %vm6772, %v6833, %v6832
      %v6835 = vrot.slane %v6739, 5
      %v6836 = vsel %vm6775, %v6835, %v6834
      %v6837 = vrot.slane %v6740, 4
      %v6838 = vsel %vm6778, %v6837, %v6836
      %v6839 = vrot.slane %v6741, 3
      %v6840 = vsel %vm6781, %v6839, %v6838
      %v6841 = vrot.slane %v6742, 2
      %v6842 = vsel %vm6784, %v6841, %v6840
      %v6843 = vrot.slane %v6743, 1
      %v6844 = vsel %vm6787, %v6843, %v6842
      %v6845 = vrot.slane %v6745, 7
      %v6846 = vsel %vm6769, %v6845, %v6744
      %v6847 = vrot.slane %v6746, 6
      %v6848 = vsel %vm6772, %v6847, %v6846
      %v6849 = vrot.slane %v6747, 5
      %v6850 = vsel %vm6775, %v6849, %v6848
      %v6851 = vrot.slane %v6748, 4
      %v6852 = vsel %vm6778, %v6851, %v6850
      %v6853 = vrot.slane %v6749, 3
      %v6854 = vsel %vm6781, %v6853, %v6852
      %v6855 = vrot.slane %v6750, 2
      %v6856 = vsel %vm6784, %v6855, %v6854
      %v6857 = vrot.slane %v6751, 1
      %v6858 = vsel %vm6787, %v6857, %v6856
      %v6859 = vrot.slane %v6753, 7
      %v6860 = vsel %vm6769, %v6859, %v6752
      %v6861 = vrot.slane %v6754, 6
      %v6862 = vsel %vm6772, %v6861, %v6860
      %v6863 = vrot.slane %v6755, 5
      %v6864 = vsel %vm6775, %v6863, %v6862
      %v6865 = vrot.slane %v6756, 4
      %v6866 = vsel %vm6778, %v6865, %v6864
      %v6867 = vrot.slane %v6757, 3
      %v6868 = vsel %vm6781, %v6867, %v6866
      %v6869 = vrot.slane %v6758, 2
      %v6870 = vsel %vm6784, %v6869, %v6868
      %v6871 = vrot.slane %v6759, 1
      %v6872 = vsel %vm6787, %v6871, %v6870
      %v6873 = vrot.slane %v6761, 7
      %v6874 = vsel %vm6769, %v6873, %v6760
      %v6875 = vrot.slane %v6762, 6
      %v6876 = vsel %vm6772, %v6875, %v6874
      %v6877 = vrot.slane %v6763, 5
      %v6878 = vsel %vm6775, %v6877, %v6876
      %v6879 = vrot.slane %v6764, 4
      %v6880 = vsel %vm6778, %v6879, %v6878
      %v6881 = vrot.slane %v6765, 3
      %v6882 = vsel %vm6781, %v6881, %v6880
      %v6883 = vrot.slane %v6766, 2
      %v6884 = vsel %vm6784, %v6883, %v6882
      %v6885 = vrot.slane %v6767, 1
      %v6886 = vsel %vm6787, %v6885, %v6884
      %v6887 = vpack.c.b16 %v6788, %v6788
      %v6888 = vpack.c.b16 %v6802, %v6802
      %v6889 = vpack.c.b16 %v6816, %v6816
      %v6890 = vpack.c.b16 %v6830, %v6830
      %v6891 = vpack.c.b16 %v6844, %v6844
      %v6892 = vpack.c.b16 %v6858, %v6858
      %v6893 = vpack.c.b16 %v6872, %v6872
      %v6894 = vpack.c.b16 %v6886, %v6886
      %vm6903 = vcmask 257024
      %6904 = vst.msk [vmem:[%s564] sm:$0xf] %vm6903, %v6887
      %6905 = vst.msk [vmem:[%s564 + $0x4] sm:$0xf] %vm6903, %v6888
      %6906 = vst.msk [vmem:[%s564 + $0x8] sm:$0xf] %vm6903, %v6889
      %6907 = vst.msk [vmem:[%s564 + $0xc] sm:$0xf] %vm6903, %v6890
      %6908 = vst.msk [vmem:[%s564 + $0x10] sm:$0xf] %vm6903, %v6891
      %6909 = vst.msk [vmem:[%s564 + $0x14] sm:$0xf] %vm6903, %v6892
      %6910 = vst.msk [vmem:[%s564 + $0x18] sm:$0xf] %vm6903, %v6893
      %6911 = vst.msk [vmem:[%s564 + $0x1c] sm:$0xf] %vm6903, %v6894
      %s6912 = smul.u32 8, %s27
      %p6913 = scmp.lt.s32.totalorder %s25, 2
      %s6914 = scalar_select %p6913, %s25, 2
      %p6915 = scmp.lt.s32.totalorder %s26, 1
      %s6916 = scalar_select %p6915, %s26, 1
      %p6917 = scmp.lt.s32.totalorder %s6912, 7
      %s6918 = scalar_select %p6917, %s6912, 7
      %s6919 = smul.addr %s6916, 8
      %s6920 = sadd.s32 %s6918, %s6919
      %s6921 = smul.addr %s6914, 16
      %s6922 = sadd.s32 %s6920, %s6921
      %s6923 = smul.addr %s6922, 4
      %s6924 = scalar_lea.vmem %s9, %s6923
      // Predicated region
      $region68: #{tri_window_mamba_forward.4} parent=55 // pred_check
        %p6925 = pneg %p303
      $region69: #{tri_window_mamba_forward.4} parent=55 // pred_check_branch
        %6927 = sbr.rel (%p6925) target = $region71
      $region70: #{tri_window_mamba_forward.4} parent=55 // pred_region
        %s6928 = smul.u32 8, %s27
      $region71: #{tri_window_mamba_forward.4} parent=55 // pred_fallthru
        _
    $region56: #{tri_window_mamba_forward.4} parent=5 // pred_fallthru
      _
    %p6929 = scmp.le.s32.totalorder 2, %s15
    // Predicated region
    $region72: #{tri_window_mamba_forward.4} parent=5 // pred_check
      %p6930 = pneg %p6929
    $region73: #{tri_window_mamba_forward.4} parent=5 // pred_check_branch
      %6932 = sbr.rel (%p6930) target = $region75
    $region74: #{tri_window_mamba_forward.4} parent=5 // pred_region
      %s6933 = ssub.s32 %s15, 2
      // Predicated region
      $region76: #{tri_window_mamba_forward.4} parent=74 // pred_check
        %p6934 = pneg %p309
      $region77: #{tri_window_mamba_forward.4} parent=74 // pred_check_branch
        %6936 = sbr.rel (%p6934) target = $region79
      $region78: #{tri_window_mamba_forward.4} parent=74 // pred_region
        %s6937 = smul.u32 8, %s30
        %p6938 = scmp.lt.s32.totalorder %s28, 2
        %s6939 = scalar_select %p6938, %s28, 2
        %p6940 = scmp.lt.s32.totalorder %s29, 1
        %s6941 = scalar_select %p6940, %s29, 1
        %p6942 = scmp.lt.s32.totalorder %s6937, 7
        %s6943 = scalar_select %p6942, %s6937, 7
        %s6944 = smul.addr %s6941, 8
        %s6945 = sadd.s32 %s6943, %s6944
        %s6946 = smul.addr %s6939, 16
        %s6947 = sadd.s32 %s6945, %s6946
        %s6948 = smul.addr %s6947, 4
        %s6949 = scalar_lea.vmem %s9, %s6948
      $region79: #{tri_window_mamba_forward.4} parent=74 // pred_fallthru
        _
    $region75: #{tri_window_mamba_forward.4} parent=5 // pred_fallthru
      _
  $region6: #{tri_window_mamba_forward.4} parent=0 // loop_footer
    %s19 = sadd.s32 1, %s15
  $region7: #{tri_window_mamba_forward.4} parent=0 // loop_footer_branch
    %14 = sbr.rel target = $region3
  $region8: #{tri_window_mamba_forward.4} parent=0 // loop_exit
    _

</llo_original>
